<compile_context>
chip_gen: v7x
topology: tpu7x:2x2x1
jax: 0.10.0
libtpu: 0.0.40
codegen_flags: <defaults>
</compile_context>

<pallas_src>
import functools

import jax
import jax.numpy as jnp
from jax import lax
from jax.experimental import pallas as pl
from jax.experimental.pallas import tpu as pltpu

CP = 128  # padded channel width = TPU lane count


# ---------------------------------------------------------------------------
# Fused conv + bias + ReLU + 2x2 maxpool kernel (one batch element / grid step)
# ---------------------------------------------------------------------------
def _conv_pool_kernel(x_ref, w_ref, b_ref, o_ref, band_ref, *,
                      kh, kw, W, oh, ow, cin, out_pad):
    """x_ref:   (H*W + kw - 1, cin)    flattened-spatial input (+ zero rows)
       w_ref:   (kh*kw*cin, CP)        weights, row = (i*kw + j)*cin + ci
       b_ref:   (1, CP)                bias (zero-padded channels)
       o_ref:   (ph*pw + out_pad, CP)  pooled output, row = po*pw + pwi
       band_ref: VMEM scratch (2*W, CP) holding two conv output rows."""
    cp = w_ref.shape[1]
    ow2 = ow // 2
    ph = oh // 2
    # Bias broadcast hoisted out of the band loop (JAX does not CSE broadcasts).
    bias = jnp.broadcast_to(b_ref[...], (ow2, cp))

    def band_body(band, carry):
        base = band * (2 * W)
        # Two adjacent conv output rows as a sum of kh*kw shifted matmuls.
        acc = jnp.zeros((2 * W, cp), jnp.float32)
        for i in range(kh):
            for j in range(kw):
                tap = x_ref[pl.ds(base + i * W + j, 2 * W), :]
                wt = w_ref[pl.ds((i * kw + j) * cin, cin), :]
                acc = acc + jnp.dot(tap, wt,
                                    preferred_element_type=jnp.float32)
        # Columns ow..W-1 of each conv row are wrap-around garbage; they are
        # never read below (only even/odd columns < ow are extracted).
        band_ref[...] = acc
        # Fused 2x2 max-pool via stride-2 sublane reads, then bias + ReLU.
        t00 = band_ref[pl.ds(0, ow2, 2), :]
        t01 = band_ref[pl.ds(1, ow2, 2), :]
        t10 = band_ref[pl.ds(W, ow2, 2), :]
        t11 = band_ref[pl.ds(W + 1, ow2, 2), :]
        m = jnp.maximum(jnp.maximum(t00, t01), jnp.maximum(t10, t11))
        o_ref[pl.ds(band * ow2, ow2), :] = jnp.maximum(m + bias, 0.0)
        return carry

    lax.fori_loop(0, ph, band_body, 0)

    if out_pad:  # zero rows consumed only by the next conv's shifted windows
        o_ref[ph * ow2:ph * ow2 + out_pad, :] = jnp.zeros((out_pad, cp),
                                                          jnp.float32)


def conv_pool(x, w, b, *, H, W, cin, kh, kw, out_pad):
    """x: (N, H*W + kw - 1, cin) -> (N, (oh//2)*(ow//2) + out_pad, CP)."""
    N, rows_in, _ = x.shape
    oh, ow = H - kh + 1, W - kw + 1
    rows_out = (oh // 2) * (ow // 2) + out_pad
    cp = w.shape[1]
    kern = functools.partial(_conv_pool_kernel, kh=kh, kw=kw, W=W,
                             oh=oh, ow=ow, cin=cin, out_pad=out_pad)
    return pl.pallas_call(
        kern,
        out_shape=jax.ShapeDtypeStruct((N, rows_out, cp), jnp.float32),
        grid=(N,),
        in_specs=[
            pl.BlockSpec((None, rows_in, cin), lambda n: (n, 0, 0)),
            pl.BlockSpec((kh * kw * cin, cp), lambda n: (0, 0)),
            pl.BlockSpec((1, cp), lambda n: (0, 0)),
        ],
        out_specs=pl.BlockSpec((None, rows_out, cp), lambda n: (n, 0, 0)),
        scratch_shapes=[pltpu.VMEM((2 * W, cp), jnp.float32)],
        compiler_params=pltpu.CompilerParams(
            dimension_semantics=("parallel",)),
    )(x, w, b)


# ---------------------------------------------------------------------------
# Fused fc1 + ReLU + fc2 + ReLU + fc3 kernel
# ---------------------------------------------------------------------------
def _fc_fused_kernel(x_ref, w1_ref, b1_ref, w2_ref, b2_ref, w3_ref, b3_ref,
                     o_ref):
    h = jnp.dot(x_ref[...], w1_ref[...], preferred_element_type=jnp.float32)
    h = jnp.maximum(h + b1_ref[...], 0.0)
    h = jnp.dot(h, w2_ref[...], preferred_element_type=jnp.float32)
    h = jnp.maximum(h + b2_ref[...], 0.0)
    h = jnp.dot(h, w3_ref[...], preferred_element_type=jnp.float32)
    o_ref[...] = (h + b3_ref[...]).astype(o_ref.dtype)


def fc_fused(x, w1, b1, w2, b2, w3, b3):
    M, K = x.shape
    n_out = w3.shape[1]
    bm = min(M, 256)  # row-tile so large batches stay within VMEM (v7x: 64 MiB)
    return pl.pallas_call(
        _fc_fused_kernel,
        out_shape=jax.ShapeDtypeStruct((M, n_out), jnp.float32),
        grid=(pl.cdiv(M, bm),),
        in_specs=[
            pl.BlockSpec((bm, K), lambda m: (m, 0)),
            pl.BlockSpec(w1.shape, lambda m: (0, 0)),
            pl.BlockSpec(b1.shape, lambda m: (0, 0)),
            pl.BlockSpec(w2.shape, lambda m: (0, 0)),
            pl.BlockSpec(b2.shape, lambda m: (0, 0)),
            pl.BlockSpec(w3.shape, lambda m: (0, 0)),
            pl.BlockSpec(b3.shape, lambda m: (0, 0)),
        ],
        out_specs=pl.BlockSpec((bm, n_out), lambda m: (m, 0)),
        compiler_params=pltpu.CompilerParams(
            dimension_semantics=("parallel",)),
    )(x, w1, b1, w2, b2, w3, b3)


# ---------------------------------------------------------------------------
# One-time parameter re-layout (PyTorch shapes -> kernel-friendly slabs)
# ---------------------------------------------------------------------------
def prepare_params(p):
    """Conv weights -> (kh*kw*cin, 128) matmul matrices; fc1 rows permuted to
    accept the kernel's (spatial, channel) flatten order; every channel /
    feature dim zero-padded to 128 lanes.  Padded lanes stay exactly zero
    through the whole network, so the math equals the PyTorch reference."""
    f32 = jnp.float32

    # conv1: (6,3,5,5) -> (75, 128); rows ordered (i*5 + j)*3 + ci.
    c1 = jnp.transpose(p["conv1_w"], (2, 3, 1, 0)).reshape(25 * 3, 6)
    c1 = jnp.pad(c1, ((0, 0), (0, CP - 6))).astype(f32)
    c1b = jnp.pad(p["conv1_b"], (0, CP - 6)).reshape(1, CP).astype(f32)

    # conv2: (16,6,5,5) -> (25*128, 128); rows ordered (i*5 + j)*128 + ci.
    c2 = jnp.transpose(p["conv2_w"], (2, 3, 1, 0))                  # (5,5,6,16)
    c2 = jnp.pad(c2, ((0, 0), (0, 0), (0, CP - 6), (0, CP - 16)))
    c2 = c2.reshape(25 * CP, CP).astype(f32)
    c2b = jnp.pad(p["conv2_b"], (0, CP - 16)).reshape(1, CP).astype(f32)

    # fc1: (120, 400), PyTorch feature order c*25 + h*5 + w  ->
    # (25*128, 128) with kernel feature order (h*5 + w)*128 + c.
    f1 = p["fc1_w"].reshape(120, 16, 5, 5)
    f1 = jnp.transpose(f1, (2, 3, 1, 0)).reshape(25, 16, 120)       # (hw, c, k)
    f1 = jnp.pad(f1, ((0, 0), (0, CP - 16), (0, CP - 120)))
    f1 = f1.reshape(25 * CP, CP).astype(f32)
    f1b = jnp.pad(p["fc1_b"], (0, CP - 120)).reshape(1, CP).astype(f32)

    f2 = jnp.pad(p["fc2_w"].T, ((0, CP - 120), (0, CP - 84))).astype(f32)
    f2b = jnp.pad(p["fc2_b"], (0, CP - 84)).reshape(1, CP).astype(f32)

    f3 = jnp.pad(p["fc3_w"].T, ((0, CP - 84), (0, 0))).astype(f32)  # (128, 10)
    f3b = p["fc3_b"].reshape(1, 10).astype(f32)

    return dict(c1_w=c1, c1_b=c1b, c2_w=c2, c2_b=c2b,
                f1_w=f1, f1_b=f1b, f2_w=f2, f2_b=f2b, f3_w=f3, f3_b=f3b)


# ---------------------------------------------------------------------------
# LeNet forward
# ---------------------------------------------------------------------------
def lenet_forward(x_nchw, pp):
    n = x_nchw.shape[0]
    # Layout plumbing only: NCHW -> (N, H*W, C), plus kw-1 zero rows for the
    # shifted-window conv trick.  All compute runs inside the Pallas kernels.
    x = jnp.transpose(x_nchw, (0, 2, 3, 1)).astype(jnp.float32)     # (N,32,32,3)
    x = x.reshape(n, 32 * 32, 3)
    x = jnp.pad(x, ((0, 0), (0, 4), (0, 0)))                        # (N,1028,3)

    y = conv_pool(x, pp["c1_w"], pp["c1_b"], H=32, W=32, cin=3,
                  kh=5, kw=5, out_pad=4)                            # (N,200,128)
    y = conv_pool(y, pp["c2_w"], pp["c2_b"], H=14, W=14, cin=CP,
                  kh=5, kw=5, out_pad=0)                            # (N,25,128)

    feats = y.reshape(n, 25 * CP)                                   # free reshape
    return fc_fused(feats, pp["f1_w"], pp["f1_b"], pp["f2_w"], pp["f2_b"],
                    pp["f3_w"], pp["f3_b"])                         # (N, 10)


# ---------------------------------------------------------------------------
# Deterministic parameter init (PyTorch shapes; kaiming-style uniform bounds)
# ---------------------------------------------------------------------------
def init_params(key):
    def u(k, shape, fan_in):
        bound = 1.0 / jnp.sqrt(jnp.float32(fan_in))
        return jax.random.uniform(k, shape, jnp.float32, -bound, bound)

    ks = jax.random.split(key, 10)
    return {
        "conv1_w": u(ks[0], (6, 3, 5, 5), 3 * 5 * 5),
        "conv1_b": u(ks[1], (6,), 3 * 5 * 5),
        "conv2_w": u(ks[2], (16, 6, 5, 5), 6 * 5 * 5),
        "conv2_b": u(ks[3], (16,), 6 * 5 * 5),
        "fc1_w": u(ks[4], (120, 400), 400),
        "fc1_b": u(ks[5], (120,), 400),
        "fc2_w": u(ks[6], (84, 120), 120),
        "fc2_b": u(ks[7], (84,), 120),
        "fc3_w": u(ks[8], (10, 84), 84),
        "fc3_b": u(ks[9], (10,), 84),
    }


if __name__ == "__main__":
    key = jax.random.PRNGKey(0)
    pkey, xkey = jax.random.split(key)
    params = init_params(pkey)
    prepped = prepare_params(params)   # one-time weight re-layout / padding

    # LeNet's Flatten expects 16*5*5 features -> 32x32 spatial input (CIFAR-10).
    x = jax.random.normal(xkey, (2, 3, 32, 32), jnp.float32)

    out = jax.jit(lenet_forward)(x, prepped)
    out = jax.block_until_ready(out)
    assert out.shape == (2, 10) and out.dtype == jnp.float32
    print("KERNEL_OK")
</pallas_src>

<mosaic_0001>
module attributes {stable_mosaic.version = 11 : i64} {
  func.func @_conv_pool_kernel(%arg0: i32, %arg1: memref<1x200x128xf32, #tpu.memory_space<vmem>>, %arg2: memref<3200x128xf32, #tpu.memory_space<vmem>>, %arg3: memref<1x128xf32, #tpu.memory_space<vmem>>, %arg4: memref<1x25x128xf32, #tpu.memory_space<vmem>>, %arg5: memref<28x128xf32, #tpu.memory_space<vmem>>) attributes {dimension_semantics = [#tpu.dimension_semantics<parallel>], iteration_bounds = array<i64: 2>, scalar_prefetch = 0 : i64, scratch_operands = 1 : i64, tpu.core_type = #tpu.core_type<tc>, window_params = [{transform_indices = @transform_0, window_bounds = array<i64: 1, 200, 128>}, {pipeline_mode = #tpu.pipeline_mode<synchronous>, transform_indices = @transform_1, window_bounds = array<i64: 3200, 128>}, {pipeline_mode = #tpu.pipeline_mode<synchronous>, transform_indices = @transform_2, window_bounds = array<i64: 1, 128>}, {transform_indices = @transform_3, window_bounds = array<i64: 1, 25, 128>}]} {
    %c0 = arith.constant 0 : index
    %c0_0 = arith.constant 0 : index
    %0 = vector.load %arg3[%c0, %c0_0] : memref<1x128xf32, #tpu.memory_space<vmem>>, vector<1x128xf32>
    %1 = vector.shape_cast %0 : vector<1x128xf32> to vector<1x128xf32>
    %2 = vector.broadcast %1 : vector<1x128xf32> to vector<5x128xf32>
    %c0_i32 = arith.constant 0 : i32
    %c5_i32 = arith.constant 5 : i32
    %3 = arith.addi %c0_i32, %c5_i32 : i32
    %c1_i32 = arith.constant 1 : i32
    scf.for %arg6 = %c0_i32 to %3 step %c1_i32  : i32 {
      %c28_i32 = arith.constant 28 : i32
      %4 = arith.muli %arg6, %c28_i32 : i32
      %cst = arith.constant 0.000000e+00 : f32
      %5 = vector.broadcast %cst : f32 to vector<28x128xf32>
      %c0_i32_2 = arith.constant 0 : i32
      %6 = arith.addi %4, %c0_i32_2 : i32
      %c0_i32_3 = arith.constant 0 : i32
      %7 = arith.addi %6, %c0_i32_3 : i32
      %c0_4 = arith.constant 0 : index
      %8 = arith.index_cast %7 : i32 to index
      %c0_5 = arith.constant 0 : index
      %9 = vector.load %arg1[%c0_4, %8, %c0_5] : memref<1x200x128xf32, #tpu.memory_space<vmem>>, vector<1x28x128xf32>
      %10 = vector.shape_cast %9 : vector<1x28x128xf32> to vector<28x128xf32>
      %c0_6 = arith.constant 0 : index
      %c0_7 = arith.constant 0 : index
      %11 = vector.load %arg2[%c0_6, %c0_7] : memref<3200x128xf32, #tpu.memory_space<vmem>>, vector<128x128xf32>
      %cst_8 = arith.constant dense<0.000000e+00> : vector<28x128xf32>
      %12 = tpu.matmul %10, %11, %cst_8 {dimension_numbers = #tpu.dot_dimension_numbers<[1], [0], [0], [1], [0, 0, 1, 1], [], []>} : vector<28x128xf32>, vector<128x128xf32>, vector<28x128xf32> -> vector<28x128xf32>
      %13 = arith.addf %5, %12 : vector<28x128xf32>
      %c0_i32_9 = arith.constant 0 : i32
      %14 = arith.addi %4, %c0_i32_9 : i32
      %c1_i32_10 = arith.constant 1 : i32
      %15 = arith.addi %14, %c1_i32_10 : i32
      %c0_11 = arith.constant 0 : index
      %16 = arith.index_cast %15 : i32 to index
      %c0_12 = arith.constant 0 : index
      %17 = vector.load %arg1[%c0_11, %16, %c0_12] : memref<1x200x128xf32, #tpu.memory_space<vmem>>, vector<1x28x128xf32>
      %18 = vector.shape_cast %17 : vector<1x28x128xf32> to vector<28x128xf32>
      %c128 = arith.constant 128 : index
      %c0_13 = arith.constant 0 : index
      %19 = vector.load %arg2[%c128, %c0_13] : memref<3200x128xf32, #tpu.memory_space<vmem>>, vector<128x128xf32>
      %cst_14 = arith.constant dense<0.000000e+00> : vector<28x128xf32>
      %20 = tpu.matmul %18, %19, %cst_14 {dimension_numbers = #tpu.dot_dimension_numbers<[1], [0], [0], [1], [0, 0, 1, 1], [], []>} : vector<28x128xf32>, vector<128x128xf32>, vector<28x128xf32> -> vector<28x128xf32>
      %21 = arith.addf %13, %20 : vector<28x128xf32>
      %c0_i32_15 = arith.constant 0 : i32
      %22 = arith.addi %4, %c0_i32_15 : i32
      %c2_i32 = arith.constant 2 : i32
      %23 = arith.addi %22, %c2_i32 : i32
      %c0_16 = arith.constant 0 : index
      %24 = arith.index_cast %23 : i32 to index
      %c0_17 = arith.constant 0 : index
      %25 = vector.load %arg1[%c0_16, %24, %c0_17] : memref<1x200x128xf32, #tpu.memory_space<vmem>>, vector<1x28x128xf32>
      %26 = vector.shape_cast %25 : vector<1x28x128xf32> to vector<28x128xf32>
      %c256 = arith.constant 256 : index
      %c0_18 = arith.constant 0 : index
      %27 = vector.load %arg2[%c256, %c0_18] : memref<3200x128xf32, #tpu.memory_space<vmem>>, vector<128x128xf32>
      %cst_19 = arith.constant dense<0.000000e+00> : vector<28x128xf32>
      %28 = tpu.matmul %26, %27, %cst_19 {dimension_numbers = #tpu.dot_dimension_numbers<[1], [0], [0], [1], [0, 0, 1, 1], [], []>} : vector<28x128xf32>, vector<128x128xf32>, vector<28x128xf32> -> vector<28x128xf32>
      %29 = arith.addf %21, %28 : vector<28x128xf32>
      %c0_i32_20 = arith.constant 0 : i32
      %30 = arith.addi %4, %c0_i32_20 : i32
      %c3_i32 = arith.constant 3 : i32
      %31 = arith.addi %30, %c3_i32 : i32
      %c0_21 = arith.constant 0 : index
      %32 = arith.index_cast %31 : i32 to index
      %c0_22 = arith.constant 0 : index
      %33 = vector.load %arg1[%c0_21, %32, %c0_22] : memref<1x200x128xf32, #tpu.memory_space<vmem>>, vector<1x28x128xf32>
      %34 = vector.shape_cast %33 : vector<1x28x128xf32> to vector<28x128xf32>
      %c384 = arith.constant 384 : index
      %c0_23 = arith.constant 0 : index
      %35 = vector.load %arg2[%c384, %c0_23] : memref<3200x128xf32, #tpu.memory_space<vmem>>, vector<128x128xf32>
      %cst_24 = arith.constant dense<0.000000e+00> : vector<28x128xf32>
      %36 = tpu.matmul %34, %35, %cst_24 {dimension_numbers = #tpu.dot_dimension_numbers<[1], [0], [0], [1], [0, 0, 1, 1], [], []>} : vector<28x128xf32>, vector<128x128xf32>, vector<28x128xf32> -> vector<28x128xf32>
      %37 = arith.addf %29, %36 : vector<28x128xf32>
      %c0_i32_25 = arith.constant 0 : i32
      %38 = arith.addi %4, %c0_i32_25 : i32
      %c4_i32 = arith.constant 4 : i32
      %39 = arith.addi %38, %c4_i32 : i32
      %c0_26 = arith.constant 0 : index
      %40 = arith.index_cast %39 : i32 to index
      %c0_27 = arith.constant 0 : index
      %41 = vector.load %arg1[%c0_26, %40, %c0_27] : memref<1x200x128xf32, #tpu.memory_space<vmem>>, vector<1x28x128xf32>
      %42 = vector.shape_cast %41 : vector<1x28x128xf32> to vector<28x128xf32>
      %c512 = arith.constant 512 : index
      %c0_28 = arith.constant 0 : index
      %43 = vector.load %arg2[%c512, %c0_28] : memref<3200x128xf32, #tpu.memory_space<vmem>>, vector<128x128xf32>
      %cst_29 = arith.constant dense<0.000000e+00> : vector<28x128xf32>
      %44 = tpu.matmul %42, %43, %cst_29 {dimension_numbers = #tpu.dot_dimension_numbers<[1], [0], [0], [1], [0, 0, 1, 1], [], []>} : vector<28x128xf32>, vector<128x128xf32>, vector<28x128xf32> -> vector<28x128xf32>
      %45 = arith.addf %37, %44 : vector<28x128xf32>
      %c14_i32 = arith.constant 14 : i32
      %46 = arith.addi %4, %c14_i32 : i32
      %c0_i32_30 = arith.constant 0 : i32
      %47 = arith.addi %46, %c0_i32_30 : i32
      %c0_31 = arith.constant 0 : index
      %48 = arith.index_cast %47 : i32 to index
      %c0_32 = arith.constant 0 : index
      %49 = vector.load %arg1[%c0_31, %48, %c0_32] : memref<1x200x128xf32, #tpu.memory_space<vmem>>, vector<1x28x128xf32>
      %50 = vector.shape_cast %49 : vector<1x28x128xf32> to vector<28x128xf32>
      %c640 = arith.constant 640 : index
      %c0_33 = arith.constant 0 : index
      %51 = vector.load %arg2[%c640, %c0_33] : memref<3200x128xf32, #tpu.memory_space<vmem>>, vector<128x128xf32>
      %cst_34 = arith.constant dense<0.000000e+00> : vector<28x128xf32>
      %52 = tpu.matmul %50, %51, %cst_34 {dimension_numbers = #tpu.dot_dimension_numbers<[1], [0], [0], [1], [0, 0, 1, 1], [], []>} : vector<28x128xf32>, vector<128x128xf32>, vector<28x128xf32> -> vector<28x128xf32>
      %53 = arith.addf %45, %52 : vector<28x128xf32>
      %c14_i32_35 = arith.constant 14 : i32
      %54 = arith.addi %4, %c14_i32_35 : i32
      %c1_i32_36 = arith.constant 1 : i32
      %55 = arith.addi %54, %c1_i32_36 : i32
      %c0_37 = arith.constant 0 : index
      %56 = arith.index_cast %55 : i32 to index
      %c0_38 = arith.constant 0 : index
      %57 = vector.load %arg1[%c0_37, %56, %c0_38] : memref<1x200x128xf32, #tpu.memory_space<vmem>>, vector<1x28x128xf32>
      %58 = vector.shape_cast %57 : vector<1x28x128xf32> to vector<28x128xf32>
      %c768 = arith.constant 768 : index
      %c0_39 = arith.constant 0 : index
      %59 = vector.load %arg2[%c768, %c0_39] : memref<3200x128xf32, #tpu.memory_space<vmem>>, vector<128x128xf32>
      %cst_40 = arith.constant dense<0.000000e+00> : vector<28x128xf32>
      %60 = tpu.matmul %58, %59, %cst_40 {dimension_numbers = #tpu.dot_dimension_numbers<[1], [0], [0], [1], [0, 0, 1, 1], [], []>} : vector<28x128xf32>, vector<128x128xf32>, vector<28x128xf32> -> vector<28x128xf32>
      %61 = arith.addf %53, %60 : vector<28x128xf32>
      %c14_i32_41 = arith.constant 14 : i32
      %62 = arith.addi %4, %c14_i32_41 : i32
      %c2_i32_42 = arith.constant 2 : i32
      %63 = arith.addi %62, %c2_i32_42 : i32
      %c0_43 = arith.constant 0 : index
      %64 = arith.index_cast %63 : i32 to index
      %c0_44 = arith.constant 0 : index
      %65 = vector.load %arg1[%c0_43, %64, %c0_44] : memref<1x200x128xf32, #tpu.memory_space<vmem>>, vector<1x28x128xf32>
      %66 = vector.shape_cast %65 : vector<1x28x128xf32> to vector<28x128xf32>
      %c896 = arith.constant 896 : index
      %c0_45 = arith.constant 0 : index
      %67 = vector.load %arg2[%c896, %c0_45] : memref<3200x128xf32, #tpu.memory_space<vmem>>, vector<128x128xf32>
      %cst_46 = arith.constant dense<0.000000e+00> : vector<28x128xf32>
      %68 = tpu.matmul %66, %67, %cst_46 {dimension_numbers = #tpu.dot_dimension_numbers<[1], [0], [0], [1], [0, 0, 1, 1], [], []>} : vector<28x128xf32>, vector<128x128xf32>, vector<28x128xf32> -> vector<28x128xf32>
      %69 = arith.addf %61, %68 : vector<28x128xf32>
      %c14_i32_47 = arith.constant 14 : i32
      %70 = arith.addi %4, %c14_i32_47 : i32
      %c3_i32_48 = arith.constant 3 : i32
      %71 = arith.addi %70, %c3_i32_48 : i32
      %c0_49 = arith.constant 0 : index
      %72 = arith.index_cast %71 : i32 to index
      %c0_50 = arith.constant 0 : index
      %73 = vector.load %arg1[%c0_49, %72, %c0_50] : memref<1x200x128xf32, #tpu.memory_space<vmem>>, vector<1x28x128xf32>
      %74 = vector.shape_cast %73 : vector<1x28x128xf32> to vector<28x128xf32>
      %c1024 = arith.constant 1024 : index
      %c0_51 = arith.constant 0 : index
      %75 = vector.load %arg2[%c1024, %c0_51] : memref<3200x128xf32, #tpu.memory_space<vmem>>, vector<128x128xf32>
      %cst_52 = arith.constant dense<0.000000e+00> : vector<28x128xf32>
      %76 = tpu.matmul %74, %75, %cst_52 {dimension_numbers = #tpu.dot_dimension_numbers<[1], [0], [0], [1], [0, 0, 1, 1], [], []>} : vector<28x128xf32>, vector<128x128xf32>, vector<28x128xf32> -> vector<28x128xf32>
      %77 = arith.addf %69, %76 : vector<28x128xf32>
      %c14_i32_53 = arith.constant 14 : i32
      %78 = arith.addi %4, %c14_i32_53 : i32
      %c4_i32_54 = arith.constant 4 : i32
      %79 = arith.addi %78, %c4_i32_54 : i32
      %c0_55 = arith.constant 0 : index
      %80 = arith.index_cast %79 : i32 to index
      %c0_56 = arith.constant 0 : index
      %81 = vector.load %arg1[%c0_55, %80, %c0_56] : memref<1x200x128xf32, #tpu.memory_space<vmem>>, vector<1x28x128xf32>
      %82 = vector.shape_cast %81 : vector<1x28x128xf32> to vector<28x128xf32>
      %c1152 = arith.constant 1152 : index
      %c0_57 = arith.constant 0 : index
      %83 = vector.load %arg2[%c1152, %c0_57] : memref<3200x128xf32, #tpu.memory_space<vmem>>, vector<128x128xf32>
      %cst_58 = arith.constant dense<0.000000e+00> : vector<28x128xf32>
      %84 = tpu.matmul %82, %83, %cst_58 {dimension_numbers = #tpu.dot_dimension_numbers<[1], [0], [0], [1], [0, 0, 1, 1], [], []>} : vector<28x128xf32>, vector<128x128xf32>, vector<28x128xf32> -> vector<28x128xf32>
      %85 = arith.addf %77, %84 : vector<28x128xf32>
      %c28_i32_59 = arith.constant 28 : i32
      %86 = arith.addi %4, %c28_i32_59 : i32
      %c0_i32_60 = arith.constant 0 : i32
      %87 = arith.addi %86, %c0_i32_60 : i32
      %c0_61 = arith.constant 0 : index
      %88 = arith.index_cast %87 : i32 to index
      %c0_62 = arith.constant 0 : index
      %89 = vector.load %arg1[%c0_61, %88, %c0_62] : memref<1x200x128xf32, #tpu.memory_space<vmem>>, vector<1x28x128xf32>
      %90 = vector.shape_cast %89 : vector<1x28x128xf32> to vector<28x128xf32>
      %c1280 = arith.constant 1280 : index
      %c0_63 = arith.constant 0 : index
      %91 = vector.load %arg2[%c1280, %c0_63] : memref<3200x128xf32, #tpu.memory_space<vmem>>, vector<128x128xf32>
      %cst_64 = arith.constant dense<0.000000e+00> : vector<28x128xf32>
      %92 = tpu.matmul %90, %91, %cst_64 {dimension_numbers = #tpu.dot_dimension_numbers<[1], [0], [0], [1], [0, 0, 1, 1], [], []>} : vector<28x128xf32>, vector<128x128xf32>, vector<28x128xf32> -> vector<28x128xf32>
      %93 = arith.addf %85, %92 : vector<28x128xf32>
      %c28_i32_65 = arith.constant 28 : i32
      %94 = arith.addi %4, %c28_i32_65 : i32
      %c1_i32_66 = arith.constant 1 : i32
      %95 = arith.addi %94, %c1_i32_66 : i32
      %c0_67 = arith.constant 0 : index
      %96 = arith.index_cast %95 : i32 to index
      %c0_68 = arith.constant 0 : index
      %97 = vector.load %arg1[%c0_67, %96, %c0_68] : memref<1x200x128xf32, #tpu.memory_space<vmem>>, vector<1x28x128xf32>
      %98 = vector.shape_cast %97 : vector<1x28x128xf32> to vector<28x128xf32>
      %c1408 = arith.constant 1408 : index
      %c0_69 = arith.constant 0 : index
      %99 = vector.load %arg2[%c1408, %c0_69] : memref<3200x128xf32, #tpu.memory_space<vmem>>, vector<128x128xf32>
      %cst_70 = arith.constant dense<0.000000e+00> : vector<28x128xf32>
      %100 = tpu.matmul %98, %99, %cst_70 {dimension_numbers = #tpu.dot_dimension_numbers<[1], [0], [0], [1], [0, 0, 1, 1], [], []>} : vector<28x128xf32>, vector<128x128xf32>, vector<28x128xf32> -> vector<28x128xf32>
      %101 = arith.addf %93, %100 : vector<28x128xf32>
      %c28_i32_71 = arith.constant 28 : i32
      %102 = arith.addi %4, %c28_i32_71 : i32
      %c2_i32_72 = arith.constant 2 : i32
      %103 = arith.addi %102, %c2_i32_72 : i32
      %c0_73 = arith.constant 0 : index
      %104 = arith.index_cast %103 : i32 to index
      %c0_74 = arith.constant 0 : index
      %105 = vector.load %arg1[%c0_73, %104, %c0_74] : memref<1x200x128xf32, #tpu.memory_space<vmem>>, vector<1x28x128xf32>
      %106 = vector.shape_cast %105 : vector<1x28x128xf32> to vector<28x128xf32>
      %c1536 = arith.constant 1536 : index
      %c0_75 = arith.constant 0 : index
      %107 = vector.load %arg2[%c1536, %c0_75] : memref<3200x128xf32, #tpu.memory_space<vmem>>, vector<128x128xf32>
      %cst_76 = arith.constant dense<0.000000e+00> : vector<28x128xf32>
      %108 = tpu.matmul %106, %107, %cst_76 {dimension_numbers = #tpu.dot_dimension_numbers<[1], [0], [0], [1], [0, 0, 1, 1], [], []>} : vector<28x128xf32>, vector<128x128xf32>, vector<28x128xf32> -> vector<28x128xf32>
      %109 = arith.addf %101, %108 : vector<28x128xf32>
      %c28_i32_77 = arith.constant 28 : i32
      %110 = arith.addi %4, %c28_i32_77 : i32
      %c3_i32_78 = arith.constant 3 : i32
      %111 = arith.addi %110, %c3_i32_78 : i32
      %c0_79 = arith.constant 0 : index
      %112 = arith.index_cast %111 : i32 to index
      %c0_80 = arith.constant 0 : index
      %113 = vector.load %arg1[%c0_79, %112, %c0_80] : memref<1x200x128xf32, #tpu.memory_space<vmem>>, vector<1x28x128xf32>
      %114 = vector.shape_cast %113 : vector<1x28x128xf32> to vector<28x128xf32>
      %c1664 = arith.constant 1664 : index
      %c0_81 = arith.constant 0 : index
      %115 = vector.load %arg2[%c1664, %c0_81] : memref<3200x128xf32, #tpu.memory_space<vmem>>, vector<128x128xf32>
      %cst_82 = arith.constant dense<0.000000e+00> : vector<28x128xf32>
      %116 = tpu.matmul %114, %115, %cst_82 {dimension_numbers = #tpu.dot_dimension_numbers<[1], [0], [0], [1], [0, 0, 1, 1], [], []>} : vector<28x128xf32>, vector<128x128xf32>, vector<28x128xf32> -> vector<28x128xf32>
      %117 = arith.addf %109, %116 : vector<28x128xf32>
      %c28_i32_83 = arith.constant 28 : i32
      %118 = arith.addi %4, %c28_i32_83 : i32
      %c4_i32_84 = arith.constant 4 : i32
      %119 = arith.addi %118, %c4_i32_84 : i32
      %c0_85 = arith.constant 0 : index
      %120 = arith.index_cast %119 : i32 to index
      %c0_86 = arith.constant 0 : index
      %121 = vector.load %arg1[%c0_85, %120, %c0_86] : memref<1x200x128xf32, #tpu.memory_space<vmem>>, vector<1x28x128xf32>
      %122 = vector.shape_cast %121 : vector<1x28x128xf32> to vector<28x128xf32>
      %c1792 = arith.constant 1792 : index
      %c0_87 = arith.constant 0 : index
      %123 = vector.load %arg2[%c1792, %c0_87] : memref<3200x128xf32, #tpu.memory_space<vmem>>, vector<128x128xf32>
      %cst_88 = arith.constant dense<0.000000e+00> : vector<28x128xf32>
      %124 = tpu.matmul %122, %123, %cst_88 {dimension_numbers = #tpu.dot_dimension_numbers<[1], [0], [0], [1], [0, 0, 1, 1], [], []>} : vector<28x128xf32>, vector<128x128xf32>, vector<28x128xf32> -> vector<28x128xf32>
      %125 = arith.addf %117, %124 : vector<28x128xf32>
      %c42_i32 = arith.constant 42 : i32
      %126 = arith.addi %4, %c42_i32 : i32
      %c0_i32_89 = arith.constant 0 : i32
      %127 = arith.addi %126, %c0_i32_89 : i32
      %c0_90 = arith.constant 0 : index
      %128 = arith.index_cast %127 : i32 to index
      %c0_91 = arith.constant 0 : index
      %129 = vector.load %arg1[%c0_90, %128, %c0_91] : memref<1x200x128xf32, #tpu.memory_space<vmem>>, vector<1x28x128xf32>
      %130 = vector.shape_cast %129 : vector<1x28x128xf32> to vector<28x128xf32>
      %c1920 = arith.constant 1920 : index
      %c0_92 = arith.constant 0 : index
      %131 = vector.load %arg2[%c1920, %c0_92] : memref<3200x128xf32, #tpu.memory_space<vmem>>, vector<128x128xf32>
      %cst_93 = arith.constant dense<0.000000e+00> : vector<28x128xf32>
      %132 = tpu.matmul %130, %131, %cst_93 {dimension_numbers = #tpu.dot_dimension_numbers<[1], [0], [0], [1], [0, 0, 1, 1], [], []>} : vector<28x128xf32>, vector<128x128xf32>, vector<28x128xf32> -> vector<28x128xf32>
      %133 = arith.addf %125, %132 : vector<28x128xf32>
      %c42_i32_94 = arith.constant 42 : i32
      %134 = arith.addi %4, %c42_i32_94 : i32
      %c1_i32_95 = arith.constant 1 : i32
      %135 = arith.addi %134, %c1_i32_95 : i32
      %c0_96 = arith.constant 0 : index
      %136 = arith.index_cast %135 : i32 to index
      %c0_97 = arith.constant 0 : index
      %137 = vector.load %arg1[%c0_96, %136, %c0_97] : memref<1x200x128xf32, #tpu.memory_space<vmem>>, vector<1x28x128xf32>
      %138 = vector.shape_cast %137 : vector<1x28x128xf32> to vector<28x128xf32>
      %c2048 = arith.constant 2048 : index
      %c0_98 = arith.constant 0 : index
      %139 = vector.load %arg2[%c2048, %c0_98] : memref<3200x128xf32, #tpu.memory_space<vmem>>, vector<128x128xf32>
      %cst_99 = arith.constant dense<0.000000e+00> : vector<28x128xf32>
      %140 = tpu.matmul %138, %139, %cst_99 {dimension_numbers = #tpu.dot_dimension_numbers<[1], [0], [0], [1], [0, 0, 1, 1], [], []>} : vector<28x128xf32>, vector<128x128xf32>, vector<28x128xf32> -> vector<28x128xf32>
      %141 = arith.addf %133, %140 : vector<28x128xf32>
      %c42_i32_100 = arith.constant 42 : i32
      %142 = arith.addi %4, %c42_i32_100 : i32
      %c2_i32_101 = arith.constant 2 : i32
      %143 = arith.addi %142, %c2_i32_101 : i32
      %c0_102 = arith.constant 0 : index
      %144 = arith.index_cast %143 : i32 to index
      %c0_103 = arith.constant 0 : index
      %145 = vector.load %arg1[%c0_102, %144, %c0_103] : memref<1x200x128xf32, #tpu.memory_space<vmem>>, vector<1x28x128xf32>
      %146 = vector.shape_cast %145 : vector<1x28x128xf32> to vector<28x128xf32>
      %c2176 = arith.constant 2176 : index
      %c0_104 = arith.constant 0 : index
      %147 = vector.load %arg2[%c2176, %c0_104] : memref<3200x128xf32, #tpu.memory_space<vmem>>, vector<128x128xf32>
      %cst_105 = arith.constant dense<0.000000e+00> : vector<28x128xf32>
      %148 = tpu.matmul %146, %147, %cst_105 {dimension_numbers = #tpu.dot_dimension_numbers<[1], [0], [0], [1], [0, 0, 1, 1], [], []>} : vector<28x128xf32>, vector<128x128xf32>, vector<28x128xf32> -> vector<28x128xf32>
      %149 = arith.addf %141, %148 : vector<28x128xf32>
      %c42_i32_106 = arith.constant 42 : i32
      %150 = arith.addi %4, %c42_i32_106 : i32
      %c3_i32_107 = arith.constant 3 : i32
      %151 = arith.addi %150, %c3_i32_107 : i32
      %c0_108 = arith.constant 0 : index
      %152 = arith.index_cast %151 : i32 to index
      %c0_109 = arith.constant 0 : index
      %153 = vector.load %arg1[%c0_108, %152, %c0_109] : memref<1x200x128xf32, #tpu.memory_space<vmem>>, vector<1x28x128xf32>
      %154 = vector.shape_cast %153 : vector<1x28x128xf32> to vector<28x128xf32>
      %c2304 = arith.constant 2304 : index
      %c0_110 = arith.constant 0 : index
      %155 = vector.load %arg2[%c2304, %c0_110] : memref<3200x128xf32, #tpu.memory_space<vmem>>, vector<128x128xf32>
      %cst_111 = arith.constant dense<0.000000e+00> : vector<28x128xf32>
      %156 = tpu.matmul %154, %155, %cst_111 {dimension_numbers = #tpu.dot_dimension_numbers<[1], [0], [0], [1], [0, 0, 1, 1], [], []>} : vector<28x128xf32>, vector<128x128xf32>, vector<28x128xf32> -> vector<28x128xf32>
      %157 = arith.addf %149, %156 : vector<28x128xf32>
      %c42_i32_112 = arith.constant 42 : i32
      %158 = arith.addi %4, %c42_i32_112 : i32
      %c4_i32_113 = arith.constant 4 : i32
      %159 = arith.addi %158, %c4_i32_113 : i32
      %c0_114 = arith.constant 0 : index
      %160 = arith.index_cast %159 : i32 to index
      %c0_115 = arith.constant 0 : index
      %161 = vector.load %arg1[%c0_114, %160, %c0_115] : memref<1x200x128xf32, #tpu.memory_space<vmem>>, vector<1x28x128xf32>
      %162 = vector.shape_cast %161 : vector<1x28x128xf32> to vector<28x128xf32>
      %c2432 = arith.constant 2432 : index
      %c0_116 = arith.constant 0 : index
      %163 = vector.load %arg2[%c2432, %c0_116] : memref<3200x128xf32, #tpu.memory_space<vmem>>, vector<128x128xf32>
      %cst_117 = arith.constant dense<0.000000e+00> : vector<28x128xf32>
      %164 = tpu.matmul %162, %163, %cst_117 {dimension_numbers = #tpu.dot_dimension_numbers<[1], [0], [0], [1], [0, 0, 1, 1], [], []>} : vector<28x128xf32>, vector<128x128xf32>, vector<28x128xf32> -> vector<28x128xf32>
      %165 = arith.addf %157, %164 : vector<28x128xf32>
      %c56_i32 = arith.constant 56 : i32
      %166 = arith.addi %4, %c56_i32 : i32
      %c0_i32_118 = arith.constant 0 : i32
      %167 = arith.addi %166, %c0_i32_118 : i32
      %c0_119 = arith.constant 0 : index
      %168 = arith.index_cast %167 : i32 to index
      %c0_120 = arith.constant 0 : index
      %169 = vector.load %arg1[%c0_119, %168, %c0_120] : memref<1x200x128xf32, #tpu.memory_space<vmem>>, vector<1x28x128xf32>
      %170 = vector.shape_cast %169 : vector<1x28x128xf32> to vector<28x128xf32>
      %c2560 = arith.constant 2560 : index
      %c0_121 = arith.constant 0 : index
      %171 = vector.load %arg2[%c2560, %c0_121] : memref<3200x128xf32, #tpu.memory_space<vmem>>, vector<128x128xf32>
      %cst_122 = arith.constant dense<0.000000e+00> : vector<28x128xf32>
      %172 = tpu.matmul %170, %171, %cst_122 {dimension_numbers = #tpu.dot_dimension_numbers<[1], [0], [0], [1], [0, 0, 1, 1], [], []>} : vector<28x128xf32>, vector<128x128xf32>, vector<28x128xf32> -> vector<28x128xf32>
      %173 = arith.addf %165, %172 : vector<28x128xf32>
      %c56_i32_123 = arith.constant 56 : i32
      %174 = arith.addi %4, %c56_i32_123 : i32
      %c1_i32_124 = arith.constant 1 : i32
      %175 = arith.addi %174, %c1_i32_124 : i32
      %c0_125 = arith.constant 0 : index
      %176 = arith.index_cast %175 : i32 to index
      %c0_126 = arith.constant 0 : index
      %177 = vector.load %arg1[%c0_125, %176, %c0_126] : memref<1x200x128xf32, #tpu.memory_space<vmem>>, vector<1x28x128xf32>
      %178 = vector.shape_cast %177 : vector<1x28x128xf32> to vector<28x128xf32>
      %c2688 = arith.constant 2688 : index
      %c0_127 = arith.constant 0 : index
      %179 = vector.load %arg2[%c2688, %c0_127] : memref<3200x128xf32, #tpu.memory_space<vmem>>, vector<128x128xf32>
      %cst_128 = arith.constant dense<0.000000e+00> : vector<28x128xf32>
      %180 = tpu.matmul %178, %179, %cst_128 {dimension_numbers = #tpu.dot_dimension_numbers<[1], [0], [0], [1], [0, 0, 1, 1], [], []>} : vector<28x128xf32>, vector<128x128xf32>, vector<28x128xf32> -> vector<28x128xf32>
      %181 = arith.addf %173, %180 : vector<28x128xf32>
      %c56_i32_129 = arith.constant 56 : i32
      %182 = arith.addi %4, %c56_i32_129 : i32
      %c2_i32_130 = arith.constant 2 : i32
      %183 = arith.addi %182, %c2_i32_130 : i32
      %c0_131 = arith.constant 0 : index
      %184 = arith.index_cast %183 : i32 to index
      %c0_132 = arith.constant 0 : index
      %185 = vector.load %arg1[%c0_131, %184, %c0_132] : memref<1x200x128xf32, #tpu.memory_space<vmem>>, vector<1x28x128xf32>
      %186 = vector.shape_cast %185 : vector<1x28x128xf32> to vector<28x128xf32>
      %c2816 = arith.constant 2816 : index
      %c0_133 = arith.constant 0 : index
      %187 = vector.load %arg2[%c2816, %c0_133] : memref<3200x128xf32, #tpu.memory_space<vmem>>, vector<128x128xf32>
      %cst_134 = arith.constant dense<0.000000e+00> : vector<28x128xf32>
      %188 = tpu.matmul %186, %187, %cst_134 {dimension_numbers = #tpu.dot_dimension_numbers<[1], [0], [0], [1], [0, 0, 1, 1], [], []>} : vector<28x128xf32>, vector<128x128xf32>, vector<28x128xf32> -> vector<28x128xf32>
      %189 = arith.addf %181, %188 : vector<28x128xf32>
      %c56_i32_135 = arith.constant 56 : i32
      %190 = arith.addi %4, %c56_i32_135 : i32
      %c3_i32_136 = arith.constant 3 : i32
      %191 = arith.addi %190, %c3_i32_136 : i32
      %c0_137 = arith.constant 0 : index
      %192 = arith.index_cast %191 : i32 to index
      %c0_138 = arith.constant 0 : index
      %193 = vector.load %arg1[%c0_137, %192, %c0_138] : memref<1x200x128xf32, #tpu.memory_space<vmem>>, vector<1x28x128xf32>
      %194 = vector.shape_cast %193 : vector<1x28x128xf32> to vector<28x128xf32>
      %c2944 = arith.constant 2944 : index
      %c0_139 = arith.constant 0 : index
      %195 = vector.load %arg2[%c2944, %c0_139] : memref<3200x128xf32, #tpu.memory_space<vmem>>, vector<128x128xf32>
      %cst_140 = arith.constant dense<0.000000e+00> : vector<28x128xf32>
      %196 = tpu.matmul %194, %195, %cst_140 {dimension_numbers = #tpu.dot_dimension_numbers<[1], [0], [0], [1], [0, 0, 1, 1], [], []>} : vector<28x128xf32>, vector<128x128xf32>, vector<28x128xf32> -> vector<28x128xf32>
      %197 = arith.addf %189, %196 : vector<28x128xf32>
      %c56_i32_141 = arith.constant 56 : i32
      %198 = arith.addi %4, %c56_i32_141 : i32
      %c4_i32_142 = arith.constant 4 : i32
      %199 = arith.addi %198, %c4_i32_142 : i32
      %c0_143 = arith.constant 0 : index
      %200 = arith.index_cast %199 : i32 to index
      %c0_144 = arith.constant 0 : index
      %201 = vector.load %arg1[%c0_143, %200, %c0_144] : memref<1x200x128xf32, #tpu.memory_space<vmem>>, vector<1x28x128xf32>
      %202 = vector.shape_cast %201 : vector<1x28x128xf32> to vector<28x128xf32>
      %c3072 = arith.constant 3072 : index
      %c0_145 = arith.constant 0 : index
      %203 = vector.load %arg2[%c3072, %c0_145] : memref<3200x128xf32, #tpu.memory_space<vmem>>, vector<128x128xf32>
      %cst_146 = arith.constant dense<0.000000e+00> : vector<28x128xf32>
      %204 = tpu.matmul %202, %203, %cst_146 {dimension_numbers = #tpu.dot_dimension_numbers<[1], [0], [0], [1], [0, 0, 1, 1], [], []>} : vector<28x128xf32>, vector<128x128xf32>, vector<28x128xf32> -> vector<28x128xf32>
      %205 = arith.addf %197, %204 : vector<28x128xf32>
      %c0_147 = arith.constant 0 : index
      %c0_148 = arith.constant 0 : index
      %206 = vector.load %arg5[%c0_147, %c0_148] : memref<28x128xf32, #tpu.memory_space<vmem>>, vector<28x128xf32>
      tpu.vector_store %arg5[%c0_147, %c0_148], %205 {strides = array<i32>} : memref<28x128xf32, #tpu.memory_space<vmem>>, vector<28x128xf32>,
      %c0_149 = arith.constant 0 : index
      %c0_150 = arith.constant 0 : index
      %207 = tpu.strided_load %arg5[%c0_149, %c0_150] {strides = array<i32: 2, 1>} : memref<28x128xf32, #tpu.memory_space<vmem>>, vector<5x128xf32>
      %c1 = arith.constant 1 : index
      %c0_151 = arith.constant 0 : index
      %208 = tpu.strided_load %arg5[%c1, %c0_151] {strides = array<i32: 2, 1>} : memref<28x128xf32, #tpu.memory_space<vmem>>, vector<5x128xf32>
      %c14 = arith.constant 14 : index
      %c0_152 = arith.constant 0 : index
      %209 = tpu.strided_load %arg5[%c14, %c0_152] {strides = array<i32: 2, 1>} : memref<28x128xf32, #tpu.memory_space<vmem>>, vector<5x128xf32>
      %c15 = arith.constant 15 : index
      %c0_153 = arith.constant 0 : index
      %210 = tpu.strided_load %arg5[%c15, %c0_153] {strides = array<i32: 2, 1>} : memref<28x128xf32, #tpu.memory_space<vmem>>, vector<5x128xf32>
      %211 = arith.maximumf %207, %208 : vector<5x128xf32>
      %212 = arith.maximumf %209, %210 : vector<5x128xf32>
      %213 = arith.maximumf %211, %212 : vector<5x128xf32>
      %214 = arith.addf %213, %2 : vector<5x128xf32>
      %cst_154 = arith.constant 0.000000e+00 : f32
      %215 = vector.broadcast %cst_154 : f32 to vector<5x128xf32>
      %216 = arith.maximumf %214, %215 : vector<5x128xf32>
      %c5_i32_155 = arith.constant 5 : i32
      %217 = arith.muli %arg6, %c5_i32_155 : i32
      %c0_156 = arith.constant 0 : index
      %218 = arith.index_cast %217 : i32 to index
      %c0_157 = arith.constant 0 : index
      %219 = vector.load %arg4[%c0_156, %218, %c0_157] : memref<1x25x128xf32, #tpu.memory_space<vmem>>, vector<1x5x128xf32>
      %220 = vector.shape_cast %219 : vector<1x5x128xf32> to vector<5x128xf32>
      %221 = vector.shape_cast %216 : vector<5x128xf32> to vector<1x5x128xf32>
      tpu.vector_store %arg4[%c0_156, %218, %c0_157], %221 {strides = array<i32>} : memref<1x25x128xf32, #tpu.memory_space<vmem>>, vector<1x5x128xf32>,
    }
    %c5_i32_1 = arith.constant 5 : i32
    return
  }
  func.func @transform_0(%arg0: i32) -> (i32, i32, i32) {
    %c0_i32 = arith.constant 0 : i32
    %c0_i32_0 = arith.constant 0 : i32
    %c0_i32_1 = arith.constant 0 : i32
    return %arg0, %c0_i32, %c0_i32_0 : i32, i32, i32
  }
  func.func @transform_1(%arg0: i32) -> (i32, i32) {
    %c0_i32 = arith.constant 0 : i32
    %c0_i32_0 = arith.constant 0 : i32
    %c0_i32_1 = arith.constant 0 : i32
    return %c0_i32, %c0_i32_0 : i32, i32
  }
  func.func @transform_2(%arg0: i32) -> (i32, i32) {
    %c0_i32 = arith.constant 0 : i32
    %c0_i32_0 = arith.constant 0 : i32
    %c0_i32_1 = arith.constant 0 : i32
    return %c0_i32, %c0_i32_0 : i32, i32
  }
  func.func @transform_3(%arg0: i32) -> (i32, i32, i32) {
    %c0_i32 = arith.constant 0 : i32
    %c0_i32_0 = arith.constant 0 : i32
    %c0_i32_1 = arith.constant 0 : i32
    return %arg0, %c0_i32, %c0_i32_0 : i32, i32, i32
  }
}

module attributes {stable_mosaic.version = 11 : i64} {
  func.func @_conv_pool_kernel(%arg0: i32, %arg1: memref<1x1028x3xf32, #tpu.memory_space<vmem>>, %arg2: memref<75x128xf32, #tpu.memory_space<vmem>>, %arg3: memref<1x128xf32, #tpu.memory_space<vmem>>, %arg4: memref<1x200x128xf32, #tpu.memory_space<vmem>>, %arg5: memref<64x128xf32, #tpu.memory_space<vmem>>) attributes {dimension_semantics = [#tpu.dimension_semantics<parallel>], iteration_bounds = array<i64: 2>, scalar_prefetch = 0 : i64, scratch_operands = 1 : i64, tpu.core_type = #tpu.core_type<tc>, window_params = [{transform_indices = @transform_0, window_bounds = array<i64: 1, 1028, 3>}, {pipeline_mode = #tpu.pipeline_mode<synchronous>, transform_indices = @transform_1, window_bounds = array<i64: 75, 128>}, {pipeline_mode = #tpu.pipeline_mode<synchronous>, transform_indices = @transform_2, window_bounds = array<i64: 1, 128>}, {transform_indices = @transform_3, window_bounds = array<i64: 1, 200, 128>}]} {
    %c0 = arith.constant 0 : index
    %c0_0 = arith.constant 0 : index
    %0 = vector.load %arg3[%c0, %c0_0] : memref<1x128xf32, #tpu.memory_space<vmem>>, vector<1x128xf32>
    %1 = vector.shape_cast %0 : vector<1x128xf32> to vector<1x128xf32>
    %2 = vector.broadcast %1 : vector<1x128xf32> to vector<14x128xf32>
    %c0_i32 = arith.constant 0 : i32
    %c14_i32 = arith.constant 14 : i32
    %3 = arith.addi %c0_i32, %c14_i32 : i32
    %c1_i32 = arith.constant 1 : i32
    scf.for %arg6 = %c0_i32 to %3 step %c1_i32  : i32 {
      %c64_i32 = arith.constant 64 : i32
      %8 = arith.muli %arg6, %c64_i32 : i32
      %cst_4 = arith.constant 0.000000e+00 : f32
      %9 = vector.broadcast %cst_4 : f32 to vector<64x128xf32>
      %c0_i32_5 = arith.constant 0 : i32
      %10 = arith.addi %8, %c0_i32_5 : i32
      %c0_i32_6 = arith.constant 0 : i32
      %11 = arith.addi %10, %c0_i32_6 : i32
      %c0_7 = arith.constant 0 : index
      %12 = arith.index_cast %11 : i32 to index
      %c0_8 = arith.constant 0 : index
      %13 = vector.load %arg1[%c0_7, %12, %c0_8] : memref<1x1028x3xf32, #tpu.memory_space<vmem>>, vector<1x64x3xf32>
      %14 = vector.shape_cast %13 : vector<1x64x3xf32> to vector<64x3xf32>
      %c0_9 = arith.constant 0 : index
      %c0_10 = arith.constant 0 : index
      %15 = vector.load %arg2[%c0_9, %c0_10] : memref<75x128xf32, #tpu.memory_space<vmem>>, vector<3x128xf32>
      %cst_11 = arith.constant dense<0.000000e+00> : vector<64x128xf32>
      %16 = tpu.matmul %14, %15, %cst_11 {dimension_numbers = #tpu.dot_dimension_numbers<[1], [0], [0], [1], [0, 0, 1, 1], [], []>} : vector<64x3xf32>, vector<3x128xf32>, vector<64x128xf32> -> vector<64x128xf32>
      %17 = arith.addf %9, %16 : vector<64x128xf32>
      %c0_i32_12 = arith.constant 0 : i32
      %18 = arith.addi %8, %c0_i32_12 : i32
      %c1_i32_13 = arith.constant 1 : i32
      %19 = arith.addi %18, %c1_i32_13 : i32
      %c0_14 = arith.constant 0 : index
      %20 = arith.index_cast %19 : i32 to index
      %c0_15 = arith.constant 0 : index
      %21 = vector.load %arg1[%c0_14, %20, %c0_15] : memref<1x1028x3xf32, #tpu.memory_space<vmem>>, vector<1x64x3xf32>
      %22 = vector.shape_cast %21 : vector<1x64x3xf32> to vector<64x3xf32>
      %c3 = arith.constant 3 : index
      %c0_16 = arith.constant 0 : index
      %23 = vector.load %arg2[%c3, %c0_16] : memref<75x128xf32, #tpu.memory_space<vmem>>, vector<3x128xf32>
      %cst_17 = arith.constant dense<0.000000e+00> : vector<64x128xf32>
      %24 = tpu.matmul %22, %23, %cst_17 {dimension_numbers = #tpu.dot_dimension_numbers<[1], [0], [0], [1], [0, 0, 1, 1], [], []>} : vector<64x3xf32>, vector<3x128xf32>, vector<64x128xf32> -> vector<64x128xf32>
      %25 = arith.addf %17, %24 : vector<64x128xf32>
      %c0_i32_18 = arith.constant 0 : i32
      %26 = arith.addi %8, %c0_i32_18 : i32
      %c2_i32 = arith.constant 2 : i32
      %27 = arith.addi %26, %c2_i32 : i32
      %c0_19 = arith.constant 0 : index
      %28 = arith.index_cast %27 : i32 to index
      %c0_20 = arith.constant 0 : index
      %29 = vector.load %arg1[%c0_19, %28, %c0_20] : memref<1x1028x3xf32, #tpu.memory_space<vmem>>, vector<1x64x3xf32>
      %30 = vector.shape_cast %29 : vector<1x64x3xf32> to vector<64x3xf32>
      %c6 = arith.constant 6 : index
      %c0_21 = arith.constant 0 : index
      %31 = vector.load %arg2[%c6, %c0_21] : memref<75x128xf32, #tpu.memory_space<vmem>>, vector<3x128xf32>
      %cst_22 = arith.constant dense<0.000000e+00> : vector<64x128xf32>
      %32 = tpu.matmul %30, %31, %cst_22 {dimension_numbers = #tpu.dot_dimension_numbers<[1], [0], [0], [1], [0, 0, 1, 1], [], []>} : vector<64x3xf32>, vector<3x128xf32>, vector<64x128xf32> -> vector<64x128xf32>
      %33 = arith.addf %25, %32 : vector<64x128xf32>
      %c0_i32_23 = arith.constant 0 : i32
      %34 = arith.addi %8, %c0_i32_23 : i32
      %c3_i32 = arith.constant 3 : i32
      %35 = arith.addi %34, %c3_i32 : i32
      %c0_24 = arith.constant 0 : index
      %36 = arith.index_cast %35 : i32 to index
      %c0_25 = arith.constant 0 : index
      %37 = vector.load %arg1[%c0_24, %36, %c0_25] : memref<1x1028x3xf32, #tpu.memory_space<vmem>>, vector<1x64x3xf32>
      %38 = vector.shape_cast %37 : vector<1x64x3xf32> to vector<64x3xf32>
      %c9 = arith.constant 9 : index
      %c0_26 = arith.constant 0 : index
      %39 = vector.load %arg2[%c9, %c0_26] : memref<75x128xf32, #tpu.memory_space<vmem>>, vector<3x128xf32>
      %cst_27 = arith.constant dense<0.000000e+00> : vector<64x128xf32>
      %40 = tpu.matmul %38, %39, %cst_27 {dimension_numbers = #tpu.dot_dimension_numbers<[1], [0], [0], [1], [0, 0, 1, 1], [], []>} : vector<64x3xf32>, vector<3x128xf32>, vector<64x128xf32> -> vector<64x128xf32>
      %41 = arith.addf %33, %40 : vector<64x128xf32>
      %c0_i32_28 = arith.constant 0 : i32
      %42 = arith.addi %8, %c0_i32_28 : i32
      %c4_i32 = arith.constant 4 : i32
      %43 = arith.addi %42, %c4_i32 : i32
      %c0_29 = arith.constant 0 : index
      %44 = arith.index_cast %43 : i32 to index
      %c0_30 = arith.constant 0 : index
      %45 = vector.load %arg1[%c0_29, %44, %c0_30] : memref<1x1028x3xf32, #tpu.memory_space<vmem>>, vector<1x64x3xf32>
      %46 = vector.shape_cast %45 : vector<1x64x3xf32> to vector<64x3xf32>
      %c12 = arith.constant 12 : index
      %c0_31 = arith.constant 0 : index
      %47 = vector.load %arg2[%c12, %c0_31] : memref<75x128xf32, #tpu.memory_space<vmem>>, vector<3x128xf32>
      %cst_32 = arith.constant dense<0.000000e+00> : vector<64x128xf32>
      %48 = tpu.matmul %46, %47, %cst_32 {dimension_numbers = #tpu.dot_dimension_numbers<[1], [0], [0], [1], [0, 0, 1, 1], [], []>} : vector<64x3xf32>, vector<3x128xf32>, vector<64x128xf32> -> vector<64x128xf32>
      %49 = arith.addf %41, %48 : vector<64x128xf32>
      %c32_i32 = arith.constant 32 : i32
      %50 = arith.addi %8, %c32_i32 : i32
      %c0_i32_33 = arith.constant 0 : i32
      %51 = arith.addi %50, %c0_i32_33 : i32
      %c0_34 = arith.constant 0 : index
      %52 = arith.index_cast %51 : i32 to index
      %c0_35 = arith.constant 0 : index
      %53 = vector.load %arg1[%c0_34, %52, %c0_35] : memref<1x1028x3xf32, #tpu.memory_space<vmem>>, vector<1x64x3xf32>
      %54 = vector.shape_cast %53 : vector<1x64x3xf32> to vector<64x3xf32>
      %c15 = arith.constant 15 : index
      %c0_36 = arith.constant 0 : index
      %55 = vector.load %arg2[%c15, %c0_36] : memref<75x128xf32, #tpu.memory_space<vmem>>, vector<3x128xf32>
      %cst_37 = arith.constant dense<0.000000e+00> : vector<64x128xf32>
      %56 = tpu.matmul %54, %55, %cst_37 {dimension_numbers = #tpu.dot_dimension_numbers<[1], [0], [0], [1], [0, 0, 1, 1], [], []>} : vector<64x3xf32>, vector<3x128xf32>, vector<64x128xf32> -> vector<64x128xf32>
      %57 = arith.addf %49, %56 : vector<64x128xf32>
      %c32_i32_38 = arith.constant 32 : i32
      %58 = arith.addi %8, %c32_i32_38 : i32
      %c1_i32_39 = arith.constant 1 : i32
      %59 = arith.addi %58, %c1_i32_39 : i32
      %c0_40 = arith.constant 0 : index
      %60 = arith.index_cast %59 : i32 to index
      %c0_41 = arith.constant 0 : index
      %61 = vector.load %arg1[%c0_40, %60, %c0_41] : memref<1x1028x3xf32, #tpu.memory_space<vmem>>, vector<1x64x3xf32>
      %62 = vector.shape_cast %61 : vector<1x64x3xf32> to vector<64x3xf32>
      %c18 = arith.constant 18 : index
      %c0_42 = arith.constant 0 : index
      %63 = vector.load %arg2[%c18, %c0_42] : memref<75x128xf32, #tpu.memory_space<vmem>>, vector<3x128xf32>
      %cst_43 = arith.constant dense<0.000000e+00> : vector<64x128xf32>
      %64 = tpu.matmul %62, %63, %cst_43 {dimension_numbers = #tpu.dot_dimension_numbers<[1], [0], [0], [1], [0, 0, 1, 1], [], []>} : vector<64x3xf32>, vector<3x128xf32>, vector<64x128xf32> -> vector<64x128xf32>
      %65 = arith.addf %57, %64 : vector<64x128xf32>
      %c32_i32_44 = arith.constant 32 : i32
      %66 = arith.addi %8, %c32_i32_44 : i32
      %c2_i32_45 = arith.constant 2 : i32
      %67 = arith.addi %66, %c2_i32_45 : i32
      %c0_46 = arith.constant 0 : index
      %68 = arith.index_cast %67 : i32 to index
      %c0_47 = arith.constant 0 : index
      %69 = vector.load %arg1[%c0_46, %68, %c0_47] : memref<1x1028x3xf32, #tpu.memory_space<vmem>>, vector<1x64x3xf32>
      %70 = vector.shape_cast %69 : vector<1x64x3xf32> to vector<64x3xf32>
      %c21 = arith.constant 21 : index
      %c0_48 = arith.constant 0 : index
      %71 = vector.load %arg2[%c21, %c0_48] : memref<75x128xf32, #tpu.memory_space<vmem>>, vector<3x128xf32>
      %cst_49 = arith.constant dense<0.000000e+00> : vector<64x128xf32>
      %72 = tpu.matmul %70, %71, %cst_49 {dimension_numbers = #tpu.dot_dimension_numbers<[1], [0], [0], [1], [0, 0, 1, 1], [], []>} : vector<64x3xf32>, vector<3x128xf32>, vector<64x128xf32> -> vector<64x128xf32>
      %73 = arith.addf %65, %72 : vector<64x128xf32>
      %c32_i32_50 = arith.constant 32 : i32
      %74 = arith.addi %8, %c32_i32_50 : i32
      %c3_i32_51 = arith.constant 3 : i32
      %75 = arith.addi %74, %c3_i32_51 : i32
      %c0_52 = arith.constant 0 : index
      %76 = arith.index_cast %75 : i32 to index
      %c0_53 = arith.constant 0 : index
      %77 = vector.load %arg1[%c0_52, %76, %c0_53] : memref<1x1028x3xf32, #tpu.memory_space<vmem>>, vector<1x64x3xf32>
      %78 = vector.shape_cast %77 : vector<1x64x3xf32> to vector<64x3xf32>
      %c24 = arith.constant 24 : index
      %c0_54 = arith.constant 0 : index
      %79 = vector.load %arg2[%c24, %c0_54] : memref<75x128xf32, #tpu.memory_space<vmem>>, vector<3x128xf32>
      %cst_55 = arith.constant dense<0.000000e+00> : vector<64x128xf32>
      %80 = tpu.matmul %78, %79, %cst_55 {dimension_numbers = #tpu.dot_dimension_numbers<[1], [0], [0], [1], [0, 0, 1, 1], [], []>} : vector<64x3xf32>, vector<3x128xf32>, vector<64x128xf32> -> vector<64x128xf32>
      %81 = arith.addf %73, %80 : vector<64x128xf32>
      %c32_i32_56 = arith.constant 32 : i32
      %82 = arith.addi %8, %c32_i32_56 : i32
      %c4_i32_57 = arith.constant 4 : i32
      %83 = arith.addi %82, %c4_i32_57 : i32
      %c0_58 = arith.constant 0 : index
      %84 = arith.index_cast %83 : i32 to index
      %c0_59 = arith.constant 0 : index
      %85 = vector.load %arg1[%c0_58, %84, %c0_59] : memref<1x1028x3xf32, #tpu.memory_space<vmem>>, vector<1x64x3xf32>
      %86 = vector.shape_cast %85 : vector<1x64x3xf32> to vector<64x3xf32>
      %c27 = arith.constant 27 : index
      %c0_60 = arith.constant 0 : index
      %87 = vector.load %arg2[%c27, %c0_60] : memref<75x128xf32, #tpu.memory_space<vmem>>, vector<3x128xf32>
      %cst_61 = arith.constant dense<0.000000e+00> : vector<64x128xf32>
      %88 = tpu.matmul %86, %87, %cst_61 {dimension_numbers = #tpu.dot_dimension_numbers<[1], [0], [0], [1], [0, 0, 1, 1], [], []>} : vector<64x3xf32>, vector<3x128xf32>, vector<64x128xf32> -> vector<64x128xf32>
      %89 = arith.addf %81, %88 : vector<64x128xf32>
      %c64_i32_62 = arith.constant 64 : i32
      %90 = arith.addi %8, %c64_i32_62 : i32
      %c0_i32_63 = arith.constant 0 : i32
      %91 = arith.addi %90, %c0_i32_63 : i32
      %c0_64 = arith.constant 0 : index
      %92 = arith.index_cast %91 : i32 to index
      %c0_65 = arith.constant 0 : index
      %93 = vector.load %arg1[%c0_64, %92, %c0_65] : memref<1x1028x3xf32, #tpu.memory_space<vmem>>, vector<1x64x3xf32>
      %94 = vector.shape_cast %93 : vector<1x64x3xf32> to vector<64x3xf32>
      %c30 = arith.constant 30 : index
      %c0_66 = arith.constant 0 : index
      %95 = vector.load %arg2[%c30, %c0_66] : memref<75x128xf32, #tpu.memory_space<vmem>>, vector<3x128xf32>
      %cst_67 = arith.constant dense<0.000000e+00> : vector<64x128xf32>
      %96 = tpu.matmul %94, %95, %cst_67 {dimension_numbers = #tpu.dot_dimension_numbers<[1], [0], [0], [1], [0, 0, 1, 1], [], []>} : vector<64x3xf32>, vector<3x128xf32>, vector<64x128xf32> -> vector<64x128xf32>
      %97 = arith.addf %89, %96 : vector<64x128xf32>
      %c64_i32_68 = arith.constant 64 : i32
      %98 = arith.addi %8, %c64_i32_68 : i32
      %c1_i32_69 = arith.constant 1 : i32
      %99 = arith.addi %98, %c1_i32_69 : i32
      %c0_70 = arith.constant 0 : index
      %100 = arith.index_cast %99 : i32 to index
      %c0_71 = arith.constant 0 : index
      %101 = vector.load %arg1[%c0_70, %100, %c0_71] : memref<1x1028x3xf32, #tpu.memory_space<vmem>>, vector<1x64x3xf32>
      %102 = vector.shape_cast %101 : vector<1x64x3xf32> to vector<64x3xf32>
      %c33 = arith.constant 33 : index
      %c0_72 = arith.constant 0 : index
      %103 = vector.load %arg2[%c33, %c0_72] : memref<75x128xf32, #tpu.memory_space<vmem>>, vector<3x128xf32>
      %cst_73 = arith.constant dense<0.000000e+00> : vector<64x128xf32>
      %104 = tpu.matmul %102, %103, %cst_73 {dimension_numbers = #tpu.dot_dimension_numbers<[1], [0], [0], [1], [0, 0, 1, 1], [], []>} : vector<64x3xf32>, vector<3x128xf32>, vector<64x128xf32> -> vector<64x128xf32>
      %105 = arith.addf %97, %104 : vector<64x128xf32>
      %c64_i32_74 = arith.constant 64 : i32
      %106 = arith.addi %8, %c64_i32_74 : i32
      %c2_i32_75 = arith.constant 2 : i32
      %107 = arith.addi %106, %c2_i32_75 : i32
      %c0_76 = arith.constant 0 : index
      %108 = arith.index_cast %107 : i32 to index
      %c0_77 = arith.constant 0 : index
      %109 = vector.load %arg1[%c0_76, %108, %c0_77] : memref<1x1028x3xf32, #tpu.memory_space<vmem>>, vector<1x64x3xf32>
      %110 = vector.shape_cast %109 : vector<1x64x3xf32> to vector<64x3xf32>
      %c36 = arith.constant 36 : index
      %c0_78 = arith.constant 0 : index
      %111 = vector.load %arg2[%c36, %c0_78] : memref<75x128xf32, #tpu.memory_space<vmem>>, vector<3x128xf32>
      %cst_79 = arith.constant dense<0.000000e+00> : vector<64x128xf32>
      %112 = tpu.matmul %110, %111, %cst_79 {dimension_numbers = #tpu.dot_dimension_numbers<[1], [0], [0], [1], [0, 0, 1, 1], [], []>} : vector<64x3xf32>, vector<3x128xf32>, vector<64x128xf32> -> vector<64x128xf32>
      %113 = arith.addf %105, %112 : vector<64x128xf32>
      %c64_i32_80 = arith.constant 64 : i32
      %114 = arith.addi %8, %c64_i32_80 : i32
      %c3_i32_81 = arith.constant 3 : i32
      %115 = arith.addi %114, %c3_i32_81 : i32
      %c0_82 = arith.constant 0 : index
      %116 = arith.index_cast %115 : i32 to index
      %c0_83 = arith.constant 0 : index
      %117 = vector.load %arg1[%c0_82, %116, %c0_83] : memref<1x1028x3xf32, #tpu.memory_space<vmem>>, vector<1x64x3xf32>
      %118 = vector.shape_cast %117 : vector<1x64x3xf32> to vector<64x3xf32>
      %c39 = arith.constant 39 : index
      %c0_84 = arith.constant 0 : index
      %119 = vector.load %arg2[%c39, %c0_84] : memref<75x128xf32, #tpu.memory_space<vmem>>, vector<3x128xf32>
      %cst_85 = arith.constant dense<0.000000e+00> : vector<64x128xf32>
      %120 = tpu.matmul %118, %119, %cst_85 {dimension_numbers = #tpu.dot_dimension_numbers<[1], [0], [0], [1], [0, 0, 1, 1], [], []>} : vector<64x3xf32>, vector<3x128xf32>, vector<64x128xf32> -> vector<64x128xf32>
      %121 = arith.addf %113, %120 : vector<64x128xf32>
      %c64_i32_86 = arith.constant 64 : i32
      %122 = arith.addi %8, %c64_i32_86 : i32
      %c4_i32_87 = arith.constant 4 : i32
      %123 = arith.addi %122, %c4_i32_87 : i32
      %c0_88 = arith.constant 0 : index
      %124 = arith.index_cast %123 : i32 to index
      %c0_89 = arith.constant 0 : index
      %125 = vector.load %arg1[%c0_88, %124, %c0_89] : memref<1x1028x3xf32, #tpu.memory_space<vmem>>, vector<1x64x3xf32>
      %126 = vector.shape_cast %125 : vector<1x64x3xf32> to vector<64x3xf32>
      %c42 = arith.constant 42 : index
      %c0_90 = arith.constant 0 : index
      %127 = vector.load %arg2[%c42, %c0_90] : memref<75x128xf32, #tpu.memory_space<vmem>>, vector<3x128xf32>
      %cst_91 = arith.constant dense<0.000000e+00> : vector<64x128xf32>
      %128 = tpu.matmul %126, %127, %cst_91 {dimension_numbers = #tpu.dot_dimension_numbers<[1], [0], [0], [1], [0, 0, 1, 1], [], []>} : vector<64x3xf32>, vector<3x128xf32>, vector<64x128xf32> -> vector<64x128xf32>
      %129 = arith.addf %121, %128 : vector<64x128xf32>
      %c96_i32 = arith.constant 96 : i32
      %130 = arith.addi %8, %c96_i32 : i32
      %c0_i32_92 = arith.constant 0 : i32
      %131 = arith.addi %130, %c0_i32_92 : i32
      %c0_93 = arith.constant 0 : index
      %132 = arith.index_cast %131 : i32 to index
      %c0_94 = arith.constant 0 : index
      %133 = vector.load %arg1[%c0_93, %132, %c0_94] : memref<1x1028x3xf32, #tpu.memory_space<vmem>>, vector<1x64x3xf32>
      %134 = vector.shape_cast %133 : vector<1x64x3xf32> to vector<64x3xf32>
      %c45 = arith.constant 45 : index
      %c0_95 = arith.constant 0 : index
      %135 = vector.load %arg2[%c45, %c0_95] : memref<75x128xf32, #tpu.memory_space<vmem>>, vector<3x128xf32>
      %cst_96 = arith.constant dense<0.000000e+00> : vector<64x128xf32>
      %136 = tpu.matmul %134, %135, %cst_96 {dimension_numbers = #tpu.dot_dimension_numbers<[1], [0], [0], [1], [0, 0, 1, 1], [], []>} : vector<64x3xf32>, vector<3x128xf32>, vector<64x128xf32> -> vector<64x128xf32>
      %137 = arith.addf %129, %136 : vector<64x128xf32>
      %c96_i32_97 = arith.constant 96 : i32
      %138 = arith.addi %8, %c96_i32_97 : i32
      %c1_i32_98 = arith.constant 1 : i32
      %139 = arith.addi %138, %c1_i32_98 : i32
      %c0_99 = arith.constant 0 : index
      %140 = arith.index_cast %139 : i32 to index
      %c0_100 = arith.constant 0 : index
      %141 = vector.load %arg1[%c0_99, %140, %c0_100] : memref<1x1028x3xf32, #tpu.memory_space<vmem>>, vector<1x64x3xf32>
      %142 = vector.shape_cast %141 : vector<1x64x3xf32> to vector<64x3xf32>
      %c48 = arith.constant 48 : index
      %c0_101 = arith.constant 0 : index
      %143 = vector.load %arg2[%c48, %c0_101] : memref<75x128xf32, #tpu.memory_space<vmem>>, vector<3x128xf32>
      %cst_102 = arith.constant dense<0.000000e+00> : vector<64x128xf32>
      %144 = tpu.matmul %142, %143, %cst_102 {dimension_numbers = #tpu.dot_dimension_numbers<[1], [0], [0], [1], [0, 0, 1, 1], [], []>} : vector<64x3xf32>, vector<3x128xf32>, vector<64x128xf32> -> vector<64x128xf32>
      %145 = arith.addf %137, %144 : vector<64x128xf32>
      %c96_i32_103 = arith.constant 96 : i32
      %146 = arith.addi %8, %c96_i32_103 : i32
      %c2_i32_104 = arith.constant 2 : i32
      %147 = arith.addi %146, %c2_i32_104 : i32
      %c0_105 = arith.constant 0 : index
      %148 = arith.index_cast %147 : i32 to index
      %c0_106 = arith.constant 0 : index
      %149 = vector.load %arg1[%c0_105, %148, %c0_106] : memref<1x1028x3xf32, #tpu.memory_space<vmem>>, vector<1x64x3xf32>
      %150 = vector.shape_cast %149 : vector<1x64x3xf32> to vector<64x3xf32>
      %c51 = arith.constant 51 : index
      %c0_107 = arith.constant 0 : index
      %151 = vector.load %arg2[%c51, %c0_107] : memref<75x128xf32, #tpu.memory_space<vmem>>, vector<3x128xf32>
      %cst_108 = arith.constant dense<0.000000e+00> : vector<64x128xf32>
      %152 = tpu.matmul %150, %151, %cst_108 {dimension_numbers = #tpu.dot_dimension_numbers<[1], [0], [0], [1], [0, 0, 1, 1], [], []>} : vector<64x3xf32>, vector<3x128xf32>, vector<64x128xf32> -> vector<64x128xf32>
      %153 = arith.addf %145, %152 : vector<64x128xf32>
      %c96_i32_109 = arith.constant 96 : i32
      %154 = arith.addi %8, %c96_i32_109 : i32
      %c3_i32_110 = arith.constant 3 : i32
      %155 = arith.addi %154, %c3_i32_110 : i32
      %c0_111 = arith.constant 0 : index
      %156 = arith.index_cast %155 : i32 to index
      %c0_112 = arith.constant 0 : index
      %157 = vector.load %arg1[%c0_111, %156, %c0_112] : memref<1x1028x3xf32, #tpu.memory_space<vmem>>, vector<1x64x3xf32>
      %158 = vector.shape_cast %157 : vector<1x64x3xf32> to vector<64x3xf32>
      %c54 = arith.constant 54 : index
      %c0_113 = arith.constant 0 : index
      %159 = vector.load %arg2[%c54, %c0_113] : memref<75x128xf32, #tpu.memory_space<vmem>>, vector<3x128xf32>
      %cst_114 = arith.constant dense<0.000000e+00> : vector<64x128xf32>
      %160 = tpu.matmul %158, %159, %cst_114 {dimension_numbers = #tpu.dot_dimension_numbers<[1], [0], [0], [1], [0, 0, 1, 1], [], []>} : vector<64x3xf32>, vector<3x128xf32>, vector<64x128xf32> -> vector<64x128xf32>
      %161 = arith.addf %153, %160 : vector<64x128xf32>
      %c96_i32_115 = arith.constant 96 : i32
      %162 = arith.addi %8, %c96_i32_115 : i32
      %c4_i32_116 = arith.constant 4 : i32
      %163 = arith.addi %162, %c4_i32_116 : i32
      %c0_117 = arith.constant 0 : index
      %164 = arith.index_cast %163 : i32 to index
      %c0_118 = arith.constant 0 : index
      %165 = vector.load %arg1[%c0_117, %164, %c0_118] : memref<1x1028x3xf32, #tpu.memory_space<vmem>>, vector<1x64x3xf32>
      %166 = vector.shape_cast %165 : vector<1x64x3xf32> to vector<64x3xf32>
      %c57 = arith.constant 57 : index
      %c0_119 = arith.constant 0 : index
      %167 = vector.load %arg2[%c57, %c0_119] : memref<75x128xf32, #tpu.memory_space<vmem>>, vector<3x128xf32>
      %cst_120 = arith.constant dense<0.000000e+00> : vector<64x128xf32>
      %168 = tpu.matmul %166, %167, %cst_120 {dimension_numbers = #tpu.dot_dimension_numbers<[1], [0], [0], [1], [0, 0, 1, 1], [], []>} : vector<64x3xf32>, vector<3x128xf32>, vector<64x128xf32> -> vector<64x128xf32>
      %169 = arith.addf %161, %168 : vector<64x128xf32>
      %c128_i32 = arith.constant 128 : i32
      %170 = arith.addi %8, %c128_i32 : i32
      %c0_i32_121 = arith.constant 0 : i32
      %171 = arith.addi %170, %c0_i32_121 : i32
      %c0_122 = arith.constant 0 : index
      %172 = arith.index_cast %171 : i32 to index
      %c0_123 = arith.constant 0 : index
      %173 = vector.load %arg1[%c0_122, %172, %c0_123] : memref<1x1028x3xf32, #tpu.memory_space<vmem>>, vector<1x64x3xf32>
      %174 = vector.shape_cast %173 : vector<1x64x3xf32> to vector<64x3xf32>
      %c60 = arith.constant 60 : index
      %c0_124 = arith.constant 0 : index
      %175 = vector.load %arg2[%c60, %c0_124] : memref<75x128xf32, #tpu.memory_space<vmem>>, vector<3x128xf32>
      %cst_125 = arith.constant dense<0.000000e+00> : vector<64x128xf32>
      %176 = tpu.matmul %174, %175, %cst_125 {dimension_numbers = #tpu.dot_dimension_numbers<[1], [0], [0], [1], [0, 0, 1, 1], [], []>} : vector<64x3xf32>, vector<3x128xf32>, vector<64x128xf32> -> vector<64x128xf32>
      %177 = arith.addf %169, %176 : vector<64x128xf32>
      %c128_i32_126 = arith.constant 128 : i32
      %178 = arith.addi %8, %c128_i32_126 : i32
      %c1_i32_127 = arith.constant 1 : i32
      %179 = arith.addi %178, %c1_i32_127 : i32
      %c0_128 = arith.constant 0 : index
      %180 = arith.index_cast %179 : i32 to index
      %c0_129 = arith.constant 0 : index
      %181 = vector.load %arg1[%c0_128, %180, %c0_129] : memref<1x1028x3xf32, #tpu.memory_space<vmem>>, vector<1x64x3xf32>
      %182 = vector.shape_cast %181 : vector<1x64x3xf32> to vector<64x3xf32>
      %c63 = arith.constant 63 : index
      %c0_130 = arith.constant 0 : index
      %183 = vector.load %arg2[%c63, %c0_130] : memref<75x128xf32, #tpu.memory_space<vmem>>, vector<3x128xf32>
      %cst_131 = arith.constant dense<0.000000e+00> : vector<64x128xf32>
      %184 = tpu.matmul %182, %183, %cst_131 {dimension_numbers = #tpu.dot_dimension_numbers<[1], [0], [0], [1], [0, 0, 1, 1], [], []>} : vector<64x3xf32>, vector<3x128xf32>, vector<64x128xf32> -> vector<64x128xf32>
      %185 = arith.addf %177, %184 : vector<64x128xf32>
      %c128_i32_132 = arith.constant 128 : i32
      %186 = arith.addi %8, %c128_i32_132 : i32
      %c2_i32_133 = arith.constant 2 : i32
      %187 = arith.addi %186, %c2_i32_133 : i32
      %c0_134 = arith.constant 0 : index
      %188 = arith.index_cast %187 : i32 to index
      %c0_135 = arith.constant 0 : index
      %189 = vector.load %arg1[%c0_134, %188, %c0_135] : memref<1x1028x3xf32, #tpu.memory_space<vmem>>, vector<1x64x3xf32>
      %190 = vector.shape_cast %189 : vector<1x64x3xf32> to vector<64x3xf32>
      %c66 = arith.constant 66 : index
      %c0_136 = arith.constant 0 : index
      %191 = vector.load %arg2[%c66, %c0_136] : memref<75x128xf32, #tpu.memory_space<vmem>>, vector<3x128xf32>
      %cst_137 = arith.constant dense<0.000000e+00> : vector<64x128xf32>
      %192 = tpu.matmul %190, %191, %cst_137 {dimension_numbers = #tpu.dot_dimension_numbers<[1], [0], [0], [1], [0, 0, 1, 1], [], []>} : vector<64x3xf32>, vector<3x128xf32>, vector<64x128xf32> -> vector<64x128xf32>
      %193 = arith.addf %185, %192 : vector<64x128xf32>
      %c128_i32_138 = arith.constant 128 : i32
      %194 = arith.addi %8, %c128_i32_138 : i32
      %c3_i32_139 = arith.constant 3 : i32
      %195 = arith.addi %194, %c3_i32_139 : i32
      %c0_140 = arith.constant 0 : index
      %196 = arith.index_cast %195 : i32 to index
      %c0_141 = arith.constant 0 : index
      %197 = vector.load %arg1[%c0_140, %196, %c0_141] : memref<1x1028x3xf32, #tpu.memory_space<vmem>>, vector<1x64x3xf32>
      %198 = vector.shape_cast %197 : vector<1x64x3xf32> to vector<64x3xf32>
      %c69 = arith.constant 69 : index
      %c0_142 = arith.constant 0 : index
      %199 = vector.load %arg2[%c69, %c0_142] : memref<75x128xf32, #tpu.memory_space<vmem>>, vector<3x128xf32>
      %cst_143 = arith.constant dense<0.000000e+00> : vector<64x128xf32>
      %200 = tpu.matmul %198, %199, %cst_143 {dimension_numbers = #tpu.dot_dimension_numbers<[1], [0], [0], [1], [0, 0, 1, 1], [], []>} : vector<64x3xf32>, vector<3x128xf32>, vector<64x128xf32> -> vector<64x128xf32>
      %201 = arith.addf %193, %200 : vector<64x128xf32>
      %c128_i32_144 = arith.constant 128 : i32
      %202 = arith.addi %8, %c128_i32_144 : i32
      %c4_i32_145 = arith.constant 4 : i32
      %203 = arith.addi %202, %c4_i32_145 : i32
      %c0_146 = arith.constant 0 : index
      %204 = arith.index_cast %203 : i32 to index
      %c0_147 = arith.constant 0 : index
      %205 = vector.load %arg1[%c0_146, %204, %c0_147] : memref<1x1028x3xf32, #tpu.memory_space<vmem>>, vector<1x64x3xf32>
      %206 = vector.shape_cast %205 : vector<1x64x3xf32> to vector<64x3xf32>
      %c72 = arith.constant 72 : index
      %c0_148 = arith.constant 0 : index
      %207 = vector.load %arg2[%c72, %c0_148] : memref<75x128xf32, #tpu.memory_space<vmem>>, vector<3x128xf32>
      %cst_149 = arith.constant dense<0.000000e+00> : vector<64x128xf32>
      %208 = tpu.matmul %206, %207, %cst_149 {dimension_numbers = #tpu.dot_dimension_numbers<[1], [0], [0], [1], [0, 0, 1, 1], [], []>} : vector<64x3xf32>, vector<3x128xf32>, vector<64x128xf32> -> vector<64x128xf32>
      %209 = arith.addf %201, %208 : vector<64x128xf32>
      %c0_150 = arith.constant 0 : index
      %c0_151 = arith.constant 0 : index
      %210 = vector.load %arg5[%c0_150, %c0_151] : memref<64x128xf32, #tpu.memory_space<vmem>>, vector<64x128xf32>
      tpu.vector_store %arg5[%c0_150, %c0_151], %209 {strides = array<i32>} : memref<64x128xf32, #tpu.memory_space<vmem>>, vector<64x128xf32>,
      %c0_152 = arith.constant 0 : index
      %c0_153 = arith.constant 0 : index
      %211 = tpu.strided_load %arg5[%c0_152, %c0_153] {strides = array<i32: 2, 1>} : memref<64x128xf32, #tpu.memory_space<vmem>>, vector<14x128xf32>
      %c1 = arith.constant 1 : index
      %c0_154 = arith.constant 0 : index
      %212 = tpu.strided_load %arg5[%c1, %c0_154] {strides = array<i32: 2, 1>} : memref<64x128xf32, #tpu.memory_space<vmem>>, vector<14x128xf32>
      %c32 = arith.constant 32 : index
      %c0_155 = arith.constant 0 : index
      %213 = tpu.strided_load %arg5[%c32, %c0_155] {strides = array<i32: 2, 1>} : memref<64x128xf32, #tpu.memory_space<vmem>>, vector<14x128xf32>
      %c33_156 = arith.constant 33 : index
      %c0_157 = arith.constant 0 : index
      %214 = tpu.strided_load %arg5[%c33_156, %c0_157] {strides = array<i32: 2, 1>} : memref<64x128xf32, #tpu.memory_space<vmem>>, vector<14x128xf32>
      %215 = arith.maximumf %211, %212 : vector<14x128xf32>
      %216 = arith.maximumf %213, %214 : vector<14x128xf32>
      %217 = arith.maximumf %215, %216 : vector<14x128xf32>
      %218 = arith.addf %217, %2 : vector<14x128xf32>
      %cst_158 = arith.constant 0.000000e+00 : f32
      %219 = vector.broadcast %cst_158 : f32 to vector<14x128xf32>
      %220 = arith.maximumf %218, %219 : vector<14x128xf32>
      %c14_i32_159 = arith.constant 14 : i32
      %221 = arith.muli %arg6, %c14_i32_159 : i32
      %c0_160 = arith.constant 0 : index
      %222 = arith.index_cast %221 : i32 to index
      %c0_161 = arith.constant 0 : index
      %223 = vector.load %arg4[%c0_160, %222, %c0_161] : memref<1x200x128xf32, #tpu.memory_space<vmem>>, vector<1x14x128xf32>
      %224 = vector.shape_cast %223 : vector<1x14x128xf32> to vector<14x128xf32>
      %225 = vector.shape_cast %220 : vector<14x128xf32> to vector<1x14x128xf32>
      tpu.vector_store %arg4[%c0_160, %222, %c0_161], %225 {strides = array<i32>} : memref<1x200x128xf32, #tpu.memory_space<vmem>>, vector<1x14x128xf32>,
    }
    %c14_i32_1 = arith.constant 14 : i32
    %cst = arith.constant 0.000000e+00 : f32
    %4 = vector.broadcast %cst : f32 to vector<4x128xf32>
    %c0_2 = arith.constant 0 : index
    %c196 = arith.constant 196 : index
    %c0_3 = arith.constant 0 : index
    %5 = vector.load %arg4[%c0_2, %c196, %c0_3] : memref<1x200x128xf32, #tpu.memory_space<vmem>>, vector<1x4x128xf32>
    %6 = vector.shape_cast %5 : vector<1x4x128xf32> to vector<4x128xf32>
    %7 = vector.shape_cast %4 : vector<4x128xf32> to vector<1x4x128xf32>
    tpu.vector_store %arg4[%c0_2, %c196, %c0_3], %7 {strides = array<i32>} : memref<1x200x128xf32, #tpu.memory_space<vmem>>, vector<1x4x128xf32>,
    return
  }
  func.func @transform_0(%arg0: i32) -> (i32, i32, i32) {
    %c0_i32 = arith.constant 0 : i32
    %c0_i32_0 = arith.constant 0 : i32
    %c0_i32_1 = arith.constant 0 : i32
    return %arg0, %c0_i32, %c0_i32_0 : i32, i32, i32
  }
  func.func @transform_1(%arg0: i32) -> (i32, i32) {
    %c0_i32 = arith.constant 0 : i32
    %c0_i32_0 = arith.constant 0 : i32
    %c0_i32_1 = arith.constant 0 : i32
    return %c0_i32, %c0_i32_0 : i32, i32
  }
  func.func @transform_2(%arg0: i32) -> (i32, i32) {
    %c0_i32 = arith.constant 0 : i32
    %c0_i32_0 = arith.constant 0 : i32
    %c0_i32_1 = arith.constant 0 : i32
    return %c0_i32, %c0_i32_0 : i32, i32
  }
  func.func @transform_3(%arg0: i32) -> (i32, i32, i32) {
    %c0_i32 = arith.constant 0 : i32
    %c0_i32_0 = arith.constant 0 : i32
    %c0_i32_1 = arith.constant 0 : i32
    return %arg0, %c0_i32, %c0_i32_0 : i32, i32, i32
  }
}

module attributes {stable_mosaic.version = 11 : i64} {
  func.func @_fc_fused_kernel(%arg0: i32, %arg1: memref<2x3200xf32, #tpu.memory_space<vmem>>, %arg2: memref<3200x128xf32, #tpu.memory_space<vmem>>, %arg3: memref<1x128xf32, #tpu.memory_space<vmem>>, %arg4: memref<128x128xf32, #tpu.memory_space<vmem>>, %arg5: memref<1x128xf32, #tpu.memory_space<vmem>>, %arg6: memref<128x10xf32, #tpu.memory_space<vmem>>, %arg7: memref<1x10xf32, #tpu.memory_space<vmem>>, %arg8: memref<2x10xf32, #tpu.memory_space<vmem>>) attributes {dimension_semantics = [#tpu.dimension_semantics<parallel>], iteration_bounds = array<i64: 1>, scalar_prefetch = 0 : i64, scratch_operands = 0 : i64, tpu.core_type = #tpu.core_type<tc>, window_params = [{transform_indices = @transform_0, window_bounds = array<i64: 2, 3200>}, {pipeline_mode = #tpu.pipeline_mode<synchronous>, transform_indices = @transform_1, window_bounds = array<i64: 3200, 128>}, {pipeline_mode = #tpu.pipeline_mode<synchronous>, transform_indices = @transform_2, window_bounds = array<i64: 1, 128>}, {pipeline_mode = #tpu.pipeline_mode<synchronous>, transform_indices = @transform_3, window_bounds = array<i64: 128, 128>}, {pipeline_mode = #tpu.pipeline_mode<synchronous>, transform_indices = @transform_4, window_bounds = array<i64: 1, 128>}, {pipeline_mode = #tpu.pipeline_mode<synchronous>, transform_indices = @transform_5, window_bounds = array<i64: 128, 10>}, {pipeline_mode = #tpu.pipeline_mode<synchronous>, transform_indices = @transform_6, window_bounds = array<i64: 1, 10>}, {transform_indices = @transform_7, window_bounds = array<i64: 2, 10>}]} {
    %c0 = arith.constant 0 : index
    %c0_0 = arith.constant 0 : index
    %0 = vector.load %arg1[%c0, %c0_0] : memref<2x3200xf32, #tpu.memory_space<vmem>>, vector<2x3200xf32>
    %c0_1 = arith.constant 0 : index
    %c0_2 = arith.constant 0 : index
    %1 = vector.load %arg2[%c0_1, %c0_2] : memref<3200x128xf32, #tpu.memory_space<vmem>>, vector<3200x128xf32>
    %cst = arith.constant dense<0.000000e+00> : vector<2x128xf32>
    %2 = tpu.matmul %0, %1, %cst {dimension_numbers = #tpu.dot_dimension_numbers<[1], [0], [0], [1], [0, 0, 1, 1], [], []>} : vector<2x3200xf32>, vector<3200x128xf32>, vector<2x128xf32> -> vector<2x128xf32>
    %c0_3 = arith.constant 0 : index
    %c0_4 = arith.constant 0 : index
    %3 = vector.load %arg3[%c0_3, %c0_4] : memref<1x128xf32, #tpu.memory_space<vmem>>, vector<1x128xf32>
    %4 = vector.broadcast %3 : vector<1x128xf32> to vector<2x128xf32>
    %5 = arith.addf %2, %4 : vector<2x128xf32>
    %cst_5 = arith.constant 0.000000e+00 : f32
    %6 = vector.broadcast %cst_5 : f32 to vector<2x128xf32>
    %7 = arith.maximumf %5, %6 : vector<2x128xf32>
    %c0_6 = arith.constant 0 : index
    %c0_7 = arith.constant 0 : index
    %8 = vector.load %arg4[%c0_6, %c0_7] : memref<128x128xf32, #tpu.memory_space<vmem>>, vector<128x128xf32>
    %cst_8 = arith.constant dense<0.000000e+00> : vector<2x128xf32>
    %9 = tpu.matmul %7, %8, %cst_8 {dimension_numbers = #tpu.dot_dimension_numbers<[1], [0], [0], [1], [0, 0, 1, 1], [], []>} : vector<2x128xf32>, vector<128x128xf32>, vector<2x128xf32> -> vector<2x128xf32>
    %c0_9 = arith.constant 0 : index
    %c0_10 = arith.constant 0 : index
    %10 = vector.load %arg5[%c0_9, %c0_10] : memref<1x128xf32, #tpu.memory_space<vmem>>, vector<1x128xf32>
    %11 = vector.broadcast %10 : vector<1x128xf32> to vector<2x128xf32>
    %12 = arith.addf %9, %11 : vector<2x128xf32>
    %cst_11 = arith.constant 0.000000e+00 : f32
    %13 = vector.broadcast %cst_11 : f32 to vector<2x128xf32>
    %14 = arith.maximumf %12, %13 : vector<2x128xf32>
    %c0_12 = arith.constant 0 : index
    %c0_13 = arith.constant 0 : index
    %15 = vector.load %arg6[%c0_12, %c0_13] : memref<128x10xf32, #tpu.memory_space<vmem>>, vector<128x10xf32>
    %cst_14 = arith.constant dense<0.000000e+00> : vector<2x10xf32>
    %16 = tpu.matmul %14, %15, %cst_14 {dimension_numbers = #tpu.dot_dimension_numbers<[1], [0], [0], [1], [0, 0, 1, 1], [], []>} : vector<2x128xf32>, vector<128x10xf32>, vector<2x10xf32> -> vector<2x10xf32>
    %c0_15 = arith.constant 0 : index
    %c0_16 = arith.constant 0 : index
    %17 = vector.load %arg7[%c0_15, %c0_16] : memref<1x10xf32, #tpu.memory_space<vmem>>, vector<1x10xf32>
    %18 = vector.broadcast %17 : vector<1x10xf32> to vector<2x10xf32>
    %19 = arith.addf %16, %18 : vector<2x10xf32>
    %c0_17 = arith.constant 0 : index
    %c0_18 = arith.constant 0 : index
    %20 = vector.load %arg8[%c0_17, %c0_18] : memref<2x10xf32, #tpu.memory_space<vmem>>, vector<2x10xf32>
    tpu.vector_store %arg8[%c0_17, %c0_18], %19 {strides = array<i32>} : memref<2x10xf32, #tpu.memory_space<vmem>>, vector<2x10xf32>,
    return
  }
  func.func @transform_0(%arg0: i32) -> (i32, i32) {
    %c0_i32 = arith.constant 0 : i32
    %c0_i32_0 = arith.constant 0 : i32
    return %arg0, %c0_i32 : i32, i32
  }
  func.func @transform_1(%arg0: i32) -> (i32, i32) {
    %c0_i32 = arith.constant 0 : i32
    %c0_i32_0 = arith.constant 0 : i32
    %c0_i32_1 = arith.constant 0 : i32
    return %c0_i32, %c0_i32_0 : i32, i32
  }
  func.func @transform_2(%arg0: i32) -> (i32, i32) {
    %c0_i32 = arith.constant 0 : i32
    %c0_i32_0 = arith.constant 0 : i32
    %c0_i32_1 = arith.constant 0 : i32
    return %c0_i32, %c0_i32_0 : i32, i32
  }
  func.func @transform_3(%arg0: i32) -> (i32, i32) {
    %c0_i32 = arith.constant 0 : i32
    %c0_i32_0 = arith.constant 0 : i32
    %c0_i32_1 = arith.constant 0 : i32
    return %c0_i32, %c0_i32_0 : i32, i32
  }
  func.func @transform_4(%arg0: i32) -> (i32, i32) {
    %c0_i32 = arith.constant 0 : i32
    %c0_i32_0 = arith.constant 0 : i32
    %c0_i32_1 = arith.constant 0 : i32
    return %c0_i32, %c0_i32_0 : i32, i32
  }
  func.func @transform_5(%arg0: i32) -> (i32, i32) {
    %c0_i32 = arith.constant 0 : i32
    %c0_i32_0 = arith.constant 0 : i32
    %c0_i32_1 = arith.constant 0 : i32
    return %c0_i32, %c0_i32_0 : i32, i32
  }
  func.func @transform_6(%arg0: i32) -> (i32, i32) {
    %c0_i32 = arith.constant 0 : i32
    %c0_i32_0 = arith.constant 0 : i32
    %c0_i32_1 = arith.constant 0 : i32
    return %c0_i32, %c0_i32_0 : i32, i32
  }
  func.func @transform_7(%arg0: i32) -> (i32, i32) {
    %c0_i32 = arith.constant 0 : i32
    %c0_i32_0 = arith.constant 0 : i32
    return %arg0, %c0_i32 : i32, i32
  }
}

</mosaic_0001>

<llo_original>
// kernel: lenet_forward.5
$region0: #{lenet_forward.5}
  #allocation0 [shape = 'u32[]', space=smem, size = 0x4, offset = 0x4, fixed_abs, tag = 'smem constant byte address 0x4 - core index']
  #allocation1 [shape = 'u32[144,128]{1,0:T(1,128)}', space=vmem, size = 0x12000, scoped, tag = 'internal scratch']
  %s0 = inlined_call_operand.vmem [shape: f32[2,3200], index: 0, kind: input, shape index: {}]
  %s1 = inlined_call_operand.vmem [shape: f32[3200,128], index: 1, kind: input, shape index: {}]
  %s2 = inlined_call_operand.vmem [shape: f32[1,128], index: 2, kind: input, shape index: {}]
  %s3 = inlined_call_operand.vmem [shape: f32[128,128], index: 3, kind: input, shape index: {}]
  %s4 = inlined_call_operand.vmem [shape: f32[1,128], index: 4, kind: input, shape index: {}]
  %s5 = inlined_call_operand.vmem [shape: f32[128,10], index: 5, kind: input, shape index: {}]
  %s6 = inlined_call_operand.vmem [shape: f32[1,10], index: 6, kind: input, shape index: {}]
  %s7 = inlined_call_operand.hbm [shape: f32[2,10], index: 7, kind: output, shape index: {}]
  %s8 = sld [smem:[#allocation0]]
  $region38: #{lenet_forward.5} parent=0
    _
  %s10 = ssub.s32 1, %s8
  %s11 = scalar_select 0, %s10, %s8
  $region1: #{lenet_forward.5} parent=0
    #allocation2 [shape = 'u8[1024]{0}', space=vmem, size = 0x400, scoped, tag = 'output window, operand 0, single buffered']
    #allocation3 [shape = 's32[1]{0}', space=sflag, size = 0x4, scoped, tag = 'scoped memory for lenet_forward.5']
    %12 = vsyncpa [#allocation3], 0
    // Predicated region
    $region2: #{lenet_forward.5} parent=1 // pred_check
      _
    $region3: #{lenet_forward.5} parent=1 // pred_check_branch
      %14 = sbr.rel (0) target = $region5
    $region4: #{lenet_forward.5} parent=1 // pred_region
      _
    $region5: #{lenet_forward.5} parent=1 // pred_fallthru
      _
    // Predicated region
    $region6: #{lenet_forward.5} parent=1 // pred_check
      _
    $region7: #{lenet_forward.5} parent=1 // pred_check_branch
      %16 = sbr.rel (0) target = $region9
    $region8: #{lenet_forward.5} parent=1 // pred_region
      _
    $region9: #{lenet_forward.5} parent=1 // pred_fallthru
      _
    // Predicated region
    $region10: #{lenet_forward.5} parent=1 // pred_check
      _
    $region11: #{lenet_forward.5} parent=1 // pred_check_branch
      %18 = sbr.rel (0) target = $region13
    $region12: #{lenet_forward.5} parent=1 // pred_region
      _
    $region13: #{lenet_forward.5} parent=1 // pred_fallthru
      _
    // Predicated region
    $region14: #{lenet_forward.5} parent=1 // pred_check
      _
    $region15: #{lenet_forward.5} parent=1 // pred_check_branch
      %20 = sbr.rel (0) target = $region17
    $region16: #{lenet_forward.5} parent=1 // pred_region
      _
    $region17: #{lenet_forward.5} parent=1 // pred_fallthru
      _
    // Predicated region
    $region18: #{lenet_forward.5} parent=1 // pred_check
      _
    $region19: #{lenet_forward.5} parent=1 // pred_check_branch
      %22 = sbr.rel (0) target = $region21
    $region20: #{lenet_forward.5} parent=1 // pred_region
      _
    $region21: #{lenet_forward.5} parent=1 // pred_fallthru
      _
    // Predicated region
    $region22: #{lenet_forward.5} parent=1 // pred_check
      _
    $region23: #{lenet_forward.5} parent=1 // pred_check_branch
      %24 = sbr.rel (0) target = $region25
    $region24: #{lenet_forward.5} parent=1 // pred_region
      _
    $region25: #{lenet_forward.5} parent=1 // pred_fallthru
      _
    // Predicated region
    $region26: #{lenet_forward.5} parent=1 // pred_check
      _
    $region27: #{lenet_forward.5} parent=1 // pred_check_branch
      %26 = sbr.rel (0) target = $region29
    $region28: #{lenet_forward.5} parent=1 // pred_region
      _
    $region29: #{lenet_forward.5} parent=1 // pred_fallthru
      _
    %v27 = vld [vmem:[%s0] sm:$0xff]
    %v28 = vld [vmem:[%s0 + $0x8] sm:$0xff]
    %v29 = vld [vmem:[%s0 + $0x10] sm:$0xff]
    %v30 = vld [vmem:[%s0 + $0x18] sm:$0xff]
    %v31 = vld [vmem:[%s0 + $0x20] sm:$0xff]
    %v32 = vld [vmem:[%s0 + $0x28] sm:$0xff]
    %v33 = vld [vmem:[%s0 + $0x30] sm:$0x3]
    %v34 = vld [vmem:[%s1] sm:$0xff]
    %v35 = vld [vmem:[%s1 + $0x8] sm:$0xff]
    %v36 = vld [vmem:[%s1 + $0x10] sm:$0xff]
    %v37 = vld [vmem:[%s1 + $0x18] sm:$0xff]
    %v38 = vld [vmem:[%s1 + $0x20] sm:$0xff]
    %v39 = vld [vmem:[%s1 + $0x28] sm:$0xff]
    %v40 = vld [vmem:[%s1 + $0x30] sm:$0xff]
    %v41 = vld [vmem:[%s1 + $0x38] sm:$0xff]
    %v42 = vld [vmem:[%s1 + $0x40] sm:$0xff]
    %v43 = vld [vmem:[%s1 + $0x48] sm:$0xff]
    %v44 = vld [vmem:[%s1 + $0x50] sm:$0xff]
    %v45 = vld [vmem:[%s1 + $0x58] sm:$0xff]
    %v46 = vld [vmem:[%s1 + $0x60] sm:$0xff]
    %v47 = vld [vmem:[%s1 + $0x68] sm:$0xff]
    %v48 = vld [vmem:[%s1 + $0x70] sm:$0xff]
    %v49 = vld [vmem:[%s1 + $0x78] sm:$0xff]
    %v50 = vld [vmem:[%s1 + $0x80] sm:$0xff]
    %v51 = vld [vmem:[%s1 + $0x88] sm:$0xff]
    %v52 = vld [vmem:[%s1 + $0x90] sm:$0xff]
    %v53 = vld [vmem:[%s1 + $0x98] sm:$0xff]
    %v54 = vld [vmem:[%s1 + $0xa0] sm:$0xff]
    %v55 = vld [vmem:[%s1 + $0xa8] sm:$0xff]
    %v56 = vld [vmem:[%s1 + $0xb0] sm:$0xff]
    %v57 = vld [vmem:[%s1 + $0xb8] sm:$0xff]
    %v58 = vld [vmem:[%s1 + $0xc0] sm:$0xff]
    %v59 = vld [vmem:[%s1 + $0xc8] sm:$0xff]
    %v60 = vld [vmem:[%s1 + $0xd0] sm:$0xff]
    %v61 = vld [vmem:[%s1 + $0xd8] sm:$0xff]
    %v62 = vld [vmem:[%s1 + $0xe0] sm:$0xff]
    %v63 = vld [vmem:[%s1 + $0xe8] sm:$0xff]
    %v64 = vld [vmem:[%s1 + $0xf0] sm:$0xff]
    %v65 = vld [vmem:[%s1 + $0xf8] sm:$0xff]
    %v66 = vld [vmem:[%s1 + $0x100] sm:$0xff]
    %v67 = vld [vmem:[%s1 + $0x108] sm:$0xff]
    %v68 = vld [vmem:[%s1 + $0x110] sm:$0xff]
    %v69 = vld [vmem:[%s1 + $0x118] sm:$0xff]
    %v70 = vld [vmem:[%s1 + $0x120] sm:$0xff]
    %v71 = vld [vmem:[%s1 + $0x128] sm:$0xff]
    %v72 = vld [vmem:[%s1 + $0x130] sm:$0xff]
    %v73 = vld [vmem:[%s1 + $0x138] sm:$0xff]
    %v74 = vld [vmem:[%s1 + $0x140] sm:$0xff]
    %v75 = vld [vmem:[%s1 + $0x148] sm:$0xff]
    %v76 = vld [vmem:[%s1 + $0x150] sm:$0xff]
    %v77 = vld [vmem:[%s1 + $0x158] sm:$0xff]
    %v78 = vld [vmem:[%s1 + $0x160] sm:$0xff]
    %v79 = vld [vmem:[%s1 + $0x168] sm:$0xff]
    %v80 = vld [vmem:[%s1 + $0x170] sm:$0xff]
    %v81 = vld [vmem:[%s1 + $0x178] sm:$0xff]
    %v82 = vld [vmem:[%s1 + $0x180] sm:$0xff]
    %v83 = vld [vmem:[%s1 + $0x188] sm:$0xff]
    %v84 = vld [vmem:[%s1 + $0x190] sm:$0xff]
    %v85 = vld [vmem:[%s1 + $0x198] sm:$0xff]
    %v86 = vld [vmem:[%s1 + $0x1a0] sm:$0xff]
    %v87 = vld [vmem:[%s1 + $0x1a8] sm:$0xff]
    %v88 = vld [vmem:[%s1 + $0x1b0] sm:$0xff]
    %v89 = vld [vmem:[%s1 + $0x1b8] sm:$0xff]
    %v90 = vld [vmem:[%s1 + $0x1c0] sm:$0xff]
    %v91 = vld [vmem:[%s1 + $0x1c8] sm:$0xff]
    %v92 = vld [vmem:[%s1 + $0x1d0] sm:$0xff]
    %v93 = vld [vmem:[%s1 + $0x1d8] sm:$0xff]
    %v94 = vld [vmem:[%s1 + $0x1e0] sm:$0xff]
    %v95 = vld [vmem:[%s1 + $0x1e8] sm:$0xff]
    %v96 = vld [vmem:[%s1 + $0x1f0] sm:$0xff]
    %v97 = vld [vmem:[%s1 + $0x1f8] sm:$0xff]
    %v98 = vld [vmem:[%s1 + $0x200] sm:$0xff]
    %v99 = vld [vmem:[%s1 + $0x208] sm:$0xff]
    %v100 = vld [vmem:[%s1 + $0x210] sm:$0xff]
    %v101 = vld [vmem:[%s1 + $0x218] sm:$0xff]
    %v102 = vld [vmem:[%s1 + $0x220] sm:$0xff]
    %v103 = vld [vmem:[%s1 + $0x228] sm:$0xff]
    %v104 = vld [vmem:[%s1 + $0x230] sm:$0xff]
    %v105 = vld [vmem:[%s1 + $0x238] sm:$0xff]
    %v106 = vld [vmem:[%s1 + $0x240] sm:$0xff]
    %v107 = vld [vmem:[%s1 + $0x248] sm:$0xff]
    %v108 = vld [vmem:[%s1 + $0x250] sm:$0xff]
    %v109 = vld [vmem:[%s1 + $0x258] sm:$0xff]
    %v110 = vld [vmem:[%s1 + $0x260] sm:$0xff]
    %v111 = vld [vmem:[%s1 + $0x268] sm:$0xff]
    %v112 = vld [vmem:[%s1 + $0x270] sm:$0xff]
    %v113 = vld [vmem:[%s1 + $0x278] sm:$0xff]
    %v114 = vld [vmem:[%s1 + $0x280] sm:$0xff]
    %v115 = vld [vmem:[%s1 + $0x288] sm:$0xff]
    %v116 = vld [vmem:[%s1 + $0x290] sm:$0xff]
    %v117 = vld [vmem:[%s1 + $0x298] sm:$0xff]
    %v118 = vld [vmem:[%s1 + $0x2a0] sm:$0xff]
    %v119 = vld [vmem:[%s1 + $0x2a8] sm:$0xff]
    %v120 = vld [vmem:[%s1 + $0x2b0] sm:$0xff]
    %v121 = vld [vmem:[%s1 + $0x2b8] sm:$0xff]
    %v122 = vld [vmem:[%s1 + $0x2c0] sm:$0xff]
    %v123 = vld [vmem:[%s1 + $0x2c8] sm:$0xff]
    %v124 = vld [vmem:[%s1 + $0x2d0] sm:$0xff]
    %v125 = vld [vmem:[%s1 + $0x2d8] sm:$0xff]
    %v126 = vld [vmem:[%s1 + $0x2e0] sm:$0xff]
    %v127 = vld [vmem:[%s1 + $0x2e8] sm:$0xff]
    %v128 = vld [vmem:[%s1 + $0x2f0] sm:$0xff]
    %v129 = vld [vmem:[%s1 + $0x2f8] sm:$0xff]
    %v130 = vld [vmem:[%s1 + $0x300] sm:$0xff]
    %v131 = vld [vmem:[%s1 + $0x308] sm:$0xff]
    %v132 = vld [vmem:[%s1 + $0x310] sm:$0xff]
    %v133 = vld [vmem:[%s1 + $0x318] sm:$0xff]
    %v134 = vld [vmem:[%s1 + $0x320] sm:$0xff]
    %v135 = vld [vmem:[%s1 + $0x328] sm:$0xff]
    %v136 = vld [vmem:[%s1 + $0x330] sm:$0xff]
    %v137 = vld [vmem:[%s1 + $0x338] sm:$0xff]
    %v138 = vld [vmem:[%s1 + $0x340] sm:$0xff]
    %v139 = vld [vmem:[%s1 + $0x348] sm:$0xff]
    %v140 = vld [vmem:[%s1 + $0x350] sm:$0xff]
    %v141 = vld [vmem:[%s1 + $0x358] sm:$0xff]
    %v142 = vld [vmem:[%s1 + $0x360] sm:$0xff]
    %v143 = vld [vmem:[%s1 + $0x368] sm:$0xff]
    %v144 = vld [vmem:[%s1 + $0x370] sm:$0xff]
    %v145 = vld [vmem:[%s1 + $0x378] sm:$0xff]
    %v146 = vld [vmem:[%s1 + $0x380] sm:$0xff]
    %v147 = vld [vmem:[%s1 + $0x388] sm:$0xff]
    %v148 = vld [vmem:[%s1 + $0x390] sm:$0xff]
    %v149 = vld [vmem:[%s1 + $0x398] sm:$0xff]
    %v150 = vld [vmem:[%s1 + $0x3a0] sm:$0xff]
    %v151 = vld [vmem:[%s1 + $0x3a8] sm:$0xff]
    %v152 = vld [vmem:[%s1 + $0x3b0] sm:$0xff]
    %v153 = vld [vmem:[%s1 + $0x3b8] sm:$0xff]
    %v154 = vld [vmem:[%s1 + $0x3c0] sm:$0xff]
    %v155 = vld [vmem:[%s1 + $0x3c8] sm:$0xff]
    %v156 = vld [vmem:[%s1 + $0x3d0] sm:$0xff]
    %v157 = vld [vmem:[%s1 + $0x3d8] sm:$0xff]
    %v158 = vld [vmem:[%s1 + $0x3e0] sm:$0xff]
    %v159 = vld [vmem:[%s1 + $0x3e8] sm:$0xff]
    %v160 = vld [vmem:[%s1 + $0x3f0] sm:$0xff]
    %v161 = vld [vmem:[%s1 + $0x3f8] sm:$0xff]
    %v162 = vld [vmem:[%s1 + $0x400] sm:$0xff]
    %v163 = vld [vmem:[%s1 + $0x408] sm:$0xff]
    %v164 = vld [vmem:[%s1 + $0x410] sm:$0xff]
    %v165 = vld [vmem:[%s1 + $0x418] sm:$0xff]
    %v166 = vld [vmem:[%s1 + $0x420] sm:$0xff]
    %v167 = vld [vmem:[%s1 + $0x428] sm:$0xff]
    %v168 = vld [vmem:[%s1 + $0x430] sm:$0xff]
    %v169 = vld [vmem:[%s1 + $0x438] sm:$0xff]
    %v170 = vld [vmem:[%s1 + $0x440] sm:$0xff]
    %v171 = vld [vmem:[%s1 + $0x448] sm:$0xff]
    %v172 = vld [vmem:[%s1 + $0x450] sm:$0xff]
    %v173 = vld [vmem:[%s1 + $0x458] sm:$0xff]
    %v174 = vld [vmem:[%s1 + $0x460] sm:$0xff]
    %v175 = vld [vmem:[%s1 + $0x468] sm:$0xff]
    %v176 = vld [vmem:[%s1 + $0x470] sm:$0xff]
    %v177 = vld [vmem:[%s1 + $0x478] sm:$0xff]
    %v178 = vld [vmem:[%s1 + $0x480] sm:$0xff]
    %v179 = vld [vmem:[%s1 + $0x488] sm:$0xff]
    %v180 = vld [vmem:[%s1 + $0x490] sm:$0xff]
    %v181 = vld [vmem:[%s1 + $0x498] sm:$0xff]
    %v182 = vld [vmem:[%s1 + $0x4a0] sm:$0xff]
    %v183 = vld [vmem:[%s1 + $0x4a8] sm:$0xff]
    %v184 = vld [vmem:[%s1 + $0x4b0] sm:$0xff]
    %v185 = vld [vmem:[%s1 + $0x4b8] sm:$0xff]
    %v186 = vld [vmem:[%s1 + $0x4c0] sm:$0xff]
    %v187 = vld [vmem:[%s1 + $0x4c8] sm:$0xff]
    %v188 = vld [vmem:[%s1 + $0x4d0] sm:$0xff]
    %v189 = vld [vmem:[%s1 + $0x4d8] sm:$0xff]
    %v190 = vld [vmem:[%s1 + $0x4e0] sm:$0xff]
    %v191 = vld [vmem:[%s1 + $0x4e8] sm:$0xff]
    %v192 = vld [vmem:[%s1 + $0x4f0] sm:$0xff]
    %v193 = vld [vmem:[%s1 + $0x4f8] sm:$0xff]
    %v194 = vld [vmem:[%s1 + $0x500] sm:$0xff]
    %v195 = vld [vmem:[%s1 + $0x508] sm:$0xff]
    %v196 = vld [vmem:[%s1 + $0x510] sm:$0xff]
    %v197 = vld [vmem:[%s1 + $0x518] sm:$0xff]
    %v198 = vld [vmem:[%s1 + $0x520] sm:$0xff]
    %v199 = vld [vmem:[%s1 + $0x528] sm:$0xff]
    %v200 = vld [vmem:[%s1 + $0x530] sm:$0xff]
    %v201 = vld [vmem:[%s1 + $0x538] sm:$0xff]
    %v202 = vld [vmem:[%s1 + $0x540] sm:$0xff]
    %v203 = vld [vmem:[%s1 + $0x548] sm:$0xff]
    %v204 = vld [vmem:[%s1 + $0x550] sm:$0xff]
    %v205 = vld [vmem:[%s1 + $0x558] sm:$0xff]
    %v206 = vld [vmem:[%s1 + $0x560] sm:$0xff]
    %v207 = vld [vmem:[%s1 + $0x568] sm:$0xff]
    %v208 = vld [vmem:[%s1 + $0x570] sm:$0xff]
    %v209 = vld [vmem:[%s1 + $0x578] sm:$0xff]
    %v210 = vld [vmem:[%s1 + $0x580] sm:$0xff]
    %v211 = vld [vmem:[%s1 + $0x588] sm:$0xff]
    %v212 = vld [vmem:[%s1 + $0x590] sm:$0xff]
    %v213 = vld [vmem:[%s1 + $0x598] sm:$0xff]
    %v214 = vld [vmem:[%s1 + $0x5a0] sm:$0xff]
    %v215 = vld [vmem:[%s1 + $0x5a8] sm:$0xff]
    %v216 = vld [vmem:[%s1 + $0x5b0] sm:$0xff]
    %v217 = vld [vmem:[%s1 + $0x5b8] sm:$0xff]
    %v218 = vld [vmem:[%s1 + $0x5c0] sm:$0xff]
    %v219 = vld [vmem:[%s1 + $0x5c8] sm:$0xff]
    %v220 = vld [vmem:[%s1 + $0x5d0] sm:$0xff]
    %v221 = vld [vmem:[%s1 + $0x5d8] sm:$0xff]
    %v222 = vld [vmem:[%s1 + $0x5e0] sm:$0xff]
    %v223 = vld [vmem:[%s1 + $0x5e8] sm:$0xff]
    %v224 = vld [vmem:[%s1 + $0x5f0] sm:$0xff]
    %v225 = vld [vmem:[%s1 + $0x5f8] sm:$0xff]
    %v226 = vld [vmem:[%s1 + $0x600] sm:$0xff]
    %v227 = vld [vmem:[%s1 + $0x608] sm:$0xff]
    %v228 = vld [vmem:[%s1 + $0x610] sm:$0xff]
    %v229 = vld [vmem:[%s1 + $0x618] sm:$0xff]
    %v230 = vld [vmem:[%s1 + $0x620] sm:$0xff]
    %v231 = vld [vmem:[%s1 + $0x628] sm:$0xff]
    %v232 = vld [vmem:[%s1 + $0x630] sm:$0xff]
    %v233 = vld [vmem:[%s1 + $0x638] sm:$0xff]
    %v234 = vld [vmem:[%s1 + $0x640] sm:$0xff]
    %v235 = vld [vmem:[%s1 + $0x648] sm:$0xff]
    %v236 = vld [vmem:[%s1 + $0x650] sm:$0xff]
    %v237 = vld [vmem:[%s1 + $0x658] sm:$0xff]
    %v238 = vld [vmem:[%s1 + $0x660] sm:$0xff]
    %v239 = vld [vmem:[%s1 + $0x668] sm:$0xff]
    %v240 = vld [vmem:[%s1 + $0x670] sm:$0xff]
    %v241 = vld [vmem:[%s1 + $0x678] sm:$0xff]
    %v242 = vld [vmem:[%s1 + $0x680] sm:$0xff]
    %v243 = vld [vmem:[%s1 + $0x688] sm:$0xff]
    %v244 = vld [vmem:[%s1 + $0x690] sm:$0xff]
    %v245 = vld [vmem:[%s1 + $0x698] sm:$0xff]
    %v246 = vld [vmem:[%s1 + $0x6a0] sm:$0xff]
    %v247 = vld [vmem:[%s1 + $0x6a8] sm:$0xff]
    %v248 = vld [vmem:[%s1 + $0x6b0] sm:$0xff]
    %v249 = vld [vmem:[%s1 + $0x6b8] sm:$0xff]
    %v250 = vld [vmem:[%s1 + $0x6c0] sm:$0xff]
    %v251 = vld [vmem:[%s1 + $0x6c8] sm:$0xff]
    %v252 = vld [vmem:[%s1 + $0x6d0] sm:$0xff]
    %v253 = vld [vmem:[%s1 + $0x6d8] sm:$0xff]
    %v254 = vld [vmem:[%s1 + $0x6e0] sm:$0xff]
    %v255 = vld [vmem:[%s1 + $0x6e8] sm:$0xff]
    %v256 = vld [vmem:[%s1 + $0x6f0] sm:$0xff]
    %v257 = vld [vmem:[%s1 + $0x6f8] sm:$0xff]
    %v258 = vld [vmem:[%s1 + $0x700] sm:$0xff]
    %v259 = vld [vmem:[%s1 + $0x708] sm:$0xff]
    %v260 = vld [vmem:[%s1 + $0x710] sm:$0xff]
    %v261 = vld [vmem:[%s1 + $0x718] sm:$0xff]
    %v262 = vld [vmem:[%s1 + $0x720] sm:$0xff]
    %v263 = vld [vmem:[%s1 + $0x728] sm:$0xff]
    %v264 = vld [vmem:[%s1 + $0x730] sm:$0xff]
    %v265 = vld [vmem:[%s1 + $0x738] sm:$0xff]
    %v266 = vld [vmem:[%s1 + $0x740] sm:$0xff]
    %v267 = vld [vmem:[%s1 + $0x748] sm:$0xff]
    %v268 = vld [vmem:[%s1 + $0x750] sm:$0xff]
    %v269 = vld [vmem:[%s1 + $0x758] sm:$0xff]
    %v270 = vld [vmem:[%s1 + $0x760] sm:$0xff]
    %v271 = vld [vmem:[%s1 + $0x768] sm:$0xff]
    %v272 = vld [vmem:[%s1 + $0x770] sm:$0xff]
    %v273 = vld [vmem:[%s1 + $0x778] sm:$0xff]
    %v274 = vld [vmem:[%s1 + $0x780] sm:$0xff]
    %v275 = vld [vmem:[%s1 + $0x788] sm:$0xff]
    %v276 = vld [vmem:[%s1 + $0x790] sm:$0xff]
    %v277 = vld [vmem:[%s1 + $0x798] sm:$0xff]
    %v278 = vld [vmem:[%s1 + $0x7a0] sm:$0xff]
    %v279 = vld [vmem:[%s1 + $0x7a8] sm:$0xff]
    %v280 = vld [vmem:[%s1 + $0x7b0] sm:$0xff]
    %v281 = vld [vmem:[%s1 + $0x7b8] sm:$0xff]
    %v282 = vld [vmem:[%s1 + $0x7c0] sm:$0xff]
    %v283 = vld [vmem:[%s1 + $0x7c8] sm:$0xff]
    %v284 = vld [vmem:[%s1 + $0x7d0] sm:$0xff]
    %v285 = vld [vmem:[%s1 + $0x7d8] sm:$0xff]
    %v286 = vld [vmem:[%s1 + $0x7e0] sm:$0xff]
    %v287 = vld [vmem:[%s1 + $0x7e8] sm:$0xff]
    %v288 = vld [vmem:[%s1 + $0x7f0] sm:$0xff]
    %v289 = vld [vmem:[%s1 + $0x7f8] sm:$0xff]
    %v290 = vld [vmem:[%s1 + $0x800] sm:$0xff]
    %v291 = vld [vmem:[%s1 + $0x808] sm:$0xff]
    %v292 = vld [vmem:[%s1 + $0x810] sm:$0xff]
    %v293 = vld [vmem:[%s1 + $0x818] sm:$0xff]
    %v294 = vld [vmem:[%s1 + $0x820] sm:$0xff]
    %v295 = vld [vmem:[%s1 + $0x828] sm:$0xff]
    %v296 = vld [vmem:[%s1 + $0x830] sm:$0xff]
    %v297 = vld [vmem:[%s1 + $0x838] sm:$0xff]
    %v298 = vld [vmem:[%s1 + $0x840] sm:$0xff]
    %v299 = vld [vmem:[%s1 + $0x848] sm:$0xff]
    %v300 = vld [vmem:[%s1 + $0x850] sm:$0xff]
    %v301 = vld [vmem:[%s1 + $0x858] sm:$0xff]
    %v302 = vld [vmem:[%s1 + $0x860] sm:$0xff]
    %v303 = vld [vmem:[%s1 + $0x868] sm:$0xff]
    %v304 = vld [vmem:[%s1 + $0x870] sm:$0xff]
    %v305 = vld [vmem:[%s1 + $0x878] sm:$0xff]
    %v306 = vld [vmem:[%s1 + $0x880] sm:$0xff]
    %v307 = vld [vmem:[%s1 + $0x888] sm:$0xff]
    %v308 = vld [vmem:[%s1 + $0x890] sm:$0xff]
    %v309 = vld [vmem:[%s1 + $0x898] sm:$0xff]
    %v310 = vld [vmem:[%s1 + $0x8a0] sm:$0xff]
    %v311 = vld [vmem:[%s1 + $0x8a8] sm:$0xff]
    %v312 = vld [vmem:[%s1 + $0x8b0] sm:$0xff]
    %v313 = vld [vmem:[%s1 + $0x8b8] sm:$0xff]
    %v314 = vld [vmem:[%s1 + $0x8c0] sm:$0xff]
    %v315 = vld [vmem:[%s1 + $0x8c8] sm:$0xff]
    %v316 = vld [vmem:[%s1 + $0x8d0] sm:$0xff]
    %v317 = vld [vmem:[%s1 + $0x8d8] sm:$0xff]
    %v318 = vld [vmem:[%s1 + $0x8e0] sm:$0xff]
    %v319 = vld [vmem:[%s1 + $0x8e8] sm:$0xff]
    %v320 = vld [vmem:[%s1 + $0x8f0] sm:$0xff]
    %v321 = vld [vmem:[%s1 + $0x8f8] sm:$0xff]
    %v322 = vld [vmem:[%s1 + $0x900] sm:$0xff]
    %v323 = vld [vmem:[%s1 + $0x908] sm:$0xff]
    %v324 = vld [vmem:[%s1 + $0x910] sm:$0xff]
    %v325 = vld [vmem:[%s1 + $0x918] sm:$0xff]
    %v326 = vld [vmem:[%s1 + $0x920] sm:$0xff]
    %v327 = vld [vmem:[%s1 + $0x928] sm:$0xff]
    %v328 = vld [vmem:[%s1 + $0x930] sm:$0xff]
    %v329 = vld [vmem:[%s1 + $0x938] sm:$0xff]
    %v330 = vld [vmem:[%s1 + $0x940] sm:$0xff]
    %v331 = vld [vmem:[%s1 + $0x948] sm:$0xff]
    %v332 = vld [vmem:[%s1 + $0x950] sm:$0xff]
    %v333 = vld [vmem:[%s1 + $0x958] sm:$0xff]
    %v334 = vld [vmem:[%s1 + $0x960] sm:$0xff]
    %v335 = vld [vmem:[%s1 + $0x968] sm:$0xff]
    %v336 = vld [vmem:[%s1 + $0x970] sm:$0xff]
    %v337 = vld [vmem:[%s1 + $0x978] sm:$0xff]
    %v338 = vld [vmem:[%s1 + $0x980] sm:$0xff]
    %v339 = vld [vmem:[%s1 + $0x988] sm:$0xff]
    %v340 = vld [vmem:[%s1 + $0x990] sm:$0xff]
    %v341 = vld [vmem:[%s1 + $0x998] sm:$0xff]
    %v342 = vld [vmem:[%s1 + $0x9a0] sm:$0xff]
    %v343 = vld [vmem:[%s1 + $0x9a8] sm:$0xff]
    %v344 = vld [vmem:[%s1 + $0x9b0] sm:$0xff]
    %v345 = vld [vmem:[%s1 + $0x9b8] sm:$0xff]
    %v346 = vld [vmem:[%s1 + $0x9c0] sm:$0xff]
    %v347 = vld [vmem:[%s1 + $0x9c8] sm:$0xff]
    %v348 = vld [vmem:[%s1 + $0x9d0] sm:$0xff]
    %v349 = vld [vmem:[%s1 + $0x9d8] sm:$0xff]
    %v350 = vld [vmem:[%s1 + $0x9e0] sm:$0xff]
    %v351 = vld [vmem:[%s1 + $0x9e8] sm:$0xff]
    %v352 = vld [vmem:[%s1 + $0x9f0] sm:$0xff]
    %v353 = vld [vmem:[%s1 + $0x9f8] sm:$0xff]
    %v354 = vld [vmem:[%s1 + $0xa00] sm:$0xff]
    %v355 = vld [vmem:[%s1 + $0xa08] sm:$0xff]
    %v356 = vld [vmem:[%s1 + $0xa10] sm:$0xff]
    %v357 = vld [vmem:[%s1 + $0xa18] sm:$0xff]
    %v358 = vld [vmem:[%s1 + $0xa20] sm:$0xff]
    %v359 = vld [vmem:[%s1 + $0xa28] sm:$0xff]
    %v360 = vld [vmem:[%s1 + $0xa30] sm:$0xff]
    %v361 = vld [vmem:[%s1 + $0xa38] sm:$0xff]
    %v362 = vld [vmem:[%s1 + $0xa40] sm:$0xff]
    %v363 = vld [vmem:[%s1 + $0xa48] sm:$0xff]
    %v364 = vld [vmem:[%s1 + $0xa50] sm:$0xff]
    %v365 = vld [vmem:[%s1 + $0xa58] sm:$0xff]
    %v366 = vld [vmem:[%s1 + $0xa60] sm:$0xff]
    %v367 = vld [vmem:[%s1 + $0xa68] sm:$0xff]
    %v368 = vld [vmem:[%s1 + $0xa70] sm:$0xff]
    %v369 = vld [vmem:[%s1 + $0xa78] sm:$0xff]
    %v370 = vld [vmem:[%s1 + $0xa80] sm:$0xff]
    %v371 = vld [vmem:[%s1 + $0xa88] sm:$0xff]
    %v372 = vld [vmem:[%s1 + $0xa90] sm:$0xff]
    %v373 = vld [vmem:[%s1 + $0xa98] sm:$0xff]
    %v374 = vld [vmem:[%s1 + $0xaa0] sm:$0xff]
    %v375 = vld [vmem:[%s1 + $0xaa8] sm:$0xff]
    %v376 = vld [vmem:[%s1 + $0xab0] sm:$0xff]
    %v377 = vld [vmem:[%s1 + $0xab8] sm:$0xff]
    %v378 = vld [vmem:[%s1 + $0xac0] sm:$0xff]
    %v379 = vld [vmem:[%s1 + $0xac8] sm:$0xff]
    %v380 = vld [vmem:[%s1 + $0xad0] sm:$0xff]
    %v381 = vld [vmem:[%s1 + $0xad8] sm:$0xff]
    %v382 = vld [vmem:[%s1 + $0xae0] sm:$0xff]
    %v383 = vld [vmem:[%s1 + $0xae8] sm:$0xff]
    %v384 = vld [vmem:[%s1 + $0xaf0] sm:$0xff]
    %v385 = vld [vmem:[%s1 + $0xaf8] sm:$0xff]
    %v386 = vld [vmem:[%s1 + $0xb00] sm:$0xff]
    %v387 = vld [vmem:[%s1 + $0xb08] sm:$0xff]
    %v388 = vld [vmem:[%s1 + $0xb10] sm:$0xff]
    %v389 = vld [vmem:[%s1 + $0xb18] sm:$0xff]
    %v390 = vld [vmem:[%s1 + $0xb20] sm:$0xff]
    %v391 = vld [vmem:[%s1 + $0xb28] sm:$0xff]
    %v392 = vld [vmem:[%s1 + $0xb30] sm:$0xff]
    %v393 = vld [vmem:[%s1 + $0xb38] sm:$0xff]
    %v394 = vld [vmem:[%s1 + $0xb40] sm:$0xff]
    %v395 = vld [vmem:[%s1 + $0xb48] sm:$0xff]
    %v396 = vld [vmem:[%s1 + $0xb50] sm:$0xff]
    %v397 = vld [vmem:[%s1 + $0xb58] sm:$0xff]
    %v398 = vld [vmem:[%s1 + $0xb60] sm:$0xff]
    %v399 = vld [vmem:[%s1 + $0xb68] sm:$0xff]
    %v400 = vld [vmem:[%s1 + $0xb70] sm:$0xff]
    %v401 = vld [vmem:[%s1 + $0xb78] sm:$0xff]
    %v402 = vld [vmem:[%s1 + $0xb80] sm:$0xff]
    %v403 = vld [vmem:[%s1 + $0xb88] sm:$0xff]
    %v404 = vld [vmem:[%s1 + $0xb90] sm:$0xff]
    %v405 = vld [vmem:[%s1 + $0xb98] sm:$0xff]
    %v406 = vld [vmem:[%s1 + $0xba0] sm:$0xff]
    %v407 = vld [vmem:[%s1 + $0xba8] sm:$0xff]
    %v408 = vld [vmem:[%s1 + $0xbb0] sm:$0xff]
    %v409 = vld [vmem:[%s1 + $0xbb8] sm:$0xff]
    %v410 = vld [vmem:[%s1 + $0xbc0] sm:$0xff]
    %v411 = vld [vmem:[%s1 + $0xbc8] sm:$0xff]
    %v412 = vld [vmem:[%s1 + $0xbd0] sm:$0xff]
    %v413 = vld [vmem:[%s1 + $0xbd8] sm:$0xff]
    %v414 = vld [vmem:[%s1 + $0xbe0] sm:$0xff]
    %v415 = vld [vmem:[%s1 + $0xbe8] sm:$0xff]
    %v416 = vld [vmem:[%s1 + $0xbf0] sm:$0xff]
    %v417 = vld [vmem:[%s1 + $0xbf8] sm:$0xff]
    %v418 = vld [vmem:[%s1 + $0xc00] sm:$0xff]
    %v419 = vld [vmem:[%s1 + $0xc08] sm:$0xff]
    %v420 = vld [vmem:[%s1 + $0xc10] sm:$0xff]
    %v421 = vld [vmem:[%s1 + $0xc18] sm:$0xff]
    %v422 = vld [vmem:[%s1 + $0xc20] sm:$0xff]
    %v423 = vld [vmem:[%s1 + $0xc28] sm:$0xff]
    %v424 = vld [vmem:[%s1 + $0xc30] sm:$0xff]
    %v425 = vld [vmem:[%s1 + $0xc38] sm:$0xff]
    %v426 = vld [vmem:[%s1 + $0xc40] sm:$0xff]
    %v427 = vld [vmem:[%s1 + $0xc48] sm:$0xff]
    %v428 = vld [vmem:[%s1 + $0xc50] sm:$0xff]
    %v429 = vld [vmem:[%s1 + $0xc58] sm:$0xff]
    %v430 = vld [vmem:[%s1 + $0xc60] sm:$0xff]
    %v431 = vld [vmem:[%s1 + $0xc68] sm:$0xff]
    %v432 = vld [vmem:[%s1 + $0xc70] sm:$0xff]
    %v433 = vld [vmem:[%s1 + $0xc78] sm:$0xff]
    %v434 = vld [vmem:[%s2] sm:$0x1]
    %v436 = vlaneseq
    %v437 = vshrl.u32 %v436, 7
    %v438 = vsub.s32 0, %v437
    %v439 = vrot.slane %v434, %v438
    %v448 = vcombine.high %v27, %v27
    %v450 = vunpack.c.l.s4 1983009808
    %v451 = vunpack.c.0.s8 %v450
    %v452 = vlaneseq
    %v453 = vshrl.u32 %v452, 7
    %v454 = vsub.s32 %v451, %v453
    %v455 = vrot.slane %v27, %v454
    %v457 = vunpack.c.l.s4 1983009808
    %v458 = vunpack.c.0.s8 %v457
    %v459 = vlaneseq
    %v460 = vshrl.u32 %v459, 7
    %v461 = vsub.s32 %v458, %v460
    %v462 = vrot.slane %v448, %v461
    %v463 = vcombine.high %v455, %v455
    %v464 = vcombine.high %v462, %v462
    %v465 = vcombine.high %v28, %v28
    %v467 = vunpack.c.l.s4 1983009808
    %v468 = vunpack.c.0.s8 %v467
    %v469 = vlaneseq
    %v470 = vshrl.u32 %v469, 7
    %v471 = vsub.s32 %v468, %v470
    %v472 = vrot.slane %v28, %v471
    %v474 = vunpack.c.l.s4 1983009808
    %v475 = vunpack.c.0.s8 %v474
    %v476 = vlaneseq
    %v477 = vshrl.u32 %v476, 7
    %v478 = vsub.s32 %v475, %v477
    %v479 = vrot.slane %v465, %v478
    %v480 = vcombine.high %v472, %v472
    %v481 = vcombine.high %v479, %v479
    %v482 = vcombine.high %v29, %v29
    %v484 = vunpack.c.l.s4 1983009808
    %v485 = vunpack.c.0.s8 %v484
    %v486 = vlaneseq
    %v487 = vshrl.u32 %v486, 7
    %v488 = vsub.s32 %v485, %v487
    %v489 = vrot.slane %v29, %v488
    %v491 = vunpack.c.l.s4 1983009808
    %v492 = vunpack.c.0.s8 %v491
    %v493 = vlaneseq
    %v494 = vshrl.u32 %v493, 7
    %v495 = vsub.s32 %v492, %v494
    %v496 = vrot.slane %v482, %v495
    %v497 = vcombine.high %v489, %v489
    %v498 = vcombine.high %v496, %v496
    %v499 = vcombine.high %v30, %v30
    %v501 = vunpack.c.l.s4 1983009808
    %v502 = vunpack.c.0.s8 %v501
    %v503 = vlaneseq
    %v504 = vshrl.u32 %v503, 7
    %v505 = vsub.s32 %v502, %v504
    %v506 = vrot.slane %v30, %v505
    %v508 = vunpack.c.l.s4 1983009808
    %v509 = vunpack.c.0.s8 %v508
    %v510 = vlaneseq
    %v511 = vshrl.u32 %v510, 7
    %v512 = vsub.s32 %v509, %v511
    %v513 = vrot.slane %v499, %v512
    %v514 = vcombine.high %v506, %v506
    %v515 = vcombine.high %v513, %v513
    %v516 = vcombine.high %v31, %v31
    %v518 = vunpack.c.l.s4 1983009808
    %v519 = vunpack.c.0.s8 %v518
    %v520 = vlaneseq
    %v521 = vshrl.u32 %v520, 7
    %v522 = vsub.s32 %v519, %v521
    %v523 = vrot.slane %v31, %v522
    %v525 = vunpack.c.l.s4 1983009808
    %v526 = vunpack.c.0.s8 %v525
    %v527 = vlaneseq
    %v528 = vshrl.u32 %v527, 7
    %v529 = vsub.s32 %v526, %v528
    %v530 = vrot.slane %v516, %v529
    %v531 = vcombine.high %v523, %v523
    %v532 = vcombine.high %v530, %v530
    %v533 = vcombine.high %v32, %v32
    %v535 = vunpack.c.l.s4 1983009808
    %v536 = vunpack.c.0.s8 %v535
    %v537 = vlaneseq
    %v538 = vshrl.u32 %v537, 7
    %v539 = vsub.s32 %v536, %v538
    %v540 = vrot.slane %v32, %v539
    %v542 = vunpack.c.l.s4 1983009808
    %v543 = vunpack.c.0.s8 %v542
    %v544 = vlaneseq
    %v545 = vshrl.u32 %v544, 7
    %v546 = vsub.s32 %v543, %v545
    %v547 = vrot.slane %v533, %v546
    %v548 = vcombine.high %v540, %v540
    %v549 = vcombine.high %v547, %v547
    %v551 = vunpack.c.l.s4 1983009808
    %v552 = vunpack.c.0.s8 %v551
    %v553 = vlaneseq
    %v554 = vshrl.u32 %v553, 7
    %v555 = vsub.s32 %v552, %v554
    %v556 = vrot.slane %v33, %v555
    %582 = vmatprep.subr.mxu0 0.0
    %583 = vmatpush1.msra.mxu0 %v34
    %584 = vmatprep.subr.mxu0 0.0
    %585 = vmatpush1.msra.mxu0 %v35
    %586 = vmatprep.subr.mxu0 0.0
    %587 = vmatpush1.msra.mxu0 %v36
    %588 = vmatprep.subr.mxu0 0.0
    %589 = vmatpush1.msra.mxu0 %v37
    %590 = vmatprep.subr.mxu0 0.0
    %591 = vmatpush1.msra.mxu0 %v38
    %592 = vmatprep.subr.mxu0 0.0
    %593 = vmatpush1.msra.mxu0 %v39
    %594 = vmatprep.subr.mxu0 0.0
    %595 = vmatpush1.msra.mxu0 %v40
    %596 = vmatprep.subr.mxu0 0.0
    %597 = vmatpush1.msra.mxu0 %v41
    %598 = vmatprep.subr.mxu0 0.0
    %599 = vmatpush1.msra.mxu0 %v42
    %600 = vmatprep.subr.mxu0 0.0
    %601 = vmatpush1.msra.mxu0 %v43
    %602 = vmatprep.subr.mxu0 0.0
    %603 = vmatpush1.msra.mxu0 %v44
    %604 = vmatprep.subr.mxu0 0.0
    %605 = vmatpush1.msra.mxu0 %v45
    %606 = vmatprep.subr.mxu0 0.0
    %607 = vmatpush1.msra.mxu0 %v46
    %608 = vmatprep.subr.mxu0 0.0
    %609 = vmatpush1.msra.mxu0 %v47
    %610 = vmatprep.subr.mxu0 0.0
    %611 = vmatpush1.msra.mxu0 %v48
    %612 = vmatprep.subr.mxu0 0.0
    %613 = vmatpush1.msra.mxu0 %v49
    %614 = vmatprep.subr.mxu0 0.0
    %615 = vmatpush1.msra.mxu0 %v50
    %616 = vmatprep.subr.mxu0 0.0
    %617 = vmatpush1.msra.mxu0 %v51
    %618 = vmatprep.subr.mxu0 0.0
    %619 = vmatpush1.msra.mxu0 %v52
    %620 = vmatprep.subr.mxu0 0.0
    %621 = vmatpush1.msra.mxu0 %v53
    %622 = vmatprep.subr.mxu0 0.0
    %623 = vmatpush1.msra.mxu0 %v54
    %624 = vmatprep.subr.mxu0 0.0
    %625 = vmatpush1.msra.mxu0 %v55
    %626 = vmatprep.subr.mxu0 0.0
    %627 = vmatpush1.msra.mxu0 %v56
    %628 = vmatprep.subr.mxu0 0.0
    %629 = vmatpush1.msra.mxu0 %v57
    %630 = vmatprep.subr.mxu0 0.0
    %631 = vmatpush1.msra.mxu0 %v58
    %632 = vmatprep.subr.mxu0 0.0
    %633 = vmatpush1.msra.mxu0 %v59
    %634 = vmatprep.subr.mxu0 0.0
    %635 = vmatpush1.msra.mxu0 %v60
    %636 = vmatprep.subr.mxu0 0.0
    %637 = vmatpush1.msra.mxu0 %v61
    %638 = vmatprep.subr.mxu0 0.0
    %639 = vmatpush1.msra.mxu0 %v62
    %640 = vmatprep.subr.mxu0 0.0
    %641 = vmatpush1.msra.mxu0 %v63
    %642 = vmatprep.subr.mxu0 0.0
    %643 = vmatpush1.msra.mxu0 %v64
    %644 = vmatprep.subr.mxu0 0.0
    %645 = vmatpush1.msra.mxu0 %v65
    %646 = vmatprep.mubr.f32.mxu0 %v463
    %647 = vmatmul.mubr.f32.gmra.mrb[0].mxu0 %v455
    %v648 = vpop.f32.mrb[0].mxu0
    %v649 = vadd.f32 %v439, %v648
    %v650 = vpop.f32.mrb[0].mxu0
    %651 = vdwg.mxu0
    %652 = vmatprep.subr.mxu0 0.0
    %653 = vmatpush1.msra.mxu0 %v66
    %654 = vmatprep.subr.mxu0 0.0
    %655 = vmatpush1.msra.mxu0 %v67
    %656 = vmatprep.subr.mxu0 0.0
    %657 = vmatpush1.msra.mxu0 %v68
    %658 = vmatprep.subr.mxu0 0.0
    %659 = vmatpush1.msra.mxu0 %v69
    %660 = vmatprep.subr.mxu0 0.0
    %661 = vmatpush1.msra.mxu0 %v70
    %662 = vmatprep.subr.mxu0 0.0
    %663 = vmatpush1.msra.mxu0 %v71
    %664 = vmatprep.subr.mxu0 0.0
    %665 = vmatpush1.msra.mxu0 %v72
    %666 = vmatprep.subr.mxu0 0.0
    %667 = vmatpush1.msra.mxu0 %v73
    %668 = vmatprep.subr.mxu0 0.0
    %669 = vmatpush1.msra.mxu0 %v74
    %670 = vmatprep.subr.mxu0 0.0
    %671 = vmatpush1.msra.mxu0 %v75
    %672 = vmatprep.subr.mxu0 0.0
    %673 = vmatpush1.msra.mxu0 %v76
    %674 = vmatprep.subr.mxu0 0.0
    %675 = vmatpush1.msra.mxu0 %v77
    %676 = vmatprep.subr.mxu0 0.0
    %677 = vmatpush1.msra.mxu0 %v78
    %678 = vmatprep.subr.mxu0 0.0
    %679 = vmatpush1.msra.mxu0 %v79
    %680 = vmatprep.subr.mxu0 0.0
    %681 = vmatpush1.msra.mxu0 %v80
    %682 = vmatprep.subr.mxu0 0.0
    %683 = vmatpush1.msra.mxu0 %v81
    %684 = vmatprep.subr.mxu0 0.0
    %685 = vmatpush1.msra.mxu0 %v82
    %686 = vmatprep.subr.mxu0 0.0
    %687 = vmatpush1.msra.mxu0 %v83
    %688 = vmatprep.subr.mxu0 0.0
    %689 = vmatpush1.msra.mxu0 %v84
    %690 = vmatprep.subr.mxu0 0.0
    %691 = vmatpush1.msra.mxu0 %v85
    %692 = vmatprep.subr.mxu0 0.0
    %693 = vmatpush1.msra.mxu0 %v86
    %694 = vmatprep.subr.mxu0 0.0
    %695 = vmatpush1.msra.mxu0 %v87
    %696 = vmatprep.subr.mxu0 0.0
    %697 = vmatpush1.msra.mxu0 %v88
    %698 = vmatprep.subr.mxu0 0.0
    %699 = vmatpush1.msra.mxu0 %v89
    %700 = vmatprep.subr.mxu0 0.0
    %701 = vmatpush1.msra.mxu0 %v90
    %702 = vmatprep.subr.mxu0 0.0
    %703 = vmatpush1.msra.mxu0 %v91
    %704 = vmatprep.subr.mxu0 0.0
    %705 = vmatpush1.msra.mxu0 %v92
    %706 = vmatprep.subr.mxu0 0.0
    %707 = vmatpush1.msra.mxu0 %v93
    %708 = vmatprep.subr.mxu0 0.0
    %709 = vmatpush1.msra.mxu0 %v94
    %710 = vmatprep.subr.mxu0 0.0
    %711 = vmatpush1.msra.mxu0 %v95
    %712 = vmatprep.subr.mxu0 0.0
    %713 = vmatpush1.msra.mxu0 %v96
    %714 = vmatprep.subr.mxu0 0.0
    %715 = vmatpush1.msra.mxu0 %v97
    %716 = vmatprep.mubr.f32.mxu0 %v464
    %717 = vmatmul.mubr.f32.gmra.mrb[0].mxu0 %v462
    %v718 = vpop.f32.mrb[0].mxu0
    %v719 = vadd.f32 %v649, %v718
    %v720 = vpop.f32.mrb[0].mxu0
    %721 = vdwg.mxu0
    %722 = vmatprep.subr.mxu0 0.0
    %723 = vmatpush1.msra.mxu0 %v98
    %724 = vmatprep.subr.mxu0 0.0
    %725 = vmatpush1.msra.mxu0 %v99
    %726 = vmatprep.subr.mxu0 0.0
    %727 = vmatpush1.msra.mxu0 %v100
    %728 = vmatprep.subr.mxu0 0.0
    %729 = vmatpush1.msra.mxu0 %v101
    %730 = vmatprep.subr.mxu0 0.0
    %731 = vmatpush1.msra.mxu0 %v102
    %732 = vmatprep.subr.mxu0 0.0
    %733 = vmatpush1.msra.mxu0 %v103
    %734 = vmatprep.subr.mxu0 0.0
    %735 = vmatpush1.msra.mxu0 %v104
    %736 = vmatprep.subr.mxu0 0.0
    %737 = vmatpush1.msra.mxu0 %v105
    %738 = vmatprep.subr.mxu0 0.0
    %739 = vmatpush1.msra.mxu0 %v106
    %740 = vmatprep.subr.mxu0 0.0
    %741 = vmatpush1.msra.mxu0 %v107
    %742 = vmatprep.subr.mxu0 0.0
    %743 = vmatpush1.msra.mxu0 %v108
    %744 = vmatprep.subr.mxu0 0.0
    %745 = vmatpush1.msra.mxu0 %v109
    %746 = vmatprep.subr.mxu0 0.0
    %747 = vmatpush1.msra.mxu0 %v110
    %748 = vmatprep.subr.mxu0 0.0
    %749 = vmatpush1.msra.mxu0 %v111
    %750 = vmatprep.subr.mxu0 0.0
    %751 = vmatpush1.msra.mxu0 %v112
    %752 = vmatprep.subr.mxu0 0.0
    %753 = vmatpush1.msra.mxu0 %v113
    %754 = vmatprep.subr.mxu0 0.0
    %755 = vmatpush1.msra.mxu0 %v114
    %756 = vmatprep.subr.mxu0 0.0
    %757 = vmatpush1.msra.mxu0 %v115
    %758 = vmatprep.subr.mxu0 0.0
    %759 = vmatpush1.msra.mxu0 %v116
    %760 = vmatprep.subr.mxu0 0.0
    %761 = vmatpush1.msra.mxu0 %v117
    %762 = vmatprep.subr.mxu0 0.0
    %763 = vmatpush1.msra.mxu0 %v118
    %764 = vmatprep.subr.mxu0 0.0
    %765 = vmatpush1.msra.mxu0 %v119
    %766 = vmatprep.subr.mxu0 0.0
    %767 = vmatpush1.msra.mxu0 %v120
    %768 = vmatprep.subr.mxu0 0.0
    %769 = vmatpush1.msra.mxu0 %v121
    %770 = vmatprep.subr.mxu0 0.0
    %771 = vmatpush1.msra.mxu0 %v122
    %772 = vmatprep.subr.mxu0 0.0
    %773 = vmatpush1.msra.mxu0 %v123
    %774 = vmatprep.subr.mxu0 0.0
    %775 = vmatpush1.msra.mxu0 %v124
    %776 = vmatprep.subr.mxu0 0.0
    %777 = vmatpush1.msra.mxu0 %v125
    %778 = vmatprep.subr.mxu0 0.0
    %779 = vmatpush1.msra.mxu0 %v126
    %780 = vmatprep.subr.mxu0 0.0
    %781 = vmatpush1.msra.mxu0 %v127
    %782 = vmatprep.subr.mxu0 0.0
    %783 = vmatpush1.msra.mxu0 %v128
    %784 = vmatprep.subr.mxu0 0.0
    %785 = vmatpush1.msra.mxu0 %v129
    %786 = vmatprep.mubr.f32.mxu0 %v480
    %787 = vmatmul.mubr.f32.gmra.mrb[0].mxu0 %v472
    %v788 = vpop.f32.mrb[0].mxu0
    %v789 = vadd.f32 %v719, %v788
    %v790 = vpop.f32.mrb[0].mxu0
    %791 = vdwg.mxu0
    %792 = vmatprep.subr.mxu0 0.0
    %793 = vmatpush1.msra.mxu0 %v130
    %794 = vmatprep.subr.mxu0 0.0
    %795 = vmatpush1.msra.mxu0 %v131
    %796 = vmatprep.subr.mxu0 0.0
    %797 = vmatpush1.msra.mxu0 %v132
    %798 = vmatprep.subr.mxu0 0.0
    %799 = vmatpush1.msra.mxu0 %v133
    %800 = vmatprep.subr.mxu0 0.0
    %801 = vmatpush1.msra.mxu0 %v134
    %802 = vmatprep.subr.mxu0 0.0
    %803 = vmatpush1.msra.mxu0 %v135
    %804 = vmatprep.subr.mxu0 0.0
    %805 = vmatpush1.msra.mxu0 %v136
    %806 = vmatprep.subr.mxu0 0.0
    %807 = vmatpush1.msra.mxu0 %v137
    %808 = vmatprep.subr.mxu0 0.0
    %809 = vmatpush1.msra.mxu0 %v138
    %810 = vmatprep.subr.mxu0 0.0
    %811 = vmatpush1.msra.mxu0 %v139
    %812 = vmatprep.subr.mxu0 0.0
    %813 = vmatpush1.msra.mxu0 %v140
    %814 = vmatprep.subr.mxu0 0.0
    %815 = vmatpush1.msra.mxu0 %v141
    %816 = vmatprep.subr.mxu0 0.0
    %817 = vmatpush1.msra.mxu0 %v142
    %818 = vmatprep.subr.mxu0 0.0
    %819 = vmatpush1.msra.mxu0 %v143
    %820 = vmatprep.subr.mxu0 0.0
    %821 = vmatpush1.msra.mxu0 %v144
    %822 = vmatprep.subr.mxu0 0.0
    %823 = vmatpush1.msra.mxu0 %v145
    %824 = vmatprep.subr.mxu0 0.0
    %825 = vmatpush1.msra.mxu0 %v146
    %826 = vmatprep.subr.mxu0 0.0
    %827 = vmatpush1.msra.mxu0 %v147
    %828 = vmatprep.subr.mxu0 0.0
    %829 = vmatpush1.msra.mxu0 %v148
    %830 = vmatprep.subr.mxu0 0.0
    %831 = vmatpush1.msra.mxu0 %v149
    %832 = vmatprep.subr.mxu0 0.0
    %833 = vmatpush1.msra.mxu0 %v150
    %834 = vmatprep.subr.mxu0 0.0
    %835 = vmatpush1.msra.mxu0 %v151
    %836 = vmatprep.subr.mxu0 0.0
    %837 = vmatpush1.msra.mxu0 %v152
    %838 = vmatprep.subr.mxu0 0.0
    %839 = vmatpush1.msra.mxu0 %v153
    %840 = vmatprep.subr.mxu0 0.0
    %841 = vmatpush1.msra.mxu0 %v154
    %842 = vmatprep.subr.mxu0 0.0
    %843 = vmatpush1.msra.mxu0 %v155
    %844 = vmatprep.subr.mxu0 0.0
    %845 = vmatpush1.msra.mxu0 %v156
    %846 = vmatprep.subr.mxu0 0.0
    %847 = vmatpush1.msra.mxu0 %v157
    %848 = vmatprep.subr.mxu0 0.0
    %849 = vmatpush1.msra.mxu0 %v158
    %850 = vmatprep.subr.mxu0 0.0
    %851 = vmatpush1.msra.mxu0 %v159
    %852 = vmatprep.subr.mxu0 0.0
    %853 = vmatpush1.msra.mxu0 %v160
    %854 = vmatprep.subr.mxu0 0.0
    %855 = vmatpush1.msra.mxu0 %v161
    %856 = vmatprep.mubr.f32.mxu0 %v481
    %857 = vmatmul.mubr.f32.gmra.mrb[0].mxu0 %v479
    %v858 = vpop.f32.mrb[0].mxu0
    %v859 = vadd.f32 %v789, %v858
    %v860 = vpop.f32.mrb[0].mxu0
    %861 = vdwg.mxu0
    %862 = vmatprep.subr.mxu0 0.0
    %863 = vmatpush1.msra.mxu0 %v162
    %864 = vmatprep.subr.mxu0 0.0
    %865 = vmatpush1.msra.mxu0 %v163
    %866 = vmatprep.subr.mxu0 0.0
    %867 = vmatpush1.msra.mxu0 %v164
    %868 = vmatprep.subr.mxu0 0.0
    %869 = vmatpush1.msra.mxu0 %v165
    %870 = vmatprep.subr.mxu0 0.0
    %871 = vmatpush1.msra.mxu0 %v166
    %872 = vmatprep.subr.mxu0 0.0
    %873 = vmatpush1.msra.mxu0 %v167
    %874 = vmatprep.subr.mxu0 0.0
    %875 = vmatpush1.msra.mxu0 %v168
    %876 = vmatprep.subr.mxu0 0.0
    %877 = vmatpush1.msra.mxu0 %v169
    %878 = vmatprep.subr.mxu0 0.0
    %879 = vmatpush1.msra.mxu0 %v170
    %880 = vmatprep.subr.mxu0 0.0
    %881 = vmatpush1.msra.mxu0 %v171
    %882 = vmatprep.subr.mxu0 0.0
    %883 = vmatpush1.msra.mxu0 %v172
    %884 = vmatprep.subr.mxu0 0.0
    %885 = vmatpush1.msra.mxu0 %v173
    %886 = vmatprep.subr.mxu0 0.0
    %887 = vmatpush1.msra.mxu0 %v174
    %888 = vmatprep.subr.mxu0 0.0
    %889 = vmatpush1.msra.mxu0 %v175
    %890 = vmatprep.subr.mxu0 0.0
    %891 = vmatpush1.msra.mxu0 %v176
    %892 = vmatprep.subr.mxu0 0.0
    %893 = vmatpush1.msra.mxu0 %v177
    %894 = vmatprep.subr.mxu0 0.0
    %895 = vmatpush1.msra.mxu0 %v178
    %896 = vmatprep.subr.mxu0 0.0
    %897 = vmatpush1.msra.mxu0 %v179
    %898 = vmatprep.subr.mxu0 0.0
    %899 = vmatpush1.msra.mxu0 %v180
    %900 = vmatprep.subr.mxu0 0.0
    %901 = vmatpush1.msra.mxu0 %v181
    %902 = vmatprep.subr.mxu0 0.0
    %903 = vmatpush1.msra.mxu0 %v182
    %904 = vmatprep.subr.mxu0 0.0
    %905 = vmatpush1.msra.mxu0 %v183
    %906 = vmatprep.subr.mxu0 0.0
    %907 = vmatpush1.msra.mxu0 %v184
    %908 = vmatprep.subr.mxu0 0.0
    %909 = vmatpush1.msra.mxu0 %v185
    %910 = vmatprep.subr.mxu0 0.0
    %911 = vmatpush1.msra.mxu0 %v186
    %912 = vmatprep.subr.mxu0 0.0
    %913 = vmatpush1.msra.mxu0 %v187
    %914 = vmatprep.subr.mxu0 0.0
    %915 = vmatpush1.msra.mxu0 %v188
    %916 = vmatprep.subr.mxu0 0.0
    %917 = vmatpush1.msra.mxu0 %v189
    %918 = vmatprep.subr.mxu0 0.0
    %919 = vmatpush1.msra.mxu0 %v190
    %920 = vmatprep.subr.mxu0 0.0
    %921 = vmatpush1.msra.mxu0 %v191
    %922 = vmatprep.subr.mxu0 0.0
    %923 = vmatpush1.msra.mxu0 %v192
    %924 = vmatprep.subr.mxu0 0.0
    %925 = vmatpush1.msra.mxu0 %v193
    %926 = vmatprep.mubr.f32.mxu0 %v497
    %927 = vmatmul.mubr.f32.gmra.mrb[0].mxu0 %v489
    %v928 = vpop.f32.mrb[0].mxu0
    %v929 = vadd.f32 %v859, %v928
    %v930 = vpop.f32.mrb[0].mxu0
    %931 = vdwg.mxu0
    %932 = vmatprep.subr.mxu0 0.0
    %933 = vmatpush1.msra.mxu0 %v194
    %934 = vmatprep.subr.mxu0 0.0
    %935 = vmatpush1.msra.mxu0 %v195
    %936 = vmatprep.subr.mxu0 0.0
    %937 = vmatpush1.msra.mxu0 %v196
    %938 = vmatprep.subr.mxu0 0.0
    %939 = vmatpush1.msra.mxu0 %v197
    %940 = vmatprep.subr.mxu0 0.0
    %941 = vmatpush1.msra.mxu0 %v198
    %942 = vmatprep.subr.mxu0 0.0
    %943 = vmatpush1.msra.mxu0 %v199
    %944 = vmatprep.subr.mxu0 0.0
    %945 = vmatpush1.msra.mxu0 %v200
    %946 = vmatprep.subr.mxu0 0.0
    %947 = vmatpush1.msra.mxu0 %v201
    %948 = vmatprep.subr.mxu0 0.0
    %949 = vmatpush1.msra.mxu0 %v202
    %950 = vmatprep.subr.mxu0 0.0
    %951 = vmatpush1.msra.mxu0 %v203
    %952 = vmatprep.subr.mxu0 0.0
    %953 = vmatpush1.msra.mxu0 %v204
    %954 = vmatprep.subr.mxu0 0.0
    %955 = vmatpush1.msra.mxu0 %v205
    %956 = vmatprep.subr.mxu0 0.0
    %957 = vmatpush1.msra.mxu0 %v206
    %958 = vmatprep.subr.mxu0 0.0
    %959 = vmatpush1.msra.mxu0 %v207
    %960 = vmatprep.subr.mxu0 0.0
    %961 = vmatpush1.msra.mxu0 %v208
    %962 = vmatprep.subr.mxu0 0.0
    %963 = vmatpush1.msra.mxu0 %v209
    %964 = vmatprep.subr.mxu0 0.0
    %965 = vmatpush1.msra.mxu0 %v210
    %966 = vmatprep.subr.mxu0 0.0
    %967 = vmatpush1.msra.mxu0 %v211
    %968 = vmatprep.subr.mxu0 0.0
    %969 = vmatpush1.msra.mxu0 %v212
    %970 = vmatprep.subr.mxu0 0.0
    %971 = vmatpush1.msra.mxu0 %v213
    %972 = vmatprep.subr.mxu0 0.0
    %973 = vmatpush1.msra.mxu0 %v214
    %974 = vmatprep.subr.mxu0 0.0
    %975 = vmatpush1.msra.mxu0 %v215
    %976 = vmatprep.subr.mxu0 0.0
    %977 = vmatpush1.msra.mxu0 %v216
    %978 = vmatprep.subr.mxu0 0.0
    %979 = vmatpush1.msra.mxu0 %v217
    %980 = vmatprep.subr.mxu0 0.0
    %981 = vmatpush1.msra.mxu0 %v218
    %982 = vmatprep.subr.mxu0 0.0
    %983 = vmatpush1.msra.mxu0 %v219
    %984 = vmatprep.subr.mxu0 0.0
    %985 = vmatpush1.msra.mxu0 %v220
    %986 = vmatprep.subr.mxu0 0.0
    %987 = vmatpush1.msra.mxu0 %v221
    %988 = vmatprep.subr.mxu0 0.0
    %989 = vmatpush1.msra.mxu0 %v222
    %990 = vmatprep.subr.mxu0 0.0
    %991 = vmatpush1.msra.mxu0 %v223
    %992 = vmatprep.subr.mxu0 0.0
    %993 = vmatpush1.msra.mxu0 %v224
    %994 = vmatprep.subr.mxu0 0.0
    %995 = vmatpush1.msra.mxu0 %v225
    %996 = vmatprep.mubr.f32.mxu0 %v498
    %997 = vmatmul.mubr.f32.gmra.mrb[0].mxu0 %v496
    %v998 = vpop.f32.mrb[0].mxu0
    %v999 = vadd.f32 %v929, %v998
    %v1000 = vpop.f32.mrb[0].mxu0
    %1001 = vdwg.mxu0
    %1002 = vmatprep.subr.mxu0 0.0
    %1003 = vmatpush1.msra.mxu0 %v226
    %1004 = vmatprep.subr.mxu0 0.0
    %1005 = vmatpush1.msra.mxu0 %v227
    %1006 = vmatprep.subr.mxu0 0.0
    %1007 = vmatpush1.msra.mxu0 %v228
    %1008 = vmatprep.subr.mxu0 0.0
    %1009 = vmatpush1.msra.mxu0 %v229
    %1010 = vmatprep.subr.mxu0 0.0
    %1011 = vmatpush1.msra.mxu0 %v230
    %1012 = vmatprep.subr.mxu0 0.0
    %1013 = vmatpush1.msra.mxu0 %v231
    %1014 = vmatprep.subr.mxu0 0.0
    %1015 = vmatpush1.msra.mxu0 %v232
    %1016 = vmatprep.subr.mxu0 0.0
    %1017 = vmatpush1.msra.mxu0 %v233
    %1018 = vmatprep.subr.mxu0 0.0
    %1019 = vmatpush1.msra.mxu0 %v234
    %1020 = vmatprep.subr.mxu0 0.0
    %1021 = vmatpush1.msra.mxu0 %v235
    %1022 = vmatprep.subr.mxu0 0.0
    %1023 = vmatpush1.msra.mxu0 %v236
    %1024 = vmatprep.subr.mxu0 0.0
    %1025 = vmatpush1.msra.mxu0 %v237
    %1026 = vmatprep.subr.mxu0 0.0
    %1027 = vmatpush1.msra.mxu0 %v238
    %1028 = vmatprep.subr.mxu0 0.0
    %1029 = vmatpush1.msra.mxu0 %v239
    %1030 = vmatprep.subr.mxu0 0.0
    %1031 = vmatpush1.msra.mxu0 %v240
    %1032 = vmatprep.subr.mxu0 0.0
    %1033 = vmatpush1.msra.mxu0 %v241
    %1034 = vmatprep.subr.mxu0 0.0
    %1035 = vmatpush1.msra.mxu0 %v242
    %1036 = vmatprep.subr.mxu0 0.0
    %1037 = vmatpush1.msra.mxu0 %v243
    %1038 = vmatprep.subr.mxu0 0.0
    %1039 = vmatpush1.msra.mxu0 %v244
    %1040 = vmatprep.subr.mxu0 0.0
    %1041 = vmatpush1.msra.mxu0 %v245
    %1042 = vmatprep.subr.mxu0 0.0
    %1043 = vmatpush1.msra.mxu0 %v246
    %1044 = vmatprep.subr.mxu0 0.0
    %1045 = vmatpush1.msra.mxu0 %v247
    %1046 = vmatprep.subr.mxu0 0.0
    %1047 = vmatpush1.msra.mxu0 %v248
    %1048 = vmatprep.subr.mxu0 0.0
    %1049 = vmatpush1.msra.mxu0 %v249
    %1050 = vmatprep.subr.mxu0 0.0
    %1051 = vmatpush1.msra.mxu0 %v250
    %1052 = vmatprep.subr.mxu0 0.0
    %1053 = vmatpush1.msra.mxu0 %v251
    %1054 = vmatprep.subr.mxu0 0.0
    %1055 = vmatpush1.msra.mxu0 %v252
    %1056 = vmatprep.subr.mxu0 0.0
    %1057 = vmatpush1.msra.mxu0 %v253
    %1058 = vmatprep.subr.mxu0 0.0
    %1059 = vmatpush1.msra.mxu0 %v254
    %1060 = vmatprep.subr.mxu0 0.0
    %1061 = vmatpush1.msra.mxu0 %v255
    %1062 = vmatprep.subr.mxu0 0.0
    %1063 = vmatpush1.msra.mxu0 %v256
    %1064 = vmatprep.subr.mxu0 0.0
    %1065 = vmatpush1.msra.mxu0 %v257
    %1066 = vmatprep.mubr.f32.mxu0 %v514
    %1067 = vmatmul.mubr.f32.gmra.mrb[0].mxu0 %v506
    %v1068 = vpop.f32.mrb[0].mxu0
    %v1069 = vadd.f32 %v999, %v1068
    %v1070 = vpop.f32.mrb[0].mxu0
    %1071 = vdwg.mxu0
    %1072 = vmatprep.subr.mxu0 0.0
    %1073 = vmatpush1.msra.mxu0 %v258
    %1074 = vmatprep.subr.mxu0 0.0
    %1075 = vmatpush1.msra.mxu0 %v259
    %1076 = vmatprep.subr.mxu0 0.0
    %1077 = vmatpush1.msra.mxu0 %v260
    %1078 = vmatprep.subr.mxu0 0.0
    %1079 = vmatpush1.msra.mxu0 %v261
    %1080 = vmatprep.subr.mxu0 0.0
    %1081 = vmatpush1.msra.mxu0 %v262
    %1082 = vmatprep.subr.mxu0 0.0
    %1083 = vmatpush1.msra.mxu0 %v263
    %1084 = vmatprep.subr.mxu0 0.0
    %1085 = vmatpush1.msra.mxu0 %v264
    %1086 = vmatprep.subr.mxu0 0.0
    %1087 = vmatpush1.msra.mxu0 %v265
    %1088 = vmatprep.subr.mxu0 0.0
    %1089 = vmatpush1.msra.mxu0 %v266
    %1090 = vmatprep.subr.mxu0 0.0
    %1091 = vmatpush1.msra.mxu0 %v267
    %1092 = vmatprep.subr.mxu0 0.0
    %1093 = vmatpush1.msra.mxu0 %v268
    %1094 = vmatprep.subr.mxu0 0.0
    %1095 = vmatpush1.msra.mxu0 %v269
    %1096 = vmatprep.subr.mxu0 0.0
    %1097 = vmatpush1.msra.mxu0 %v270
    %1098 = vmatprep.subr.mxu0 0.0
    %1099 = vmatpush1.msra.mxu0 %v271
    %1100 = vmatprep.subr.mxu0 0.0
    %1101 = vmatpush1.msra.mxu0 %v272
    %1102 = vmatprep.subr.mxu0 0.0
    %1103 = vmatpush1.msra.mxu0 %v273
    %1104 = vmatprep.subr.mxu0 0.0
    %1105 = vmatpush1.msra.mxu0 %v274
    %1106 = vmatprep.subr.mxu0 0.0
    %1107 = vmatpush1.msra.mxu0 %v275
    %1108 = vmatprep.subr.mxu0 0.0
    %1109 = vmatpush1.msra.mxu0 %v276
    %1110 = vmatprep.subr.mxu0 0.0
    %1111 = vmatpush1.msra.mxu0 %v277
    %1112 = vmatprep.subr.mxu0 0.0
    %1113 = vmatpush1.msra.mxu0 %v278
    %1114 = vmatprep.subr.mxu0 0.0
    %1115 = vmatpush1.msra.mxu0 %v279
    %1116 = vmatprep.subr.mxu0 0.0
    %1117 = vmatpush1.msra.mxu0 %v280
    %1118 = vmatprep.subr.mxu0 0.0
    %1119 = vmatpush1.msra.mxu0 %v281
    %1120 = vmatprep.subr.mxu0 0.0
    %1121 = vmatpush1.msra.mxu0 %v282
    %1122 = vmatprep.subr.mxu0 0.0
    %1123 = vmatpush1.msra.mxu0 %v283
    %1124 = vmatprep.subr.mxu0 0.0
    %1125 = vmatpush1.msra.mxu0 %v284
    %1126 = vmatprep.subr.mxu0 0.0
    %1127 = vmatpush1.msra.mxu0 %v285
    %1128 = vmatprep.subr.mxu0 0.0
    %1129 = vmatpush1.msra.mxu0 %v286
    %1130 = vmatprep.subr.mxu0 0.0
    %1131 = vmatpush1.msra.mxu0 %v287
    %1132 = vmatprep.subr.mxu0 0.0
    %1133 = vmatpush1.msra.mxu0 %v288
    %1134 = vmatprep.subr.mxu0 0.0
    %1135 = vmatpush1.msra.mxu0 %v289
    %1136 = vmatprep.mubr.f32.mxu0 %v515
    %1137 = vmatmul.mubr.f32.gmra.mrb[0].mxu0 %v513
    %v1138 = vpop.f32.mrb[0].mxu0
    %v1139 = vadd.f32 %v1069, %v1138
    %v1140 = vpop.f32.mrb[0].mxu0
    %1141 = vdwg.mxu0
    %1142 = vmatprep.subr.mxu0 0.0
    %1143 = vmatpush1.msra.mxu0 %v290
    %1144 = vmatprep.subr.mxu0 0.0
    %1145 = vmatpush1.msra.mxu0 %v291
    %1146 = vmatprep.subr.mxu0 0.0
    %1147 = vmatpush1.msra.mxu0 %v292
    %1148 = vmatprep.subr.mxu0 0.0
    %1149 = vmatpush1.msra.mxu0 %v293
    %1150 = vmatprep.subr.mxu0 0.0
    %1151 = vmatpush1.msra.mxu0 %v294
    %1152 = vmatprep.subr.mxu0 0.0
    %1153 = vmatpush1.msra.mxu0 %v295
    %1154 = vmatprep.subr.mxu0 0.0
    %1155 = vmatpush1.msra.mxu0 %v296
    %1156 = vmatprep.subr.mxu0 0.0
    %1157 = vmatpush1.msra.mxu0 %v297
    %1158 = vmatprep.subr.mxu0 0.0
    %1159 = vmatpush1.msra.mxu0 %v298
    %1160 = vmatprep.subr.mxu0 0.0
    %1161 = vmatpush1.msra.mxu0 %v299
    %1162 = vmatprep.subr.mxu0 0.0
    %1163 = vmatpush1.msra.mxu0 %v300
    %1164 = vmatprep.subr.mxu0 0.0
    %1165 = vmatpush1.msra.mxu0 %v301
    %1166 = vmatprep.subr.mxu0 0.0
    %1167 = vmatpush1.msra.mxu0 %v302
    %1168 = vmatprep.subr.mxu0 0.0
    %1169 = vmatpush1.msra.mxu0 %v303
    %1170 = vmatprep.subr.mxu0 0.0
    %1171 = vmatpush1.msra.mxu0 %v304
    %1172 = vmatprep.subr.mxu0 0.0
    %1173 = vmatpush1.msra.mxu0 %v305
    %1174 = vmatprep.subr.mxu0 0.0
    %1175 = vmatpush1.msra.mxu0 %v306
    %1176 = vmatprep.subr.mxu0 0.0
    %1177 = vmatpush1.msra.mxu0 %v307
    %1178 = vmatprep.subr.mxu0 0.0
    %1179 = vmatpush1.msra.mxu0 %v308
    %1180 = vmatprep.subr.mxu0 0.0
    %1181 = vmatpush1.msra.mxu0 %v309
    %1182 = vmatprep.subr.mxu0 0.0
    %1183 = vmatpush1.msra.mxu0 %v310
    %1184 = vmatprep.subr.mxu0 0.0
    %1185 = vmatpush1.msra.mxu0 %v311
    %1186 = vmatprep.subr.mxu0 0.0
    %1187 = vmatpush1.msra.mxu0 %v312
    %1188 = vmatprep.subr.mxu0 0.0
    %1189 = vmatpush1.msra.mxu0 %v313
    %1190 = vmatprep.subr.mxu0 0.0
    %1191 = vmatpush1.msra.mxu0 %v314
    %1192 = vmatprep.subr.mxu0 0.0
    %1193 = vmatpush1.msra.mxu0 %v315
    %1194 = vmatprep.subr.mxu0 0.0
    %1195 = vmatpush1.msra.mxu0 %v316
    %1196 = vmatprep.subr.mxu0 0.0
    %1197 = vmatpush1.msra.mxu0 %v317
    %1198 = vmatprep.subr.mxu0 0.0
    %1199 = vmatpush1.msra.mxu0 %v318
    %1200 = vmatprep.subr.mxu0 0.0
    %1201 = vmatpush1.msra.mxu0 %v319
    %1202 = vmatprep.subr.mxu0 0.0
    %1203 = vmatpush1.msra.mxu0 %v320
    %1204 = vmatprep.subr.mxu0 0.0
    %1205 = vmatpush1.msra.mxu0 %v321
    %1206 = vmatprep.mubr.f32.mxu0 %v531
    %1207 = vmatmul.mubr.f32.gmra.mrb[0].mxu0 %v523
    %v1208 = vpop.f32.mrb[0].mxu0
    %v1209 = vadd.f32 %v1139, %v1208
    %v1210 = vpop.f32.mrb[0].mxu0
    %1211 = vdwg.mxu0
    %1212 = vmatprep.subr.mxu0 0.0
    %1213 = vmatpush1.msra.mxu0 %v322
    %1214 = vmatprep.subr.mxu0 0.0
    %1215 = vmatpush1.msra.mxu0 %v323
    %1216 = vmatprep.subr.mxu0 0.0
    %1217 = vmatpush1.msra.mxu0 %v324
    %1218 = vmatprep.subr.mxu0 0.0
    %1219 = vmatpush1.msra.mxu0 %v325
    %1220 = vmatprep.subr.mxu0 0.0
    %1221 = vmatpush1.msra.mxu0 %v326
    %1222 = vmatprep.subr.mxu0 0.0
    %1223 = vmatpush1.msra.mxu0 %v327
    %1224 = vmatprep.subr.mxu0 0.0
    %1225 = vmatpush1.msra.mxu0 %v328
    %1226 = vmatprep.subr.mxu0 0.0
    %1227 = vmatpush1.msra.mxu0 %v329
    %1228 = vmatprep.subr.mxu0 0.0
    %1229 = vmatpush1.msra.mxu0 %v330
    %1230 = vmatprep.subr.mxu0 0.0
    %1231 = vmatpush1.msra.mxu0 %v331
    %1232 = vmatprep.subr.mxu0 0.0
    %1233 = vmatpush1.msra.mxu0 %v332
    %1234 = vmatprep.subr.mxu0 0.0
    %1235 = vmatpush1.msra.mxu0 %v333
    %1236 = vmatprep.subr.mxu0 0.0
    %1237 = vmatpush1.msra.mxu0 %v334
    %1238 = vmatprep.subr.mxu0 0.0
    %1239 = vmatpush1.msra.mxu0 %v335
    %1240 = vmatprep.subr.mxu0 0.0
    %1241 = vmatpush1.msra.mxu0 %v336
    %1242 = vmatprep.subr.mxu0 0.0
    %1243 = vmatpush1.msra.mxu0 %v337
    %1244 = vmatprep.subr.mxu0 0.0
    %1245 = vmatpush1.msra.mxu0 %v338
    %1246 = vmatprep.subr.mxu0 0.0
    %1247 = vmatpush1.msra.mxu0 %v339
    %1248 = vmatprep.subr.mxu0 0.0
    %1249 = vmatpush1.msra.mxu0 %v340
    %1250 = vmatprep.subr.mxu0 0.0
    %1251 = vmatpush1.msra.mxu0 %v341
    %1252 = vmatprep.subr.mxu0 0.0
    %1253 = vmatpush1.msra.mxu0 %v342
    %1254 = vmatprep.subr.mxu0 0.0
    %1255 = vmatpush1.msra.mxu0 %v343
    %1256 = vmatprep.subr.mxu0 0.0
    %1257 = vmatpush1.msra.mxu0 %v344
    %1258 = vmatprep.subr.mxu0 0.0
    %1259 = vmatpush1.msra.mxu0 %v345
    %1260 = vmatprep.subr.mxu0 0.0
    %1261 = vmatpush1.msra.mxu0 %v346
    %1262 = vmatprep.subr.mxu0 0.0
    %1263 = vmatpush1.msra.mxu0 %v347
    %1264 = vmatprep.subr.mxu0 0.0
    %1265 = vmatpush1.msra.mxu0 %v348
    %1266 = vmatprep.subr.mxu0 0.0
    %1267 = vmatpush1.msra.mxu0 %v349
    %1268 = vmatprep.subr.mxu0 0.0
    %1269 = vmatpush1.msra.mxu0 %v350
    %1270 = vmatprep.subr.mxu0 0.0
    %1271 = vmatpush1.msra.mxu0 %v351
    %1272 = vmatprep.subr.mxu0 0.0
    %1273 = vmatpush1.msra.mxu0 %v352
    %1274 = vmatprep.subr.mxu0 0.0
    %1275 = vmatpush1.msra.mxu0 %v353
    %1276 = vmatprep.mubr.f32.mxu0 %v532
    %1277 = vmatmul.mubr.f32.gmra.mrb[0].mxu0 %v530
    %v1278 = vpop.f32.mrb[0].mxu0
    %v1279 = vadd.f32 %v1209, %v1278
    %v1280 = vpop.f32.mrb[0].mxu0
    %1281 = vdwg.mxu0
    %1282 = vmatprep.subr.mxu0 0.0
    %1283 = vmatpush1.msra.mxu0 %v354
    %1284 = vmatprep.subr.mxu0 0.0
    %1285 = vmatpush1.msra.mxu0 %v355
    %1286 = vmatprep.subr.mxu0 0.0
    %1287 = vmatpush1.msra.mxu0 %v356
    %1288 = vmatprep.subr.mxu0 0.0
    %1289 = vmatpush1.msra.mxu0 %v357
    %1290 = vmatprep.subr.mxu0 0.0
    %1291 = vmatpush1.msra.mxu0 %v358
    %1292 = vmatprep.subr.mxu0 0.0
    %1293 = vmatpush1.msra.mxu0 %v359
    %1294 = vmatprep.subr.mxu0 0.0
    %1295 = vmatpush1.msra.mxu0 %v360
    %1296 = vmatprep.subr.mxu0 0.0
    %1297 = vmatpush1.msra.mxu0 %v361
    %1298 = vmatprep.subr.mxu0 0.0
    %1299 = vmatpush1.msra.mxu0 %v362
    %1300 = vmatprep.subr.mxu0 0.0
    %1301 = vmatpush1.msra.mxu0 %v363
    %1302 = vmatprep.subr.mxu0 0.0
    %1303 = vmatpush1.msra.mxu0 %v364
    %1304 = vmatprep.subr.mxu0 0.0
    %1305 = vmatpush1.msra.mxu0 %v365
    %1306 = vmatprep.subr.mxu0 0.0
    %1307 = vmatpush1.msra.mxu0 %v366
    %1308 = vmatprep.subr.mxu0 0.0
    %1309 = vmatpush1.msra.mxu0 %v367
    %1310 = vmatprep.subr.mxu0 0.0
    %1311 = vmatpush1.msra.mxu0 %v368
    %1312 = vmatprep.subr.mxu0 0.0
    %1313 = vmatpush1.msra.mxu0 %v369
    %1314 = vmatprep.subr.mxu0 0.0
    %1315 = vmatpush1.msra.mxu0 %v370
    %1316 = vmatprep.subr.mxu0 0.0
    %1317 = vmatpush1.msra.mxu0 %v371
    %1318 = vmatprep.subr.mxu0 0.0
    %1319 = vmatpush1.msra.mxu0 %v372
    %1320 = vmatprep.subr.mxu0 0.0
    %1321 = vmatpush1.msra.mxu0 %v373
    %1322 = vmatprep.subr.mxu0 0.0
    %1323 = vmatpush1.msra.mxu0 %v374
    %1324 = vmatprep.subr.mxu0 0.0
    %1325 = vmatpush1.msra.mxu0 %v375
    %1326 = vmatprep.subr.mxu0 0.0
    %1327 = vmatpush1.msra.mxu0 %v376
    %1328 = vmatprep.subr.mxu0 0.0
    %1329 = vmatpush1.msra.mxu0 %v377
    %1330 = vmatprep.subr.mxu0 0.0
    %1331 = vmatpush1.msra.mxu0 %v378
    %1332 = vmatprep.subr.mxu0 0.0
    %1333 = vmatpush1.msra.mxu0 %v379
    %1334 = vmatprep.subr.mxu0 0.0
    %1335 = vmatpush1.msra.mxu0 %v380
    %1336 = vmatprep.subr.mxu0 0.0
    %1337 = vmatpush1.msra.mxu0 %v381
    %1338 = vmatprep.subr.mxu0 0.0
    %1339 = vmatpush1.msra.mxu0 %v382
    %1340 = vmatprep.subr.mxu0 0.0
    %1341 = vmatpush1.msra.mxu0 %v383
    %1342 = vmatprep.subr.mxu0 0.0
    %1343 = vmatpush1.msra.mxu0 %v384
    %1344 = vmatprep.subr.mxu0 0.0
    %1345 = vmatpush1.msra.mxu0 %v385
    %1346 = vmatprep.mubr.f32.mxu0 %v548
    %1347 = vmatmul.mubr.f32.gmra.mrb[0].mxu0 %v540
    %v1348 = vpop.f32.mrb[0].mxu0
    %v1349 = vadd.f32 %v1279, %v1348
    %v1350 = vpop.f32.mrb[0].mxu0
    %1351 = vdwg.mxu0
    %1352 = vmatprep.subr.mxu0 0.0
    %1353 = vmatpush1.msra.mxu0 %v386
    %1354 = vmatprep.subr.mxu0 0.0
    %1355 = vmatpush1.msra.mxu0 %v387
    %1356 = vmatprep.subr.mxu0 0.0
    %1357 = vmatpush1.msra.mxu0 %v388
    %1358 = vmatprep.subr.mxu0 0.0
    %1359 = vmatpush1.msra.mxu0 %v389
    %1360 = vmatprep.subr.mxu0 0.0
    %1361 = vmatpush1.msra.mxu0 %v390
    %1362 = vmatprep.subr.mxu0 0.0
    %1363 = vmatpush1.msra.mxu0 %v391
    %1364 = vmatprep.subr.mxu0 0.0
    %1365 = vmatpush1.msra.mxu0 %v392
    %1366 = vmatprep.subr.mxu0 0.0
    %1367 = vmatpush1.msra.mxu0 %v393
    %1368 = vmatprep.subr.mxu0 0.0
    %1369 = vmatpush1.msra.mxu0 %v394
    %1370 = vmatprep.subr.mxu0 0.0
    %1371 = vmatpush1.msra.mxu0 %v395
    %1372 = vmatprep.subr.mxu0 0.0
    %1373 = vmatpush1.msra.mxu0 %v396
    %1374 = vmatprep.subr.mxu0 0.0
    %1375 = vmatpush1.msra.mxu0 %v397
    %1376 = vmatprep.subr.mxu0 0.0
    %1377 = vmatpush1.msra.mxu0 %v398
    %1378 = vmatprep.subr.mxu0 0.0
    %1379 = vmatpush1.msra.mxu0 %v399
    %1380 = vmatprep.subr.mxu0 0.0
    %1381 = vmatpush1.msra.mxu0 %v400
    %1382 = vmatprep.subr.mxu0 0.0
    %1383 = vmatpush1.msra.mxu0 %v401
    %1384 = vmatprep.subr.mxu0 0.0
    %1385 = vmatpush1.msra.mxu0 %v402
    %1386 = vmatprep.subr.mxu0 0.0
    %1387 = vmatpush1.msra.mxu0 %v403
    %1388 = vmatprep.subr.mxu0 0.0
    %1389 = vmatpush1.msra.mxu0 %v404
    %1390 = vmatprep.subr.mxu0 0.0
    %1391 = vmatpush1.msra.mxu0 %v405
    %1392 = vmatprep.subr.mxu0 0.0
    %1393 = vmatpush1.msra.mxu0 %v406
    %1394 = vmatprep.subr.mxu0 0.0
    %1395 = vmatpush1.msra.mxu0 %v407
    %1396 = vmatprep.subr.mxu0 0.0
    %1397 = vmatpush1.msra.mxu0 %v408
    %1398 = vmatprep.subr.mxu0 0.0
    %1399 = vmatpush1.msra.mxu0 %v409
    %1400 = vmatprep.subr.mxu0 0.0
    %1401 = vmatpush1.msra.mxu0 %v410
    %1402 = vmatprep.subr.mxu0 0.0
    %1403 = vmatpush1.msra.mxu0 %v411
    %1404 = vmatprep.subr.mxu0 0.0
    %1405 = vmatpush1.msra.mxu0 %v412
    %1406 = vmatprep.subr.mxu0 0.0
    %1407 = vmatpush1.msra.mxu0 %v413
    %1408 = vmatprep.subr.mxu0 0.0
    %1409 = vmatpush1.msra.mxu0 %v414
    %1410 = vmatprep.subr.mxu0 0.0
    %1411 = vmatpush1.msra.mxu0 %v415
    %1412 = vmatprep.subr.mxu0 0.0
    %1413 = vmatpush1.msra.mxu0 %v416
    %1414 = vmatprep.subr.mxu0 0.0
    %1415 = vmatpush1.msra.mxu0 %v417
    %1416 = vmatprep.mubr.f32.mxu0 %v549
    %1417 = vmatmul.mubr.f32.gmra.mrb[0].mxu0 %v547
    %v1418 = vpop.f32.mrb[0].mxu0
    %v1419 = vadd.f32 %v1349, %v1418
    %v1420 = vpop.f32.mrb[0].mxu0
    %1421 = vdwg.mxu0
    %1422 = vmatprep.subr.mxu0 0.0
    %1423 = vmatpush1.msra.mxu0 %v418
    %1424 = vmatprep.subr.mxu0 0.0
    %1425 = vmatpush1.msra.mxu0 %v419
    %1426 = vmatprep.subr.mxu0 0.0
    %1427 = vmatpush1.msra.mxu0 %v420
    %1428 = vmatprep.subr.mxu0 0.0
    %1429 = vmatpush1.msra.mxu0 %v421
    %1430 = vmatprep.subr.mxu0 0.0
    %1431 = vmatpush1.msra.mxu0 %v422
    %1432 = vmatprep.subr.mxu0 0.0
    %1433 = vmatpush1.msra.mxu0 %v423
    %1434 = vmatprep.subr.mxu0 0.0
    %1435 = vmatpush1.msra.mxu0 %v424
    %1436 = vmatprep.subr.mxu0 0.0
    %1437 = vmatpush1.msra.mxu0 %v425
    %1438 = vmatprep.subr.mxu0 0.0
    %1439 = vmatpush1.msra.mxu0 %v426
    %1440 = vmatprep.subr.mxu0 0.0
    %1441 = vmatpush1.msra.mxu0 %v427
    %1442 = vmatprep.subr.mxu0 0.0
    %1443 = vmatpush1.msra.mxu0 %v428
    %1444 = vmatprep.subr.mxu0 0.0
    %1445 = vmatpush1.msra.mxu0 %v429
    %1446 = vmatprep.subr.mxu0 0.0
    %1447 = vmatpush1.msra.mxu0 %v430
    %1448 = vmatprep.subr.mxu0 0.0
    %1449 = vmatpush1.msra.mxu0 %v431
    %1450 = vmatprep.subr.mxu0 0.0
    %1451 = vmatpush1.msra.mxu0 %v432
    %1452 = vmatprep.subr.mxu0 0.0
    %1453 = vmatpush1.msra.mxu0 %v433
    %1454 = vmatprep.subr.mxu0 0.0
    %1455 = vmatpush1.msra.mxu0 0.0
    %1456 = vmatprep.subr.mxu0 0.0
    %1457 = vmatpush1.msra.mxu0 0.0
    %1458 = vmatprep.subr.mxu0 0.0
    %1459 = vmatpush1.msra.mxu0 0.0
    %1460 = vmatprep.subr.mxu0 0.0
    %1461 = vmatpush1.msra.mxu0 0.0
    %1462 = vmatprep.subr.mxu0 0.0
    %1463 = vmatpush1.msra.mxu0 0.0
    %1464 = vmatprep.subr.mxu0 0.0
    %1465 = vmatpush1.msra.mxu0 0.0
    %1466 = vmatprep.subr.mxu0 0.0
    %1467 = vmatpush1.msra.mxu0 0.0
    %1468 = vmatprep.subr.mxu0 0.0
    %1469 = vmatpush1.msra.mxu0 0.0
    %1470 = vmatprep.subr.mxu0 0.0
    %1471 = vmatpush1.msra.mxu0 0.0
    %1472 = vmatprep.subr.mxu0 0.0
    %1473 = vmatpush1.msra.mxu0 0.0
    %1474 = vmatprep.subr.mxu0 0.0
    %1475 = vmatpush1.msra.mxu0 0.0
    %1476 = vmatprep.subr.mxu0 0.0
    %1477 = vmatpush1.msra.mxu0 0.0
    %1478 = vmatprep.subr.mxu0 0.0
    %1479 = vmatpush1.msra.mxu0 0.0
    %1480 = vmatprep.subr.mxu0 0.0
    %1481 = vmatpush1.msra.mxu0 0.0
    %1482 = vmatprep.subr.mxu0 0.0
    %1483 = vmatpush1.msra.mxu0 0.0
    %1484 = vmatprep.subr.mxu0 0.0
    %1485 = vmatpush1.msra.mxu0 0.0
    %1486 = vmatprep.mubr.f32.mxu0 0.0
    %1487 = vmatmul.mubr.f32.gmra.mrb[0].mxu0 %v556
    %v1488 = vpop.f32.mrb[0].mxu0
    %v1489 = vadd.f32 %v1419, %v1488
    %v1490 = vpop.f32.mrb[0].mxu0
    %1491 = vdwg.mxu0
    %v1492 = vmax.f32 %v1489, 0.0
    %v1493 = vld [vmem:[%s3] sm:$0xff]
    %v1494 = vld [vmem:[%s3 + $0x8] sm:$0xff]
    %v1495 = vld [vmem:[%s3 + $0x10] sm:$0xff]
    %v1496 = vld [vmem:[%s3 + $0x18] sm:$0xff]
    %v1497 = vld [vmem:[%s3 + $0x20] sm:$0xff]
    %v1498 = vld [vmem:[%s3 + $0x28] sm:$0xff]
    %v1499 = vld [vmem:[%s3 + $0x30] sm:$0xff]
    %v1500 = vld [vmem:[%s3 + $0x38] sm:$0xff]
    %v1501 = vld [vmem:[%s3 + $0x40] sm:$0xff]
    %v1502 = vld [vmem:[%s3 + $0x48] sm:$0xff]
    %v1503 = vld [vmem:[%s3 + $0x50] sm:$0xff]
    %v1504 = vld [vmem:[%s3 + $0x58] sm:$0xff]
    %v1505 = vld [vmem:[%s3 + $0x60] sm:$0xff]
    %v1506 = vld [vmem:[%s3 + $0x68] sm:$0xff]
    %v1507 = vld [vmem:[%s3 + $0x70] sm:$0xff]
    %v1508 = vld [vmem:[%s3 + $0x78] sm:$0xff]
    %v1509 = vld [vmem:[%s4] sm:$0x1]
    %v1511 = vlaneseq
    %v1512 = vshrl.u32 %v1511, 7
    %v1513 = vsub.s32 0, %v1512
    %v1514 = vrot.slane %v1509, %v1513
    %1516 = vmatprep.subr.mxu0 0.0
    %1517 = vmatpush1.msra.mxu0 %v1493
    %1518 = vmatprep.subr.mxu0 0.0
    %1519 = vmatpush1.msra.mxu0 %v1494
    %1520 = vmatprep.subr.mxu0 0.0
    %1521 = vmatpush1.msra.mxu0 %v1495
    %1522 = vmatprep.subr.mxu0 0.0
    %1523 = vmatpush1.msra.mxu0 %v1496
    %1524 = vmatprep.subr.mxu0 0.0
    %1525 = vmatpush1.msra.mxu0 %v1497
    %1526 = vmatprep.subr.mxu0 0.0
    %1527 = vmatpush1.msra.mxu0 %v1498
    %1528 = vmatprep.subr.mxu0 0.0
    %1529 = vmatpush1.msra.mxu0 %v1499
    %1530 = vmatprep.subr.mxu0 0.0
    %1531 = vmatpush1.msra.mxu0 %v1500
    %1532 = vmatprep.subr.mxu0 0.0
    %1533 = vmatpush1.msra.mxu0 %v1501
    %1534 = vmatprep.subr.mxu0 0.0
    %1535 = vmatpush1.msra.mxu0 %v1502
    %1536 = vmatprep.subr.mxu0 0.0
    %1537 = vmatpush1.msra.mxu0 %v1503
    %1538 = vmatprep.subr.mxu0 0.0
    %1539 = vmatpush1.msra.mxu0 %v1504
    %1540 = vmatprep.subr.mxu0 0.0
    %1541 = vmatpush1.msra.mxu0 %v1505
    %1542 = vmatprep.subr.mxu0 0.0
    %1543 = vmatpush1.msra.mxu0 %v1506
    %1544 = vmatprep.subr.mxu0 0.0
    %1545 = vmatpush1.msra.mxu0 %v1507
    %1546 = vmatprep.subr.mxu0 0.0
    %1547 = vmatpush1.msra.mxu0 %v1508
    %1548 = vmatprep.subr.mxu0 0.0
    %1549 = vmatpush1.msra.mxu0 0.0
    %1550 = vmatprep.subr.mxu0 0.0
    %1551 = vmatpush1.msra.mxu0 0.0
    %1552 = vmatprep.subr.mxu0 0.0
    %1553 = vmatpush1.msra.mxu0 0.0
    %1554 = vmatprep.subr.mxu0 0.0
    %1555 = vmatpush1.msra.mxu0 0.0
    %1556 = vmatprep.subr.mxu0 0.0
    %1557 = vmatpush1.msra.mxu0 0.0
    %1558 = vmatprep.subr.mxu0 0.0
    %1559 = vmatpush1.msra.mxu0 0.0
    %1560 = vmatprep.subr.mxu0 0.0
    %1561 = vmatpush1.msra.mxu0 0.0
    %1562 = vmatprep.subr.mxu0 0.0
    %1563 = vmatpush1.msra.mxu0 0.0
    %1564 = vmatprep.subr.mxu0 0.0
    %1565 = vmatpush1.msra.mxu0 0.0
    %1566 = vmatprep.subr.mxu0 0.0
    %1567 = vmatpush1.msra.mxu0 0.0
    %1568 = vmatprep.subr.mxu0 0.0
    %1569 = vmatpush1.msra.mxu0 0.0
    %1570 = vmatprep.subr.mxu0 0.0
    %1571 = vmatpush1.msra.mxu0 0.0
    %1572 = vmatprep.subr.mxu0 0.0
    %1573 = vmatpush1.msra.mxu0 0.0
    %1574 = vmatprep.subr.mxu0 0.0
    %1575 = vmatpush1.msra.mxu0 0.0
    %1576 = vmatprep.subr.mxu0 0.0
    %1577 = vmatpush1.msra.mxu0 0.0
    %1578 = vmatprep.subr.mxu0 0.0
    %1579 = vmatpush1.msra.mxu0 0.0
    %1580 = vmatprep.mubr.f32.mxu0 0.0
    %1581 = vmatmul.mubr.f32.gmra.mrb[0].mxu0 %v1492
    %v1582 = vpop.f32.mrb[0].mxu0
    %v1583 = vadd.f32 %v1514, %v1582
    %v1584 = vpop.f32.mrb[0].mxu0
    %1585 = vdwg.mxu0
    %v1586 = vmax.f32 %v1583, 0.0
    %v1587 = vld [vmem:[%s5] sm:$0xff]
    %v1588 = vld [vmem:[%s5 + $0x8] sm:$0xff]
    %v1589 = vld [vmem:[%s5 + $0x10] sm:$0xff]
    %v1590 = vld [vmem:[%s5 + $0x18] sm:$0xff]
    %v1591 = vld [vmem:[%s5 + $0x20] sm:$0xff]
    %v1592 = vld [vmem:[%s5 + $0x28] sm:$0xff]
    %v1593 = vld [vmem:[%s5 + $0x30] sm:$0xff]
    %v1594 = vld [vmem:[%s5 + $0x38] sm:$0xff]
    %v1595 = vld [vmem:[%s5 + $0x40] sm:$0xff]
    %v1596 = vld [vmem:[%s5 + $0x48] sm:$0xff]
    %v1597 = vld [vmem:[%s5 + $0x50] sm:$0xff]
    %v1598 = vld [vmem:[%s5 + $0x58] sm:$0xff]
    %v1599 = vld [vmem:[%s5 + $0x60] sm:$0xff]
    %v1600 = vld [vmem:[%s5 + $0x68] sm:$0xff]
    %v1601 = vld [vmem:[%s5 + $0x70] sm:$0xff]
    %v1602 = vld [vmem:[%s5 + $0x78] sm:$0xff]
    %v1603 = vld [vmem:[%s6] sm:$0x1]
    %v1605 = vlaneseq
    %v1606 = vshrl.u32 %v1605, 7
    %v1607 = vsub.s32 0, %v1606
    %v1608 = vrot.slane %v1603, %v1607
    %1610 = vmatprep.subr.mxu0 0.0
    %1611 = vmatpush1.msra.mxu0 %v1587
    %1612 = vmatprep.subr.mxu0 0.0
    %1613 = vmatpush1.msra.mxu0 %v1588
    %1614 = vmatprep.subr.mxu0 0.0
    %1615 = vmatpush1.msra.mxu0 %v1589
    %1616 = vmatprep.subr.mxu0 0.0
    %1617 = vmatpush1.msra.mxu0 %v1590
    %1618 = vmatprep.subr.mxu0 0.0
    %1619 = vmatpush1.msra.mxu0 %v1591
    %1620 = vmatprep.subr.mxu0 0.0
    %1621 = vmatpush1.msra.mxu0 %v1592
    %1622 = vmatprep.subr.mxu0 0.0
    %1623 = vmatpush1.msra.mxu0 %v1593
    %1624 = vmatprep.subr.mxu0 0.0
    %1625 = vmatpush1.msra.mxu0 %v1594
    %1626 = vmatprep.subr.mxu0 0.0
    %1627 = vmatpush1.msra.mxu0 %v1595
    %1628 = vmatprep.subr.mxu0 0.0
    %1629 = vmatpush1.msra.mxu0 %v1596
    %1630 = vmatprep.subr.mxu0 0.0
    %1631 = vmatpush1.msra.mxu0 %v1597
    %1632 = vmatprep.subr.mxu0 0.0
    %1633 = vmatpush1.msra.mxu0 %v1598
    %1634 = vmatprep.subr.mxu0 0.0
    %1635 = vmatpush1.msra.mxu0 %v1599
    %1636 = vmatprep.subr.mxu0 0.0
    %1637 = vmatpush1.msra.mxu0 %v1600
    %1638 = vmatprep.subr.mxu0 0.0
    %1639 = vmatpush1.msra.mxu0 %v1601
    %1640 = vmatprep.subr.mxu0 0.0
    %1641 = vmatpush1.msra.mxu0 %v1602
    %1642 = vmatprep.subr.mxu0 0.0
    %1643 = vmatpush1.msra.mxu0 0.0
    %1644 = vmatprep.subr.mxu0 0.0
    %1645 = vmatpush1.msra.mxu0 0.0
    %1646 = vmatprep.subr.mxu0 0.0
    %1647 = vmatpush1.msra.mxu0 0.0
    %1648 = vmatprep.subr.mxu0 0.0
    %1649 = vmatpush1.msra.mxu0 0.0
    %1650 = vmatprep.subr.mxu0 0.0
    %1651 = vmatpush1.msra.mxu0 0.0
    %1652 = vmatprep.subr.mxu0 0.0
    %1653 = vmatpush1.msra.mxu0 0.0
    %1654 = vmatprep.subr.mxu0 0.0
    %1655 = vmatpush1.msra.mxu0 0.0
    %1656 = vmatprep.subr.mxu0 0.0
    %1657 = vmatpush1.msra.mxu0 0.0
    %1658 = vmatprep.subr.mxu0 0.0
    %1659 = vmatpush1.msra.mxu0 0.0
    %1660 = vmatprep.subr.mxu0 0.0
    %1661 = vmatpush1.msra.mxu0 0.0
    %1662 = vmatprep.subr.mxu0 0.0
    %1663 = vmatpush1.msra.mxu0 0.0
    %1664 = vmatprep.subr.mxu0 0.0
    %1665 = vmatpush1.msra.mxu0 0.0
    %1666 = vmatprep.subr.mxu0 0.0
    %1667 = vmatpush1.msra.mxu0 0.0
    %1668 = vmatprep.subr.mxu0 0.0
    %1669 = vmatpush1.msra.mxu0 0.0
    %1670 = vmatprep.subr.mxu0 0.0
    %1671 = vmatpush1.msra.mxu0 0.0
    %1672 = vmatprep.subr.mxu0 0.0
    %1673 = vmatpush1.msra.mxu0 0.0
    %1674 = vmatprep.mubr.f32.mxu0 0.0
    %1675 = vmatmul.mubr.f32.gmra.mrb[0].mxu0 %v1586
    %v1676 = vpop.f32.mrb[0].mxu0
    %v1677 = vadd.f32 %v1608, %v1676
    %v1678 = vpop.f32.mrb[0].mxu0
    %1679 = vdwg.mxu0
    %vm1680 = vcmask 74752
    %1681 = vst.msk [vmem:[#allocation2] sm:$0x3] %vm1680, %v1677
    // Predicated region
    $region30: #{lenet_forward.5} parent=1 // pred_check
      _
    $region31: #{lenet_forward.5} parent=1 // pred_check_branch
      %1683 = sbr.rel (0) target = $region33
    $region32: #{lenet_forward.5} parent=1 // pred_region
      %s1685 = ssub.s32 32, 32
      %1686 = vsyncadd [#allocation3], %s1685
      %s1688 = sshll.u32 [#allocation2], 4
      %s1689 = int_to_ptr.vmem [resolvable:$true] %s1688
      %1691 = dma.vmem_to_hbm [thread:$0]  %s1689, 32, %s7, [#allocation3]
    $region33: #{lenet_forward.5} parent=1 // pred_fallthru
      _
    // Predicated region
    $region34: #{lenet_forward.5} parent=1 // pred_check
      _
    $region35: #{lenet_forward.5} parent=1 // pred_check_branch
      %1693 = sbr.rel (0) target = $region37
    $region36: #{lenet_forward.5} parent=1 // pred_region
      %1694 = dma.done [#allocation3], 32
    $region37: #{lenet_forward.5} parent=1 // pred_fallthru
      _
    %1695 = vsyncpa [#allocation3], 1

// kernel: lenet_forward.4
$region0: #{lenet_forward.4}
  #allocation0 [shape = 'u32[]', space=smem, size = 0x4, offset = 0x4, fixed_abs, tag = 'smem constant byte address 0x4 - core index']
  #allocation1 [shape = 'u32[144,128]{1,0:T(1,128)}', space=vmem, size = 0x12000, scoped, tag = 'internal scratch']
  #allocation2 [shape = 'f32[28,128]{1,0:T(8,128)}', space=vmem, size = 0x4000, scoped, tag = 'scratch operand']
  %s0 = inlined_call_operand.vmem [shape: f32[2,200,128], index: 0, kind: input, shape index: {}]
  %s1 = inlined_call_operand.vmem [shape: f32[3200,128], index: 1, kind: input, shape index: {}]
  %s2 = inlined_call_operand.vmem [shape: f32[1,128], index: 2, kind: input, shape index: {}]
  %s3 = inlined_call_operand.vmem [shape: f32[2,25,128], index: 3, kind: output, shape index: {}]
  %s4 = sld [smem:[#allocation0]]
  $region52: #{lenet_forward.4} parent=0
    _
  %s6 = ssub.s32 1, %s4
  %s7 = scalar_select 0, %s6, %s4
  loop: start=0, step=1, limit=4
  $region2: #{lenet_forward.4} parent=0 // loop_pre_header
    _
  $region3: #{lenet_forward.4} parent=0 // loop_header
    %s9 = sphi 0, %s13
    %p10 = scmp.ge.s32.totalorder %s9, 4
    %s19 = sphi 0, %s21
    %s22 = sphi 0, %s19
    %s23 = sphi 0, %s22
    %s39 = sphi 0, %s23
    %s43 = sphi 0, %s43
    %s45 = sphi 0, %s43
    %s46 = sphi 0, %s45
    %s60 = sphi 0, %s46
    %s64 = sphi 0, %s64
    %s66 = sphi 0, %s64
    %s67 = sphi 0, %s66
    %s81 = sphi 0, %s67
    %s87 = sphi 0, %s89
    %s90 = sphi 0, %s87
    %s91 = sphi 0, %s90
    %s107 = sphi 0, %s91
  $region4: #{lenet_forward.4} parent=0 // loop_header_branch
    %12 = sbr.rel (%p10) target = $region8
  $region5: #{lenet_forward.4} parent=0 // loop_body
    %s14 = ssub.s32 %s9, 1
    %s15 = ssub.s32 %s9, 2
    %s16 = sadd.s32 %s9, 1
    %s17 = ssub.s32 %s9, %s16
    %p18 = scmp.eq.s32.totalorder %s17, 0
    %s20 = sadd.s32 %s19, 1
    %s21 = scalar_select %p18, %s19, %s20
    %p24 = pneg %p18
    %p25 = scmp.eq.s32.totalorder %s9, 1
    %p26 = por %p24, %p25
    %p27 = scmp.ne.s32.totalorder %s19, %s22
    %p28 = scmp.eq.s32.totalorder %s9, 0
    %p29 = por %p27, %p28
    %p30 = scmp.ne.s32.totalorder %s19, %s22
    %p31 = scmp.eq.s32.totalorder %s14, 1
    %p32 = por %p30, %p31
    %p33 = scmp.ne.s32.totalorder %s22, %s23
    %p34 = scmp.eq.s32.totalorder %s14, 0
    %p35 = por %p33, %p34
    %p36 = scmp.ne.s32.totalorder %s22, %s23
    %p37 = scmp.eq.s32.totalorder %s15, 1
    %p38 = por %p36, %p37
    %p40 = scmp.ne.s32.totalorder %s23, %s39
    %p41 = scmp.eq.s32.totalorder %s15, 0
    %p42 = por %p40, %p41
    %s44 = sadd.s32 %s43, 1
    %p47 = scmp.eq.s32.totalorder %s9, 1
    %p48 = scmp.ne.s32.totalorder %s43, %s45
    %p49 = scmp.eq.s32.totalorder %s9, 0
    %p50 = por %p48, %p49
    %p51 = scmp.ne.s32.totalorder %s43, %s45
    %p52 = scmp.eq.s32.totalorder %s14, 1
    %p53 = por %p51, %p52
    %p54 = scmp.ne.s32.totalorder %s45, %s46
    %p55 = scmp.eq.s32.totalorder %s14, 0
    %p56 = por %p54, %p55
    %p57 = scmp.ne.s32.totalorder %s45, %s46
    %p58 = scmp.eq.s32.totalorder %s15, 1
    %p59 = por %p57, %p58
    %p61 = scmp.ne.s32.totalorder %s46, %s60
    %p62 = scmp.eq.s32.totalorder %s15, 0
    %p63 = por %p61, %p62
    %s65 = sadd.s32 %s64, 1
    %p68 = scmp.eq.s32.totalorder %s9, 1
    %p69 = scmp.ne.s32.totalorder %s64, %s66
    %p70 = scmp.eq.s32.totalorder %s9, 0
    %p71 = por %p69, %p70
    %p72 = scmp.ne.s32.totalorder %s64, %s66
    %p73 = scmp.eq.s32.totalorder %s14, 1
    %p74 = por %p72, %p73
    %p75 = scmp.ne.s32.totalorder %s66, %s67
    %p76 = scmp.eq.s32.totalorder %s14, 0
    %p77 = por %p75, %p76
    %p78 = scmp.ne.s32.totalorder %s66, %s67
    %p79 = scmp.eq.s32.totalorder %s15, 1
    %p80 = por %p78, %p79
    %p82 = scmp.ne.s32.totalorder %s67, %s81
    %p83 = scmp.eq.s32.totalorder %s15, 0
    %p84 = por %p82, %p83
    %s85 = ssub.s32 %s9, %s16
    %p86 = scmp.eq.s32.totalorder %s85, 0
    %s88 = sadd.s32 %s87, 1
    %s89 = scalar_select %p86, %s87, %s88
    %p92 = pneg %p86
    %p93 = scmp.eq.s32.totalorder %s9, 1
    %p94 = por %p92, %p93
    %p95 = scmp.ne.s32.totalorder %s87, %s90
    %p96 = scmp.eq.s32.totalorder %s9, 0
    %p97 = por %p95, %p96
    %p98 = scmp.ne.s32.totalorder %s87, %s90
    %p99 = scmp.eq.s32.totalorder %s14, 1
    %p100 = por %p98, %p99
    %p101 = scmp.ne.s32.totalorder %s90, %s91
    %p102 = scmp.eq.s32.totalorder %s14, 0
    %p103 = por %p101, %p102
    %p104 = scmp.ne.s32.totalorder %s90, %s91
    %p105 = scmp.eq.s32.totalorder %s15, 1
    %p106 = por %p104, %p105
    %p108 = scmp.ne.s32.totalorder %s91, %s107
    %p109 = scmp.eq.s32.totalorder %s15, 0
    %p110 = por %p108, %p109
    %p111 = scmp.le.s32.totalorder 1, %s9
    %p112 = scmp.lt.s32.totalorder %s9, 3
    %p113 = pnand %p111, %p112
    %p114 = pneg %p113
    // Predicated region
    $region9: #{lenet_forward.4} parent=5 // pred_check
      _
    $region10: #{lenet_forward.4} parent=5 // pred_check_branch
      %116 = sbr.rel (%p113) target = $region12
    $region11: #{lenet_forward.4} parent=5 // pred_region
      %s117 = ssub.s32 %s9, 1
      // Predicated region
      $region13: #{lenet_forward.4} parent=11 // pred_check
        %p118 = pneg %p56
      $region14: #{lenet_forward.4} parent=11 // pred_check_branch
        %120 = sbr.rel (%p118) target = $region16
      $region15: #{lenet_forward.4} parent=11 // pred_region
        _
      $region16: #{lenet_forward.4} parent=11 // pred_fallthru
        _
      // Predicated region
      $region17: #{lenet_forward.4} parent=11 // pred_check
        %p121 = pneg %p77
      $region18: #{lenet_forward.4} parent=11 // pred_check_branch
        %123 = sbr.rel (%p121) target = $region20
      $region19: #{lenet_forward.4} parent=11 // pred_region
        _
      $region20: #{lenet_forward.4} parent=11 // pred_fallthru
        _
    $region12: #{lenet_forward.4} parent=5 // pred_fallthru
      _
    %p124 = scmp.lt.s32.totalorder %s9, 2
    // Predicated region
    $region21: #{lenet_forward.4} parent=5 // pred_check
      %p125 = pneg %p124
    $region22: #{lenet_forward.4} parent=5 // pred_check_branch
      %127 = sbr.rel (%p125) target = $region24
    $region23: #{lenet_forward.4} parent=5 // pred_region
      // Predicated region
      $region25: #{lenet_forward.4} parent=23 // pred_check
        %p128 = pneg %p29
      $region26: #{lenet_forward.4} parent=23 // pred_check_branch
        %130 = sbr.rel (%p128) target = $region28
      $region27: #{lenet_forward.4} parent=23 // pred_region
        %p131 = scmp.lt.s32.totalorder %s9, 1
        %s132 = scalar_select %p131, %s9, 1
        %s133 = smul.addr %s132, 25
        %s134 = smul.addr %s133, 8
        %s135 = scalar_lea.vmem %s0, %s134
      $region28: #{lenet_forward.4} parent=23 // pred_fallthru
        _
    $region24: #{lenet_forward.4} parent=5 // pred_fallthru
      _
    %p136 = scmp.le.s32.totalorder 1, %s9
    %p137 = scmp.lt.s32.totalorder %s9, 3
    %p138 = pnand %p136, %p137
    %p139 = pneg %p138
    // Predicated region
    $region29: #{lenet_forward.4} parent=5 // pred_check
      _
    $region30: #{lenet_forward.4} parent=5 // pred_check_branch
      %141 = sbr.rel (%p138) target = $region32
    $region31: #{lenet_forward.4} parent=5 // pred_region
      %s142 = ssub.s32 %s9, 1
      %p143 = scmp.lt.s32.totalorder %s14, 1
      %s144 = scalar_select %p143, %s14, 1
      %s145 = smul.addr %s144, 25
      %s146 = smul.addr %s145, 8
      %s147 = scalar_lea.vmem %s0, %s146
      %p148 = pneg %p35
      %p149 = pneg %p32
      %p150 = pneg %p56
      %p151 = pneg %p53
      %p152 = pneg %p77
      %p153 = pneg %p74
      %p154 = pneg %p103
      %p155 = pneg %p100
      %p156 = scmp.lt.s32.totalorder %s14, 1
      %s157 = scalar_select %p156, %s14, 1
      %s158 = smul.addr %s157, 4
      %s159 = smul.addr %s158, 8
      %s160 = scalar_lea.vmem %s3, %s159
      %p161 = scmp.lt.s32.totalorder %s14, 1
      %s162 = scalar_select %p161, %s14, 1
      %s163 = smul.addr %s162, 25
      %s164 = smul.addr %s163, 8
      %s165 = scalar_lea.vmem %s0, %s164
      %p166 = scmp.lt.s32.totalorder %s14, 1
      %s167 = scalar_select %p166, %s14, 1
      %s168 = smul.addr %s167, 4
      %s169 = smul.addr %s168, 8
      %s170 = scalar_lea.vmem %s3, %s169
      %v171 = vld [vmem:[%s2] sm:$0x1]
      %v173 = vlaneseq
      %v174 = vshrl.u32 %v173, 7
      %v175 = vsub.s32 0, %v174
      %v176 = vrot.slane %v171, %v175
      loop: start=0, step=1, limit=5
      $region33: #{lenet_forward.4} parent=31 // loop_pre_header
        _
      $region34: #{lenet_forward.4} parent=31 // loop_header
        %s179 = sphi 0, %s183
        %p180 = scmp.ge.s32.totalorder %s179, 5
      $region35: #{lenet_forward.4} parent=31 // loop_header_branch
        %182 = sbr.rel (%p180) target = $region39
      $region36: #{lenet_forward.4} parent=31 // loop_body
        %s184 = smul.u32 %s179, 28
        %s185 = scalar_lea.vmem %s165, %s184
        %v186 = vld [vmem:[%s185] sm:$0xff]
        %v187 = vld [vmem:[%s185 + $0x8] sm:$0xff]
        %v188 = vld [vmem:[%s185 + $0x10] sm:$0xff]
        %v189 = vld [vmem:[%s185 + $0x18] sm:$0xf]
        %v190 = vld [vmem:[%s1] sm:$0xff]
        %v191 = vld [vmem:[%s1 + $0x8] sm:$0xff]
        %v192 = vld [vmem:[%s1 + $0x10] sm:$0xff]
        %v193 = vld [vmem:[%s1 + $0x18] sm:$0xff]
        %v194 = vld [vmem:[%s1 + $0x20] sm:$0xff]
        %v195 = vld [vmem:[%s1 + $0x28] sm:$0xff]
        %v196 = vld [vmem:[%s1 + $0x30] sm:$0xff]
        %v197 = vld [vmem:[%s1 + $0x38] sm:$0xff]
        %v198 = vld [vmem:[%s1 + $0x40] sm:$0xff]
        %v199 = vld [vmem:[%s1 + $0x48] sm:$0xff]
        %v200 = vld [vmem:[%s1 + $0x50] sm:$0xff]
        %v201 = vld [vmem:[%s1 + $0x58] sm:$0xff]
        %v202 = vld [vmem:[%s1 + $0x60] sm:$0xff]
        %v203 = vld [vmem:[%s1 + $0x68] sm:$0xff]
        %v204 = vld [vmem:[%s1 + $0x70] sm:$0xff]
        %v205 = vld [vmem:[%s1 + $0x78] sm:$0xff]
        %s206 = sadd.s32 %s184, 1
        %s207 = scalar_lea.vmem %s165, %s206
        %v208 = vld [vmem:[%s207] sm:$0xff]
        %v209 = vld [vmem:[%s207 + $0x8] sm:$0xff]
        %v210 = vld [vmem:[%s207 + $0x10] sm:$0xff]
        %v211 = vld [vmem:[%s207 + $0x18] sm:$0xf]
        %v212 = vld [vmem:[%s1 + $0x80] sm:$0xff]
        %v213 = vld [vmem:[%s1 + $0x88] sm:$0xff]
        %v214 = vld [vmem:[%s1 + $0x90] sm:$0xff]
        %v215 = vld [vmem:[%s1 + $0x98] sm:$0xff]
        %v216 = vld [vmem:[%s1 + $0xa0] sm:$0xff]
        %v217 = vld [vmem:[%s1 + $0xa8] sm:$0xff]
        %v218 = vld [vmem:[%s1 + $0xb0] sm:$0xff]
        %v219 = vld [vmem:[%s1 + $0xb8] sm:$0xff]
        %v220 = vld [vmem:[%s1 + $0xc0] sm:$0xff]
        %v221 = vld [vmem:[%s1 + $0xc8] sm:$0xff]
        %v222 = vld [vmem:[%s1 + $0xd0] sm:$0xff]
        %v223 = vld [vmem:[%s1 + $0xd8] sm:$0xff]
        %v224 = vld [vmem:[%s1 + $0xe0] sm:$0xff]
        %v225 = vld [vmem:[%s1 + $0xe8] sm:$0xff]
        %v226 = vld [vmem:[%s1 + $0xf0] sm:$0xff]
        %v227 = vld [vmem:[%s1 + $0xf8] sm:$0xff]
        %228 = vmatprep.subr.mxu0 0.0
        %229 = vmatpush1.msra.mxu0 %v212
        %230 = vmatprep.subr.mxu0 0.0
        %231 = vmatpush1.msra.mxu0 %v213
        %232 = vmatprep.subr.mxu0 0.0
        %233 = vmatpush1.msra.mxu0 %v214
        %234 = vmatprep.subr.mxu0 0.0
        %235 = vmatpush1.msra.mxu0 %v215
        %236 = vmatprep.subr.mxu0 0.0
        %237 = vmatpush1.msra.mxu0 %v216
        %238 = vmatprep.subr.mxu0 0.0
        %239 = vmatpush1.msra.mxu0 %v217
        %240 = vmatprep.subr.mxu0 0.0
        %241 = vmatpush1.msra.mxu0 %v218
        %242 = vmatprep.subr.mxu0 0.0
        %243 = vmatpush1.msra.mxu0 %v219
        %244 = vmatprep.subr.mxu0 0.0
        %245 = vmatpush1.msra.mxu0 %v220
        %246 = vmatprep.subr.mxu0 0.0
        %247 = vmatpush1.msra.mxu0 %v221
        %248 = vmatprep.subr.mxu0 0.0
        %249 = vmatpush1.msra.mxu0 %v222
        %250 = vmatprep.subr.mxu0 0.0
        %251 = vmatpush1.msra.mxu0 %v223
        %252 = vmatprep.subr.mxu0 0.0
        %253 = vmatpush1.msra.mxu0 %v224
        %254 = vmatprep.subr.mxu0 0.0
        %255 = vmatpush1.msra.mxu0 %v225
        %256 = vmatprep.subr.mxu0 0.0
        %257 = vmatpush1.msra.mxu0 %v226
        %258 = vmatprep.subr.mxu0 0.0
        %259 = vmatpush1.msra.mxu0 %v227
        %260 = vmatprep.subr.mxu0 0.0
        %261 = vmatpush1.msra.mxu0 0.0
        %262 = vmatprep.subr.mxu0 0.0
        %263 = vmatpush1.msra.mxu0 0.0
        %264 = vmatprep.subr.mxu0 0.0
        %265 = vmatpush1.msra.mxu0 0.0
        %266 = vmatprep.subr.mxu0 0.0
        %267 = vmatpush1.msra.mxu0 0.0
        %268 = vmatprep.subr.mxu0 0.0
        %269 = vmatpush1.msra.mxu0 0.0
        %270 = vmatprep.subr.mxu0 0.0
        %271 = vmatpush1.msra.mxu0 0.0
        %272 = vmatprep.subr.mxu0 0.0
        %273 = vmatpush1.msra.mxu0 0.0
        %274 = vmatprep.subr.mxu0 0.0
        %275 = vmatpush1.msra.mxu0 0.0
        %276 = vmatprep.subr.mxu0 0.0
        %277 = vmatpush1.msra.mxu0 0.0
        %278 = vmatprep.subr.mxu0 0.0
        %279 = vmatpush1.msra.mxu0 0.0
        %280 = vmatprep.subr.mxu0 0.0
        %281 = vmatpush1.msra.mxu0 0.0
        %282 = vmatprep.subr.mxu0 0.0
        %283 = vmatpush1.msra.mxu0 0.0
        %284 = vmatprep.subr.mxu0 0.0
        %285 = vmatpush1.msra.mxu0 0.0
        %286 = vmatprep.subr.mxu0 0.0
        %287 = vmatpush1.msra.mxu0 0.0
        %288 = vmatprep.subr.mxu0 0.0
        %289 = vmatpush1.msra.mxu0 0.0
        %290 = vmatprep.subr.mxu0 0.0
        %291 = vmatpush1.msra.mxu0 0.0
        %292 = vmatprep.mubr.f32.mxu0 0.0
        %293 = vmatmul.mubr.f32.gmra.mrb[0].mxu0 %v208
        %v294 = vpop.f32.mrb[0].mxu0
        %v295 = vadd.f32 0.0, %v294
        %v296 = vpop.f32.mrb[0].mxu0
        %297 = vmatprep.mubr.f32.mxu0 0.0
        %298 = vmatmul.mubr.f32.gmra.mrb[0].mxu0 %v209
        %v299 = vpop.f32.mrb[0].mxu0
        %v300 = vadd.f32 0.0, %v299
        %v301 = vpop.f32.mrb[0].mxu0
        %302 = vmatprep.mubr.f32.mxu0 0.0
        %303 = vmatmul.mubr.f32.gmra.mrb[0].mxu0 %v210
        %v304 = vpop.f32.mrb[0].mxu0
        %v305 = vadd.f32 0.0, %v304
        %v306 = vpop.f32.mrb[0].mxu0
        %307 = vmatprep.mubr.f32.mxu0 0.0
        %308 = vmatmul.mubr.f32.gmra.mrb[0].mxu0 %v211
        %v309 = vpop.f32.mrb[0].mxu0
        %v310 = vadd.f32 0.0, %v309
        %v311 = vpop.f32.mrb[0].mxu0
        %312 = vdwg.mxu0
        %313 = vmatprep.subr.mxu0 0.0
        %314 = vmatpush1.msra.mxu0 %v190
        %315 = vmatprep.subr.mxu0 0.0
        %316 = vmatpush1.msra.mxu0 %v191
        %317 = vmatprep.subr.mxu0 0.0
        %318 = vmatpush1.msra.mxu0 %v192
        %319 = vmatprep.subr.mxu0 0.0
        %320 = vmatpush1.msra.mxu0 %v193
        %321 = vmatprep.subr.mxu0 0.0
        %322 = vmatpush1.msra.mxu0 %v194
        %323 = vmatprep.subr.mxu0 0.0
        %324 = vmatpush1.msra.mxu0 %v195
        %325 = vmatprep.subr.mxu0 0.0
        %326 = vmatpush1.msra.mxu0 %v196
        %327 = vmatprep.subr.mxu0 0.0
        %328 = vmatpush1.msra.mxu0 %v197
        %329 = vmatprep.subr.mxu0 0.0
        %330 = vmatpush1.msra.mxu0 %v198
        %331 = vmatprep.subr.mxu0 0.0
        %332 = vmatpush1.msra.mxu0 %v199
        %333 = vmatprep.subr.mxu0 0.0
        %334 = vmatpush1.msra.mxu0 %v200
        %335 = vmatprep.subr.mxu0 0.0
        %336 = vmatpush1.msra.mxu0 %v201
        %337 = vmatprep.subr.mxu0 0.0
        %338 = vmatpush1.msra.mxu0 %v202
        %339 = vmatprep.subr.mxu0 0.0
        %340 = vmatpush1.msra.mxu0 %v203
        %341 = vmatprep.subr.mxu0 0.0
        %342 = vmatpush1.msra.mxu0 %v204
        %343 = vmatprep.subr.mxu0 0.0
        %344 = vmatpush1.msra.mxu0 %v205
        %345 = vmatprep.subr.mxu0 0.0
        %346 = vmatpush1.msra.mxu0 0.0
        %347 = vmatprep.subr.mxu0 0.0
        %348 = vmatpush1.msra.mxu0 0.0
        %349 = vmatprep.subr.mxu0 0.0
        %350 = vmatpush1.msra.mxu0 0.0
        %351 = vmatprep.subr.mxu0 0.0
        %352 = vmatpush1.msra.mxu0 0.0
        %353 = vmatprep.subr.mxu0 0.0
        %354 = vmatpush1.msra.mxu0 0.0
        %355 = vmatprep.subr.mxu0 0.0
        %356 = vmatpush1.msra.mxu0 0.0
        %357 = vmatprep.subr.mxu0 0.0
        %358 = vmatpush1.msra.mxu0 0.0
        %359 = vmatprep.subr.mxu0 0.0
        %360 = vmatpush1.msra.mxu0 0.0
        %361 = vmatprep.subr.mxu0 0.0
        %362 = vmatpush1.msra.mxu0 0.0
        %363 = vmatprep.subr.mxu0 0.0
        %364 = vmatpush1.msra.mxu0 0.0
        %365 = vmatprep.subr.mxu0 0.0
        %366 = vmatpush1.msra.mxu0 0.0
        %367 = vmatprep.subr.mxu0 0.0
        %368 = vmatpush1.msra.mxu0 0.0
        %369 = vmatprep.subr.mxu0 0.0
        %370 = vmatpush1.msra.mxu0 0.0
        %371 = vmatprep.subr.mxu0 0.0
        %372 = vmatpush1.msra.mxu0 0.0
        %373 = vmatprep.subr.mxu0 0.0
        %374 = vmatpush1.msra.mxu0 0.0
        %375 = vmatprep.subr.mxu0 0.0
        %376 = vmatpush1.msra.mxu0 0.0
        %377 = vmatprep.mubr.f32.mxu0 0.0
        %378 = vmatmul.mubr.f32.gmra.mrb[0].mxu0 %v186
        %v379 = vpop.f32.mrb[0].mxu0
        %v380 = vadd.f32 %v295, %v379
        %v381 = vpop.f32.mrb[0].mxu0
        %382 = vmatprep.mubr.f32.mxu0 0.0
        %383 = vmatmul.mubr.f32.gmra.mrb[0].mxu0 %v187
        %v384 = vpop.f32.mrb[0].mxu0
        %v385 = vadd.f32 %v300, %v384
        %v386 = vpop.f32.mrb[0].mxu0
        %387 = vmatprep.mubr.f32.mxu0 0.0
        %388 = vmatmul.mubr.f32.gmra.mrb[0].mxu0 %v188
        %v389 = vpop.f32.mrb[0].mxu0
        %v390 = vadd.f32 %v305, %v389
        %v391 = vpop.f32.mrb[0].mxu0
        %392 = vmatprep.mubr.f32.mxu0 0.0
        %393 = vmatmul.mubr.f32.gmra.mrb[0].mxu0 %v189
        %v394 = vpop.f32.mrb[0].mxu0
        %v395 = vadd.f32 %v310, %v394
        %v396 = vpop.f32.mrb[0].mxu0
        %397 = vdwg.mxu0
        %s398 = sadd.s32 %s184, 2
        %s399 = scalar_lea.vmem %s165, %s398
        %v400 = vld [vmem:[%s399] sm:$0xff]
        %v401 = vld [vmem:[%s399 + $0x8] sm:$0xff]
        %v402 = vld [vmem:[%s399 + $0x10] sm:$0xff]
        %v403 = vld [vmem:[%s399 + $0x18] sm:$0xf]
        %v404 = vld [vmem:[%s1 + $0x100] sm:$0xff]
        %v405 = vld [vmem:[%s1 + $0x108] sm:$0xff]
        %v406 = vld [vmem:[%s1 + $0x110] sm:$0xff]
        %v407 = vld [vmem:[%s1 + $0x118] sm:$0xff]
        %v408 = vld [vmem:[%s1 + $0x120] sm:$0xff]
        %v409 = vld [vmem:[%s1 + $0x128] sm:$0xff]
        %v410 = vld [vmem:[%s1 + $0x130] sm:$0xff]
        %v411 = vld [vmem:[%s1 + $0x138] sm:$0xff]
        %v412 = vld [vmem:[%s1 + $0x140] sm:$0xff]
        %v413 = vld [vmem:[%s1 + $0x148] sm:$0xff]
        %v414 = vld [vmem:[%s1 + $0x150] sm:$0xff]
        %v415 = vld [vmem:[%s1 + $0x158] sm:$0xff]
        %v416 = vld [vmem:[%s1 + $0x160] sm:$0xff]
        %v417 = vld [vmem:[%s1 + $0x168] sm:$0xff]
        %v418 = vld [vmem:[%s1 + $0x170] sm:$0xff]
        %v419 = vld [vmem:[%s1 + $0x178] sm:$0xff]
        %420 = vmatprep.subr.mxu0 0.0
        %421 = vmatpush1.msra.mxu0 %v404
        %422 = vmatprep.subr.mxu0 0.0
        %423 = vmatpush1.msra.mxu0 %v405
        %424 = vmatprep.subr.mxu0 0.0
        %425 = vmatpush1.msra.mxu0 %v406
        %426 = vmatprep.subr.mxu0 0.0
        %427 = vmatpush1.msra.mxu0 %v407
        %428 = vmatprep.subr.mxu0 0.0
        %429 = vmatpush1.msra.mxu0 %v408
        %430 = vmatprep.subr.mxu0 0.0
        %431 = vmatpush1.msra.mxu0 %v409
        %432 = vmatprep.subr.mxu0 0.0
        %433 = vmatpush1.msra.mxu0 %v410
        %434 = vmatprep.subr.mxu0 0.0
        %435 = vmatpush1.msra.mxu0 %v411
        %436 = vmatprep.subr.mxu0 0.0
        %437 = vmatpush1.msra.mxu0 %v412
        %438 = vmatprep.subr.mxu0 0.0
        %439 = vmatpush1.msra.mxu0 %v413
        %440 = vmatprep.subr.mxu0 0.0
        %441 = vmatpush1.msra.mxu0 %v414
        %442 = vmatprep.subr.mxu0 0.0
        %443 = vmatpush1.msra.mxu0 %v415
        %444 = vmatprep.subr.mxu0 0.0
        %445 = vmatpush1.msra.mxu0 %v416
        %446 = vmatprep.subr.mxu0 0.0
        %447 = vmatpush1.msra.mxu0 %v417
        %448 = vmatprep.subr.mxu0 0.0
        %449 = vmatpush1.msra.mxu0 %v418
        %450 = vmatprep.subr.mxu0 0.0
        %451 = vmatpush1.msra.mxu0 %v419
        %452 = vmatprep.subr.mxu0 0.0
        %453 = vmatpush1.msra.mxu0 0.0
        %454 = vmatprep.subr.mxu0 0.0
        %455 = vmatpush1.msra.mxu0 0.0
        %456 = vmatprep.subr.mxu0 0.0
        %457 = vmatpush1.msra.mxu0 0.0
        %458 = vmatprep.subr.mxu0 0.0
        %459 = vmatpush1.msra.mxu0 0.0
        %460 = vmatprep.subr.mxu0 0.0
        %461 = vmatpush1.msra.mxu0 0.0
        %462 = vmatprep.subr.mxu0 0.0
        %463 = vmatpush1.msra.mxu0 0.0
        %464 = vmatprep.subr.mxu0 0.0
        %465 = vmatpush1.msra.mxu0 0.0
        %466 = vmatprep.subr.mxu0 0.0
        %467 = vmatpush1.msra.mxu0 0.0
        %468 = vmatprep.subr.mxu0 0.0
        %469 = vmatpush1.msra.mxu0 0.0
        %470 = vmatprep.subr.mxu0 0.0
        %471 = vmatpush1.msra.mxu0 0.0
        %472 = vmatprep.subr.mxu0 0.0
        %473 = vmatpush1.msra.mxu0 0.0
        %474 = vmatprep.subr.mxu0 0.0
        %475 = vmatpush1.msra.mxu0 0.0
        %476 = vmatprep.subr.mxu0 0.0
        %477 = vmatpush1.msra.mxu0 0.0
        %478 = vmatprep.subr.mxu0 0.0
        %479 = vmatpush1.msra.mxu0 0.0
        %480 = vmatprep.subr.mxu0 0.0
        %481 = vmatpush1.msra.mxu0 0.0
        %482 = vmatprep.subr.mxu0 0.0
        %483 = vmatpush1.msra.mxu0 0.0
        %484 = vmatprep.mubr.f32.mxu0 0.0
        %485 = vmatmul.mubr.f32.gmra.mrb[0].mxu0 %v400
        %v486 = vpop.f32.mrb[0].mxu0
        %v487 = vadd.f32 0.0, %v486
        %v488 = vpop.f32.mrb[0].mxu0
        %489 = vmatprep.mubr.f32.mxu0 0.0
        %490 = vmatmul.mubr.f32.gmra.mrb[0].mxu0 %v401
        %v491 = vpop.f32.mrb[0].mxu0
        %v492 = vadd.f32 0.0, %v491
        %v493 = vpop.f32.mrb[0].mxu0
        %494 = vmatprep.mubr.f32.mxu0 0.0
        %495 = vmatmul.mubr.f32.gmra.mrb[0].mxu0 %v402
        %v496 = vpop.f32.mrb[0].mxu0
        %v497 = vadd.f32 0.0, %v496
        %v498 = vpop.f32.mrb[0].mxu0
        %499 = vmatprep.mubr.f32.mxu0 0.0
        %500 = vmatmul.mubr.f32.gmra.mrb[0].mxu0 %v403
        %v501 = vpop.f32.mrb[0].mxu0
        %v502 = vadd.f32 0.0, %v501
        %v503 = vpop.f32.mrb[0].mxu0
        %504 = vdwg.mxu0
        %v505 = vadd.f32 %v380, %v487
        %v506 = vadd.f32 %v385, %v492
        %v507 = vadd.f32 %v390, %v497
        %v508 = vadd.f32 %v395, %v502
        %s509 = sadd.s32 %s184, 3
        %s510 = scalar_lea.vmem %s165, %s509
        %v511 = vld [vmem:[%s510] sm:$0xff]
        %v512 = vld [vmem:[%s510 + $0x8] sm:$0xff]
        %v513 = vld [vmem:[%s510 + $0x10] sm:$0xff]
        %v514 = vld [vmem:[%s510 + $0x18] sm:$0xf]
        %v515 = vld [vmem:[%s1 + $0x180] sm:$0xff]
        %v516 = vld [vmem:[%s1 + $0x188] sm:$0xff]
        %v517 = vld [vmem:[%s1 + $0x190] sm:$0xff]
        %v518 = vld [vmem:[%s1 + $0x198] sm:$0xff]
        %v519 = vld [vmem:[%s1 + $0x1a0] sm:$0xff]
        %v520 = vld [vmem:[%s1 + $0x1a8] sm:$0xff]
        %v521 = vld [vmem:[%s1 + $0x1b0] sm:$0xff]
        %v522 = vld [vmem:[%s1 + $0x1b8] sm:$0xff]
        %v523 = vld [vmem:[%s1 + $0x1c0] sm:$0xff]
        %v524 = vld [vmem:[%s1 + $0x1c8] sm:$0xff]
        %v525 = vld [vmem:[%s1 + $0x1d0] sm:$0xff]
        %v526 = vld [vmem:[%s1 + $0x1d8] sm:$0xff]
        %v527 = vld [vmem:[%s1 + $0x1e0] sm:$0xff]
        %v528 = vld [vmem:[%s1 + $0x1e8] sm:$0xff]
        %v529 = vld [vmem:[%s1 + $0x1f0] sm:$0xff]
        %v530 = vld [vmem:[%s1 + $0x1f8] sm:$0xff]
        %531 = vmatprep.subr.mxu0 0.0
        %532 = vmatpush1.msra.mxu0 %v515
        %533 = vmatprep.subr.mxu0 0.0
        %534 = vmatpush1.msra.mxu0 %v516
        %535 = vmatprep.subr.mxu0 0.0
        %536 = vmatpush1.msra.mxu0 %v517
        %537 = vmatprep.subr.mxu0 0.0
        %538 = vmatpush1.msra.mxu0 %v518
        %539 = vmatprep.subr.mxu0 0.0
        %540 = vmatpush1.msra.mxu0 %v519
        %541 = vmatprep.subr.mxu0 0.0
        %542 = vmatpush1.msra.mxu0 %v520
        %543 = vmatprep.subr.mxu0 0.0
        %544 = vmatpush1.msra.mxu0 %v521
        %545 = vmatprep.subr.mxu0 0.0
        %546 = vmatpush1.msra.mxu0 %v522
        %547 = vmatprep.subr.mxu0 0.0
        %548 = vmatpush1.msra.mxu0 %v523
        %549 = vmatprep.subr.mxu0 0.0
        %550 = vmatpush1.msra.mxu0 %v524
        %551 = vmatprep.subr.mxu0 0.0
        %552 = vmatpush1.msra.mxu0 %v525
        %553 = vmatprep.subr.mxu0 0.0
        %554 = vmatpush1.msra.mxu0 %v526
        %555 = vmatprep.subr.mxu0 0.0
        %556 = vmatpush1.msra.mxu0 %v527
        %557 = vmatprep.subr.mxu0 0.0
        %558 = vmatpush1.msra.mxu0 %v528
        %559 = vmatprep.subr.mxu0 0.0
        %560 = vmatpush1.msra.mxu0 %v529
        %561 = vmatprep.subr.mxu0 0.0
        %562 = vmatpush1.msra.mxu0 %v530
        %563 = vmatprep.subr.mxu0 0.0
        %564 = vmatpush1.msra.mxu0 0.0
        %565 = vmatprep.subr.mxu0 0.0
        %566 = vmatpush1.msra.mxu0 0.0
        %567 = vmatprep.subr.mxu0 0.0
        %568 = vmatpush1.msra.mxu0 0.0
        %569 = vmatprep.subr.mxu0 0.0
        %570 = vmatpush1.msra.mxu0 0.0
        %571 = vmatprep.subr.mxu0 0.0
        %572 = vmatpush1.msra.mxu0 0.0
        %573 = vmatprep.subr.mxu0 0.0
        %574 = vmatpush1.msra.mxu0 0.0
        %575 = vmatprep.subr.mxu0 0.0
        %576 = vmatpush1.msra.mxu0 0.0
        %577 = vmatprep.subr.mxu0 0.0
        %578 = vmatpush1.msra.mxu0 0.0
        %579 = vmatprep.subr.mxu0 0.0
        %580 = vmatpush1.msra.mxu0 0.0
        %581 = vmatprep.subr.mxu0 0.0
        %582 = vmatpush1.msra.mxu0 0.0
        %583 = vmatprep.subr.mxu0 0.0
        %584 = vmatpush1.msra.mxu0 0.0
        %585 = vmatprep.subr.mxu0 0.0
        %586 = vmatpush1.msra.mxu0 0.0
        %587 = vmatprep.subr.mxu0 0.0
        %588 = vmatpush1.msra.mxu0 0.0
        %589 = vmatprep.subr.mxu0 0.0
        %590 = vmatpush1.msra.mxu0 0.0
        %591 = vmatprep.subr.mxu0 0.0
        %592 = vmatpush1.msra.mxu0 0.0
        %593 = vmatprep.subr.mxu0 0.0
        %594 = vmatpush1.msra.mxu0 0.0
        %595 = vmatprep.mubr.f32.mxu0 0.0
        %596 = vmatmul.mubr.f32.gmra.mrb[0].mxu0 %v511
        %v597 = vpop.f32.mrb[0].mxu0
        %v598 = vadd.f32 0.0, %v597
        %v599 = vpop.f32.mrb[0].mxu0
        %600 = vmatprep.mubr.f32.mxu0 0.0
        %601 = vmatmul.mubr.f32.gmra.mrb[0].mxu0 %v512
        %v602 = vpop.f32.mrb[0].mxu0
        %v603 = vadd.f32 0.0, %v602
        %v604 = vpop.f32.mrb[0].mxu0
        %605 = vmatprep.mubr.f32.mxu0 0.0
        %606 = vmatmul.mubr.f32.gmra.mrb[0].mxu0 %v513
        %v607 = vpop.f32.mrb[0].mxu0
        %v608 = vadd.f32 0.0, %v607
        %v609 = vpop.f32.mrb[0].mxu0
        %610 = vmatprep.mubr.f32.mxu0 0.0
        %611 = vmatmul.mubr.f32.gmra.mrb[0].mxu0 %v514
        %v612 = vpop.f32.mrb[0].mxu0
        %v613 = vadd.f32 0.0, %v612
        %v614 = vpop.f32.mrb[0].mxu0
        %615 = vdwg.mxu0
        %v616 = vadd.f32 %v505, %v598
        %v617 = vadd.f32 %v506, %v603
        %v618 = vadd.f32 %v507, %v608
        %v619 = vadd.f32 %v508, %v613
        %s620 = sadd.s32 %s184, 4
        %s621 = scalar_lea.vmem %s165, %s620
        %v622 = vld [vmem:[%s621] sm:$0xff]
        %v623 = vld [vmem:[%s621 + $0x8] sm:$0xff]
        %v624 = vld [vmem:[%s621 + $0x10] sm:$0xff]
        %v625 = vld [vmem:[%s621 + $0x18] sm:$0xf]
        %v626 = vld [vmem:[%s1 + $0x200] sm:$0xff]
        %v627 = vld [vmem:[%s1 + $0x208] sm:$0xff]
        %v628 = vld [vmem:[%s1 + $0x210] sm:$0xff]
        %v629 = vld [vmem:[%s1 + $0x218] sm:$0xff]
        %v630 = vld [vmem:[%s1 + $0x220] sm:$0xff]
        %v631 = vld [vmem:[%s1 + $0x228] sm:$0xff]
        %v632 = vld [vmem:[%s1 + $0x230] sm:$0xff]
        %v633 = vld [vmem:[%s1 + $0x238] sm:$0xff]
        %v634 = vld [vmem:[%s1 + $0x240] sm:$0xff]
        %v635 = vld [vmem:[%s1 + $0x248] sm:$0xff]
        %v636 = vld [vmem:[%s1 + $0x250] sm:$0xff]
        %v637 = vld [vmem:[%s1 + $0x258] sm:$0xff]
        %v638 = vld [vmem:[%s1 + $0x260] sm:$0xff]
        %v639 = vld [vmem:[%s1 + $0x268] sm:$0xff]
        %v640 = vld [vmem:[%s1 + $0x270] sm:$0xff]
        %v641 = vld [vmem:[%s1 + $0x278] sm:$0xff]
        %642 = vmatprep.subr.mxu0 0.0
        %643 = vmatpush1.msra.mxu0 %v626
        %644 = vmatprep.subr.mxu0 0.0
        %645 = vmatpush1.msra.mxu0 %v627
        %646 = vmatprep.subr.mxu0 0.0
        %647 = vmatpush1.msra.mxu0 %v628
        %648 = vmatprep.subr.mxu0 0.0
        %649 = vmatpush1.msra.mxu0 %v629
        %650 = vmatprep.subr.mxu0 0.0
        %651 = vmatpush1.msra.mxu0 %v630
        %652 = vmatprep.subr.mxu0 0.0
        %653 = vmatpush1.msra.mxu0 %v631
        %654 = vmatprep.subr.mxu0 0.0
        %655 = vmatpush1.msra.mxu0 %v632
        %656 = vmatprep.subr.mxu0 0.0
        %657 = vmatpush1.msra.mxu0 %v633
        %658 = vmatprep.subr.mxu0 0.0
        %659 = vmatpush1.msra.mxu0 %v634
        %660 = vmatprep.subr.mxu0 0.0
        %661 = vmatpush1.msra.mxu0 %v635
        %662 = vmatprep.subr.mxu0 0.0
        %663 = vmatpush1.msra.mxu0 %v636
        %664 = vmatprep.subr.mxu0 0.0
        %665 = vmatpush1.msra.mxu0 %v637
        %666 = vmatprep.subr.mxu0 0.0
        %667 = vmatpush1.msra.mxu0 %v638
        %668 = vmatprep.subr.mxu0 0.0
        %669 = vmatpush1.msra.mxu0 %v639
        %670 = vmatprep.subr.mxu0 0.0
        %671 = vmatpush1.msra.mxu0 %v640
        %672 = vmatprep.subr.mxu0 0.0
        %673 = vmatpush1.msra.mxu0 %v641
        %674 = vmatprep.subr.mxu0 0.0
        %675 = vmatpush1.msra.mxu0 0.0
        %676 = vmatprep.subr.mxu0 0.0
        %677 = vmatpush1.msra.mxu0 0.0
        %678 = vmatprep.subr.mxu0 0.0
        %679 = vmatpush1.msra.mxu0 0.0
        %680 = vmatprep.subr.mxu0 0.0
        %681 = vmatpush1.msra.mxu0 0.0
        %682 = vmatprep.subr.mxu0 0.0
        %683 = vmatpush1.msra.mxu0 0.0
        %684 = vmatprep.subr.mxu0 0.0
        %685 = vmatpush1.msra.mxu0 0.0
        %686 = vmatprep.subr.mxu0 0.0
        %687 = vmatpush1.msra.mxu0 0.0
        %688 = vmatprep.subr.mxu0 0.0
        %689 = vmatpush1.msra.mxu0 0.0
        %690 = vmatprep.subr.mxu0 0.0
        %691 = vmatpush1.msra.mxu0 0.0
        %692 = vmatprep.subr.mxu0 0.0
        %693 = vmatpush1.msra.mxu0 0.0
        %694 = vmatprep.subr.mxu0 0.0
        %695 = vmatpush1.msra.mxu0 0.0
        %696 = vmatprep.subr.mxu0 0.0
        %697 = vmatpush1.msra.mxu0 0.0
        %698 = vmatprep.subr.mxu0 0.0
        %699 = vmatpush1.msra.mxu0 0.0
        %700 = vmatprep.subr.mxu0 0.0
        %701 = vmatpush1.msra.mxu0 0.0
        %702 = vmatprep.subr.mxu0 0.0
        %703 = vmatpush1.msra.mxu0 0.0
        %704 = vmatprep.subr.mxu0 0.0
        %705 = vmatpush1.msra.mxu0 0.0
        %706 = vmatprep.mubr.f32.mxu0 0.0
        %707 = vmatmul.mubr.f32.gmra.mrb[0].mxu0 %v622
        %v708 = vpop.f32.mrb[0].mxu0
        %v709 = vadd.f32 0.0, %v708
        %v710 = vpop.f32.mrb[0].mxu0
        %711 = vmatprep.mubr.f32.mxu0 0.0
        %712 = vmatmul.mubr.f32.gmra.mrb[0].mxu0 %v623
        %v713 = vpop.f32.mrb[0].mxu0
        %v714 = vadd.f32 0.0, %v713
        %v715 = vpop.f32.mrb[0].mxu0
        %716 = vmatprep.mubr.f32.mxu0 0.0
        %717 = vmatmul.mubr.f32.gmra.mrb[0].mxu0 %v624
        %v718 = vpop.f32.mrb[0].mxu0
        %v719 = vadd.f32 0.0, %v718
        %v720 = vpop.f32.mrb[0].mxu0
        %721 = vmatprep.mubr.f32.mxu0 0.0
        %722 = vmatmul.mubr.f32.gmra.mrb[0].mxu0 %v625
        %v723 = vpop.f32.mrb[0].mxu0
        %v724 = vadd.f32 0.0, %v723
        %v725 = vpop.f32.mrb[0].mxu0
        %726 = vdwg.mxu0
        %v727 = vadd.f32 %v616, %v709
        %v728 = vadd.f32 %v617, %v714
        %v729 = vadd.f32 %v618, %v719
        %v730 = vadd.f32 %v619, %v724
        %s731 = sadd.s32 %s184, 14
        %s732 = scalar_lea.vmem %s165, %s731
        %v733 = vld [vmem:[%s732] sm:$0xff]
        %v734 = vld [vmem:[%s732 + $0x8] sm:$0xff]
        %v735 = vld [vmem:[%s732 + $0x10] sm:$0xff]
        %v736 = vld [vmem:[%s732 + $0x18] sm:$0xf]
        %v737 = vld [vmem:[%s1 + $0x280] sm:$0xff]
        %v738 = vld [vmem:[%s1 + $0x288] sm:$0xff]
        %v739 = vld [vmem:[%s1 + $0x290] sm:$0xff]
        %v740 = vld [vmem:[%s1 + $0x298] sm:$0xff]
        %v741 = vld [vmem:[%s1 + $0x2a0] sm:$0xff]
        %v742 = vld [vmem:[%s1 + $0x2a8] sm:$0xff]
        %v743 = vld [vmem:[%s1 + $0x2b0] sm:$0xff]
        %v744 = vld [vmem:[%s1 + $0x2b8] sm:$0xff]
        %v745 = vld [vmem:[%s1 + $0x2c0] sm:$0xff]
        %v746 = vld [vmem:[%s1 + $0x2c8] sm:$0xff]
        %v747 = vld [vmem:[%s1 + $0x2d0] sm:$0xff]
        %v748 = vld [vmem:[%s1 + $0x2d8] sm:$0xff]
        %v749 = vld [vmem:[%s1 + $0x2e0] sm:$0xff]
        %v750 = vld [vmem:[%s1 + $0x2e8] sm:$0xff]
        %v751 = vld [vmem:[%s1 + $0x2f0] sm:$0xff]
        %v752 = vld [vmem:[%s1 + $0x2f8] sm:$0xff]
        %753 = vmatprep.subr.mxu0 0.0
        %754 = vmatpush1.msra.mxu0 %v737
        %755 = vmatprep.subr.mxu0 0.0
        %756 = vmatpush1.msra.mxu0 %v738
        %757 = vmatprep.subr.mxu0 0.0
        %758 = vmatpush1.msra.mxu0 %v739
        %759 = vmatprep.subr.mxu0 0.0
        %760 = vmatpush1.msra.mxu0 %v740
        %761 = vmatprep.subr.mxu0 0.0
        %762 = vmatpush1.msra.mxu0 %v741
        %763 = vmatprep.subr.mxu0 0.0
        %764 = vmatpush1.msra.mxu0 %v742
        %765 = vmatprep.subr.mxu0 0.0
        %766 = vmatpush1.msra.mxu0 %v743
        %767 = vmatprep.subr.mxu0 0.0
        %768 = vmatpush1.msra.mxu0 %v744
        %769 = vmatprep.subr.mxu0 0.0
        %770 = vmatpush1.msra.mxu0 %v745
        %771 = vmatprep.subr.mxu0 0.0
        %772 = vmatpush1.msra.mxu0 %v746
        %773 = vmatprep.subr.mxu0 0.0
        %774 = vmatpush1.msra.mxu0 %v747
        %775 = vmatprep.subr.mxu0 0.0
        %776 = vmatpush1.msra.mxu0 %v748
        %777 = vmatprep.subr.mxu0 0.0
        %778 = vmatpush1.msra.mxu0 %v749
        %779 = vmatprep.subr.mxu0 0.0
        %780 = vmatpush1.msra.mxu0 %v750
        %781 = vmatprep.subr.mxu0 0.0
        %782 = vmatpush1.msra.mxu0 %v751
        %783 = vmatprep.subr.mxu0 0.0
        %784 = vmatpush1.msra.mxu0 %v752
        %785 = vmatprep.subr.mxu0 0.0
        %786 = vmatpush1.msra.mxu0 0.0
        %787 = vmatprep.subr.mxu0 0.0
        %788 = vmatpush1.msra.mxu0 0.0
        %789 = vmatprep.subr.mxu0 0.0
        %790 = vmatpush1.msra.mxu0 0.0
        %791 = vmatprep.subr.mxu0 0.0
        %792 = vmatpush1.msra.mxu0 0.0
        %793 = vmatprep.subr.mxu0 0.0
        %794 = vmatpush1.msra.mxu0 0.0
        %795 = vmatprep.subr.mxu0 0.0
        %796 = vmatpush1.msra.mxu0 0.0
        %797 = vmatprep.subr.mxu0 0.0
        %798 = vmatpush1.msra.mxu0 0.0
        %799 = vmatprep.subr.mxu0 0.0
        %800 = vmatpush1.msra.mxu0 0.0
        %801 = vmatprep.subr.mxu0 0.0
        %802 = vmatpush1.msra.mxu0 0.0
        %803 = vmatprep.subr.mxu0 0.0
        %804 = vmatpush1.msra.mxu0 0.0
        %805 = vmatprep.subr.mxu0 0.0
        %806 = vmatpush1.msra.mxu0 0.0
        %807 = vmatprep.subr.mxu0 0.0
        %808 = vmatpush1.msra.mxu0 0.0
        %809 = vmatprep.subr.mxu0 0.0
        %810 = vmatpush1.msra.mxu0 0.0
        %811 = vmatprep.subr.mxu0 0.0
        %812 = vmatpush1.msra.mxu0 0.0
        %813 = vmatprep.subr.mxu0 0.0
        %814 = vmatpush1.msra.mxu0 0.0
        %815 = vmatprep.subr.mxu0 0.0
        %816 = vmatpush1.msra.mxu0 0.0
        %817 = vmatprep.mubr.f32.mxu0 0.0
        %818 = vmatmul.mubr.f32.gmra.mrb[0].mxu0 %v733
        %v819 = vpop.f32.mrb[0].mxu0
        %v820 = vadd.f32 0.0, %v819
        %v821 = vpop.f32.mrb[0].mxu0
        %822 = vmatprep.mubr.f32.mxu0 0.0
        %823 = vmatmul.mubr.f32.gmra.mrb[0].mxu0 %v734
        %v824 = vpop.f32.mrb[0].mxu0
        %v825 = vadd.f32 0.0, %v824
        %v826 = vpop.f32.mrb[0].mxu0
        %827 = vmatprep.mubr.f32.mxu0 0.0
        %828 = vmatmul.mubr.f32.gmra.mrb[0].mxu0 %v735
        %v829 = vpop.f32.mrb[0].mxu0
        %v830 = vadd.f32 0.0, %v829
        %v831 = vpop.f32.mrb[0].mxu0
        %832 = vmatprep.mubr.f32.mxu0 0.0
        %833 = vmatmul.mubr.f32.gmra.mrb[0].mxu0 %v736
        %v834 = vpop.f32.mrb[0].mxu0
        %v835 = vadd.f32 0.0, %v834
        %v836 = vpop.f32.mrb[0].mxu0
        %837 = vdwg.mxu0
        %v838 = vadd.f32 %v727, %v820
        %v839 = vadd.f32 %v728, %v825
        %v840 = vadd.f32 %v729, %v830
        %v841 = vadd.f32 %v730, %v835
        %s842 = sadd.s32 %s184, 15
        %s843 = scalar_lea.vmem %s165, %s842
        %v844 = vld [vmem:[%s843] sm:$0xff]
        %v845 = vld [vmem:[%s843 + $0x8] sm:$0xff]
        %v846 = vld [vmem:[%s843 + $0x10] sm:$0xff]
        %v847 = vld [vmem:[%s843 + $0x18] sm:$0xf]
        %v848 = vld [vmem:[%s1 + $0x300] sm:$0xff]
        %v849 = vld [vmem:[%s1 + $0x308] sm:$0xff]
        %v850 = vld [vmem:[%s1 + $0x310] sm:$0xff]
        %v851 = vld [vmem:[%s1 + $0x318] sm:$0xff]
        %v852 = vld [vmem:[%s1 + $0x320] sm:$0xff]
        %v853 = vld [vmem:[%s1 + $0x328] sm:$0xff]
        %v854 = vld [vmem:[%s1 + $0x330] sm:$0xff]
        %v855 = vld [vmem:[%s1 + $0x338] sm:$0xff]
        %v856 = vld [vmem:[%s1 + $0x340] sm:$0xff]
        %v857 = vld [vmem:[%s1 + $0x348] sm:$0xff]
        %v858 = vld [vmem:[%s1 + $0x350] sm:$0xff]
        %v859 = vld [vmem:[%s1 + $0x358] sm:$0xff]
        %v860 = vld [vmem:[%s1 + $0x360] sm:$0xff]
        %v861 = vld [vmem:[%s1 + $0x368] sm:$0xff]
        %v862 = vld [vmem:[%s1 + $0x370] sm:$0xff]
        %v863 = vld [vmem:[%s1 + $0x378] sm:$0xff]
        %864 = vmatprep.subr.mxu0 0.0
        %865 = vmatpush1.msra.mxu0 %v848
        %866 = vmatprep.subr.mxu0 0.0
        %867 = vmatpush1.msra.mxu0 %v849
        %868 = vmatprep.subr.mxu0 0.0
        %869 = vmatpush1.msra.mxu0 %v850
        %870 = vmatprep.subr.mxu0 0.0
        %871 = vmatpush1.msra.mxu0 %v851
        %872 = vmatprep.subr.mxu0 0.0
        %873 = vmatpush1.msra.mxu0 %v852
        %874 = vmatprep.subr.mxu0 0.0
        %875 = vmatpush1.msra.mxu0 %v853
        %876 = vmatprep.subr.mxu0 0.0
        %877 = vmatpush1.msra.mxu0 %v854
        %878 = vmatprep.subr.mxu0 0.0
        %879 = vmatpush1.msra.mxu0 %v855
        %880 = vmatprep.subr.mxu0 0.0
        %881 = vmatpush1.msra.mxu0 %v856
        %882 = vmatprep.subr.mxu0 0.0
        %883 = vmatpush1.msra.mxu0 %v857
        %884 = vmatprep.subr.mxu0 0.0
        %885 = vmatpush1.msra.mxu0 %v858
        %886 = vmatprep.subr.mxu0 0.0
        %887 = vmatpush1.msra.mxu0 %v859
        %888 = vmatprep.subr.mxu0 0.0
        %889 = vmatpush1.msra.mxu0 %v860
        %890 = vmatprep.subr.mxu0 0.0
        %891 = vmatpush1.msra.mxu0 %v861
        %892 = vmatprep.subr.mxu0 0.0
        %893 = vmatpush1.msra.mxu0 %v862
        %894 = vmatprep.subr.mxu0 0.0
        %895 = vmatpush1.msra.mxu0 %v863
        %896 = vmatprep.subr.mxu0 0.0
        %897 = vmatpush1.msra.mxu0 0.0
        %898 = vmatprep.subr.mxu0 0.0
        %899 = vmatpush1.msra.mxu0 0.0
        %900 = vmatprep.subr.mxu0 0.0
        %901 = vmatpush1.msra.mxu0 0.0
        %902 = vmatprep.subr.mxu0 0.0
        %903 = vmatpush1.msra.mxu0 0.0
        %904 = vmatprep.subr.mxu0 0.0
        %905 = vmatpush1.msra.mxu0 0.0
        %906 = vmatprep.subr.mxu0 0.0
        %907 = vmatpush1.msra.mxu0 0.0
        %908 = vmatprep.subr.mxu0 0.0
        %909 = vmatpush1.msra.mxu0 0.0
        %910 = vmatprep.subr.mxu0 0.0
        %911 = vmatpush1.msra.mxu0 0.0
        %912 = vmatprep.subr.mxu0 0.0
        %913 = vmatpush1.msra.mxu0 0.0
        %914 = vmatprep.subr.mxu0 0.0
        %915 = vmatpush1.msra.mxu0 0.0
        %916 = vmatprep.subr.mxu0 0.0
        %917 = vmatpush1.msra.mxu0 0.0
        %918 = vmatprep.subr.mxu0 0.0
        %919 = vmatpush1.msra.mxu0 0.0
        %920 = vmatprep.subr.mxu0 0.0
        %921 = vmatpush1.msra.mxu0 0.0
        %922 = vmatprep.subr.mxu0 0.0
        %923 = vmatpush1.msra.mxu0 0.0
        %924 = vmatprep.subr.mxu0 0.0
        %925 = vmatpush1.msra.mxu0 0.0
        %926 = vmatprep.subr.mxu0 0.0
        %927 = vmatpush1.msra.mxu0 0.0
        %928 = vmatprep.mubr.f32.mxu0 0.0
        %929 = vmatmul.mubr.f32.gmra.mrb[0].mxu0 %v844
        %v930 = vpop.f32.mrb[0].mxu0
        %v931 = vadd.f32 0.0, %v930
        %v932 = vpop.f32.mrb[0].mxu0
        %933 = vmatprep.mubr.f32.mxu0 0.0
        %934 = vmatmul.mubr.f32.gmra.mrb[0].mxu0 %v845
        %v935 = vpop.f32.mrb[0].mxu0
        %v936 = vadd.f32 0.0, %v935
        %v937 = vpop.f32.mrb[0].mxu0
        %938 = vmatprep.mubr.f32.mxu0 0.0
        %939 = vmatmul.mubr.f32.gmra.mrb[0].mxu0 %v846
        %v940 = vpop.f32.mrb[0].mxu0
        %v941 = vadd.f32 0.0, %v940
        %v942 = vpop.f32.mrb[0].mxu0
        %943 = vmatprep.mubr.f32.mxu0 0.0
        %944 = vmatmul.mubr.f32.gmra.mrb[0].mxu0 %v847
        %v945 = vpop.f32.mrb[0].mxu0
        %v946 = vadd.f32 0.0, %v945
        %v947 = vpop.f32.mrb[0].mxu0
        %948 = vdwg.mxu0
        %v949 = vadd.f32 %v838, %v931
        %v950 = vadd.f32 %v839, %v936
        %v951 = vadd.f32 %v840, %v941
        %v952 = vadd.f32 %v841, %v946
        %s953 = sadd.s32 %s184, 16
        %s954 = scalar_lea.vmem %s165, %s953
        %v955 = vld [vmem:[%s954] sm:$0xff]
        %v956 = vld [vmem:[%s954 + $0x8] sm:$0xff]
        %v957 = vld [vmem:[%s954 + $0x10] sm:$0xff]
        %v958 = vld [vmem:[%s954 + $0x18] sm:$0xf]
        %v959 = vld [vmem:[%s1 + $0x380] sm:$0xff]
        %v960 = vld [vmem:[%s1 + $0x388] sm:$0xff]
        %v961 = vld [vmem:[%s1 + $0x390] sm:$0xff]
        %v962 = vld [vmem:[%s1 + $0x398] sm:$0xff]
        %v963 = vld [vmem:[%s1 + $0x3a0] sm:$0xff]
        %v964 = vld [vmem:[%s1 + $0x3a8] sm:$0xff]
        %v965 = vld [vmem:[%s1 + $0x3b0] sm:$0xff]
        %v966 = vld [vmem:[%s1 + $0x3b8] sm:$0xff]
        %v967 = vld [vmem:[%s1 + $0x3c0] sm:$0xff]
        %v968 = vld [vmem:[%s1 + $0x3c8] sm:$0xff]
        %v969 = vld [vmem:[%s1 + $0x3d0] sm:$0xff]
        %v970 = vld [vmem:[%s1 + $0x3d8] sm:$0xff]
        %v971 = vld [vmem:[%s1 + $0x3e0] sm:$0xff]
        %v972 = vld [vmem:[%s1 + $0x3e8] sm:$0xff]
        %v973 = vld [vmem:[%s1 + $0x3f0] sm:$0xff]
        %v974 = vld [vmem:[%s1 + $0x3f8] sm:$0xff]
        %975 = vmatprep.subr.mxu0 0.0
        %976 = vmatpush1.msra.mxu0 %v959
        %977 = vmatprep.subr.mxu0 0.0
        %978 = vmatpush1.msra.mxu0 %v960
        %979 = vmatprep.subr.mxu0 0.0
        %980 = vmatpush1.msra.mxu0 %v961
        %981 = vmatprep.subr.mxu0 0.0
        %982 = vmatpush1.msra.mxu0 %v962
        %983 = vmatprep.subr.mxu0 0.0
        %984 = vmatpush1.msra.mxu0 %v963
        %985 = vmatprep.subr.mxu0 0.0
        %986 = vmatpush1.msra.mxu0 %v964
        %987 = vmatprep.subr.mxu0 0.0
        %988 = vmatpush1.msra.mxu0 %v965
        %989 = vmatprep.subr.mxu0 0.0
        %990 = vmatpush1.msra.mxu0 %v966
        %991 = vmatprep.subr.mxu0 0.0
        %992 = vmatpush1.msra.mxu0 %v967
        %993 = vmatprep.subr.mxu0 0.0
        %994 = vmatpush1.msra.mxu0 %v968
        %995 = vmatprep.subr.mxu0 0.0
        %996 = vmatpush1.msra.mxu0 %v969
        %997 = vmatprep.subr.mxu0 0.0
        %998 = vmatpush1.msra.mxu0 %v970
        %999 = vmatprep.subr.mxu0 0.0
        %1000 = vmatpush1.msra.mxu0 %v971
        %1001 = vmatprep.subr.mxu0 0.0
        %1002 = vmatpush1.msra.mxu0 %v972
        %1003 = vmatprep.subr.mxu0 0.0
        %1004 = vmatpush1.msra.mxu0 %v973
        %1005 = vmatprep.subr.mxu0 0.0
        %1006 = vmatpush1.msra.mxu0 %v974
        %1007 = vmatprep.subr.mxu0 0.0
        %1008 = vmatpush1.msra.mxu0 0.0
        %1009 = vmatprep.subr.mxu0 0.0
        %1010 = vmatpush1.msra.mxu0 0.0
        %1011 = vmatprep.subr.mxu0 0.0
        %1012 = vmatpush1.msra.mxu0 0.0
        %1013 = vmatprep.subr.mxu0 0.0
        %1014 = vmatpush1.msra.mxu0 0.0
        %1015 = vmatprep.subr.mxu0 0.0
        %1016 = vmatpush1.msra.mxu0 0.0
        %1017 = vmatprep.subr.mxu0 0.0
        %1018 = vmatpush1.msra.mxu0 0.0
        %1019 = vmatprep.subr.mxu0 0.0
        %1020 = vmatpush1.msra.mxu0 0.0
        %1021 = vmatprep.subr.mxu0 0.0
        %1022 = vmatpush1.msra.mxu0 0.0
        %1023 = vmatprep.subr.mxu0 0.0
        %1024 = vmatpush1.msra.mxu0 0.0
        %1025 = vmatprep.subr.mxu0 0.0
        %1026 = vmatpush1.msra.mxu0 0.0
        %1027 = vmatprep.subr.mxu0 0.0
        %1028 = vmatpush1.msra.mxu0 0.0
        %1029 = vmatprep.subr.mxu0 0.0
        %1030 = vmatpush1.msra.mxu0 0.0
        %1031 = vmatprep.subr.mxu0 0.0
        %1032 = vmatpush1.msra.mxu0 0.0
        %1033 = vmatprep.subr.mxu0 0.0
        %1034 = vmatpush1.msra.mxu0 0.0
        %1035 = vmatprep.subr.mxu0 0.0
        %1036 = vmatpush1.msra.mxu0 0.0
        %1037 = vmatprep.subr.mxu0 0.0
        %1038 = vmatpush1.msra.mxu0 0.0
        %1039 = vmatprep.mubr.f32.mxu0 0.0
        %1040 = vmatmul.mubr.f32.gmra.mrb[0].mxu0 %v955
        %v1041 = vpop.f32.mrb[0].mxu0
        %v1042 = vadd.f32 0.0, %v1041
        %v1043 = vpop.f32.mrb[0].mxu0
        %1044 = vmatprep.mubr.f32.mxu0 0.0
        %1045 = vmatmul.mubr.f32.gmra.mrb[0].mxu0 %v956
        %v1046 = vpop.f32.mrb[0].mxu0
        %v1047 = vadd.f32 0.0, %v1046
        %v1048 = vpop.f32.mrb[0].mxu0
        %1049 = vmatprep.mubr.f32.mxu0 0.0
        %1050 = vmatmul.mubr.f32.gmra.mrb[0].mxu0 %v957
        %v1051 = vpop.f32.mrb[0].mxu0
        %v1052 = vadd.f32 0.0, %v1051
        %v1053 = vpop.f32.mrb[0].mxu0
        %1054 = vmatprep.mubr.f32.mxu0 0.0
        %1055 = vmatmul.mubr.f32.gmra.mrb[0].mxu0 %v958
        %v1056 = vpop.f32.mrb[0].mxu0
        %v1057 = vadd.f32 0.0, %v1056
        %v1058 = vpop.f32.mrb[0].mxu0
        %1059 = vdwg.mxu0
        %v1060 = vadd.f32 %v949, %v1042
        %v1061 = vadd.f32 %v950, %v1047
        %v1062 = vadd.f32 %v951, %v1052
        %v1063 = vadd.f32 %v952, %v1057
        %s1064 = sadd.s32 %s184, 17
        %s1065 = scalar_lea.vmem %s165, %s1064
        %v1066 = vld [vmem:[%s1065] sm:$0xff]
        %v1067 = vld [vmem:[%s1065 + $0x8] sm:$0xff]
        %v1068 = vld [vmem:[%s1065 + $0x10] sm:$0xff]
        %v1069 = vld [vmem:[%s1065 + $0x18] sm:$0xf]
        %v1070 = vld [vmem:[%s1 + $0x400] sm:$0xff]
        %v1071 = vld [vmem:[%s1 + $0x408] sm:$0xff]
        %v1072 = vld [vmem:[%s1 + $0x410] sm:$0xff]
        %v1073 = vld [vmem:[%s1 + $0x418] sm:$0xff]
        %v1074 = vld [vmem:[%s1 + $0x420] sm:$0xff]
        %v1075 = vld [vmem:[%s1 + $0x428] sm:$0xff]
        %v1076 = vld [vmem:[%s1 + $0x430] sm:$0xff]
        %v1077 = vld [vmem:[%s1 + $0x438] sm:$0xff]
        %v1078 = vld [vmem:[%s1 + $0x440] sm:$0xff]
        %v1079 = vld [vmem:[%s1 + $0x448] sm:$0xff]
        %v1080 = vld [vmem:[%s1 + $0x450] sm:$0xff]
        %v1081 = vld [vmem:[%s1 + $0x458] sm:$0xff]
        %v1082 = vld [vmem:[%s1 + $0x460] sm:$0xff]
        %v1083 = vld [vmem:[%s1 + $0x468] sm:$0xff]
        %v1084 = vld [vmem:[%s1 + $0x470] sm:$0xff]
        %v1085 = vld [vmem:[%s1 + $0x478] sm:$0xff]
        %1086 = vmatprep.subr.mxu0 0.0
        %1087 = vmatpush1.msra.mxu0 %v1070
        %1088 = vmatprep.subr.mxu0 0.0
        %1089 = vmatpush1.msra.mxu0 %v1071
        %1090 = vmatprep.subr.mxu0 0.0
        %1091 = vmatpush1.msra.mxu0 %v1072
        %1092 = vmatprep.subr.mxu0 0.0
        %1093 = vmatpush1.msra.mxu0 %v1073
        %1094 = vmatprep.subr.mxu0 0.0
        %1095 = vmatpush1.msra.mxu0 %v1074
        %1096 = vmatprep.subr.mxu0 0.0
        %1097 = vmatpush1.msra.mxu0 %v1075
        %1098 = vmatprep.subr.mxu0 0.0
        %1099 = vmatpush1.msra.mxu0 %v1076
        %1100 = vmatprep.subr.mxu0 0.0
        %1101 = vmatpush1.msra.mxu0 %v1077
        %1102 = vmatprep.subr.mxu0 0.0
        %1103 = vmatpush1.msra.mxu0 %v1078
        %1104 = vmatprep.subr.mxu0 0.0
        %1105 = vmatpush1.msra.mxu0 %v1079
        %1106 = vmatprep.subr.mxu0 0.0
        %1107 = vmatpush1.msra.mxu0 %v1080
        %1108 = vmatprep.subr.mxu0 0.0
        %1109 = vmatpush1.msra.mxu0 %v1081
        %1110 = vmatprep.subr.mxu0 0.0
        %1111 = vmatpush1.msra.mxu0 %v1082
        %1112 = vmatprep.subr.mxu0 0.0
        %1113 = vmatpush1.msra.mxu0 %v1083
        %1114 = vmatprep.subr.mxu0 0.0
        %1115 = vmatpush1.msra.mxu0 %v1084
        %1116 = vmatprep.subr.mxu0 0.0
        %1117 = vmatpush1.msra.mxu0 %v1085
        %1118 = vmatprep.subr.mxu0 0.0
        %1119 = vmatpush1.msra.mxu0 0.0
        %1120 = vmatprep.subr.mxu0 0.0
        %1121 = vmatpush1.msra.mxu0 0.0
        %1122 = vmatprep.subr.mxu0 0.0
        %1123 = vmatpush1.msra.mxu0 0.0
        %1124 = vmatprep.subr.mxu0 0.0
        %1125 = vmatpush1.msra.mxu0 0.0
        %1126 = vmatprep.subr.mxu0 0.0
        %1127 = vmatpush1.msra.mxu0 0.0
        %1128 = vmatprep.subr.mxu0 0.0
        %1129 = vmatpush1.msra.mxu0 0.0
        %1130 = vmatprep.subr.mxu0 0.0
        %1131 = vmatpush1.msra.mxu0 0.0
        %1132 = vmatprep.subr.mxu0 0.0
        %1133 = vmatpush1.msra.mxu0 0.0
        %1134 = vmatprep.subr.mxu0 0.0
        %1135 = vmatpush1.msra.mxu0 0.0
        %1136 = vmatprep.subr.mxu0 0.0
        %1137 = vmatpush1.msra.mxu0 0.0
        %1138 = vmatprep.subr.mxu0 0.0
        %1139 = vmatpush1.msra.mxu0 0.0
        %1140 = vmatprep.subr.mxu0 0.0
        %1141 = vmatpush1.msra.mxu0 0.0
        %1142 = vmatprep.subr.mxu0 0.0
        %1143 = vmatpush1.msra.mxu0 0.0
        %1144 = vmatprep.subr.mxu0 0.0
        %1145 = vmatpush1.msra.mxu0 0.0
        %1146 = vmatprep.subr.mxu0 0.0
        %1147 = vmatpush1.msra.mxu0 0.0
        %1148 = vmatprep.subr.mxu0 0.0
        %1149 = vmatpush1.msra.mxu0 0.0
        %1150 = vmatprep.mubr.f32.mxu0 0.0
        %1151 = vmatmul.mubr.f32.gmra.mrb[0].mxu0 %v1066
        %v1152 = vpop.f32.mrb[0].mxu0
        %v1153 = vadd.f32 0.0, %v1152
        %v1154 = vpop.f32.mrb[0].mxu0
        %1155 = vmatprep.mubr.f32.mxu0 0.0
        %1156 = vmatmul.mubr.f32.gmra.mrb[0].mxu0 %v1067
        %v1157 = vpop.f32.mrb[0].mxu0
        %v1158 = vadd.f32 0.0, %v1157
        %v1159 = vpop.f32.mrb[0].mxu0
        %1160 = vmatprep.mubr.f32.mxu0 0.0
        %1161 = vmatmul.mubr.f32.gmra.mrb[0].mxu0 %v1068
        %v1162 = vpop.f32.mrb[0].mxu0
        %v1163 = vadd.f32 0.0, %v1162
        %v1164 = vpop.f32.mrb[0].mxu0
        %1165 = vmatprep.mubr.f32.mxu0 0.0
        %1166 = vmatmul.mubr.f32.gmra.mrb[0].mxu0 %v1069
        %v1167 = vpop.f32.mrb[0].mxu0
        %v1168 = vadd.f32 0.0, %v1167
        %v1169 = vpop.f32.mrb[0].mxu0
        %1170 = vdwg.mxu0
        %v1171 = vadd.f32 %v1060, %v1153
        %v1172 = vadd.f32 %v1061, %v1158
        %v1173 = vadd.f32 %v1062, %v1163
        %v1174 = vadd.f32 %v1063, %v1168
        %s1175 = sadd.s32 %s184, 18
        %s1176 = scalar_lea.vmem %s165, %s1175
        %v1177 = vld [vmem:[%s1176] sm:$0xff]
        %v1178 = vld [vmem:[%s1176 + $0x8] sm:$0xff]
        %v1179 = vld [vmem:[%s1176 + $0x10] sm:$0xff]
        %v1180 = vld [vmem:[%s1176 + $0x18] sm:$0xf]
        %v1181 = vld [vmem:[%s1 + $0x480] sm:$0xff]
        %v1182 = vld [vmem:[%s1 + $0x488] sm:$0xff]
        %v1183 = vld [vmem:[%s1 + $0x490] sm:$0xff]
        %v1184 = vld [vmem:[%s1 + $0x498] sm:$0xff]
        %v1185 = vld [vmem:[%s1 + $0x4a0] sm:$0xff]
        %v1186 = vld [vmem:[%s1 + $0x4a8] sm:$0xff]
        %v1187 = vld [vmem:[%s1 + $0x4b0] sm:$0xff]
        %v1188 = vld [vmem:[%s1 + $0x4b8] sm:$0xff]
        %v1189 = vld [vmem:[%s1 + $0x4c0] sm:$0xff]
        %v1190 = vld [vmem:[%s1 + $0x4c8] sm:$0xff]
        %v1191 = vld [vmem:[%s1 + $0x4d0] sm:$0xff]
        %v1192 = vld [vmem:[%s1 + $0x4d8] sm:$0xff]
        %v1193 = vld [vmem:[%s1 + $0x4e0] sm:$0xff]
        %v1194 = vld [vmem:[%s1 + $0x4e8] sm:$0xff]
        %v1195 = vld [vmem:[%s1 + $0x4f0] sm:$0xff]
        %v1196 = vld [vmem:[%s1 + $0x4f8] sm:$0xff]
        %1197 = vmatprep.subr.mxu0 0.0
        %1198 = vmatpush1.msra.mxu0 %v1181
        %1199 = vmatprep.subr.mxu0 0.0
        %1200 = vmatpush1.msra.mxu0 %v1182
        %1201 = vmatprep.subr.mxu0 0.0
        %1202 = vmatpush1.msra.mxu0 %v1183
        %1203 = vmatprep.subr.mxu0 0.0
        %1204 = vmatpush1.msra.mxu0 %v1184
        %1205 = vmatprep.subr.mxu0 0.0
        %1206 = vmatpush1.msra.mxu0 %v1185
        %1207 = vmatprep.subr.mxu0 0.0
        %1208 = vmatpush1.msra.mxu0 %v1186
        %1209 = vmatprep.subr.mxu0 0.0
        %1210 = vmatpush1.msra.mxu0 %v1187
        %1211 = vmatprep.subr.mxu0 0.0
        %1212 = vmatpush1.msra.mxu0 %v1188
        %1213 = vmatprep.subr.mxu0 0.0
        %1214 = vmatpush1.msra.mxu0 %v1189
        %1215 = vmatprep.subr.mxu0 0.0
        %1216 = vmatpush1.msra.mxu0 %v1190
        %1217 = vmatprep.subr.mxu0 0.0
        %1218 = vmatpush1.msra.mxu0 %v1191
        %1219 = vmatprep.subr.mxu0 0.0
        %1220 = vmatpush1.msra.mxu0 %v1192
        %1221 = vmatprep.subr.mxu0 0.0
        %1222 = vmatpush1.msra.mxu0 %v1193
        %1223 = vmatprep.subr.mxu0 0.0
        %1224 = vmatpush1.msra.mxu0 %v1194
        %1225 = vmatprep.subr.mxu0 0.0
        %1226 = vmatpush1.msra.mxu0 %v1195
        %1227 = vmatprep.subr.mxu0 0.0
        %1228 = vmatpush1.msra.mxu0 %v1196
        %1229 = vmatprep.subr.mxu0 0.0
        %1230 = vmatpush1.msra.mxu0 0.0
        %1231 = vmatprep.subr.mxu0 0.0
        %1232 = vmatpush1.msra.mxu0 0.0
        %1233 = vmatprep.subr.mxu0 0.0
        %1234 = vmatpush1.msra.mxu0 0.0
        %1235 = vmatprep.subr.mxu0 0.0
        %1236 = vmatpush1.msra.mxu0 0.0
        %1237 = vmatprep.subr.mxu0 0.0
        %1238 = vmatpush1.msra.mxu0 0.0
        %1239 = vmatprep.subr.mxu0 0.0
        %1240 = vmatpush1.msra.mxu0 0.0
        %1241 = vmatprep.subr.mxu0 0.0
        %1242 = vmatpush1.msra.mxu0 0.0
        %1243 = vmatprep.subr.mxu0 0.0
        %1244 = vmatpush1.msra.mxu0 0.0
        %1245 = vmatprep.subr.mxu0 0.0
        %1246 = vmatpush1.msra.mxu0 0.0
        %1247 = vmatprep.subr.mxu0 0.0
        %1248 = vmatpush1.msra.mxu0 0.0
        %1249 = vmatprep.subr.mxu0 0.0
        %1250 = vmatpush1.msra.mxu0 0.0
        %1251 = vmatprep.subr.mxu0 0.0
        %1252 = vmatpush1.msra.mxu0 0.0
        %1253 = vmatprep.subr.mxu0 0.0
        %1254 = vmatpush1.msra.mxu0 0.0
        %1255 = vmatprep.subr.mxu0 0.0
        %1256 = vmatpush1.msra.mxu0 0.0
        %1257 = vmatprep.subr.mxu0 0.0
        %1258 = vmatpush1.msra.mxu0 0.0
        %1259 = vmatprep.subr.mxu0 0.0
        %1260 = vmatpush1.msra.mxu0 0.0
        %1261 = vmatprep.mubr.f32.mxu0 0.0
        %1262 = vmatmul.mubr.f32.gmra.mrb[0].mxu0 %v1177
        %v1263 = vpop.f32.mrb[0].mxu0
        %v1264 = vadd.f32 0.0, %v1263
        %v1265 = vpop.f32.mrb[0].mxu0
        %1266 = vmatprep.mubr.f32.mxu0 0.0
        %1267 = vmatmul.mubr.f32.gmra.mrb[0].mxu0 %v1178
        %v1268 = vpop.f32.mrb[0].mxu0
        %v1269 = vadd.f32 0.0, %v1268
        %v1270 = vpop.f32.mrb[0].mxu0
        %1271 = vmatprep.mubr.f32.mxu0 0.0
        %1272 = vmatmul.mubr.f32.gmra.mrb[0].mxu0 %v1179
        %v1273 = vpop.f32.mrb[0].mxu0
        %v1274 = vadd.f32 0.0, %v1273
        %v1275 = vpop.f32.mrb[0].mxu0
        %1276 = vmatprep.mubr.f32.mxu0 0.0
        %1277 = vmatmul.mubr.f32.gmra.mrb[0].mxu0 %v1180
        %v1278 = vpop.f32.mrb[0].mxu0
        %v1279 = vadd.f32 0.0, %v1278
        %v1280 = vpop.f32.mrb[0].mxu0
        %1281 = vdwg.mxu0
        %v1282 = vadd.f32 %v1171, %v1264
        %v1283 = vadd.f32 %v1172, %v1269
        %v1284 = vadd.f32 %v1173, %v1274
        %v1285 = vadd.f32 %v1174, %v1279
        %s1286 = sadd.s32 %s184, 28
        %s1287 = scalar_lea.vmem %s165, %s1286
        %v1288 = vld [vmem:[%s1287] sm:$0xff]
        %v1289 = vld [vmem:[%s1287 + $0x8] sm:$0xff]
        %v1290 = vld [vmem:[%s1287 + $0x10] sm:$0xff]
        %v1291 = vld [vmem:[%s1287 + $0x18] sm:$0xf]
        %v1292 = vld [vmem:[%s1 + $0x500] sm:$0xff]
        %v1293 = vld [vmem:[%s1 + $0x508] sm:$0xff]
        %v1294 = vld [vmem:[%s1 + $0x510] sm:$0xff]
        %v1295 = vld [vmem:[%s1 + $0x518] sm:$0xff]
        %v1296 = vld [vmem:[%s1 + $0x520] sm:$0xff]
        %v1297 = vld [vmem:[%s1 + $0x528] sm:$0xff]
        %v1298 = vld [vmem:[%s1 + $0x530] sm:$0xff]
        %v1299 = vld [vmem:[%s1 + $0x538] sm:$0xff]
        %v1300 = vld [vmem:[%s1 + $0x540] sm:$0xff]
        %v1301 = vld [vmem:[%s1 + $0x548] sm:$0xff]
        %v1302 = vld [vmem:[%s1 + $0x550] sm:$0xff]
        %v1303 = vld [vmem:[%s1 + $0x558] sm:$0xff]
        %v1304 = vld [vmem:[%s1 + $0x560] sm:$0xff]
        %v1305 = vld [vmem:[%s1 + $0x568] sm:$0xff]
        %v1306 = vld [vmem:[%s1 + $0x570] sm:$0xff]
        %v1307 = vld [vmem:[%s1 + $0x578] sm:$0xff]
        %1308 = vmatprep.subr.mxu0 0.0
        %1309 = vmatpush1.msra.mxu0 %v1292
        %1310 = vmatprep.subr.mxu0 0.0
        %1311 = vmatpush1.msra.mxu0 %v1293
        %1312 = vmatprep.subr.mxu0 0.0
        %1313 = vmatpush1.msra.mxu0 %v1294
        %1314 = vmatprep.subr.mxu0 0.0
        %1315 = vmatpush1.msra.mxu0 %v1295
        %1316 = vmatprep.subr.mxu0 0.0
        %1317 = vmatpush1.msra.mxu0 %v1296
        %1318 = vmatprep.subr.mxu0 0.0
        %1319 = vmatpush1.msra.mxu0 %v1297
        %1320 = vmatprep.subr.mxu0 0.0
        %1321 = vmatpush1.msra.mxu0 %v1298
        %1322 = vmatprep.subr.mxu0 0.0
        %1323 = vmatpush1.msra.mxu0 %v1299
        %1324 = vmatprep.subr.mxu0 0.0
        %1325 = vmatpush1.msra.mxu0 %v1300
        %1326 = vmatprep.subr.mxu0 0.0
        %1327 = vmatpush1.msra.mxu0 %v1301
        %1328 = vmatprep.subr.mxu0 0.0
        %1329 = vmatpush1.msra.mxu0 %v1302
        %1330 = vmatprep.subr.mxu0 0.0
        %1331 = vmatpush1.msra.mxu0 %v1303
        %1332 = vmatprep.subr.mxu0 0.0
        %1333 = vmatpush1.msra.mxu0 %v1304
        %1334 = vmatprep.subr.mxu0 0.0
        %1335 = vmatpush1.msra.mxu0 %v1305
        %1336 = vmatprep.subr.mxu0 0.0
        %1337 = vmatpush1.msra.mxu0 %v1306
        %1338 = vmatprep.subr.mxu0 0.0
        %1339 = vmatpush1.msra.mxu0 %v1307
        %1340 = vmatprep.subr.mxu0 0.0
        %1341 = vmatpush1.msra.mxu0 0.0
        %1342 = vmatprep.subr.mxu0 0.0
        %1343 = vmatpush1.msra.mxu0 0.0
        %1344 = vmatprep.subr.mxu0 0.0
        %1345 = vmatpush1.msra.mxu0 0.0
        %1346 = vmatprep.subr.mxu0 0.0
        %1347 = vmatpush1.msra.mxu0 0.0
        %1348 = vmatprep.subr.mxu0 0.0
        %1349 = vmatpush1.msra.mxu0 0.0
        %1350 = vmatprep.subr.mxu0 0.0
        %1351 = vmatpush1.msra.mxu0 0.0
        %1352 = vmatprep.subr.mxu0 0.0
        %1353 = vmatpush1.msra.mxu0 0.0
        %1354 = vmatprep.subr.mxu0 0.0
        %1355 = vmatpush1.msra.mxu0 0.0
        %1356 = vmatprep.subr.mxu0 0.0
        %1357 = vmatpush1.msra.mxu0 0.0
        %1358 = vmatprep.subr.mxu0 0.0
        %1359 = vmatpush1.msra.mxu0 0.0
        %1360 = vmatprep.subr.mxu0 0.0
        %1361 = vmatpush1.msra.mxu0 0.0
        %1362 = vmatprep.subr.mxu0 0.0
        %1363 = vmatpush1.msra.mxu0 0.0
        %1364 = vmatprep.subr.mxu0 0.0
        %1365 = vmatpush1.msra.mxu0 0.0
        %1366 = vmatprep.subr.mxu0 0.0
        %1367 = vmatpush1.msra.mxu0 0.0
        %1368 = vmatprep.subr.mxu0 0.0
        %1369 = vmatpush1.msra.mxu0 0.0
        %1370 = vmatprep.subr.mxu0 0.0
        %1371 = vmatpush1.msra.mxu0 0.0
        %1372 = vmatprep.mubr.f32.mxu0 0.0
        %1373 = vmatmul.mubr.f32.gmra.mrb[0].mxu0 %v1288
        %v1374 = vpop.f32.mrb[0].mxu0
        %v1375 = vadd.f32 0.0, %v1374
        %v1376 = vpop.f32.mrb[0].mxu0
        %1377 = vmatprep.mubr.f32.mxu0 0.0
        %1378 = vmatmul.mubr.f32.gmra.mrb[0].mxu0 %v1289
        %v1379 = vpop.f32.mrb[0].mxu0
        %v1380 = vadd.f32 0.0, %v1379
        %v1381 = vpop.f32.mrb[0].mxu0
        %1382 = vmatprep.mubr.f32.mxu0 0.0
        %1383 = vmatmul.mubr.f32.gmra.mrb[0].mxu0 %v1290
        %v1384 = vpop.f32.mrb[0].mxu0
        %v1385 = vadd.f32 0.0, %v1384
        %v1386 = vpop.f32.mrb[0].mxu0
        %1387 = vmatprep.mubr.f32.mxu0 0.0
        %1388 = vmatmul.mubr.f32.gmra.mrb[0].mxu0 %v1291
        %v1389 = vpop.f32.mrb[0].mxu0
        %v1390 = vadd.f32 0.0, %v1389
        %v1391 = vpop.f32.mrb[0].mxu0
        %1392 = vdwg.mxu0
        %v1393 = vadd.f32 %v1282, %v1375
        %v1394 = vadd.f32 %v1283, %v1380
        %v1395 = vadd.f32 %v1284, %v1385
        %v1396 = vadd.f32 %v1285, %v1390
        %s1397 = sadd.s32 %s184, 29
        %s1398 = scalar_lea.vmem %s165, %s1397
        %v1399 = vld [vmem:[%s1398] sm:$0xff]
        %v1400 = vld [vmem:[%s1398 + $0x8] sm:$0xff]
        %v1401 = vld [vmem:[%s1398 + $0x10] sm:$0xff]
        %v1402 = vld [vmem:[%s1398 + $0x18] sm:$0xf]
        %v1403 = vld [vmem:[%s1 + $0x580] sm:$0xff]
        %v1404 = vld [vmem:[%s1 + $0x588] sm:$0xff]
        %v1405 = vld [vmem:[%s1 + $0x590] sm:$0xff]
        %v1406 = vld [vmem:[%s1 + $0x598] sm:$0xff]
        %v1407 = vld [vmem:[%s1 + $0x5a0] sm:$0xff]
        %v1408 = vld [vmem:[%s1 + $0x5a8] sm:$0xff]
        %v1409 = vld [vmem:[%s1 + $0x5b0] sm:$0xff]
        %v1410 = vld [vmem:[%s1 + $0x5b8] sm:$0xff]
        %v1411 = vld [vmem:[%s1 + $0x5c0] sm:$0xff]
        %v1412 = vld [vmem:[%s1 + $0x5c8] sm:$0xff]
        %v1413 = vld [vmem:[%s1 + $0x5d0] sm:$0xff]
        %v1414 = vld [vmem:[%s1 + $0x5d8] sm:$0xff]
        %v1415 = vld [vmem:[%s1 + $0x5e0] sm:$0xff]
        %v1416 = vld [vmem:[%s1 + $0x5e8] sm:$0xff]
        %v1417 = vld [vmem:[%s1 + $0x5f0] sm:$0xff]
        %v1418 = vld [vmem:[%s1 + $0x5f8] sm:$0xff]
        %1419 = vmatprep.subr.mxu0 0.0
        %1420 = vmatpush1.msra.mxu0 %v1403
        %1421 = vmatprep.subr.mxu0 0.0
        %1422 = vmatpush1.msra.mxu0 %v1404
        %1423 = vmatprep.subr.mxu0 0.0
        %1424 = vmatpush1.msra.mxu0 %v1405
        %1425 = vmatprep.subr.mxu0 0.0
        %1426 = vmatpush1.msra.mxu0 %v1406
        %1427 = vmatprep.subr.mxu0 0.0
        %1428 = vmatpush1.msra.mxu0 %v1407
        %1429 = vmatprep.subr.mxu0 0.0
        %1430 = vmatpush1.msra.mxu0 %v1408
        %1431 = vmatprep.subr.mxu0 0.0
        %1432 = vmatpush1.msra.mxu0 %v1409
        %1433 = vmatprep.subr.mxu0 0.0
        %1434 = vmatpush1.msra.mxu0 %v1410
        %1435 = vmatprep.subr.mxu0 0.0
        %1436 = vmatpush1.msra.mxu0 %v1411
        %1437 = vmatprep.subr.mxu0 0.0
        %1438 = vmatpush1.msra.mxu0 %v1412
        %1439 = vmatprep.subr.mxu0 0.0
        %1440 = vmatpush1.msra.mxu0 %v1413
        %1441 = vmatprep.subr.mxu0 0.0
        %1442 = vmatpush1.msra.mxu0 %v1414
        %1443 = vmatprep.subr.mxu0 0.0
        %1444 = vmatpush1.msra.mxu0 %v1415
        %1445 = vmatprep.subr.mxu0 0.0
        %1446 = vmatpush1.msra.mxu0 %v1416
        %1447 = vmatprep.subr.mxu0 0.0
        %1448 = vmatpush1.msra.mxu0 %v1417
        %1449 = vmatprep.subr.mxu0 0.0
        %1450 = vmatpush1.msra.mxu0 %v1418
        %1451 = vmatprep.subr.mxu0 0.0
        %1452 = vmatpush1.msra.mxu0 0.0
        %1453 = vmatprep.subr.mxu0 0.0
        %1454 = vmatpush1.msra.mxu0 0.0
        %1455 = vmatprep.subr.mxu0 0.0
        %1456 = vmatpush1.msra.mxu0 0.0
        %1457 = vmatprep.subr.mxu0 0.0
        %1458 = vmatpush1.msra.mxu0 0.0
        %1459 = vmatprep.subr.mxu0 0.0
        %1460 = vmatpush1.msra.mxu0 0.0
        %1461 = vmatprep.subr.mxu0 0.0
        %1462 = vmatpush1.msra.mxu0 0.0
        %1463 = vmatprep.subr.mxu0 0.0
        %1464 = vmatpush1.msra.mxu0 0.0
        %1465 = vmatprep.subr.mxu0 0.0
        %1466 = vmatpush1.msra.mxu0 0.0
        %1467 = vmatprep.subr.mxu0 0.0
        %1468 = vmatpush1.msra.mxu0 0.0
        %1469 = vmatprep.subr.mxu0 0.0
        %1470 = vmatpush1.msra.mxu0 0.0
        %1471 = vmatprep.subr.mxu0 0.0
        %1472 = vmatpush1.msra.mxu0 0.0
        %1473 = vmatprep.subr.mxu0 0.0
        %1474 = vmatpush1.msra.mxu0 0.0
        %1475 = vmatprep.subr.mxu0 0.0
        %1476 = vmatpush1.msra.mxu0 0.0
        %1477 = vmatprep.subr.mxu0 0.0
        %1478 = vmatpush1.msra.mxu0 0.0
        %1479 = vmatprep.subr.mxu0 0.0
        %1480 = vmatpush1.msra.mxu0 0.0
        %1481 = vmatprep.subr.mxu0 0.0
        %1482 = vmatpush1.msra.mxu0 0.0
        %1483 = vmatprep.mubr.f32.mxu0 0.0
        %1484 = vmatmul.mubr.f32.gmra.mrb[0].mxu0 %v1399
        %v1485 = vpop.f32.mrb[0].mxu0
        %v1486 = vadd.f32 0.0, %v1485
        %v1487 = vpop.f32.mrb[0].mxu0
        %1488 = vmatprep.mubr.f32.mxu0 0.0
        %1489 = vmatmul.mubr.f32.gmra.mrb[0].mxu0 %v1400
        %v1490 = vpop.f32.mrb[0].mxu0
        %v1491 = vadd.f32 0.0, %v1490
        %v1492 = vpop.f32.mrb[0].mxu0
        %1493 = vmatprep.mubr.f32.mxu0 0.0
        %1494 = vmatmul.mubr.f32.gmra.mrb[0].mxu0 %v1401
        %v1495 = vpop.f32.mrb[0].mxu0
        %v1496 = vadd.f32 0.0, %v1495
        %v1497 = vpop.f32.mrb[0].mxu0
        %1498 = vmatprep.mubr.f32.mxu0 0.0
        %1499 = vmatmul.mubr.f32.gmra.mrb[0].mxu0 %v1402
        %v1500 = vpop.f32.mrb[0].mxu0
        %v1501 = vadd.f32 0.0, %v1500
        %v1502 = vpop.f32.mrb[0].mxu0
        %1503 = vdwg.mxu0
        %v1504 = vadd.f32 %v1393, %v1486
        %v1505 = vadd.f32 %v1394, %v1491
        %v1506 = vadd.f32 %v1395, %v1496
        %v1507 = vadd.f32 %v1396, %v1501
        %s1508 = sadd.s32 %s184, 30
        %s1509 = scalar_lea.vmem %s165, %s1508
        %v1510 = vld [vmem:[%s1509] sm:$0xff]
        %v1511 = vld [vmem:[%s1509 + $0x8] sm:$0xff]
        %v1512 = vld [vmem:[%s1509 + $0x10] sm:$0xff]
        %v1513 = vld [vmem:[%s1509 + $0x18] sm:$0xf]
        %v1514 = vld [vmem:[%s1 + $0x600] sm:$0xff]
        %v1515 = vld [vmem:[%s1 + $0x608] sm:$0xff]
        %v1516 = vld [vmem:[%s1 + $0x610] sm:$0xff]
        %v1517 = vld [vmem:[%s1 + $0x618] sm:$0xff]
        %v1518 = vld [vmem:[%s1 + $0x620] sm:$0xff]
        %v1519 = vld [vmem:[%s1 + $0x628] sm:$0xff]
        %v1520 = vld [vmem:[%s1 + $0x630] sm:$0xff]
        %v1521 = vld [vmem:[%s1 + $0x638] sm:$0xff]
        %v1522 = vld [vmem:[%s1 + $0x640] sm:$0xff]
        %v1523 = vld [vmem:[%s1 + $0x648] sm:$0xff]
        %v1524 = vld [vmem:[%s1 + $0x650] sm:$0xff]
        %v1525 = vld [vmem:[%s1 + $0x658] sm:$0xff]
        %v1526 = vld [vmem:[%s1 + $0x660] sm:$0xff]
        %v1527 = vld [vmem:[%s1 + $0x668] sm:$0xff]
        %v1528 = vld [vmem:[%s1 + $0x670] sm:$0xff]
        %v1529 = vld [vmem:[%s1 + $0x678] sm:$0xff]
        %1530 = vmatprep.subr.mxu0 0.0
        %1531 = vmatpush1.msra.mxu0 %v1514
        %1532 = vmatprep.subr.mxu0 0.0
        %1533 = vmatpush1.msra.mxu0 %v1515
        %1534 = vmatprep.subr.mxu0 0.0
        %1535 = vmatpush1.msra.mxu0 %v1516
        %1536 = vmatprep.subr.mxu0 0.0
        %1537 = vmatpush1.msra.mxu0 %v1517
        %1538 = vmatprep.subr.mxu0 0.0
        %1539 = vmatpush1.msra.mxu0 %v1518
        %1540 = vmatprep.subr.mxu0 0.0
        %1541 = vmatpush1.msra.mxu0 %v1519
        %1542 = vmatprep.subr.mxu0 0.0
        %1543 = vmatpush1.msra.mxu0 %v1520
        %1544 = vmatprep.subr.mxu0 0.0
        %1545 = vmatpush1.msra.mxu0 %v1521
        %1546 = vmatprep.subr.mxu0 0.0
        %1547 = vmatpush1.msra.mxu0 %v1522
        %1548 = vmatprep.subr.mxu0 0.0
        %1549 = vmatpush1.msra.mxu0 %v1523
        %1550 = vmatprep.subr.mxu0 0.0
        %1551 = vmatpush1.msra.mxu0 %v1524
        %1552 = vmatprep.subr.mxu0 0.0
        %1553 = vmatpush1.msra.mxu0 %v1525
        %1554 = vmatprep.subr.mxu0 0.0
        %1555 = vmatpush1.msra.mxu0 %v1526
        %1556 = vmatprep.subr.mxu0 0.0
        %1557 = vmatpush1.msra.mxu0 %v1527
        %1558 = vmatprep.subr.mxu0 0.0
        %1559 = vmatpush1.msra.mxu0 %v1528
        %1560 = vmatprep.subr.mxu0 0.0
        %1561 = vmatpush1.msra.mxu0 %v1529
        %1562 = vmatprep.subr.mxu0 0.0
        %1563 = vmatpush1.msra.mxu0 0.0
        %1564 = vmatprep.subr.mxu0 0.0
        %1565 = vmatpush1.msra.mxu0 0.0
        %1566 = vmatprep.subr.mxu0 0.0
        %1567 = vmatpush1.msra.mxu0 0.0
        %1568 = vmatprep.subr.mxu0 0.0
        %1569 = vmatpush1.msra.mxu0 0.0
        %1570 = vmatprep.subr.mxu0 0.0
        %1571 = vmatpush1.msra.mxu0 0.0
        %1572 = vmatprep.subr.mxu0 0.0
        %1573 = vmatpush1.msra.mxu0 0.0
        %1574 = vmatprep.subr.mxu0 0.0
        %1575 = vmatpush1.msra.mxu0 0.0
        %1576 = vmatprep.subr.mxu0 0.0
        %1577 = vmatpush1.msra.mxu0 0.0
        %1578 = vmatprep.subr.mxu0 0.0
        %1579 = vmatpush1.msra.mxu0 0.0
        %1580 = vmatprep.subr.mxu0 0.0
        %1581 = vmatpush1.msra.mxu0 0.0
        %1582 = vmatprep.subr.mxu0 0.0
        %1583 = vmatpush1.msra.mxu0 0.0
        %1584 = vmatprep.subr.mxu0 0.0
        %1585 = vmatpush1.msra.mxu0 0.0
        %1586 = vmatprep.subr.mxu0 0.0
        %1587 = vmatpush1.msra.mxu0 0.0
        %1588 = vmatprep.subr.mxu0 0.0
        %1589 = vmatpush1.msra.mxu0 0.0
        %1590 = vmatprep.subr.mxu0 0.0
        %1591 = vmatpush1.msra.mxu0 0.0
        %1592 = vmatprep.subr.mxu0 0.0
        %1593 = vmatpush1.msra.mxu0 0.0
        %1594 = vmatprep.mubr.f32.mxu0 0.0
        %1595 = vmatmul.mubr.f32.gmra.mrb[0].mxu0 %v1510
        %v1596 = vpop.f32.mrb[0].mxu0
        %v1597 = vadd.f32 0.0, %v1596
        %v1598 = vpop.f32.mrb[0].mxu0
        %1599 = vmatprep.mubr.f32.mxu0 0.0
        %1600 = vmatmul.mubr.f32.gmra.mrb[0].mxu0 %v1511
        %v1601 = vpop.f32.mrb[0].mxu0
        %v1602 = vadd.f32 0.0, %v1601
        %v1603 = vpop.f32.mrb[0].mxu0
        %1604 = vmatprep.mubr.f32.mxu0 0.0
        %1605 = vmatmul.mubr.f32.gmra.mrb[0].mxu0 %v1512
        %v1606 = vpop.f32.mrb[0].mxu0
        %v1607 = vadd.f32 0.0, %v1606
        %v1608 = vpop.f32.mrb[0].mxu0
        %1609 = vmatprep.mubr.f32.mxu0 0.0
        %1610 = vmatmul.mubr.f32.gmra.mrb[0].mxu0 %v1513
        %v1611 = vpop.f32.mrb[0].mxu0
        %v1612 = vadd.f32 0.0, %v1611
        %v1613 = vpop.f32.mrb[0].mxu0
        %1614 = vdwg.mxu0
        %v1615 = vadd.f32 %v1504, %v1597
        %v1616 = vadd.f32 %v1505, %v1602
        %v1617 = vadd.f32 %v1506, %v1607
        %v1618 = vadd.f32 %v1507, %v1612
        %s1619 = sadd.s32 %s184, 31
        %s1620 = scalar_lea.vmem %s165, %s1619
        %v1621 = vld [vmem:[%s1620] sm:$0xff]
        %v1622 = vld [vmem:[%s1620 + $0x8] sm:$0xff]
        %v1623 = vld [vmem:[%s1620 + $0x10] sm:$0xff]
        %v1624 = vld [vmem:[%s1620 + $0x18] sm:$0xf]
        %v1625 = vld [vmem:[%s1 + $0x680] sm:$0xff]
        %v1626 = vld [vmem:[%s1 + $0x688] sm:$0xff]
        %v1627 = vld [vmem:[%s1 + $0x690] sm:$0xff]
        %v1628 = vld [vmem:[%s1 + $0x698] sm:$0xff]
        %v1629 = vld [vmem:[%s1 + $0x6a0] sm:$0xff]
        %v1630 = vld [vmem:[%s1 + $0x6a8] sm:$0xff]
        %v1631 = vld [vmem:[%s1 + $0x6b0] sm:$0xff]
        %v1632 = vld [vmem:[%s1 + $0x6b8] sm:$0xff]
        %v1633 = vld [vmem:[%s1 + $0x6c0] sm:$0xff]
        %v1634 = vld [vmem:[%s1 + $0x6c8] sm:$0xff]
        %v1635 = vld [vmem:[%s1 + $0x6d0] sm:$0xff]
        %v1636 = vld [vmem:[%s1 + $0x6d8] sm:$0xff]
        %v1637 = vld [vmem:[%s1 + $0x6e0] sm:$0xff]
        %v1638 = vld [vmem:[%s1 + $0x6e8] sm:$0xff]
        %v1639 = vld [vmem:[%s1 + $0x6f0] sm:$0xff]
        %v1640 = vld [vmem:[%s1 + $0x6f8] sm:$0xff]
        %1641 = vmatprep.subr.mxu0 0.0
        %1642 = vmatpush1.msra.mxu0 %v1625
        %1643 = vmatprep.subr.mxu0 0.0
        %1644 = vmatpush1.msra.mxu0 %v1626
        %1645 = vmatprep.subr.mxu0 0.0
        %1646 = vmatpush1.msra.mxu0 %v1627
        %1647 = vmatprep.subr.mxu0 0.0
        %1648 = vmatpush1.msra.mxu0 %v1628
        %1649 = vmatprep.subr.mxu0 0.0
        %1650 = vmatpush1.msra.mxu0 %v1629
        %1651 = vmatprep.subr.mxu0 0.0
        %1652 = vmatpush1.msra.mxu0 %v1630
        %1653 = vmatprep.subr.mxu0 0.0
        %1654 = vmatpush1.msra.mxu0 %v1631
        %1655 = vmatprep.subr.mxu0 0.0
        %1656 = vmatpush1.msra.mxu0 %v1632
        %1657 = vmatprep.subr.mxu0 0.0
        %1658 = vmatpush1.msra.mxu0 %v1633
        %1659 = vmatprep.subr.mxu0 0.0
        %1660 = vmatpush1.msra.mxu0 %v1634
        %1661 = vmatprep.subr.mxu0 0.0
        %1662 = vmatpush1.msra.mxu0 %v1635
        %1663 = vmatprep.subr.mxu0 0.0
        %1664 = vmatpush1.msra.mxu0 %v1636
        %1665 = vmatprep.subr.mxu0 0.0
        %1666 = vmatpush1.msra.mxu0 %v1637
        %1667 = vmatprep.subr.mxu0 0.0
        %1668 = vmatpush1.msra.mxu0 %v1638
        %1669 = vmatprep.subr.mxu0 0.0
        %1670 = vmatpush1.msra.mxu0 %v1639
        %1671 = vmatprep.subr.mxu0 0.0
        %1672 = vmatpush1.msra.mxu0 %v1640
        %1673 = vmatprep.subr.mxu0 0.0
        %1674 = vmatpush1.msra.mxu0 0.0
        %1675 = vmatprep.subr.mxu0 0.0
        %1676 = vmatpush1.msra.mxu0 0.0
        %1677 = vmatprep.subr.mxu0 0.0
        %1678 = vmatpush1.msra.mxu0 0.0
        %1679 = vmatprep.subr.mxu0 0.0
        %1680 = vmatpush1.msra.mxu0 0.0
        %1681 = vmatprep.subr.mxu0 0.0
        %1682 = vmatpush1.msra.mxu0 0.0
        %1683 = vmatprep.subr.mxu0 0.0
        %1684 = vmatpush1.msra.mxu0 0.0
        %1685 = vmatprep.subr.mxu0 0.0
        %1686 = vmatpush1.msra.mxu0 0.0
        %1687 = vmatprep.subr.mxu0 0.0
        %1688 = vmatpush1.msra.mxu0 0.0
        %1689 = vmatprep.subr.mxu0 0.0
        %1690 = vmatpush1.msra.mxu0 0.0
        %1691 = vmatprep.subr.mxu0 0.0
        %1692 = vmatpush1.msra.mxu0 0.0
        %1693 = vmatprep.subr.mxu0 0.0
        %1694 = vmatpush1.msra.mxu0 0.0
        %1695 = vmatprep.subr.mxu0 0.0
        %1696 = vmatpush1.msra.mxu0 0.0
        %1697 = vmatprep.subr.mxu0 0.0
        %1698 = vmatpush1.msra.mxu0 0.0
        %1699 = vmatprep.subr.mxu0 0.0
        %1700 = vmatpush1.msra.mxu0 0.0
        %1701 = vmatprep.subr.mxu0 0.0
        %1702 = vmatpush1.msra.mxu0 0.0
        %1703 = vmatprep.subr.mxu0 0.0
        %1704 = vmatpush1.msra.mxu0 0.0
        %1705 = vmatprep.mubr.f32.mxu0 0.0
        %1706 = vmatmul.mubr.f32.gmra.mrb[0].mxu0 %v1621
        %v1707 = vpop.f32.mrb[0].mxu0
        %v1708 = vadd.f32 0.0, %v1707
        %v1709 = vpop.f32.mrb[0].mxu0
        %1710 = vmatprep.mubr.f32.mxu0 0.0
        %1711 = vmatmul.mubr.f32.gmra.mrb[0].mxu0 %v1622
        %v1712 = vpop.f32.mrb[0].mxu0
        %v1713 = vadd.f32 0.0, %v1712
        %v1714 = vpop.f32.mrb[0].mxu0
        %1715 = vmatprep.mubr.f32.mxu0 0.0
        %1716 = vmatmul.mubr.f32.gmra.mrb[0].mxu0 %v1623
        %v1717 = vpop.f32.mrb[0].mxu0
        %v1718 = vadd.f32 0.0, %v1717
        %v1719 = vpop.f32.mrb[0].mxu0
        %1720 = vmatprep.mubr.f32.mxu0 0.0
        %1721 = vmatmul.mubr.f32.gmra.mrb[0].mxu0 %v1624
        %v1722 = vpop.f32.mrb[0].mxu0
        %v1723 = vadd.f32 0.0, %v1722
        %v1724 = vpop.f32.mrb[0].mxu0
        %1725 = vdwg.mxu0
        %v1726 = vadd.f32 %v1615, %v1708
        %v1727 = vadd.f32 %v1616, %v1713
        %v1728 = vadd.f32 %v1617, %v1718
        %v1729 = vadd.f32 %v1618, %v1723
        %s1730 = sadd.s32 %s184, 32
        %s1731 = scalar_lea.vmem %s165, %s1730
        %v1732 = vld [vmem:[%s1731] sm:$0xff]
        %v1733 = vld [vmem:[%s1731 + $0x8] sm:$0xff]
        %v1734 = vld [vmem:[%s1731 + $0x10] sm:$0xff]
        %v1735 = vld [vmem:[%s1731 + $0x18] sm:$0xf]
        %v1736 = vld [vmem:[%s1 + $0x700] sm:$0xff]
        %v1737 = vld [vmem:[%s1 + $0x708] sm:$0xff]
        %v1738 = vld [vmem:[%s1 + $0x710] sm:$0xff]
        %v1739 = vld [vmem:[%s1 + $0x718] sm:$0xff]
        %v1740 = vld [vmem:[%s1 + $0x720] sm:$0xff]
        %v1741 = vld [vmem:[%s1 + $0x728] sm:$0xff]
        %v1742 = vld [vmem:[%s1 + $0x730] sm:$0xff]
        %v1743 = vld [vmem:[%s1 + $0x738] sm:$0xff]
        %v1744 = vld [vmem:[%s1 + $0x740] sm:$0xff]
        %v1745 = vld [vmem:[%s1 + $0x748] sm:$0xff]
        %v1746 = vld [vmem:[%s1 + $0x750] sm:$0xff]
        %v1747 = vld [vmem:[%s1 + $0x758] sm:$0xff]
        %v1748 = vld [vmem:[%s1 + $0x760] sm:$0xff]
        %v1749 = vld [vmem:[%s1 + $0x768] sm:$0xff]
        %v1750 = vld [vmem:[%s1 + $0x770] sm:$0xff]
        %v1751 = vld [vmem:[%s1 + $0x778] sm:$0xff]
        %1752 = vmatprep.subr.mxu0 0.0
        %1753 = vmatpush1.msra.mxu0 %v1736
        %1754 = vmatprep.subr.mxu0 0.0
        %1755 = vmatpush1.msra.mxu0 %v1737
        %1756 = vmatprep.subr.mxu0 0.0
        %1757 = vmatpush1.msra.mxu0 %v1738
        %1758 = vmatprep.subr.mxu0 0.0
        %1759 = vmatpush1.msra.mxu0 %v1739
        %1760 = vmatprep.subr.mxu0 0.0
        %1761 = vmatpush1.msra.mxu0 %v1740
        %1762 = vmatprep.subr.mxu0 0.0
        %1763 = vmatpush1.msra.mxu0 %v1741
        %1764 = vmatprep.subr.mxu0 0.0
        %1765 = vmatpush1.msra.mxu0 %v1742
        %1766 = vmatprep.subr.mxu0 0.0
        %1767 = vmatpush1.msra.mxu0 %v1743
        %1768 = vmatprep.subr.mxu0 0.0
        %1769 = vmatpush1.msra.mxu0 %v1744
        %1770 = vmatprep.subr.mxu0 0.0
        %1771 = vmatpush1.msra.mxu0 %v1745
        %1772 = vmatprep.subr.mxu0 0.0
        %1773 = vmatpush1.msra.mxu0 %v1746
        %1774 = vmatprep.subr.mxu0 0.0
        %1775 = vmatpush1.msra.mxu0 %v1747
        %1776 = vmatprep.subr.mxu0 0.0
        %1777 = vmatpush1.msra.mxu0 %v1748
        %1778 = vmatprep.subr.mxu0 0.0
        %1779 = vmatpush1.msra.mxu0 %v1749
        %1780 = vmatprep.subr.mxu0 0.0
        %1781 = vmatpush1.msra.mxu0 %v1750
        %1782 = vmatprep.subr.mxu0 0.0
        %1783 = vmatpush1.msra.mxu0 %v1751
        %1784 = vmatprep.subr.mxu0 0.0
        %1785 = vmatpush1.msra.mxu0 0.0
        %1786 = vmatprep.subr.mxu0 0.0
        %1787 = vmatpush1.msra.mxu0 0.0
        %1788 = vmatprep.subr.mxu0 0.0
        %1789 = vmatpush1.msra.mxu0 0.0
        %1790 = vmatprep.subr.mxu0 0.0
        %1791 = vmatpush1.msra.mxu0 0.0
        %1792 = vmatprep.subr.mxu0 0.0
        %1793 = vmatpush1.msra.mxu0 0.0
        %1794 = vmatprep.subr.mxu0 0.0
        %1795 = vmatpush1.msra.mxu0 0.0
        %1796 = vmatprep.subr.mxu0 0.0
        %1797 = vmatpush1.msra.mxu0 0.0
        %1798 = vmatprep.subr.mxu0 0.0
        %1799 = vmatpush1.msra.mxu0 0.0
        %1800 = vmatprep.subr.mxu0 0.0
        %1801 = vmatpush1.msra.mxu0 0.0
        %1802 = vmatprep.subr.mxu0 0.0
        %1803 = vmatpush1.msra.mxu0 0.0
        %1804 = vmatprep.subr.mxu0 0.0
        %1805 = vmatpush1.msra.mxu0 0.0
        %1806 = vmatprep.subr.mxu0 0.0
        %1807 = vmatpush1.msra.mxu0 0.0
        %1808 = vmatprep.subr.mxu0 0.0
        %1809 = vmatpush1.msra.mxu0 0.0
        %1810 = vmatprep.subr.mxu0 0.0
        %1811 = vmatpush1.msra.mxu0 0.0
        %1812 = vmatprep.subr.mxu0 0.0
        %1813 = vmatpush1.msra.mxu0 0.0
        %1814 = vmatprep.subr.mxu0 0.0
        %1815 = vmatpush1.msra.mxu0 0.0
        %1816 = vmatprep.mubr.f32.mxu0 0.0
        %1817 = vmatmul.mubr.f32.gmra.mrb[0].mxu0 %v1732
        %v1818 = vpop.f32.mrb[0].mxu0
        %v1819 = vadd.f32 0.0, %v1818
        %v1820 = vpop.f32.mrb[0].mxu0
        %1821 = vmatprep.mubr.f32.mxu0 0.0
        %1822 = vmatmul.mubr.f32.gmra.mrb[0].mxu0 %v1733
        %v1823 = vpop.f32.mrb[0].mxu0
        %v1824 = vadd.f32 0.0, %v1823
        %v1825 = vpop.f32.mrb[0].mxu0
        %1826 = vmatprep.mubr.f32.mxu0 0.0
        %1827 = vmatmul.mubr.f32.gmra.mrb[0].mxu0 %v1734
        %v1828 = vpop.f32.mrb[0].mxu0
        %v1829 = vadd.f32 0.0, %v1828
        %v1830 = vpop.f32.mrb[0].mxu0
        %1831 = vmatprep.mubr.f32.mxu0 0.0
        %1832 = vmatmul.mubr.f32.gmra.mrb[0].mxu0 %v1735
        %v1833 = vpop.f32.mrb[0].mxu0
        %v1834 = vadd.f32 0.0, %v1833
        %v1835 = vpop.f32.mrb[0].mxu0
        %1836 = vdwg.mxu0
        %v1837 = vadd.f32 %v1726, %v1819
        %v1838 = vadd.f32 %v1727, %v1824
        %v1839 = vadd.f32 %v1728, %v1829
        %v1840 = vadd.f32 %v1729, %v1834
        %s1841 = sadd.s32 %s184, 42
        %s1842 = scalar_lea.vmem %s165, %s1841
        %v1843 = vld [vmem:[%s1842] sm:$0xff]
        %v1844 = vld [vmem:[%s1842 + $0x8] sm:$0xff]
        %v1845 = vld [vmem:[%s1842 + $0x10] sm:$0xff]
        %v1846 = vld [vmem:[%s1842 + $0x18] sm:$0xf]
        %v1847 = vld [vmem:[%s1 + $0x780] sm:$0xff]
        %v1848 = vld [vmem:[%s1 + $0x788] sm:$0xff]
        %v1849 = vld [vmem:[%s1 + $0x790] sm:$0xff]
        %v1850 = vld [vmem:[%s1 + $0x798] sm:$0xff]
        %v1851 = vld [vmem:[%s1 + $0x7a0] sm:$0xff]
        %v1852 = vld [vmem:[%s1 + $0x7a8] sm:$0xff]
        %v1853 = vld [vmem:[%s1 + $0x7b0] sm:$0xff]
        %v1854 = vld [vmem:[%s1 + $0x7b8] sm:$0xff]
        %v1855 = vld [vmem:[%s1 + $0x7c0] sm:$0xff]
        %v1856 = vld [vmem:[%s1 + $0x7c8] sm:$0xff]
        %v1857 = vld [vmem:[%s1 + $0x7d0] sm:$0xff]
        %v1858 = vld [vmem:[%s1 + $0x7d8] sm:$0xff]
        %v1859 = vld [vmem:[%s1 + $0x7e0] sm:$0xff]
        %v1860 = vld [vmem:[%s1 + $0x7e8] sm:$0xff]
        %v1861 = vld [vmem:[%s1 + $0x7f0] sm:$0xff]
        %v1862 = vld [vmem:[%s1 + $0x7f8] sm:$0xff]
        %1863 = vmatprep.subr.mxu0 0.0
        %1864 = vmatpush1.msra.mxu0 %v1847
        %1865 = vmatprep.subr.mxu0 0.0
        %1866 = vmatpush1.msra.mxu0 %v1848
        %1867 = vmatprep.subr.mxu0 0.0
        %1868 = vmatpush1.msra.mxu0 %v1849
        %1869 = vmatprep.subr.mxu0 0.0
        %1870 = vmatpush1.msra.mxu0 %v1850
        %1871 = vmatprep.subr.mxu0 0.0
        %1872 = vmatpush1.msra.mxu0 %v1851
        %1873 = vmatprep.subr.mxu0 0.0
        %1874 = vmatpush1.msra.mxu0 %v1852
        %1875 = vmatprep.subr.mxu0 0.0
        %1876 = vmatpush1.msra.mxu0 %v1853
        %1877 = vmatprep.subr.mxu0 0.0
        %1878 = vmatpush1.msra.mxu0 %v1854
        %1879 = vmatprep.subr.mxu0 0.0
        %1880 = vmatpush1.msra.mxu0 %v1855
        %1881 = vmatprep.subr.mxu0 0.0
        %1882 = vmatpush1.msra.mxu0 %v1856
        %1883 = vmatprep.subr.mxu0 0.0
        %1884 = vmatpush1.msra.mxu0 %v1857
        %1885 = vmatprep.subr.mxu0 0.0
        %1886 = vmatpush1.msra.mxu0 %v1858
        %1887 = vmatprep.subr.mxu0 0.0
        %1888 = vmatpush1.msra.mxu0 %v1859
        %1889 = vmatprep.subr.mxu0 0.0
        %1890 = vmatpush1.msra.mxu0 %v1860
        %1891 = vmatprep.subr.mxu0 0.0
        %1892 = vmatpush1.msra.mxu0 %v1861
        %1893 = vmatprep.subr.mxu0 0.0
        %1894 = vmatpush1.msra.mxu0 %v1862
        %1895 = vmatprep.subr.mxu0 0.0
        %1896 = vmatpush1.msra.mxu0 0.0
        %1897 = vmatprep.subr.mxu0 0.0
        %1898 = vmatpush1.msra.mxu0 0.0
        %1899 = vmatprep.subr.mxu0 0.0
        %1900 = vmatpush1.msra.mxu0 0.0
        %1901 = vmatprep.subr.mxu0 0.0
        %1902 = vmatpush1.msra.mxu0 0.0
        %1903 = vmatprep.subr.mxu0 0.0
        %1904 = vmatpush1.msra.mxu0 0.0
        %1905 = vmatprep.subr.mxu0 0.0
        %1906 = vmatpush1.msra.mxu0 0.0
        %1907 = vmatprep.subr.mxu0 0.0
        %1908 = vmatpush1.msra.mxu0 0.0
        %1909 = vmatprep.subr.mxu0 0.0
        %1910 = vmatpush1.msra.mxu0 0.0
        %1911 = vmatprep.subr.mxu0 0.0
        %1912 = vmatpush1.msra.mxu0 0.0
        %1913 = vmatprep.subr.mxu0 0.0
        %1914 = vmatpush1.msra.mxu0 0.0
        %1915 = vmatprep.subr.mxu0 0.0
        %1916 = vmatpush1.msra.mxu0 0.0
        %1917 = vmatprep.subr.mxu0 0.0
        %1918 = vmatpush1.msra.mxu0 0.0
        %1919 = vmatprep.subr.mxu0 0.0
        %1920 = vmatpush1.msra.mxu0 0.0
        %1921 = vmatprep.subr.mxu0 0.0
        %1922 = vmatpush1.msra.mxu0 0.0
        %1923 = vmatprep.subr.mxu0 0.0
        %1924 = vmatpush1.msra.mxu0 0.0
        %1925 = vmatprep.subr.mxu0 0.0
        %1926 = vmatpush1.msra.mxu0 0.0
        %1927 = vmatprep.mubr.f32.mxu0 0.0
        %1928 = vmatmul.mubr.f32.gmra.mrb[0].mxu0 %v1843
        %v1929 = vpop.f32.mrb[0].mxu0
        %v1930 = vadd.f32 0.0, %v1929
        %v1931 = vpop.f32.mrb[0].mxu0
        %1932 = vmatprep.mubr.f32.mxu0 0.0
        %1933 = vmatmul.mubr.f32.gmra.mrb[0].mxu0 %v1844
        %v1934 = vpop.f32.mrb[0].mxu0
        %v1935 = vadd.f32 0.0, %v1934
        %v1936 = vpop.f32.mrb[0].mxu0
        %1937 = vmatprep.mubr.f32.mxu0 0.0
        %1938 = vmatmul.mubr.f32.gmra.mrb[0].mxu0 %v1845
        %v1939 = vpop.f32.mrb[0].mxu0
        %v1940 = vadd.f32 0.0, %v1939
        %v1941 = vpop.f32.mrb[0].mxu0
        %1942 = vmatprep.mubr.f32.mxu0 0.0
        %1943 = vmatmul.mubr.f32.gmra.mrb[0].mxu0 %v1846
        %v1944 = vpop.f32.mrb[0].mxu0
        %v1945 = vadd.f32 0.0, %v1944
        %v1946 = vpop.f32.mrb[0].mxu0
        %1947 = vdwg.mxu0
        %v1948 = vadd.f32 %v1837, %v1930
        %v1949 = vadd.f32 %v1838, %v1935
        %v1950 = vadd.f32 %v1839, %v1940
        %v1951 = vadd.f32 %v1840, %v1945
        %s1952 = sadd.s32 %s184, 43
        %s1953 = scalar_lea.vmem %s165, %s1952
        %v1954 = vld [vmem:[%s1953] sm:$0xff]
        %v1955 = vld [vmem:[%s1953 + $0x8] sm:$0xff]
        %v1956 = vld [vmem:[%s1953 + $0x10] sm:$0xff]
        %v1957 = vld [vmem:[%s1953 + $0x18] sm:$0xf]
        %v1958 = vld [vmem:[%s1 + $0x800] sm:$0xff]
        %v1959 = vld [vmem:[%s1 + $0x808] sm:$0xff]
        %v1960 = vld [vmem:[%s1 + $0x810] sm:$0xff]
        %v1961 = vld [vmem:[%s1 + $0x818] sm:$0xff]
        %v1962 = vld [vmem:[%s1 + $0x820] sm:$0xff]
        %v1963 = vld [vmem:[%s1 + $0x828] sm:$0xff]
        %v1964 = vld [vmem:[%s1 + $0x830] sm:$0xff]
        %v1965 = vld [vmem:[%s1 + $0x838] sm:$0xff]
        %v1966 = vld [vmem:[%s1 + $0x840] sm:$0xff]
        %v1967 = vld [vmem:[%s1 + $0x848] sm:$0xff]
        %v1968 = vld [vmem:[%s1 + $0x850] sm:$0xff]
        %v1969 = vld [vmem:[%s1 + $0x858] sm:$0xff]
        %v1970 = vld [vmem:[%s1 + $0x860] sm:$0xff]
        %v1971 = vld [vmem:[%s1 + $0x868] sm:$0xff]
        %v1972 = vld [vmem:[%s1 + $0x870] sm:$0xff]
        %v1973 = vld [vmem:[%s1 + $0x878] sm:$0xff]
        %1974 = vmatprep.subr.mxu0 0.0
        %1975 = vmatpush1.msra.mxu0 %v1958
        %1976 = vmatprep.subr.mxu0 0.0
        %1977 = vmatpush1.msra.mxu0 %v1959
        %1978 = vmatprep.subr.mxu0 0.0
        %1979 = vmatpush1.msra.mxu0 %v1960
        %1980 = vmatprep.subr.mxu0 0.0
        %1981 = vmatpush1.msra.mxu0 %v1961
        %1982 = vmatprep.subr.mxu0 0.0
        %1983 = vmatpush1.msra.mxu0 %v1962
        %1984 = vmatprep.subr.mxu0 0.0
        %1985 = vmatpush1.msra.mxu0 %v1963
        %1986 = vmatprep.subr.mxu0 0.0
        %1987 = vmatpush1.msra.mxu0 %v1964
        %1988 = vmatprep.subr.mxu0 0.0
        %1989 = vmatpush1.msra.mxu0 %v1965
        %1990 = vmatprep.subr.mxu0 0.0
        %1991 = vmatpush1.msra.mxu0 %v1966
        %1992 = vmatprep.subr.mxu0 0.0
        %1993 = vmatpush1.msra.mxu0 %v1967
        %1994 = vmatprep.subr.mxu0 0.0
        %1995 = vmatpush1.msra.mxu0 %v1968
        %1996 = vmatprep.subr.mxu0 0.0
        %1997 = vmatpush1.msra.mxu0 %v1969
        %1998 = vmatprep.subr.mxu0 0.0
        %1999 = vmatpush1.msra.mxu0 %v1970
        %2000 = vmatprep.subr.mxu0 0.0
        %2001 = vmatpush1.msra.mxu0 %v1971
        %2002 = vmatprep.subr.mxu0 0.0
        %2003 = vmatpush1.msra.mxu0 %v1972
        %2004 = vmatprep.subr.mxu0 0.0
        %2005 = vmatpush1.msra.mxu0 %v1973
        %2006 = vmatprep.subr.mxu0 0.0
        %2007 = vmatpush1.msra.mxu0 0.0
        %2008 = vmatprep.subr.mxu0 0.0
        %2009 = vmatpush1.msra.mxu0 0.0
        %2010 = vmatprep.subr.mxu0 0.0
        %2011 = vmatpush1.msra.mxu0 0.0
        %2012 = vmatprep.subr.mxu0 0.0
        %2013 = vmatpush1.msra.mxu0 0.0
        %2014 = vmatprep.subr.mxu0 0.0
        %2015 = vmatpush1.msra.mxu0 0.0
        %2016 = vmatprep.subr.mxu0 0.0
        %2017 = vmatpush1.msra.mxu0 0.0
        %2018 = vmatprep.subr.mxu0 0.0
        %2019 = vmatpush1.msra.mxu0 0.0
        %2020 = vmatprep.subr.mxu0 0.0
        %2021 = vmatpush1.msra.mxu0 0.0
        %2022 = vmatprep.subr.mxu0 0.0
        %2023 = vmatpush1.msra.mxu0 0.0
        %2024 = vmatprep.subr.mxu0 0.0
        %2025 = vmatpush1.msra.mxu0 0.0
        %2026 = vmatprep.subr.mxu0 0.0
        %2027 = vmatpush1.msra.mxu0 0.0
        %2028 = vmatprep.subr.mxu0 0.0
        %2029 = vmatpush1.msra.mxu0 0.0
        %2030 = vmatprep.subr.mxu0 0.0
        %2031 = vmatpush1.msra.mxu0 0.0
        %2032 = vmatprep.subr.mxu0 0.0
        %2033 = vmatpush1.msra.mxu0 0.0
        %2034 = vmatprep.subr.mxu0 0.0
        %2035 = vmatpush1.msra.mxu0 0.0
        %2036 = vmatprep.subr.mxu0 0.0
        %2037 = vmatpush1.msra.mxu0 0.0
        %2038 = vmatprep.mubr.f32.mxu0 0.0
        %2039 = vmatmul.mubr.f32.gmra.mrb[0].mxu0 %v1954
        %v2040 = vpop.f32.mrb[0].mxu0
        %v2041 = vadd.f32 0.0, %v2040
        %v2042 = vpop.f32.mrb[0].mxu0
        %2043 = vmatprep.mubr.f32.mxu0 0.0
        %2044 = vmatmul.mubr.f32.gmra.mrb[0].mxu0 %v1955
        %v2045 = vpop.f32.mrb[0].mxu0
        %v2046 = vadd.f32 0.0, %v2045
        %v2047 = vpop.f32.mrb[0].mxu0
        %2048 = vmatprep.mubr.f32.mxu0 0.0
        %2049 = vmatmul.mubr.f32.gmra.mrb[0].mxu0 %v1956
        %v2050 = vpop.f32.mrb[0].mxu0
        %v2051 = vadd.f32 0.0, %v2050
        %v2052 = vpop.f32.mrb[0].mxu0
        %2053 = vmatprep.mubr.f32.mxu0 0.0
        %2054 = vmatmul.mubr.f32.gmra.mrb[0].mxu0 %v1957
        %v2055 = vpop.f32.mrb[0].mxu0
        %v2056 = vadd.f32 0.0, %v2055
        %v2057 = vpop.f32.mrb[0].mxu0
        %2058 = vdwg.mxu0
        %v2059 = vadd.f32 %v1948, %v2041
        %v2060 = vadd.f32 %v1949, %v2046
        %v2061 = vadd.f32 %v1950, %v2051
        %v2062 = vadd.f32 %v1951, %v2056
        %s2063 = sadd.s32 %s184, 44
        %s2064 = scalar_lea.vmem %s165, %s2063
        %v2065 = vld [vmem:[%s2064] sm:$0xff]
        %v2066 = vld [vmem:[%s2064 + $0x8] sm:$0xff]
        %v2067 = vld [vmem:[%s2064 + $0x10] sm:$0xff]
        %v2068 = vld [vmem:[%s2064 + $0x18] sm:$0xf]
        %v2069 = vld [vmem:[%s1 + $0x880] sm:$0xff]
        %v2070 = vld [vmem:[%s1 + $0x888] sm:$0xff]
        %v2071 = vld [vmem:[%s1 + $0x890] sm:$0xff]
        %v2072 = vld [vmem:[%s1 + $0x898] sm:$0xff]
        %v2073 = vld [vmem:[%s1 + $0x8a0] sm:$0xff]
        %v2074 = vld [vmem:[%s1 + $0x8a8] sm:$0xff]
        %v2075 = vld [vmem:[%s1 + $0x8b0] sm:$0xff]
        %v2076 = vld [vmem:[%s1 + $0x8b8] sm:$0xff]
        %v2077 = vld [vmem:[%s1 + $0x8c0] sm:$0xff]
        %v2078 = vld [vmem:[%s1 + $0x8c8] sm:$0xff]
        %v2079 = vld [vmem:[%s1 + $0x8d0] sm:$0xff]
        %v2080 = vld [vmem:[%s1 + $0x8d8] sm:$0xff]
        %v2081 = vld [vmem:[%s1 + $0x8e0] sm:$0xff]
        %v2082 = vld [vmem:[%s1 + $0x8e8] sm:$0xff]
        %v2083 = vld [vmem:[%s1 + $0x8f0] sm:$0xff]
        %v2084 = vld [vmem:[%s1 + $0x8f8] sm:$0xff]
        %2085 = vmatprep.subr.mxu0 0.0
        %2086 = vmatpush1.msra.mxu0 %v2069
        %2087 = vmatprep.subr.mxu0 0.0
        %2088 = vmatpush1.msra.mxu0 %v2070
        %2089 = vmatprep.subr.mxu0 0.0
        %2090 = vmatpush1.msra.mxu0 %v2071
        %2091 = vmatprep.subr.mxu0 0.0
        %2092 = vmatpush1.msra.mxu0 %v2072
        %2093 = vmatprep.subr.mxu0 0.0
        %2094 = vmatpush1.msra.mxu0 %v2073
        %2095 = vmatprep.subr.mxu0 0.0
        %2096 = vmatpush1.msra.mxu0 %v2074
        %2097 = vmatprep.subr.mxu0 0.0
        %2098 = vmatpush1.msra.mxu0 %v2075
        %2099 = vmatprep.subr.mxu0 0.0
        %2100 = vmatpush1.msra.mxu0 %v2076
        %2101 = vmatprep.subr.mxu0 0.0
        %2102 = vmatpush1.msra.mxu0 %v2077
        %2103 = vmatprep.subr.mxu0 0.0
        %2104 = vmatpush1.msra.mxu0 %v2078
        %2105 = vmatprep.subr.mxu0 0.0
        %2106 = vmatpush1.msra.mxu0 %v2079
        %2107 = vmatprep.subr.mxu0 0.0
        %2108 = vmatpush1.msra.mxu0 %v2080
        %2109 = vmatprep.subr.mxu0 0.0
        %2110 = vmatpush1.msra.mxu0 %v2081
        %2111 = vmatprep.subr.mxu0 0.0
        %2112 = vmatpush1.msra.mxu0 %v2082
        %2113 = vmatprep.subr.mxu0 0.0
        %2114 = vmatpush1.msra.mxu0 %v2083
        %2115 = vmatprep.subr.mxu0 0.0
        %2116 = vmatpush1.msra.mxu0 %v2084
        %2117 = vmatprep.subr.mxu0 0.0
        %2118 = vmatpush1.msra.mxu0 0.0
        %2119 = vmatprep.subr.mxu0 0.0
        %2120 = vmatpush1.msra.mxu0 0.0
        %2121 = vmatprep.subr.mxu0 0.0
        %2122 = vmatpush1.msra.mxu0 0.0
        %2123 = vmatprep.subr.mxu0 0.0
        %2124 = vmatpush1.msra.mxu0 0.0
        %2125 = vmatprep.subr.mxu0 0.0
        %2126 = vmatpush1.msra.mxu0 0.0
        %2127 = vmatprep.subr.mxu0 0.0
        %2128 = vmatpush1.msra.mxu0 0.0
        %2129 = vmatprep.subr.mxu0 0.0
        %2130 = vmatpush1.msra.mxu0 0.0
        %2131 = vmatprep.subr.mxu0 0.0
        %2132 = vmatpush1.msra.mxu0 0.0
        %2133 = vmatprep.subr.mxu0 0.0
        %2134 = vmatpush1.msra.mxu0 0.0
        %2135 = vmatprep.subr.mxu0 0.0
        %2136 = vmatpush1.msra.mxu0 0.0
        %2137 = vmatprep.subr.mxu0 0.0
        %2138 = vmatpush1.msra.mxu0 0.0
        %2139 = vmatprep.subr.mxu0 0.0
        %2140 = vmatpush1.msra.mxu0 0.0
        %2141 = vmatprep.subr.mxu0 0.0
        %2142 = vmatpush1.msra.mxu0 0.0
        %2143 = vmatprep.subr.mxu0 0.0
        %2144 = vmatpush1.msra.mxu0 0.0
        %2145 = vmatprep.subr.mxu0 0.0
        %2146 = vmatpush1.msra.mxu0 0.0
        %2147 = vmatprep.subr.mxu0 0.0
        %2148 = vmatpush1.msra.mxu0 0.0
        %2149 = vmatprep.mubr.f32.mxu0 0.0
        %2150 = vmatmul.mubr.f32.gmra.mrb[0].mxu0 %v2065
        %v2151 = vpop.f32.mrb[0].mxu0
        %v2152 = vadd.f32 0.0, %v2151
        %v2153 = vpop.f32.mrb[0].mxu0
        %2154 = vmatprep.mubr.f32.mxu0 0.0
        %2155 = vmatmul.mubr.f32.gmra.mrb[0].mxu0 %v2066
        %v2156 = vpop.f32.mrb[0].mxu0
        %v2157 = vadd.f32 0.0, %v2156
        %v2158 = vpop.f32.mrb[0].mxu0
        %2159 = vmatprep.mubr.f32.mxu0 0.0
        %2160 = vmatmul.mubr.f32.gmra.mrb[0].mxu0 %v2067
        %v2161 = vpop.f32.mrb[0].mxu0
        %v2162 = vadd.f32 0.0, %v2161
        %v2163 = vpop.f32.mrb[0].mxu0
        %2164 = vmatprep.mubr.f32.mxu0 0.0
        %2165 = vmatmul.mubr.f32.gmra.mrb[0].mxu0 %v2068
        %v2166 = vpop.f32.mrb[0].mxu0
        %v2167 = vadd.f32 0.0, %v2166
        %v2168 = vpop.f32.mrb[0].mxu0
        %2169 = vdwg.mxu0
        %v2170 = vadd.f32 %v2059, %v2152
        %v2171 = vadd.f32 %v2060, %v2157
        %v2172 = vadd.f32 %v2061, %v2162
        %v2173 = vadd.f32 %v2062, %v2167
        %s2174 = sadd.s32 %s184, 45
        %s2175 = scalar_lea.vmem %s165, %s2174
        %v2176 = vld [vmem:[%s2175] sm:$0xff]
        %v2177 = vld [vmem:[%s2175 + $0x8] sm:$0xff]
        %v2178 = vld [vmem:[%s2175 + $0x10] sm:$0xff]
        %v2179 = vld [vmem:[%s2175 + $0x18] sm:$0xf]
        %v2180 = vld [vmem:[%s1 + $0x900] sm:$0xff]
        %v2181 = vld [vmem:[%s1 + $0x908] sm:$0xff]
        %v2182 = vld [vmem:[%s1 + $0x910] sm:$0xff]
        %v2183 = vld [vmem:[%s1 + $0x918] sm:$0xff]
        %v2184 = vld [vmem:[%s1 + $0x920] sm:$0xff]
        %v2185 = vld [vmem:[%s1 + $0x928] sm:$0xff]
        %v2186 = vld [vmem:[%s1 + $0x930] sm:$0xff]
        %v2187 = vld [vmem:[%s1 + $0x938] sm:$0xff]
        %v2188 = vld [vmem:[%s1 + $0x940] sm:$0xff]
        %v2189 = vld [vmem:[%s1 + $0x948] sm:$0xff]
        %v2190 = vld [vmem:[%s1 + $0x950] sm:$0xff]
        %v2191 = vld [vmem:[%s1 + $0x958] sm:$0xff]
        %v2192 = vld [vmem:[%s1 + $0x960] sm:$0xff]
        %v2193 = vld [vmem:[%s1 + $0x968] sm:$0xff]
        %v2194 = vld [vmem:[%s1 + $0x970] sm:$0xff]
        %v2195 = vld [vmem:[%s1 + $0x978] sm:$0xff]
        %2196 = vmatprep.subr.mxu0 0.0
        %2197 = vmatpush1.msra.mxu0 %v2180
        %2198 = vmatprep.subr.mxu0 0.0
        %2199 = vmatpush1.msra.mxu0 %v2181
        %2200 = vmatprep.subr.mxu0 0.0
        %2201 = vmatpush1.msra.mxu0 %v2182
        %2202 = vmatprep.subr.mxu0 0.0
        %2203 = vmatpush1.msra.mxu0 %v2183
        %2204 = vmatprep.subr.mxu0 0.0
        %2205 = vmatpush1.msra.mxu0 %v2184
        %2206 = vmatprep.subr.mxu0 0.0
        %2207 = vmatpush1.msra.mxu0 %v2185
        %2208 = vmatprep.subr.mxu0 0.0
        %2209 = vmatpush1.msra.mxu0 %v2186
        %2210 = vmatprep.subr.mxu0 0.0
        %2211 = vmatpush1.msra.mxu0 %v2187
        %2212 = vmatprep.subr.mxu0 0.0
        %2213 = vmatpush1.msra.mxu0 %v2188
        %2214 = vmatprep.subr.mxu0 0.0
        %2215 = vmatpush1.msra.mxu0 %v2189
        %2216 = vmatprep.subr.mxu0 0.0
        %2217 = vmatpush1.msra.mxu0 %v2190
        %2218 = vmatprep.subr.mxu0 0.0
        %2219 = vmatpush1.msra.mxu0 %v2191
        %2220 = vmatprep.subr.mxu0 0.0
        %2221 = vmatpush1.msra.mxu0 %v2192
        %2222 = vmatprep.subr.mxu0 0.0
        %2223 = vmatpush1.msra.mxu0 %v2193
        %2224 = vmatprep.subr.mxu0 0.0
        %2225 = vmatpush1.msra.mxu0 %v2194
        %2226 = vmatprep.subr.mxu0 0.0
        %2227 = vmatpush1.msra.mxu0 %v2195
        %2228 = vmatprep.subr.mxu0 0.0
        %2229 = vmatpush1.msra.mxu0 0.0
        %2230 = vmatprep.subr.mxu0 0.0
        %2231 = vmatpush1.msra.mxu0 0.0
        %2232 = vmatprep.subr.mxu0 0.0
        %2233 = vmatpush1.msra.mxu0 0.0
        %2234 = vmatprep.subr.mxu0 0.0
        %2235 = vmatpush1.msra.mxu0 0.0
        %2236 = vmatprep.subr.mxu0 0.0
        %2237 = vmatpush1.msra.mxu0 0.0
        %2238 = vmatprep.subr.mxu0 0.0
        %2239 = vmatpush1.msra.mxu0 0.0
        %2240 = vmatprep.subr.mxu0 0.0
        %2241 = vmatpush1.msra.mxu0 0.0
        %2242 = vmatprep.subr.mxu0 0.0
        %2243 = vmatpush1.msra.mxu0 0.0
        %2244 = vmatprep.subr.mxu0 0.0
        %2245 = vmatpush1.msra.mxu0 0.0
        %2246 = vmatprep.subr.mxu0 0.0
        %2247 = vmatpush1.msra.mxu0 0.0
        %2248 = vmatprep.subr.mxu0 0.0
        %2249 = vmatpush1.msra.mxu0 0.0
        %2250 = vmatprep.subr.mxu0 0.0
        %2251 = vmatpush1.msra.mxu0 0.0
        %2252 = vmatprep.subr.mxu0 0.0
        %2253 = vmatpush1.msra.mxu0 0.0
        %2254 = vmatprep.subr.mxu0 0.0
        %2255 = vmatpush1.msra.mxu0 0.0
        %2256 = vmatprep.subr.mxu0 0.0
        %2257 = vmatpush1.msra.mxu0 0.0
        %2258 = vmatprep.subr.mxu0 0.0
        %2259 = vmatpush1.msra.mxu0 0.0
        %2260 = vmatprep.mubr.f32.mxu0 0.0
        %2261 = vmatmul.mubr.f32.gmra.mrb[0].mxu0 %v2176
        %v2262 = vpop.f32.mrb[0].mxu0
        %v2263 = vadd.f32 0.0, %v2262
        %v2264 = vpop.f32.mrb[0].mxu0
        %2265 = vmatprep.mubr.f32.mxu0 0.0
        %2266 = vmatmul.mubr.f32.gmra.mrb[0].mxu0 %v2177
        %v2267 = vpop.f32.mrb[0].mxu0
        %v2268 = vadd.f32 0.0, %v2267
        %v2269 = vpop.f32.mrb[0].mxu0
        %2270 = vmatprep.mubr.f32.mxu0 0.0
        %2271 = vmatmul.mubr.f32.gmra.mrb[0].mxu0 %v2178
        %v2272 = vpop.f32.mrb[0].mxu0
        %v2273 = vadd.f32 0.0, %v2272
        %v2274 = vpop.f32.mrb[0].mxu0
        %2275 = vmatprep.mubr.f32.mxu0 0.0
        %2276 = vmatmul.mubr.f32.gmra.mrb[0].mxu0 %v2179
        %v2277 = vpop.f32.mrb[0].mxu0
        %v2278 = vadd.f32 0.0, %v2277
        %v2279 = vpop.f32.mrb[0].mxu0
        %2280 = vdwg.mxu0
        %v2281 = vadd.f32 %v2170, %v2263
        %v2282 = vadd.f32 %v2171, %v2268
        %v2283 = vadd.f32 %v2172, %v2273
        %v2284 = vadd.f32 %v2173, %v2278
        %s2285 = sadd.s32 %s184, 46
        %s2286 = scalar_lea.vmem %s165, %s2285
        %v2287 = vld [vmem:[%s2286] sm:$0xff]
        %v2288 = vld [vmem:[%s2286 + $0x8] sm:$0xff]
        %v2289 = vld [vmem:[%s2286 + $0x10] sm:$0xff]
        %v2290 = vld [vmem:[%s2286 + $0x18] sm:$0xf]
        %v2291 = vld [vmem:[%s1 + $0x980] sm:$0xff]
        %v2292 = vld [vmem:[%s1 + $0x988] sm:$0xff]
        %v2293 = vld [vmem:[%s1 + $0x990] sm:$0xff]
        %v2294 = vld [vmem:[%s1 + $0x998] sm:$0xff]
        %v2295 = vld [vmem:[%s1 + $0x9a0] sm:$0xff]
        %v2296 = vld [vmem:[%s1 + $0x9a8] sm:$0xff]
        %v2297 = vld [vmem:[%s1 + $0x9b0] sm:$0xff]
        %v2298 = vld [vmem:[%s1 + $0x9b8] sm:$0xff]
        %v2299 = vld [vmem:[%s1 + $0x9c0] sm:$0xff]
        %v2300 = vld [vmem:[%s1 + $0x9c8] sm:$0xff]
        %v2301 = vld [vmem:[%s1 + $0x9d0] sm:$0xff]
        %v2302 = vld [vmem:[%s1 + $0x9d8] sm:$0xff]
        %v2303 = vld [vmem:[%s1 + $0x9e0] sm:$0xff]
        %v2304 = vld [vmem:[%s1 + $0x9e8] sm:$0xff]
        %v2305 = vld [vmem:[%s1 + $0x9f0] sm:$0xff]
        %v2306 = vld [vmem:[%s1 + $0x9f8] sm:$0xff]
        %2307 = vmatprep.subr.mxu0 0.0
        %2308 = vmatpush1.msra.mxu0 %v2291
        %2309 = vmatprep.subr.mxu0 0.0
        %2310 = vmatpush1.msra.mxu0 %v2292
        %2311 = vmatprep.subr.mxu0 0.0
        %2312 = vmatpush1.msra.mxu0 %v2293
        %2313 = vmatprep.subr.mxu0 0.0
        %2314 = vmatpush1.msra.mxu0 %v2294
        %2315 = vmatprep.subr.mxu0 0.0
        %2316 = vmatpush1.msra.mxu0 %v2295
        %2317 = vmatprep.subr.mxu0 0.0
        %2318 = vmatpush1.msra.mxu0 %v2296
        %2319 = vmatprep.subr.mxu0 0.0
        %2320 = vmatpush1.msra.mxu0 %v2297
        %2321 = vmatprep.subr.mxu0 0.0
        %2322 = vmatpush1.msra.mxu0 %v2298
        %2323 = vmatprep.subr.mxu0 0.0
        %2324 = vmatpush1.msra.mxu0 %v2299
        %2325 = vmatprep.subr.mxu0 0.0
        %2326 = vmatpush1.msra.mxu0 %v2300
        %2327 = vmatprep.subr.mxu0 0.0
        %2328 = vmatpush1.msra.mxu0 %v2301
        %2329 = vmatprep.subr.mxu0 0.0
        %2330 = vmatpush1.msra.mxu0 %v2302
        %2331 = vmatprep.subr.mxu0 0.0
        %2332 = vmatpush1.msra.mxu0 %v2303
        %2333 = vmatprep.subr.mxu0 0.0
        %2334 = vmatpush1.msra.mxu0 %v2304
        %2335 = vmatprep.subr.mxu0 0.0
        %2336 = vmatpush1.msra.mxu0 %v2305
        %2337 = vmatprep.subr.mxu0 0.0
        %2338 = vmatpush1.msra.mxu0 %v2306
        %2339 = vmatprep.subr.mxu0 0.0
        %2340 = vmatpush1.msra.mxu0 0.0
        %2341 = vmatprep.subr.mxu0 0.0
        %2342 = vmatpush1.msra.mxu0 0.0
        %2343 = vmatprep.subr.mxu0 0.0
        %2344 = vmatpush1.msra.mxu0 0.0
        %2345 = vmatprep.subr.mxu0 0.0
        %2346 = vmatpush1.msra.mxu0 0.0
        %2347 = vmatprep.subr.mxu0 0.0
        %2348 = vmatpush1.msra.mxu0 0.0
        %2349 = vmatprep.subr.mxu0 0.0
        %2350 = vmatpush1.msra.mxu0 0.0
        %2351 = vmatprep.subr.mxu0 0.0
        %2352 = vmatpush1.msra.mxu0 0.0
        %2353 = vmatprep.subr.mxu0 0.0
        %2354 = vmatpush1.msra.mxu0 0.0
        %2355 = vmatprep.subr.mxu0 0.0
        %2356 = vmatpush1.msra.mxu0 0.0
        %2357 = vmatprep.subr.mxu0 0.0
        %2358 = vmatpush1.msra.mxu0 0.0
        %2359 = vmatprep.subr.mxu0 0.0
        %2360 = vmatpush1.msra.mxu0 0.0
        %2361 = vmatprep.subr.mxu0 0.0
        %2362 = vmatpush1.msra.mxu0 0.0
        %2363 = vmatprep.subr.mxu0 0.0
        %2364 = vmatpush1.msra.mxu0 0.0
        %2365 = vmatprep.subr.mxu0 0.0
        %2366 = vmatpush1.msra.mxu0 0.0
        %2367 = vmatprep.subr.mxu0 0.0
        %2368 = vmatpush1.msra.mxu0 0.0
        %2369 = vmatprep.subr.mxu0 0.0
        %2370 = vmatpush1.msra.mxu0 0.0
        %2371 = vmatprep.mubr.f32.mxu0 0.0
        %2372 = vmatmul.mubr.f32.gmra.mrb[0].mxu0 %v2287
        %v2373 = vpop.f32.mrb[0].mxu0
        %v2374 = vadd.f32 0.0, %v2373
        %v2375 = vpop.f32.mrb[0].mxu0
        %2376 = vmatprep.mubr.f32.mxu0 0.0
        %2377 = vmatmul.mubr.f32.gmra.mrb[0].mxu0 %v2288
        %v2378 = vpop.f32.mrb[0].mxu0
        %v2379 = vadd.f32 0.0, %v2378
        %v2380 = vpop.f32.mrb[0].mxu0
        %2381 = vmatprep.mubr.f32.mxu0 0.0
        %2382 = vmatmul.mubr.f32.gmra.mrb[0].mxu0 %v2289
        %v2383 = vpop.f32.mrb[0].mxu0
        %v2384 = vadd.f32 0.0, %v2383
        %v2385 = vpop.f32.mrb[0].mxu0
        %2386 = vmatprep.mubr.f32.mxu0 0.0
        %2387 = vmatmul.mubr.f32.gmra.mrb[0].mxu0 %v2290
        %v2388 = vpop.f32.mrb[0].mxu0
        %v2389 = vadd.f32 0.0, %v2388
        %v2390 = vpop.f32.mrb[0].mxu0
        %2391 = vdwg.mxu0
        %v2392 = vadd.f32 %v2281, %v2374
        %v2393 = vadd.f32 %v2282, %v2379
        %v2394 = vadd.f32 %v2283, %v2384
        %v2395 = vadd.f32 %v2284, %v2389
        %s2396 = sadd.s32 %s184, 56
        %s2397 = scalar_lea.vmem %s165, %s2396
        %v2398 = vld [vmem:[%s2397] sm:$0xff]
        %v2399 = vld [vmem:[%s2397 + $0x8] sm:$0xff]
        %v2400 = vld [vmem:[%s2397 + $0x10] sm:$0xff]
        %v2401 = vld [vmem:[%s2397 + $0x18] sm:$0xf]
        %v2402 = vld [vmem:[%s1 + $0xa00] sm:$0xff]
        %v2403 = vld [vmem:[%s1 + $0xa08] sm:$0xff]
        %v2404 = vld [vmem:[%s1 + $0xa10] sm:$0xff]
        %v2405 = vld [vmem:[%s1 + $0xa18] sm:$0xff]
        %v2406 = vld [vmem:[%s1 + $0xa20] sm:$0xff]
        %v2407 = vld [vmem:[%s1 + $0xa28] sm:$0xff]
        %v2408 = vld [vmem:[%s1 + $0xa30] sm:$0xff]
        %v2409 = vld [vmem:[%s1 + $0xa38] sm:$0xff]
        %v2410 = vld [vmem:[%s1 + $0xa40] sm:$0xff]
        %v2411 = vld [vmem:[%s1 + $0xa48] sm:$0xff]
        %v2412 = vld [vmem:[%s1 + $0xa50] sm:$0xff]
        %v2413 = vld [vmem:[%s1 + $0xa58] sm:$0xff]
        %v2414 = vld [vmem:[%s1 + $0xa60] sm:$0xff]
        %v2415 = vld [vmem:[%s1 + $0xa68] sm:$0xff]
        %v2416 = vld [vmem:[%s1 + $0xa70] sm:$0xff]
        %v2417 = vld [vmem:[%s1 + $0xa78] sm:$0xff]
        %2418 = vmatprep.subr.mxu0 0.0
        %2419 = vmatpush1.msra.mxu0 %v2402
        %2420 = vmatprep.subr.mxu0 0.0
        %2421 = vmatpush1.msra.mxu0 %v2403
        %2422 = vmatprep.subr.mxu0 0.0
        %2423 = vmatpush1.msra.mxu0 %v2404
        %2424 = vmatprep.subr.mxu0 0.0
        %2425 = vmatpush1.msra.mxu0 %v2405
        %2426 = vmatprep.subr.mxu0 0.0
        %2427 = vmatpush1.msra.mxu0 %v2406
        %2428 = vmatprep.subr.mxu0 0.0
        %2429 = vmatpush1.msra.mxu0 %v2407
        %2430 = vmatprep.subr.mxu0 0.0
        %2431 = vmatpush1.msra.mxu0 %v2408
        %2432 = vmatprep.subr.mxu0 0.0
        %2433 = vmatpush1.msra.mxu0 %v2409
        %2434 = vmatprep.subr.mxu0 0.0
        %2435 = vmatpush1.msra.mxu0 %v2410
        %2436 = vmatprep.subr.mxu0 0.0
        %2437 = vmatpush1.msra.mxu0 %v2411
        %2438 = vmatprep.subr.mxu0 0.0
        %2439 = vmatpush1.msra.mxu0 %v2412
        %2440 = vmatprep.subr.mxu0 0.0
        %2441 = vmatpush1.msra.mxu0 %v2413
        %2442 = vmatprep.subr.mxu0 0.0
        %2443 = vmatpush1.msra.mxu0 %v2414
        %2444 = vmatprep.subr.mxu0 0.0
        %2445 = vmatpush1.msra.mxu0 %v2415
        %2446 = vmatprep.subr.mxu0 0.0
        %2447 = vmatpush1.msra.mxu0 %v2416
        %2448 = vmatprep.subr.mxu0 0.0
        %2449 = vmatpush1.msra.mxu0 %v2417
        %2450 = vmatprep.subr.mxu0 0.0
        %2451 = vmatpush1.msra.mxu0 0.0
        %2452 = vmatprep.subr.mxu0 0.0
        %2453 = vmatpush1.msra.mxu0 0.0
        %2454 = vmatprep.subr.mxu0 0.0
        %2455 = vmatpush1.msra.mxu0 0.0
        %2456 = vmatprep.subr.mxu0 0.0
        %2457 = vmatpush1.msra.mxu0 0.0
        %2458 = vmatprep.subr.mxu0 0.0
        %2459 = vmatpush1.msra.mxu0 0.0
        %2460 = vmatprep.subr.mxu0 0.0
        %2461 = vmatpush1.msra.mxu0 0.0
        %2462 = vmatprep.subr.mxu0 0.0
        %2463 = vmatpush1.msra.mxu0 0.0
        %2464 = vmatprep.subr.mxu0 0.0
        %2465 = vmatpush1.msra.mxu0 0.0
        %2466 = vmatprep.subr.mxu0 0.0
        %2467 = vmatpush1.msra.mxu0 0.0
        %2468 = vmatprep.subr.mxu0 0.0
        %2469 = vmatpush1.msra.mxu0 0.0
        %2470 = vmatprep.subr.mxu0 0.0
        %2471 = vmatpush1.msra.mxu0 0.0
        %2472 = vmatprep.subr.mxu0 0.0
        %2473 = vmatpush1.msra.mxu0 0.0
        %2474 = vmatprep.subr.mxu0 0.0
        %2475 = vmatpush1.msra.mxu0 0.0
        %2476 = vmatprep.subr.mxu0 0.0
        %2477 = vmatpush1.msra.mxu0 0.0
        %2478 = vmatprep.subr.mxu0 0.0
        %2479 = vmatpush1.msra.mxu0 0.0
        %2480 = vmatprep.subr.mxu0 0.0
        %2481 = vmatpush1.msra.mxu0 0.0
        %2482 = vmatprep.mubr.f32.mxu0 0.0
        %2483 = vmatmul.mubr.f32.gmra.mrb[0].mxu0 %v2398
        %v2484 = vpop.f32.mrb[0].mxu0
        %v2485 = vadd.f32 0.0, %v2484
        %v2486 = vpop.f32.mrb[0].mxu0
        %2487 = vmatprep.mubr.f32.mxu0 0.0
        %2488 = vmatmul.mubr.f32.gmra.mrb[0].mxu0 %v2399
        %v2489 = vpop.f32.mrb[0].mxu0
        %v2490 = vadd.f32 0.0, %v2489
        %v2491 = vpop.f32.mrb[0].mxu0
        %2492 = vmatprep.mubr.f32.mxu0 0.0
        %2493 = vmatmul.mubr.f32.gmra.mrb[0].mxu0 %v2400
        %v2494 = vpop.f32.mrb[0].mxu0
        %v2495 = vadd.f32 0.0, %v2494
        %v2496 = vpop.f32.mrb[0].mxu0
        %2497 = vmatprep.mubr.f32.mxu0 0.0
        %2498 = vmatmul.mubr.f32.gmra.mrb[0].mxu0 %v2401
        %v2499 = vpop.f32.mrb[0].mxu0
        %v2500 = vadd.f32 0.0, %v2499
        %v2501 = vpop.f32.mrb[0].mxu0
        %2502 = vdwg.mxu0
        %v2503 = vadd.f32 %v2392, %v2485
        %v2504 = vadd.f32 %v2393, %v2490
        %v2505 = vadd.f32 %v2394, %v2495
        %v2506 = vadd.f32 %v2395, %v2500
        %s2507 = sadd.s32 %s184, 57
        %s2508 = scalar_lea.vmem %s165, %s2507
        %v2509 = vld [vmem:[%s2508] sm:$0xff]
        %v2510 = vld [vmem:[%s2508 + $0x8] sm:$0xff]
        %v2511 = vld [vmem:[%s2508 + $0x10] sm:$0xff]
        %v2512 = vld [vmem:[%s2508 + $0x18] sm:$0xf]
        %v2513 = vld [vmem:[%s1 + $0xa80] sm:$0xff]
        %v2514 = vld [vmem:[%s1 + $0xa88] sm:$0xff]
        %v2515 = vld [vmem:[%s1 + $0xa90] sm:$0xff]
        %v2516 = vld [vmem:[%s1 + $0xa98] sm:$0xff]
        %v2517 = vld [vmem:[%s1 + $0xaa0] sm:$0xff]
        %v2518 = vld [vmem:[%s1 + $0xaa8] sm:$0xff]
        %v2519 = vld [vmem:[%s1 + $0xab0] sm:$0xff]
        %v2520 = vld [vmem:[%s1 + $0xab8] sm:$0xff]
        %v2521 = vld [vmem:[%s1 + $0xac0] sm:$0xff]
        %v2522 = vld [vmem:[%s1 + $0xac8] sm:$0xff]
        %v2523 = vld [vmem:[%s1 + $0xad0] sm:$0xff]
        %v2524 = vld [vmem:[%s1 + $0xad8] sm:$0xff]
        %v2525 = vld [vmem:[%s1 + $0xae0] sm:$0xff]
        %v2526 = vld [vmem:[%s1 + $0xae8] sm:$0xff]
        %v2527 = vld [vmem:[%s1 + $0xaf0] sm:$0xff]
        %v2528 = vld [vmem:[%s1 + $0xaf8] sm:$0xff]
        %2529 = vmatprep.subr.mxu0 0.0
        %2530 = vmatpush1.msra.mxu0 %v2513
        %2531 = vmatprep.subr.mxu0 0.0
        %2532 = vmatpush1.msra.mxu0 %v2514
        %2533 = vmatprep.subr.mxu0 0.0
        %2534 = vmatpush1.msra.mxu0 %v2515
        %2535 = vmatprep.subr.mxu0 0.0
        %2536 = vmatpush1.msra.mxu0 %v2516
        %2537 = vmatprep.subr.mxu0 0.0
        %2538 = vmatpush1.msra.mxu0 %v2517
        %2539 = vmatprep.subr.mxu0 0.0
        %2540 = vmatpush1.msra.mxu0 %v2518
        %2541 = vmatprep.subr.mxu0 0.0
        %2542 = vmatpush1.msra.mxu0 %v2519
        %2543 = vmatprep.subr.mxu0 0.0
        %2544 = vmatpush1.msra.mxu0 %v2520
        %2545 = vmatprep.subr.mxu0 0.0
        %2546 = vmatpush1.msra.mxu0 %v2521
        %2547 = vmatprep.subr.mxu0 0.0
        %2548 = vmatpush1.msra.mxu0 %v2522
        %2549 = vmatprep.subr.mxu0 0.0
        %2550 = vmatpush1.msra.mxu0 %v2523
        %2551 = vmatprep.subr.mxu0 0.0
        %2552 = vmatpush1.msra.mxu0 %v2524
        %2553 = vmatprep.subr.mxu0 0.0
        %2554 = vmatpush1.msra.mxu0 %v2525
        %2555 = vmatprep.subr.mxu0 0.0
        %2556 = vmatpush1.msra.mxu0 %v2526
        %2557 = vmatprep.subr.mxu0 0.0
        %2558 = vmatpush1.msra.mxu0 %v2527
        %2559 = vmatprep.subr.mxu0 0.0
        %2560 = vmatpush1.msra.mxu0 %v2528
        %2561 = vmatprep.subr.mxu0 0.0
        %2562 = vmatpush1.msra.mxu0 0.0
        %2563 = vmatprep.subr.mxu0 0.0
        %2564 = vmatpush1.msra.mxu0 0.0
        %2565 = vmatprep.subr.mxu0 0.0
        %2566 = vmatpush1.msra.mxu0 0.0
        %2567 = vmatprep.subr.mxu0 0.0
        %2568 = vmatpush1.msra.mxu0 0.0
        %2569 = vmatprep.subr.mxu0 0.0
        %2570 = vmatpush1.msra.mxu0 0.0
        %2571 = vmatprep.subr.mxu0 0.0
        %2572 = vmatpush1.msra.mxu0 0.0
        %2573 = vmatprep.subr.mxu0 0.0
        %2574 = vmatpush1.msra.mxu0 0.0
        %2575 = vmatprep.subr.mxu0 0.0
        %2576 = vmatpush1.msra.mxu0 0.0
        %2577 = vmatprep.subr.mxu0 0.0
        %2578 = vmatpush1.msra.mxu0 0.0
        %2579 = vmatprep.subr.mxu0 0.0
        %2580 = vmatpush1.msra.mxu0 0.0
        %2581 = vmatprep.subr.mxu0 0.0
        %2582 = vmatpush1.msra.mxu0 0.0
        %2583 = vmatprep.subr.mxu0 0.0
        %2584 = vmatpush1.msra.mxu0 0.0
        %2585 = vmatprep.subr.mxu0 0.0
        %2586 = vmatpush1.msra.mxu0 0.0
        %2587 = vmatprep.subr.mxu0 0.0
        %2588 = vmatpush1.msra.mxu0 0.0
        %2589 = vmatprep.subr.mxu0 0.0
        %2590 = vmatpush1.msra.mxu0 0.0
        %2591 = vmatprep.subr.mxu0 0.0
        %2592 = vmatpush1.msra.mxu0 0.0
        %2593 = vmatprep.mubr.f32.mxu0 0.0
        %2594 = vmatmul.mubr.f32.gmra.mrb[0].mxu0 %v2509
        %v2595 = vpop.f32.mrb[0].mxu0
        %v2596 = vadd.f32 0.0, %v2595
        %v2597 = vpop.f32.mrb[0].mxu0
        %2598 = vmatprep.mubr.f32.mxu0 0.0
        %2599 = vmatmul.mubr.f32.gmra.mrb[0].mxu0 %v2510
        %v2600 = vpop.f32.mrb[0].mxu0
        %v2601 = vadd.f32 0.0, %v2600
        %v2602 = vpop.f32.mrb[0].mxu0
        %2603 = vmatprep.mubr.f32.mxu0 0.0
        %2604 = vmatmul.mubr.f32.gmra.mrb[0].mxu0 %v2511
        %v2605 = vpop.f32.mrb[0].mxu0
        %v2606 = vadd.f32 0.0, %v2605
        %v2607 = vpop.f32.mrb[0].mxu0
        %2608 = vmatprep.mubr.f32.mxu0 0.0
        %2609 = vmatmul.mubr.f32.gmra.mrb[0].mxu0 %v2512
        %v2610 = vpop.f32.mrb[0].mxu0
        %v2611 = vadd.f32 0.0, %v2610
        %v2612 = vpop.f32.mrb[0].mxu0
        %2613 = vdwg.mxu0
        %v2614 = vadd.f32 %v2503, %v2596
        %v2615 = vadd.f32 %v2504, %v2601
        %v2616 = vadd.f32 %v2505, %v2606
        %v2617 = vadd.f32 %v2506, %v2611
        %s2618 = sadd.s32 %s184, 58
        %s2619 = scalar_lea.vmem %s165, %s2618
        %v2620 = vld [vmem:[%s2619] sm:$0xff]
        %v2621 = vld [vmem:[%s2619 + $0x8] sm:$0xff]
        %v2622 = vld [vmem:[%s2619 + $0x10] sm:$0xff]
        %v2623 = vld [vmem:[%s2619 + $0x18] sm:$0xf]
        %v2624 = vld [vmem:[%s1 + $0xb00] sm:$0xff]
        %v2625 = vld [vmem:[%s1 + $0xb08] sm:$0xff]
        %v2626 = vld [vmem:[%s1 + $0xb10] sm:$0xff]
        %v2627 = vld [vmem:[%s1 + $0xb18] sm:$0xff]
        %v2628 = vld [vmem:[%s1 + $0xb20] sm:$0xff]
        %v2629 = vld [vmem:[%s1 + $0xb28] sm:$0xff]
        %v2630 = vld [vmem:[%s1 + $0xb30] sm:$0xff]
        %v2631 = vld [vmem:[%s1 + $0xb38] sm:$0xff]
        %v2632 = vld [vmem:[%s1 + $0xb40] sm:$0xff]
        %v2633 = vld [vmem:[%s1 + $0xb48] sm:$0xff]
        %v2634 = vld [vmem:[%s1 + $0xb50] sm:$0xff]
        %v2635 = vld [vmem:[%s1 + $0xb58] sm:$0xff]
        %v2636 = vld [vmem:[%s1 + $0xb60] sm:$0xff]
        %v2637 = vld [vmem:[%s1 + $0xb68] sm:$0xff]
        %v2638 = vld [vmem:[%s1 + $0xb70] sm:$0xff]
        %v2639 = vld [vmem:[%s1 + $0xb78] sm:$0xff]
        %2640 = vmatprep.subr.mxu0 0.0
        %2641 = vmatpush1.msra.mxu0 %v2624
        %2642 = vmatprep.subr.mxu0 0.0
        %2643 = vmatpush1.msra.mxu0 %v2625
        %2644 = vmatprep.subr.mxu0 0.0
        %2645 = vmatpush1.msra.mxu0 %v2626
        %2646 = vmatprep.subr.mxu0 0.0
        %2647 = vmatpush1.msra.mxu0 %v2627
        %2648 = vmatprep.subr.mxu0 0.0
        %2649 = vmatpush1.msra.mxu0 %v2628
        %2650 = vmatprep.subr.mxu0 0.0
        %2651 = vmatpush1.msra.mxu0 %v2629
        %2652 = vmatprep.subr.mxu0 0.0
        %2653 = vmatpush1.msra.mxu0 %v2630
        %2654 = vmatprep.subr.mxu0 0.0
        %2655 = vmatpush1.msra.mxu0 %v2631
        %2656 = vmatprep.subr.mxu0 0.0
        %2657 = vmatpush1.msra.mxu0 %v2632
        %2658 = vmatprep.subr.mxu0 0.0
        %2659 = vmatpush1.msra.mxu0 %v2633
        %2660 = vmatprep.subr.mxu0 0.0
        %2661 = vmatpush1.msra.mxu0 %v2634
        %2662 = vmatprep.subr.mxu0 0.0
        %2663 = vmatpush1.msra.mxu0 %v2635
        %2664 = vmatprep.subr.mxu0 0.0
        %2665 = vmatpush1.msra.mxu0 %v2636
        %2666 = vmatprep.subr.mxu0 0.0
        %2667 = vmatpush1.msra.mxu0 %v2637
        %2668 = vmatprep.subr.mxu0 0.0
        %2669 = vmatpush1.msra.mxu0 %v2638
        %2670 = vmatprep.subr.mxu0 0.0
        %2671 = vmatpush1.msra.mxu0 %v2639
        %2672 = vmatprep.subr.mxu0 0.0
        %2673 = vmatpush1.msra.mxu0 0.0
        %2674 = vmatprep.subr.mxu0 0.0
        %2675 = vmatpush1.msra.mxu0 0.0
        %2676 = vmatprep.subr.mxu0 0.0
        %2677 = vmatpush1.msra.mxu0 0.0
        %2678 = vmatprep.subr.mxu0 0.0
        %2679 = vmatpush1.msra.mxu0 0.0
        %2680 = vmatprep.subr.mxu0 0.0
        %2681 = vmatpush1.msra.mxu0 0.0
        %2682 = vmatprep.subr.mxu0 0.0
        %2683 = vmatpush1.msra.mxu0 0.0
        %2684 = vmatprep.subr.mxu0 0.0
        %2685 = vmatpush1.msra.mxu0 0.0
        %2686 = vmatprep.subr.mxu0 0.0
        %2687 = vmatpush1.msra.mxu0 0.0
        %2688 = vmatprep.subr.mxu0 0.0
        %2689 = vmatpush1.msra.mxu0 0.0
        %2690 = vmatprep.subr.mxu0 0.0
        %2691 = vmatpush1.msra.mxu0 0.0
        %2692 = vmatprep.subr.mxu0 0.0
        %2693 = vmatpush1.msra.mxu0 0.0
        %2694 = vmatprep.subr.mxu0 0.0
        %2695 = vmatpush1.msra.mxu0 0.0
        %2696 = vmatprep.subr.mxu0 0.0
        %2697 = vmatpush1.msra.mxu0 0.0
        %2698 = vmatprep.subr.mxu0 0.0
        %2699 = vmatpush1.msra.mxu0 0.0
        %2700 = vmatprep.subr.mxu0 0.0
        %2701 = vmatpush1.msra.mxu0 0.0
        %2702 = vmatprep.subr.mxu0 0.0
        %2703 = vmatpush1.msra.mxu0 0.0
        %2704 = vmatprep.mubr.f32.mxu0 0.0
        %2705 = vmatmul.mubr.f32.gmra.mrb[0].mxu0 %v2620
        %v2706 = vpop.f32.mrb[0].mxu0
        %v2707 = vadd.f32 0.0, %v2706
        %v2708 = vpop.f32.mrb[0].mxu0
        %2709 = vmatprep.mubr.f32.mxu0 0.0
        %2710 = vmatmul.mubr.f32.gmra.mrb[0].mxu0 %v2621
        %v2711 = vpop.f32.mrb[0].mxu0
        %v2712 = vadd.f32 0.0, %v2711
        %v2713 = vpop.f32.mrb[0].mxu0
        %2714 = vmatprep.mubr.f32.mxu0 0.0
        %2715 = vmatmul.mubr.f32.gmra.mrb[0].mxu0 %v2622
        %v2716 = vpop.f32.mrb[0].mxu0
        %v2717 = vadd.f32 0.0, %v2716
        %v2718 = vpop.f32.mrb[0].mxu0
        %2719 = vmatprep.mubr.f32.mxu0 0.0
        %2720 = vmatmul.mubr.f32.gmra.mrb[0].mxu0 %v2623
        %v2721 = vpop.f32.mrb[0].mxu0
        %v2722 = vadd.f32 0.0, %v2721
        %v2723 = vpop.f32.mrb[0].mxu0
        %2724 = vdwg.mxu0
        %v2725 = vadd.f32 %v2614, %v2707
        %v2726 = vadd.f32 %v2615, %v2712
        %v2727 = vadd.f32 %v2616, %v2717
        %v2728 = vadd.f32 %v2617, %v2722
        %s2729 = sadd.s32 %s184, 59
        %s2730 = scalar_lea.vmem %s165, %s2729
        %v2731 = vld [vmem:[%s2730] sm:$0xff]
        %v2732 = vld [vmem:[%s2730 + $0x8] sm:$0xff]
        %v2733 = vld [vmem:[%s2730 + $0x10] sm:$0xff]
        %v2734 = vld [vmem:[%s2730 + $0x18] sm:$0xf]
        %v2735 = vld [vmem:[%s1 + $0xb80] sm:$0xff]
        %v2736 = vld [vmem:[%s1 + $0xb88] sm:$0xff]
        %v2737 = vld [vmem:[%s1 + $0xb90] sm:$0xff]
        %v2738 = vld [vmem:[%s1 + $0xb98] sm:$0xff]
        %v2739 = vld [vmem:[%s1 + $0xba0] sm:$0xff]
        %v2740 = vld [vmem:[%s1 + $0xba8] sm:$0xff]
        %v2741 = vld [vmem:[%s1 + $0xbb0] sm:$0xff]
        %v2742 = vld [vmem:[%s1 + $0xbb8] sm:$0xff]
        %v2743 = vld [vmem:[%s1 + $0xbc0] sm:$0xff]
        %v2744 = vld [vmem:[%s1 + $0xbc8] sm:$0xff]
        %v2745 = vld [vmem:[%s1 + $0xbd0] sm:$0xff]
        %v2746 = vld [vmem:[%s1 + $0xbd8] sm:$0xff]
        %v2747 = vld [vmem:[%s1 + $0xbe0] sm:$0xff]
        %v2748 = vld [vmem:[%s1 + $0xbe8] sm:$0xff]
        %v2749 = vld [vmem:[%s1 + $0xbf0] sm:$0xff]
        %v2750 = vld [vmem:[%s1 + $0xbf8] sm:$0xff]
        %2751 = vmatprep.subr.mxu0 0.0
        %2752 = vmatpush1.msra.mxu0 %v2735
        %2753 = vmatprep.subr.mxu0 0.0
        %2754 = vmatpush1.msra.mxu0 %v2736
        %2755 = vmatprep.subr.mxu0 0.0
        %2756 = vmatpush1.msra.mxu0 %v2737
        %2757 = vmatprep.subr.mxu0 0.0
        %2758 = vmatpush1.msra.mxu0 %v2738
        %2759 = vmatprep.subr.mxu0 0.0
        %2760 = vmatpush1.msra.mxu0 %v2739
        %2761 = vmatprep.subr.mxu0 0.0
        %2762 = vmatpush1.msra.mxu0 %v2740
        %2763 = vmatprep.subr.mxu0 0.0
        %2764 = vmatpush1.msra.mxu0 %v2741
        %2765 = vmatprep.subr.mxu0 0.0
        %2766 = vmatpush1.msra.mxu0 %v2742
        %2767 = vmatprep.subr.mxu0 0.0
        %2768 = vmatpush1.msra.mxu0 %v2743
        %2769 = vmatprep.subr.mxu0 0.0
        %2770 = vmatpush1.msra.mxu0 %v2744
        %2771 = vmatprep.subr.mxu0 0.0
        %2772 = vmatpush1.msra.mxu0 %v2745
        %2773 = vmatprep.subr.mxu0 0.0
        %2774 = vmatpush1.msra.mxu0 %v2746
        %2775 = vmatprep.subr.mxu0 0.0
        %2776 = vmatpush1.msra.mxu0 %v2747
        %2777 = vmatprep.subr.mxu0 0.0
        %2778 = vmatpush1.msra.mxu0 %v2748
        %2779 = vmatprep.subr.mxu0 0.0
        %2780 = vmatpush1.msra.mxu0 %v2749
        %2781 = vmatprep.subr.mxu0 0.0
        %2782 = vmatpush1.msra.mxu0 %v2750
        %2783 = vmatprep.subr.mxu0 0.0
        %2784 = vmatpush1.msra.mxu0 0.0
        %2785 = vmatprep.subr.mxu0 0.0
        %2786 = vmatpush1.msra.mxu0 0.0
        %2787 = vmatprep.subr.mxu0 0.0
        %2788 = vmatpush1.msra.mxu0 0.0
        %2789 = vmatprep.subr.mxu0 0.0
        %2790 = vmatpush1.msra.mxu0 0.0
        %2791 = vmatprep.subr.mxu0 0.0
        %2792 = vmatpush1.msra.mxu0 0.0
        %2793 = vmatprep.subr.mxu0 0.0
        %2794 = vmatpush1.msra.mxu0 0.0
        %2795 = vmatprep.subr.mxu0 0.0
        %2796 = vmatpush1.msra.mxu0 0.0
        %2797 = vmatprep.subr.mxu0 0.0
        %2798 = vmatpush1.msra.mxu0 0.0
        %2799 = vmatprep.subr.mxu0 0.0
        %2800 = vmatpush1.msra.mxu0 0.0
        %2801 = vmatprep.subr.mxu0 0.0
        %2802 = vmatpush1.msra.mxu0 0.0
        %2803 = vmatprep.subr.mxu0 0.0
        %2804 = vmatpush1.msra.mxu0 0.0
        %2805 = vmatprep.subr.mxu0 0.0
        %2806 = vmatpush1.msra.mxu0 0.0
        %2807 = vmatprep.subr.mxu0 0.0
        %2808 = vmatpush1.msra.mxu0 0.0
        %2809 = vmatprep.subr.mxu0 0.0
        %2810 = vmatpush1.msra.mxu0 0.0
        %2811 = vmatprep.subr.mxu0 0.0
        %2812 = vmatpush1.msra.mxu0 0.0
        %2813 = vmatprep.subr.mxu0 0.0
        %2814 = vmatpush1.msra.mxu0 0.0
        %2815 = vmatprep.mubr.f32.mxu0 0.0
        %2816 = vmatmul.mubr.f32.gmra.mrb[0].mxu0 %v2731
        %v2817 = vpop.f32.mrb[0].mxu0
        %v2818 = vadd.f32 0.0, %v2817
        %v2819 = vpop.f32.mrb[0].mxu0
        %2820 = vmatprep.mubr.f32.mxu0 0.0
        %2821 = vmatmul.mubr.f32.gmra.mrb[0].mxu0 %v2732
        %v2822 = vpop.f32.mrb[0].mxu0
        %v2823 = vadd.f32 0.0, %v2822
        %v2824 = vpop.f32.mrb[0].mxu0
        %2825 = vmatprep.mubr.f32.mxu0 0.0
        %2826 = vmatmul.mubr.f32.gmra.mrb[0].mxu0 %v2733
        %v2827 = vpop.f32.mrb[0].mxu0
        %v2828 = vadd.f32 0.0, %v2827
        %v2829 = vpop.f32.mrb[0].mxu0
        %2830 = vmatprep.mubr.f32.mxu0 0.0
        %2831 = vmatmul.mubr.f32.gmra.mrb[0].mxu0 %v2734
        %v2832 = vpop.f32.mrb[0].mxu0
        %v2833 = vadd.f32 0.0, %v2832
        %v2834 = vpop.f32.mrb[0].mxu0
        %2835 = vdwg.mxu0
        %v2836 = vadd.f32 %v2725, %v2818
        %v2837 = vadd.f32 %v2726, %v2823
        %v2838 = vadd.f32 %v2727, %v2828
        %v2839 = vadd.f32 %v2728, %v2833
        %s2840 = sadd.s32 %s184, 60
        %s2841 = scalar_lea.vmem %s165, %s2840
        %v2842 = vld [vmem:[%s2841] sm:$0xff]
        %v2843 = vld [vmem:[%s2841 + $0x8] sm:$0xff]
        %v2844 = vld [vmem:[%s2841 + $0x10] sm:$0xff]
        %v2845 = vld [vmem:[%s2841 + $0x18] sm:$0xf]
        %v2846 = vld [vmem:[%s1 + $0xc00] sm:$0xff]
        %v2847 = vld [vmem:[%s1 + $0xc08] sm:$0xff]
        %v2848 = vld [vmem:[%s1 + $0xc10] sm:$0xff]
        %v2849 = vld [vmem:[%s1 + $0xc18] sm:$0xff]
        %v2850 = vld [vmem:[%s1 + $0xc20] sm:$0xff]
        %v2851 = vld [vmem:[%s1 + $0xc28] sm:$0xff]
        %v2852 = vld [vmem:[%s1 + $0xc30] sm:$0xff]
        %v2853 = vld [vmem:[%s1 + $0xc38] sm:$0xff]
        %v2854 = vld [vmem:[%s1 + $0xc40] sm:$0xff]
        %v2855 = vld [vmem:[%s1 + $0xc48] sm:$0xff]
        %v2856 = vld [vmem:[%s1 + $0xc50] sm:$0xff]
        %v2857 = vld [vmem:[%s1 + $0xc58] sm:$0xff]
        %v2858 = vld [vmem:[%s1 + $0xc60] sm:$0xff]
        %v2859 = vld [vmem:[%s1 + $0xc68] sm:$0xff]
        %v2860 = vld [vmem:[%s1 + $0xc70] sm:$0xff]
        %v2861 = vld [vmem:[%s1 + $0xc78] sm:$0xff]
        %2862 = vmatprep.subr.mxu0 0.0
        %2863 = vmatpush1.msra.mxu0 %v2846
        %2864 = vmatprep.subr.mxu0 0.0
        %2865 = vmatpush1.msra.mxu0 %v2847
        %2866 = vmatprep.subr.mxu0 0.0
        %2867 = vmatpush1.msra.mxu0 %v2848
        %2868 = vmatprep.subr.mxu0 0.0
        %2869 = vmatpush1.msra.mxu0 %v2849
        %2870 = vmatprep.subr.mxu0 0.0
        %2871 = vmatpush1.msra.mxu0 %v2850
        %2872 = vmatprep.subr.mxu0 0.0
        %2873 = vmatpush1.msra.mxu0 %v2851
        %2874 = vmatprep.subr.mxu0 0.0
        %2875 = vmatpush1.msra.mxu0 %v2852
        %2876 = vmatprep.subr.mxu0 0.0
        %2877 = vmatpush1.msra.mxu0 %v2853
        %2878 = vmatprep.subr.mxu0 0.0
        %2879 = vmatpush1.msra.mxu0 %v2854
        %2880 = vmatprep.subr.mxu0 0.0
        %2881 = vmatpush1.msra.mxu0 %v2855
        %2882 = vmatprep.subr.mxu0 0.0
        %2883 = vmatpush1.msra.mxu0 %v2856
        %2884 = vmatprep.subr.mxu0 0.0
        %2885 = vmatpush1.msra.mxu0 %v2857
        %2886 = vmatprep.subr.mxu0 0.0
        %2887 = vmatpush1.msra.mxu0 %v2858
        %2888 = vmatprep.subr.mxu0 0.0
        %2889 = vmatpush1.msra.mxu0 %v2859
        %2890 = vmatprep.subr.mxu0 0.0
        %2891 = vmatpush1.msra.mxu0 %v2860
        %2892 = vmatprep.subr.mxu0 0.0
        %2893 = vmatpush1.msra.mxu0 %v2861
        %2894 = vmatprep.subr.mxu0 0.0
        %2895 = vmatpush1.msra.mxu0 0.0
        %2896 = vmatprep.subr.mxu0 0.0
        %2897 = vmatpush1.msra.mxu0 0.0
        %2898 = vmatprep.subr.mxu0 0.0
        %2899 = vmatpush1.msra.mxu0 0.0
        %2900 = vmatprep.subr.mxu0 0.0
        %2901 = vmatpush1.msra.mxu0 0.0
        %2902 = vmatprep.subr.mxu0 0.0
        %2903 = vmatpush1.msra.mxu0 0.0
        %2904 = vmatprep.subr.mxu0 0.0
        %2905 = vmatpush1.msra.mxu0 0.0
        %2906 = vmatprep.subr.mxu0 0.0
        %2907 = vmatpush1.msra.mxu0 0.0
        %2908 = vmatprep.subr.mxu0 0.0
        %2909 = vmatpush1.msra.mxu0 0.0
        %2910 = vmatprep.subr.mxu0 0.0
        %2911 = vmatpush1.msra.mxu0 0.0
        %2912 = vmatprep.subr.mxu0 0.0
        %2913 = vmatpush1.msra.mxu0 0.0
        %2914 = vmatprep.subr.mxu0 0.0
        %2915 = vmatpush1.msra.mxu0 0.0
        %2916 = vmatprep.subr.mxu0 0.0
        %2917 = vmatpush1.msra.mxu0 0.0
        %2918 = vmatprep.subr.mxu0 0.0
        %2919 = vmatpush1.msra.mxu0 0.0
        %2920 = vmatprep.subr.mxu0 0.0
        %2921 = vmatpush1.msra.mxu0 0.0
        %2922 = vmatprep.subr.mxu0 0.0
        %2923 = vmatpush1.msra.mxu0 0.0
        %2924 = vmatprep.subr.mxu0 0.0
        %2925 = vmatpush1.msra.mxu0 0.0
        %2926 = vmatprep.mubr.f32.mxu0 0.0
        %2927 = vmatmul.mubr.f32.gmra.mrb[0].mxu0 %v2842
        %v2928 = vpop.f32.mrb[0].mxu0
        %v2929 = vadd.f32 0.0, %v2928
        %v2930 = vpop.f32.mrb[0].mxu0
        %2931 = vmatprep.mubr.f32.mxu0 0.0
        %2932 = vmatmul.mubr.f32.gmra.mrb[0].mxu0 %v2843
        %v2933 = vpop.f32.mrb[0].mxu0
        %v2934 = vadd.f32 0.0, %v2933
        %v2935 = vpop.f32.mrb[0].mxu0
        %2936 = vmatprep.mubr.f32.mxu0 0.0
        %2937 = vmatmul.mubr.f32.gmra.mrb[0].mxu0 %v2844
        %v2938 = vpop.f32.mrb[0].mxu0
        %v2939 = vadd.f32 0.0, %v2938
        %v2940 = vpop.f32.mrb[0].mxu0
        %2941 = vmatprep.mubr.f32.mxu0 0.0
        %2942 = vmatmul.mubr.f32.gmra.mrb[0].mxu0 %v2845
        %v2943 = vpop.f32.mrb[0].mxu0
        %v2944 = vadd.f32 0.0, %v2943
        %v2945 = vpop.f32.mrb[0].mxu0
        %2946 = vdwg.mxu0
        %v2947 = vadd.f32 %v2836, %v2929
        %v2948 = vadd.f32 %v2837, %v2934
        %v2949 = vadd.f32 %v2838, %v2939
        %v2950 = vadd.f32 %v2839, %v2944
        %2951 = vst [vmem:[#allocation2] sm:$0xff] %v2947
        %2952 = vst [vmem:[#allocation2 + $0x8] sm:$0xff] %v2948
        %2953 = vst [vmem:[#allocation2 + $0x10] sm:$0xff] %v2949
        %2954 = vst [vmem:[#allocation2 + $0x18] sm:$0xf] %v2950
        %v2955 = vld [vmem:[#allocation2] ss:$2 sm:$0x1f]
        %s2956 = scalar_lea.vmem [#allocation2], 1
        %v2957 = vld [vmem:[%s2956] ss:$2 sm:$0x1f]
        %s2958 = scalar_lea.vmem [#allocation2], 14
        %v2959 = vld [vmem:[%s2958] ss:$2 sm:$0x1f]
        %s2960 = scalar_lea.vmem [#allocation2], 15
        %v2961 = vld [vmem:[%s2960] ss:$2 sm:$0x1f]
        %v2962 = vmax.f32 %v2955, %v2957
        %v2963 = vmax.f32 %v2959, %v2961
        %v2964 = vmax.f32 %v2962, %v2963
        %v2965 = vadd.f32 %v2964, %v176
        %v2966 = vmax.f32 %v2965, 0.0
        %s2967 = smul.u32 %s179, 5
        %s2968 = scalar_lea.vmem %s170, %s2967
        %2969 = vst [vmem:[%s2968] sm:$0x1f] %v2966
      $region37: #{lenet_forward.4} parent=31 // loop_footer
        %s183 = sadd.s32 1, %s179
      $region38: #{lenet_forward.4} parent=31 // loop_footer_branch
        %178 = sbr.rel target = $region34
      $region39: #{lenet_forward.4} parent=31 // loop_exit
        _
      %p2970 = scmp.lt.s32.totalorder %s14, 1
      %s2971 = scalar_select %p2970, %s14, 1
      %s2972 = smul.addr %s2971, 4
      %s2973 = smul.addr %s2972, 8
      %s2974 = scalar_lea.vmem %s3, %s2973
      // Predicated region
      $region40: #{lenet_forward.4} parent=31 // pred_check
        %p2975 = pneg %p100
      $region41: #{lenet_forward.4} parent=31 // pred_check_branch
        %2977 = sbr.rel (%p2975) target = $region43
      $region42: #{lenet_forward.4} parent=31 // pred_region
        _
      $region43: #{lenet_forward.4} parent=31 // pred_fallthru
        _
    $region32: #{lenet_forward.4} parent=5 // pred_fallthru
      _
    %p2978 = scmp.le.s32.totalorder 2, %s9
    // Predicated region
    $region44: #{lenet_forward.4} parent=5 // pred_check
      %p2979 = pneg %p2978
    $region45: #{lenet_forward.4} parent=5 // pred_check_branch
      %2981 = sbr.rel (%p2979) target = $region47
    $region46: #{lenet_forward.4} parent=5 // pred_region
      %s2982 = ssub.s32 %s9, 2
      // Predicated region
      $region48: #{lenet_forward.4} parent=46 // pred_check
        %p2983 = pneg %p106
      $region49: #{lenet_forward.4} parent=46 // pred_check_branch
        %2985 = sbr.rel (%p2983) target = $region51
      $region50: #{lenet_forward.4} parent=46 // pred_region
        %p2986 = scmp.lt.s32.totalorder %s15, 1
        %s2987 = scalar_select %p2986, %s15, 1
        %s2988 = smul.addr %s2987, 4
        %s2989 = smul.addr %s2988, 8
        %s2990 = scalar_lea.vmem %s3, %s2989
      $region51: #{lenet_forward.4} parent=46 // pred_fallthru
        _
    $region47: #{lenet_forward.4} parent=5 // pred_fallthru
      _
  $region6: #{lenet_forward.4} parent=0 // loop_footer
    %s13 = sadd.s32 1, %s9
  $region7: #{lenet_forward.4} parent=0 // loop_footer_branch
    %8 = sbr.rel target = $region3
  $region8: #{lenet_forward.4} parent=0 // loop_exit
    _

// kernel: lenet_forward.3
$region0: #{lenet_forward.3}
  #allocation0 [shape = 'u32[]', space=smem, size = 0x4, offset = 0x4, fixed_abs, tag = 'smem constant byte address 0x4 - core index']
  #allocation1 [shape = 'u32[144,128]{1,0:T(1,128)}', space=vmem, size = 0x12000, scoped, tag = 'internal scratch']
  #allocation2 [shape = 'f32[64,128]{1,0:T(8,128)}', space=vmem, size = 0x8000, scoped, tag = 'scratch operand']
  %s0 = inlined_call_operand.vmem [shape: f32[2,1028,3], index: 0, kind: input, shape index: {}]
  %s1 = inlined_call_operand.vmem [shape: f32[75,128], index: 1, kind: input, shape index: {}]
  %s2 = inlined_call_operand.vmem [shape: f32[1,128], index: 2, kind: input, shape index: {}]
  %s3 = inlined_call_operand.vmem [shape: f32[2,200,128], index: 3, kind: output, shape index: {}]
  %s4 = sld [smem:[#allocation0]]
  $region52: #{lenet_forward.3} parent=0
    _
  %s6 = ssub.s32 1, %s4
  %s7 = scalar_select 0, %s6, %s4
  loop: start=0, step=1, limit=4
  $region2: #{lenet_forward.3} parent=0 // loop_pre_header
    _
  $region3: #{lenet_forward.3} parent=0 // loop_header
    %s9 = sphi 0, %s13
    %p10 = scmp.ge.s32.totalorder %s9, 4
    %s19 = sphi 0, %s21
    %s22 = sphi 0, %s19
    %s23 = sphi 0, %s22
    %s39 = sphi 0, %s23
    %s43 = sphi 0, %s43
    %s45 = sphi 0, %s43
    %s46 = sphi 0, %s45
    %s60 = sphi 0, %s46
    %s64 = sphi 0, %s64
    %s66 = sphi 0, %s64
    %s67 = sphi 0, %s66
    %s81 = sphi 0, %s67
    %s87 = sphi 0, %s89
    %s90 = sphi 0, %s87
    %s91 = sphi 0, %s90
    %s107 = sphi 0, %s91
  $region4: #{lenet_forward.3} parent=0 // loop_header_branch
    %12 = sbr.rel (%p10) target = $region8
  $region5: #{lenet_forward.3} parent=0 // loop_body
    %s14 = ssub.s32 %s9, 1
    %s15 = ssub.s32 %s9, 2
    %s16 = sadd.s32 %s9, 1
    %s17 = ssub.s32 %s9, %s16
    %p18 = scmp.eq.s32.totalorder %s17, 0
    %s20 = sadd.s32 %s19, 1
    %s21 = scalar_select %p18, %s19, %s20
    %p24 = pneg %p18
    %p25 = scmp.eq.s32.totalorder %s9, 1
    %p26 = por %p24, %p25
    %p27 = scmp.ne.s32.totalorder %s19, %s22
    %p28 = scmp.eq.s32.totalorder %s9, 0
    %p29 = por %p27, %p28
    %p30 = scmp.ne.s32.totalorder %s19, %s22
    %p31 = scmp.eq.s32.totalorder %s14, 1
    %p32 = por %p30, %p31
    %p33 = scmp.ne.s32.totalorder %s22, %s23
    %p34 = scmp.eq.s32.totalorder %s14, 0
    %p35 = por %p33, %p34
    %p36 = scmp.ne.s32.totalorder %s22, %s23
    %p37 = scmp.eq.s32.totalorder %s15, 1
    %p38 = por %p36, %p37
    %p40 = scmp.ne.s32.totalorder %s23, %s39
    %p41 = scmp.eq.s32.totalorder %s15, 0
    %p42 = por %p40, %p41
    %s44 = sadd.s32 %s43, 1
    %p47 = scmp.eq.s32.totalorder %s9, 1
    %p48 = scmp.ne.s32.totalorder %s43, %s45
    %p49 = scmp.eq.s32.totalorder %s9, 0
    %p50 = por %p48, %p49
    %p51 = scmp.ne.s32.totalorder %s43, %s45
    %p52 = scmp.eq.s32.totalorder %s14, 1
    %p53 = por %p51, %p52
    %p54 = scmp.ne.s32.totalorder %s45, %s46
    %p55 = scmp.eq.s32.totalorder %s14, 0
    %p56 = por %p54, %p55
    %p57 = scmp.ne.s32.totalorder %s45, %s46
    %p58 = scmp.eq.s32.totalorder %s15, 1
    %p59 = por %p57, %p58
    %p61 = scmp.ne.s32.totalorder %s46, %s60
    %p62 = scmp.eq.s32.totalorder %s15, 0
    %p63 = por %p61, %p62
    %s65 = sadd.s32 %s64, 1
    %p68 = scmp.eq.s32.totalorder %s9, 1
    %p69 = scmp.ne.s32.totalorder %s64, %s66
    %p70 = scmp.eq.s32.totalorder %s9, 0
    %p71 = por %p69, %p70
    %p72 = scmp.ne.s32.totalorder %s64, %s66
    %p73 = scmp.eq.s32.totalorder %s14, 1
    %p74 = por %p72, %p73
    %p75 = scmp.ne.s32.totalorder %s66, %s67
    %p76 = scmp.eq.s32.totalorder %s14, 0
    %p77 = por %p75, %p76
    %p78 = scmp.ne.s32.totalorder %s66, %s67
    %p79 = scmp.eq.s32.totalorder %s15, 1
    %p80 = por %p78, %p79
    %p82 = scmp.ne.s32.totalorder %s67, %s81
    %p83 = scmp.eq.s32.totalorder %s15, 0
    %p84 = por %p82, %p83
    %s85 = ssub.s32 %s9, %s16
    %p86 = scmp.eq.s32.totalorder %s85, 0
    %s88 = sadd.s32 %s87, 1
    %s89 = scalar_select %p86, %s87, %s88
    %p92 = pneg %p86
    %p93 = scmp.eq.s32.totalorder %s9, 1
    %p94 = por %p92, %p93
    %p95 = scmp.ne.s32.totalorder %s87, %s90
    %p96 = scmp.eq.s32.totalorder %s9, 0
    %p97 = por %p95, %p96
    %p98 = scmp.ne.s32.totalorder %s87, %s90
    %p99 = scmp.eq.s32.totalorder %s14, 1
    %p100 = por %p98, %p99
    %p101 = scmp.ne.s32.totalorder %s90, %s91
    %p102 = scmp.eq.s32.totalorder %s14, 0
    %p103 = por %p101, %p102
    %p104 = scmp.ne.s32.totalorder %s90, %s91
    %p105 = scmp.eq.s32.totalorder %s15, 1
    %p106 = por %p104, %p105
    %p108 = scmp.ne.s32.totalorder %s91, %s107
    %p109 = scmp.eq.s32.totalorder %s15, 0
    %p110 = por %p108, %p109
    %p111 = scmp.le.s32.totalorder 1, %s9
    %p112 = scmp.lt.s32.totalorder %s9, 3
    %p113 = pnand %p111, %p112
    %p114 = pneg %p113
    // Predicated region
    $region9: #{lenet_forward.3} parent=5 // pred_check
      _
    $region10: #{lenet_forward.3} parent=5 // pred_check_branch
      %116 = sbr.rel (%p113) target = $region12
    $region11: #{lenet_forward.3} parent=5 // pred_region
      %s117 = ssub.s32 %s9, 1
      // Predicated region
      $region13: #{lenet_forward.3} parent=11 // pred_check
        %p118 = pneg %p56
      $region14: #{lenet_forward.3} parent=11 // pred_check_branch
        %120 = sbr.rel (%p118) target = $region16
      $region15: #{lenet_forward.3} parent=11 // pred_region
        _
      $region16: #{lenet_forward.3} parent=11 // pred_fallthru
        _
      // Predicated region
      $region17: #{lenet_forward.3} parent=11 // pred_check
        %p121 = pneg %p77
      $region18: #{lenet_forward.3} parent=11 // pred_check_branch
        %123 = sbr.rel (%p121) target = $region20
      $region19: #{lenet_forward.3} parent=11 // pred_region
        _
      $region20: #{lenet_forward.3} parent=11 // pred_fallthru
        _
    $region12: #{lenet_forward.3} parent=5 // pred_fallthru
      _
    %p124 = scmp.lt.s32.totalorder %s9, 2
    // Predicated region
    $region21: #{lenet_forward.3} parent=5 // pred_check
      %p125 = pneg %p124
    $region22: #{lenet_forward.3} parent=5 // pred_check_branch
      %127 = sbr.rel (%p125) target = $region24
    $region23: #{lenet_forward.3} parent=5 // pred_region
      // Predicated region
      $region25: #{lenet_forward.3} parent=23 // pred_check
        %p128 = pneg %p29
      $region26: #{lenet_forward.3} parent=23 // pred_check_branch
        %130 = sbr.rel (%p128) target = $region28
      $region27: #{lenet_forward.3} parent=23 // pred_region
        %p131 = scmp.lt.s32.totalorder %s9, 1
        %s132 = scalar_select %p131, %s9, 1
        %s133 = smul.addr %s132, 129
        %s134 = smul.addr %s133, 8
        %s135 = scalar_lea.vmem %s0, %s134
      $region28: #{lenet_forward.3} parent=23 // pred_fallthru
        _
    $region24: #{lenet_forward.3} parent=5 // pred_fallthru
      _
    %p136 = scmp.le.s32.totalorder 1, %s9
    %p137 = scmp.lt.s32.totalorder %s9, 3
    %p138 = pnand %p136, %p137
    %p139 = pneg %p138
    // Predicated region
    $region29: #{lenet_forward.3} parent=5 // pred_check
      _
    $region30: #{lenet_forward.3} parent=5 // pred_check_branch
      %141 = sbr.rel (%p138) target = $region32
    $region31: #{lenet_forward.3} parent=5 // pred_region
      %s142 = ssub.s32 %s9, 1
      %p143 = scmp.lt.s32.totalorder %s14, 1
      %s144 = scalar_select %p143, %s14, 1
      %s145 = smul.addr %s144, 129
      %s146 = smul.addr %s145, 8
      %s147 = scalar_lea.vmem %s0, %s146
      %p148 = pneg %p35
      %p149 = pneg %p32
      %p150 = pneg %p56
      %p151 = pneg %p53
      %p152 = pneg %p77
      %p153 = pneg %p74
      %p154 = pneg %p103
      %p155 = pneg %p100
      %p156 = scmp.lt.s32.totalorder %s14, 1
      %s157 = scalar_select %p156, %s14, 1
      %s158 = smul.addr %s157, 25
      %s159 = smul.addr %s158, 8
      %s160 = scalar_lea.vmem %s3, %s159
      %p161 = scmp.lt.s32.totalorder %s14, 1
      %s162 = scalar_select %p161, %s14, 1
      %s163 = smul.addr %s162, 129
      %s164 = smul.addr %s163, 8
      %s165 = scalar_lea.vmem %s0, %s164
      %p166 = scmp.lt.s32.totalorder %s14, 1
      %s167 = scalar_select %p166, %s14, 1
      %s168 = smul.addr %s167, 25
      %s169 = smul.addr %s168, 8
      %s170 = scalar_lea.vmem %s3, %s169
      %v171 = vld [vmem:[%s2] sm:$0x1]
      %v173 = vlaneseq
      %v174 = vshrl.u32 %v173, 7
      %v175 = vsub.s32 0, %v174
      %v176 = vrot.slane %v171, %v175
      loop: start=0, step=1, limit=14
      $region33: #{lenet_forward.3} parent=31 // loop_pre_header
        _
      $region34: #{lenet_forward.3} parent=31 // loop_header
        %s179 = sphi 0, %s183
        %p180 = scmp.ge.s32.totalorder %s179, 14
      $region35: #{lenet_forward.3} parent=31 // loop_header_branch
        %182 = sbr.rel (%p180) target = $region39
      $region36: #{lenet_forward.3} parent=31 // loop_body
        %s184 = smul.u32 %s179, 64
        %s185 = scalar_lea.vmem %s165, %s184
        %v186 = vld [vmem:[%s185] sm:$0xff]
        %v187 = vld [vmem:[%s185 + $0x8] sm:$0xff]
        %v188 = vld [vmem:[%s185 + $0x10] sm:$0xff]
        %v189 = vld [vmem:[%s185 + $0x18] sm:$0xff]
        %v190 = vld [vmem:[%s185 + $0x20] sm:$0xff]
        %v191 = vld [vmem:[%s185 + $0x28] sm:$0xff]
        %v192 = vld [vmem:[%s185 + $0x30] sm:$0xff]
        %v193 = vld [vmem:[%s185 + $0x38] sm:$0xff]
        %v194 = vld [vmem:[%s1] sm:$0x7]
        %s195 = sadd.s32 %s184, 1
        %s196 = scalar_lea.vmem %s165, %s195
        %v197 = vld [vmem:[%s196] sm:$0xff]
        %v198 = vld [vmem:[%s196 + $0x8] sm:$0xff]
        %v199 = vld [vmem:[%s196 + $0x10] sm:$0xff]
        %v200 = vld [vmem:[%s196 + $0x18] sm:$0xff]
        %v201 = vld [vmem:[%s196 + $0x20] sm:$0xff]
        %v202 = vld [vmem:[%s196 + $0x28] sm:$0xff]
        %v203 = vld [vmem:[%s196 + $0x30] sm:$0xff]
        %v204 = vld [vmem:[%s196 + $0x38] sm:$0xff]
        %v205 = vld [vmem:[%s1 + $0x3] sm:$0x7]
        %vm206 = vcmask 23552
        %v208 = vsel %vm206, %v197, 0
        %v211 = vsel %vm206, %v198, 0
        %v214 = vsel %vm206, %v199, 0
        %v217 = vsel %vm206, %v200, 0
        %v220 = vsel %vm206, %v201, 0
        %v223 = vsel %vm206, %v202, 0
        %v226 = vsel %vm206, %v203, 0
        %v229 = vsel %vm206, %v204, 0
        %vm231 = vcmask 1042432
        %v233 = vsel %vm231, %v205, 0
        %235 = vmatprep.subr.mxu0 0.0
        %236 = vmatpush1.msra.mxu0 %v233
        %237 = vmatprep.subr.mxu0 0.0
        %238 = vmatpush1.msra.mxu0 0.0
        %239 = vmatprep.subr.mxu0 0.0
        %240 = vmatpush1.msra.mxu0 0.0
        %241 = vmatprep.subr.mxu0 0.0
        %242 = vmatpush1.msra.mxu0 0.0
        %243 = vmatprep.subr.mxu0 0.0
        %244 = vmatpush1.msra.mxu0 0.0
        %245 = vmatprep.subr.mxu0 0.0
        %246 = vmatpush1.msra.mxu0 0.0
        %247 = vmatprep.subr.mxu0 0.0
        %248 = vmatpush1.msra.mxu0 0.0
        %249 = vmatprep.subr.mxu0 0.0
        %250 = vmatpush1.msra.mxu0 0.0
        %251 = vmatprep.subr.mxu0 0.0
        %252 = vmatpush1.msra.mxu0 0.0
        %253 = vmatprep.subr.mxu0 0.0
        %254 = vmatpush1.msra.mxu0 0.0
        %255 = vmatprep.subr.mxu0 0.0
        %256 = vmatpush1.msra.mxu0 0.0
        %257 = vmatprep.subr.mxu0 0.0
        %258 = vmatpush1.msra.mxu0 0.0
        %259 = vmatprep.subr.mxu0 0.0
        %260 = vmatpush1.msra.mxu0 0.0
        %261 = vmatprep.subr.mxu0 0.0
        %262 = vmatpush1.msra.mxu0 0.0
        %263 = vmatprep.subr.mxu0 0.0
        %264 = vmatpush1.msra.mxu0 0.0
        %265 = vmatprep.subr.mxu0 0.0
        %266 = vmatpush1.msra.mxu0 0.0
        %267 = vmatprep.subr.mxu0 0.0
        %268 = vmatpush1.msra.mxu0 0.0
        %269 = vmatprep.subr.mxu0 0.0
        %270 = vmatpush1.msra.mxu0 0.0
        %271 = vmatprep.subr.mxu0 0.0
        %272 = vmatpush1.msra.mxu0 0.0
        %273 = vmatprep.subr.mxu0 0.0
        %274 = vmatpush1.msra.mxu0 0.0
        %275 = vmatprep.subr.mxu0 0.0
        %276 = vmatpush1.msra.mxu0 0.0
        %277 = vmatprep.subr.mxu0 0.0
        %278 = vmatpush1.msra.mxu0 0.0
        %279 = vmatprep.subr.mxu0 0.0
        %280 = vmatpush1.msra.mxu0 0.0
        %281 = vmatprep.subr.mxu0 0.0
        %282 = vmatpush1.msra.mxu0 0.0
        %283 = vmatprep.subr.mxu0 0.0
        %284 = vmatpush1.msra.mxu0 0.0
        %285 = vmatprep.subr.mxu0 0.0
        %286 = vmatpush1.msra.mxu0 0.0
        %287 = vmatprep.subr.mxu0 0.0
        %288 = vmatpush1.msra.mxu0 0.0
        %289 = vmatprep.subr.mxu0 0.0
        %290 = vmatpush1.msra.mxu0 0.0
        %291 = vmatprep.subr.mxu0 0.0
        %292 = vmatpush1.msra.mxu0 0.0
        %293 = vmatprep.subr.mxu0 0.0
        %294 = vmatpush1.msra.mxu0 0.0
        %295 = vmatprep.subr.mxu0 0.0
        %296 = vmatpush1.msra.mxu0 0.0
        %297 = vmatprep.subr.mxu0 0.0
        %298 = vmatpush1.msra.mxu0 0.0
        %299 = vmatprep.mubr.f32.mxu0 0.0
        %300 = vmatmul.mubr.f32.gmra.mrb[0].mxu0 %v208
        %v301 = vpop.f32.mrb[0].mxu0
        %v302 = vadd.f32 0.0, %v301
        %v303 = vpop.f32.mrb[0].mxu0
        %304 = vmatprep.mubr.f32.mxu0 0.0
        %305 = vmatmul.mubr.f32.gmra.mrb[0].mxu0 %v211
        %v306 = vpop.f32.mrb[0].mxu0
        %v307 = vadd.f32 0.0, %v306
        %v308 = vpop.f32.mrb[0].mxu0
        %309 = vmatprep.mubr.f32.mxu0 0.0
        %310 = vmatmul.mubr.f32.gmra.mrb[0].mxu0 %v214
        %v311 = vpop.f32.mrb[0].mxu0
        %v312 = vadd.f32 0.0, %v311
        %v313 = vpop.f32.mrb[0].mxu0
        %314 = vmatprep.mubr.f32.mxu0 0.0
        %315 = vmatmul.mubr.f32.gmra.mrb[0].mxu0 %v217
        %v316 = vpop.f32.mrb[0].mxu0
        %v317 = vadd.f32 0.0, %v316
        %v318 = vpop.f32.mrb[0].mxu0
        %319 = vmatprep.mubr.f32.mxu0 0.0
        %320 = vmatmul.mubr.f32.gmra.mrb[0].mxu0 %v220
        %v321 = vpop.f32.mrb[0].mxu0
        %v322 = vadd.f32 0.0, %v321
        %v323 = vpop.f32.mrb[0].mxu0
        %324 = vmatprep.mubr.f32.mxu0 0.0
        %325 = vmatmul.mubr.f32.gmra.mrb[0].mxu0 %v223
        %v326 = vpop.f32.mrb[0].mxu0
        %v327 = vadd.f32 0.0, %v326
        %v328 = vpop.f32.mrb[0].mxu0
        %329 = vmatprep.mubr.f32.mxu0 0.0
        %330 = vmatmul.mubr.f32.gmra.mrb[0].mxu0 %v226
        %v331 = vpop.f32.mrb[0].mxu0
        %v332 = vadd.f32 0.0, %v331
        %v333 = vpop.f32.mrb[0].mxu0
        %334 = vmatprep.mubr.f32.mxu0 0.0
        %335 = vmatmul.mubr.f32.gmra.mrb[0].mxu0 %v229
        %v336 = vpop.f32.mrb[0].mxu0
        %v337 = vadd.f32 0.0, %v336
        %v338 = vpop.f32.mrb[0].mxu0
        %339 = vdwg.mxu0
        %v341 = vsel %vm206, %v186, 0
        %v344 = vsel %vm206, %v187, 0
        %v347 = vsel %vm206, %v188, 0
        %v350 = vsel %vm206, %v189, 0
        %v353 = vsel %vm206, %v190, 0
        %v356 = vsel %vm206, %v191, 0
        %v359 = vsel %vm206, %v192, 0
        %v362 = vsel %vm206, %v193, 0
        %v365 = vsel %vm231, %v194, 0
        %367 = vmatprep.subr.mxu0 0.0
        %368 = vmatpush1.msra.mxu0 %v365
        %369 = vmatprep.subr.mxu0 0.0
        %370 = vmatpush1.msra.mxu0 0.0
        %371 = vmatprep.subr.mxu0 0.0
        %372 = vmatpush1.msra.mxu0 0.0
        %373 = vmatprep.subr.mxu0 0.0
        %374 = vmatpush1.msra.mxu0 0.0
        %375 = vmatprep.subr.mxu0 0.0
        %376 = vmatpush1.msra.mxu0 0.0
        %377 = vmatprep.subr.mxu0 0.0
        %378 = vmatpush1.msra.mxu0 0.0
        %379 = vmatprep.subr.mxu0 0.0
        %380 = vmatpush1.msra.mxu0 0.0
        %381 = vmatprep.subr.mxu0 0.0
        %382 = vmatpush1.msra.mxu0 0.0
        %383 = vmatprep.subr.mxu0 0.0
        %384 = vmatpush1.msra.mxu0 0.0
        %385 = vmatprep.subr.mxu0 0.0
        %386 = vmatpush1.msra.mxu0 0.0
        %387 = vmatprep.subr.mxu0 0.0
        %388 = vmatpush1.msra.mxu0 0.0
        %389 = vmatprep.subr.mxu0 0.0
        %390 = vmatpush1.msra.mxu0 0.0
        %391 = vmatprep.subr.mxu0 0.0
        %392 = vmatpush1.msra.mxu0 0.0
        %393 = vmatprep.subr.mxu0 0.0
        %394 = vmatpush1.msra.mxu0 0.0
        %395 = vmatprep.subr.mxu0 0.0
        %396 = vmatpush1.msra.mxu0 0.0
        %397 = vmatprep.subr.mxu0 0.0
        %398 = vmatpush1.msra.mxu0 0.0
        %399 = vmatprep.subr.mxu0 0.0
        %400 = vmatpush1.msra.mxu0 0.0
        %401 = vmatprep.subr.mxu0 0.0
        %402 = vmatpush1.msra.mxu0 0.0
        %403 = vmatprep.subr.mxu0 0.0
        %404 = vmatpush1.msra.mxu0 0.0
        %405 = vmatprep.subr.mxu0 0.0
        %406 = vmatpush1.msra.mxu0 0.0
        %407 = vmatprep.subr.mxu0 0.0
        %408 = vmatpush1.msra.mxu0 0.0
        %409 = vmatprep.subr.mxu0 0.0
        %410 = vmatpush1.msra.mxu0 0.0
        %411 = vmatprep.subr.mxu0 0.0
        %412 = vmatpush1.msra.mxu0 0.0
        %413 = vmatprep.subr.mxu0 0.0
        %414 = vmatpush1.msra.mxu0 0.0
        %415 = vmatprep.subr.mxu0 0.0
        %416 = vmatpush1.msra.mxu0 0.0
        %417 = vmatprep.subr.mxu0 0.0
        %418 = vmatpush1.msra.mxu0 0.0
        %419 = vmatprep.subr.mxu0 0.0
        %420 = vmatpush1.msra.mxu0 0.0
        %421 = vmatprep.subr.mxu0 0.0
        %422 = vmatpush1.msra.mxu0 0.0
        %423 = vmatprep.subr.mxu0 0.0
        %424 = vmatpush1.msra.mxu0 0.0
        %425 = vmatprep.subr.mxu0 0.0
        %426 = vmatpush1.msra.mxu0 0.0
        %427 = vmatprep.subr.mxu0 0.0
        %428 = vmatpush1.msra.mxu0 0.0
        %429 = vmatprep.subr.mxu0 0.0
        %430 = vmatpush1.msra.mxu0 0.0
        %431 = vmatprep.mubr.f32.mxu0 0.0
        %432 = vmatmul.mubr.f32.gmra.mrb[0].mxu0 %v341
        %v433 = vpop.f32.mrb[0].mxu0
        %v434 = vadd.f32 %v302, %v433
        %v435 = vpop.f32.mrb[0].mxu0
        %436 = vmatprep.mubr.f32.mxu0 0.0
        %437 = vmatmul.mubr.f32.gmra.mrb[0].mxu0 %v344
        %v438 = vpop.f32.mrb[0].mxu0
        %v439 = vadd.f32 %v307, %v438
        %v440 = vpop.f32.mrb[0].mxu0
        %441 = vmatprep.mubr.f32.mxu0 0.0
        %442 = vmatmul.mubr.f32.gmra.mrb[0].mxu0 %v347
        %v443 = vpop.f32.mrb[0].mxu0
        %v444 = vadd.f32 %v312, %v443
        %v445 = vpop.f32.mrb[0].mxu0
        %446 = vmatprep.mubr.f32.mxu0 0.0
        %447 = vmatmul.mubr.f32.gmra.mrb[0].mxu0 %v350
        %v448 = vpop.f32.mrb[0].mxu0
        %v449 = vadd.f32 %v317, %v448
        %v450 = vpop.f32.mrb[0].mxu0
        %451 = vmatprep.mubr.f32.mxu0 0.0
        %452 = vmatmul.mubr.f32.gmra.mrb[0].mxu0 %v353
        %v453 = vpop.f32.mrb[0].mxu0
        %v454 = vadd.f32 %v322, %v453
        %v455 = vpop.f32.mrb[0].mxu0
        %456 = vmatprep.mubr.f32.mxu0 0.0
        %457 = vmatmul.mubr.f32.gmra.mrb[0].mxu0 %v356
        %v458 = vpop.f32.mrb[0].mxu0
        %v459 = vadd.f32 %v327, %v458
        %v460 = vpop.f32.mrb[0].mxu0
        %461 = vmatprep.mubr.f32.mxu0 0.0
        %462 = vmatmul.mubr.f32.gmra.mrb[0].mxu0 %v359
        %v463 = vpop.f32.mrb[0].mxu0
        %v464 = vadd.f32 %v332, %v463
        %v465 = vpop.f32.mrb[0].mxu0
        %466 = vmatprep.mubr.f32.mxu0 0.0
        %467 = vmatmul.mubr.f32.gmra.mrb[0].mxu0 %v362
        %v468 = vpop.f32.mrb[0].mxu0
        %v469 = vadd.f32 %v337, %v468
        %v470 = vpop.f32.mrb[0].mxu0
        %471 = vdwg.mxu0
        %s472 = sadd.s32 %s184, 2
        %s473 = scalar_lea.vmem %s165, %s472
        %v474 = vld [vmem:[%s473] sm:$0xff]
        %v475 = vld [vmem:[%s473 + $0x8] sm:$0xff]
        %v476 = vld [vmem:[%s473 + $0x10] sm:$0xff]
        %v477 = vld [vmem:[%s473 + $0x18] sm:$0xff]
        %v478 = vld [vmem:[%s473 + $0x20] sm:$0xff]
        %v479 = vld [vmem:[%s473 + $0x28] sm:$0xff]
        %v480 = vld [vmem:[%s473 + $0x30] sm:$0xff]
        %v481 = vld [vmem:[%s473 + $0x38] sm:$0xff]
        %v482 = vld [vmem:[%s1 + $0x6] sm:$0x7]
        %v484 = vsel %vm206, %v474, 0
        %v487 = vsel %vm206, %v475, 0
        %v490 = vsel %vm206, %v476, 0
        %v493 = vsel %vm206, %v477, 0
        %v496 = vsel %vm206, %v478, 0
        %v499 = vsel %vm206, %v479, 0
        %v502 = vsel %vm206, %v480, 0
        %v505 = vsel %vm206, %v481, 0
        %v508 = vsel %vm231, %v482, 0
        %510 = vmatprep.subr.mxu0 0.0
        %511 = vmatpush1.msra.mxu0 %v508
        %512 = vmatprep.subr.mxu0 0.0
        %513 = vmatpush1.msra.mxu0 0.0
        %514 = vmatprep.subr.mxu0 0.0
        %515 = vmatpush1.msra.mxu0 0.0
        %516 = vmatprep.subr.mxu0 0.0
        %517 = vmatpush1.msra.mxu0 0.0
        %518 = vmatprep.subr.mxu0 0.0
        %519 = vmatpush1.msra.mxu0 0.0
        %520 = vmatprep.subr.mxu0 0.0
        %521 = vmatpush1.msra.mxu0 0.0
        %522 = vmatprep.subr.mxu0 0.0
        %523 = vmatpush1.msra.mxu0 0.0
        %524 = vmatprep.subr.mxu0 0.0
        %525 = vmatpush1.msra.mxu0 0.0
        %526 = vmatprep.subr.mxu0 0.0
        %527 = vmatpush1.msra.mxu0 0.0
        %528 = vmatprep.subr.mxu0 0.0
        %529 = vmatpush1.msra.mxu0 0.0
        %530 = vmatprep.subr.mxu0 0.0
        %531 = vmatpush1.msra.mxu0 0.0
        %532 = vmatprep.subr.mxu0 0.0
        %533 = vmatpush1.msra.mxu0 0.0
        %534 = vmatprep.subr.mxu0 0.0
        %535 = vmatpush1.msra.mxu0 0.0
        %536 = vmatprep.subr.mxu0 0.0
        %537 = vmatpush1.msra.mxu0 0.0
        %538 = vmatprep.subr.mxu0 0.0
        %539 = vmatpush1.msra.mxu0 0.0
        %540 = vmatprep.subr.mxu0 0.0
        %541 = vmatpush1.msra.mxu0 0.0
        %542 = vmatprep.subr.mxu0 0.0
        %543 = vmatpush1.msra.mxu0 0.0
        %544 = vmatprep.subr.mxu0 0.0
        %545 = vmatpush1.msra.mxu0 0.0
        %546 = vmatprep.subr.mxu0 0.0
        %547 = vmatpush1.msra.mxu0 0.0
        %548 = vmatprep.subr.mxu0 0.0
        %549 = vmatpush1.msra.mxu0 0.0
        %550 = vmatprep.subr.mxu0 0.0
        %551 = vmatpush1.msra.mxu0 0.0
        %552 = vmatprep.subr.mxu0 0.0
        %553 = vmatpush1.msra.mxu0 0.0
        %554 = vmatprep.subr.mxu0 0.0
        %555 = vmatpush1.msra.mxu0 0.0
        %556 = vmatprep.subr.mxu0 0.0
        %557 = vmatpush1.msra.mxu0 0.0
        %558 = vmatprep.subr.mxu0 0.0
        %559 = vmatpush1.msra.mxu0 0.0
        %560 = vmatprep.subr.mxu0 0.0
        %561 = vmatpush1.msra.mxu0 0.0
        %562 = vmatprep.subr.mxu0 0.0
        %563 = vmatpush1.msra.mxu0 0.0
        %564 = vmatprep.subr.mxu0 0.0
        %565 = vmatpush1.msra.mxu0 0.0
        %566 = vmatprep.subr.mxu0 0.0
        %567 = vmatpush1.msra.mxu0 0.0
        %568 = vmatprep.subr.mxu0 0.0
        %569 = vmatpush1.msra.mxu0 0.0
        %570 = vmatprep.subr.mxu0 0.0
        %571 = vmatpush1.msra.mxu0 0.0
        %572 = vmatprep.subr.mxu0 0.0
        %573 = vmatpush1.msra.mxu0 0.0
        %574 = vmatprep.mubr.f32.mxu0 0.0
        %575 = vmatmul.mubr.f32.gmra.mrb[0].mxu0 %v484
        %v576 = vpop.f32.mrb[0].mxu0
        %v577 = vadd.f32 0.0, %v576
        %v578 = vpop.f32.mrb[0].mxu0
        %579 = vmatprep.mubr.f32.mxu0 0.0
        %580 = vmatmul.mubr.f32.gmra.mrb[0].mxu0 %v487
        %v581 = vpop.f32.mrb[0].mxu0
        %v582 = vadd.f32 0.0, %v581
        %v583 = vpop.f32.mrb[0].mxu0
        %584 = vmatprep.mubr.f32.mxu0 0.0
        %585 = vmatmul.mubr.f32.gmra.mrb[0].mxu0 %v490
        %v586 = vpop.f32.mrb[0].mxu0
        %v587 = vadd.f32 0.0, %v586
        %v588 = vpop.f32.mrb[0].mxu0
        %589 = vmatprep.mubr.f32.mxu0 0.0
        %590 = vmatmul.mubr.f32.gmra.mrb[0].mxu0 %v493
        %v591 = vpop.f32.mrb[0].mxu0
        %v592 = vadd.f32 0.0, %v591
        %v593 = vpop.f32.mrb[0].mxu0
        %594 = vmatprep.mubr.f32.mxu0 0.0
        %595 = vmatmul.mubr.f32.gmra.mrb[0].mxu0 %v496
        %v596 = vpop.f32.mrb[0].mxu0
        %v597 = vadd.f32 0.0, %v596
        %v598 = vpop.f32.mrb[0].mxu0
        %599 = vmatprep.mubr.f32.mxu0 0.0
        %600 = vmatmul.mubr.f32.gmra.mrb[0].mxu0 %v499
        %v601 = vpop.f32.mrb[0].mxu0
        %v602 = vadd.f32 0.0, %v601
        %v603 = vpop.f32.mrb[0].mxu0
        %604 = vmatprep.mubr.f32.mxu0 0.0
        %605 = vmatmul.mubr.f32.gmra.mrb[0].mxu0 %v502
        %v606 = vpop.f32.mrb[0].mxu0
        %v607 = vadd.f32 0.0, %v606
        %v608 = vpop.f32.mrb[0].mxu0
        %609 = vmatprep.mubr.f32.mxu0 0.0
        %610 = vmatmul.mubr.f32.gmra.mrb[0].mxu0 %v505
        %v611 = vpop.f32.mrb[0].mxu0
        %v612 = vadd.f32 0.0, %v611
        %v613 = vpop.f32.mrb[0].mxu0
        %614 = vdwg.mxu0
        %v615 = vadd.f32 %v434, %v577
        %v616 = vadd.f32 %v439, %v582
        %v617 = vadd.f32 %v444, %v587
        %v618 = vadd.f32 %v449, %v592
        %v619 = vadd.f32 %v454, %v597
        %v620 = vadd.f32 %v459, %v602
        %v621 = vadd.f32 %v464, %v607
        %v622 = vadd.f32 %v469, %v612
        %s623 = sadd.s32 %s184, 3
        %s624 = scalar_lea.vmem %s165, %s623
        %v625 = vld [vmem:[%s624] sm:$0xff]
        %v626 = vld [vmem:[%s624 + $0x8] sm:$0xff]
        %v627 = vld [vmem:[%s624 + $0x10] sm:$0xff]
        %v628 = vld [vmem:[%s624 + $0x18] sm:$0xff]
        %v629 = vld [vmem:[%s624 + $0x20] sm:$0xff]
        %v630 = vld [vmem:[%s624 + $0x28] sm:$0xff]
        %v631 = vld [vmem:[%s624 + $0x30] sm:$0xff]
        %v632 = vld [vmem:[%s624 + $0x38] sm:$0xff]
        %v633 = vld [vmem:[%s1 + $0x9] sm:$0x7]
        %v635 = vsel %vm206, %v625, 0
        %v638 = vsel %vm206, %v626, 0
        %v641 = vsel %vm206, %v627, 0
        %v644 = vsel %vm206, %v628, 0
        %v647 = vsel %vm206, %v629, 0
        %v650 = vsel %vm206, %v630, 0
        %v653 = vsel %vm206, %v631, 0
        %v656 = vsel %vm206, %v632, 0
        %v659 = vsel %vm231, %v633, 0
        %661 = vmatprep.subr.mxu0 0.0
        %662 = vmatpush1.msra.mxu0 %v659
        %663 = vmatprep.subr.mxu0 0.0
        %664 = vmatpush1.msra.mxu0 0.0
        %665 = vmatprep.subr.mxu0 0.0
        %666 = vmatpush1.msra.mxu0 0.0
        %667 = vmatprep.subr.mxu0 0.0
        %668 = vmatpush1.msra.mxu0 0.0
        %669 = vmatprep.subr.mxu0 0.0
        %670 = vmatpush1.msra.mxu0 0.0
        %671 = vmatprep.subr.mxu0 0.0
        %672 = vmatpush1.msra.mxu0 0.0
        %673 = vmatprep.subr.mxu0 0.0
        %674 = vmatpush1.msra.mxu0 0.0
        %675 = vmatprep.subr.mxu0 0.0
        %676 = vmatpush1.msra.mxu0 0.0
        %677 = vmatprep.subr.mxu0 0.0
        %678 = vmatpush1.msra.mxu0 0.0
        %679 = vmatprep.subr.mxu0 0.0
        %680 = vmatpush1.msra.mxu0 0.0
        %681 = vmatprep.subr.mxu0 0.0
        %682 = vmatpush1.msra.mxu0 0.0
        %683 = vmatprep.subr.mxu0 0.0
        %684 = vmatpush1.msra.mxu0 0.0
        %685 = vmatprep.subr.mxu0 0.0
        %686 = vmatpush1.msra.mxu0 0.0
        %687 = vmatprep.subr.mxu0 0.0
        %688 = vmatpush1.msra.mxu0 0.0
        %689 = vmatprep.subr.mxu0 0.0
        %690 = vmatpush1.msra.mxu0 0.0
        %691 = vmatprep.subr.mxu0 0.0
        %692 = vmatpush1.msra.mxu0 0.0
        %693 = vmatprep.subr.mxu0 0.0
        %694 = vmatpush1.msra.mxu0 0.0
        %695 = vmatprep.subr.mxu0 0.0
        %696 = vmatpush1.msra.mxu0 0.0
        %697 = vmatprep.subr.mxu0 0.0
        %698 = vmatpush1.msra.mxu0 0.0
        %699 = vmatprep.subr.mxu0 0.0
        %700 = vmatpush1.msra.mxu0 0.0
        %701 = vmatprep.subr.mxu0 0.0
        %702 = vmatpush1.msra.mxu0 0.0
        %703 = vmatprep.subr.mxu0 0.0
        %704 = vmatpush1.msra.mxu0 0.0
        %705 = vmatprep.subr.mxu0 0.0
        %706 = vmatpush1.msra.mxu0 0.0
        %707 = vmatprep.subr.mxu0 0.0
        %708 = vmatpush1.msra.mxu0 0.0
        %709 = vmatprep.subr.mxu0 0.0
        %710 = vmatpush1.msra.mxu0 0.0
        %711 = vmatprep.subr.mxu0 0.0
        %712 = vmatpush1.msra.mxu0 0.0
        %713 = vmatprep.subr.mxu0 0.0
        %714 = vmatpush1.msra.mxu0 0.0
        %715 = vmatprep.subr.mxu0 0.0
        %716 = vmatpush1.msra.mxu0 0.0
        %717 = vmatprep.subr.mxu0 0.0
        %718 = vmatpush1.msra.mxu0 0.0
        %719 = vmatprep.subr.mxu0 0.0
        %720 = vmatpush1.msra.mxu0 0.0
        %721 = vmatprep.subr.mxu0 0.0
        %722 = vmatpush1.msra.mxu0 0.0
        %723 = vmatprep.subr.mxu0 0.0
        %724 = vmatpush1.msra.mxu0 0.0
        %725 = vmatprep.mubr.f32.mxu0 0.0
        %726 = vmatmul.mubr.f32.gmra.mrb[0].mxu0 %v635
        %v727 = vpop.f32.mrb[0].mxu0
        %v728 = vadd.f32 0.0, %v727
        %v729 = vpop.f32.mrb[0].mxu0
        %730 = vmatprep.mubr.f32.mxu0 0.0
        %731 = vmatmul.mubr.f32.gmra.mrb[0].mxu0 %v638
        %v732 = vpop.f32.mrb[0].mxu0
        %v733 = vadd.f32 0.0, %v732
        %v734 = vpop.f32.mrb[0].mxu0
        %735 = vmatprep.mubr.f32.mxu0 0.0
        %736 = vmatmul.mubr.f32.gmra.mrb[0].mxu0 %v641
        %v737 = vpop.f32.mrb[0].mxu0
        %v738 = vadd.f32 0.0, %v737
        %v739 = vpop.f32.mrb[0].mxu0
        %740 = vmatprep.mubr.f32.mxu0 0.0
        %741 = vmatmul.mubr.f32.gmra.mrb[0].mxu0 %v644
        %v742 = vpop.f32.mrb[0].mxu0
        %v743 = vadd.f32 0.0, %v742
        %v744 = vpop.f32.mrb[0].mxu0
        %745 = vmatprep.mubr.f32.mxu0 0.0
        %746 = vmatmul.mubr.f32.gmra.mrb[0].mxu0 %v647
        %v747 = vpop.f32.mrb[0].mxu0
        %v748 = vadd.f32 0.0, %v747
        %v749 = vpop.f32.mrb[0].mxu0
        %750 = vmatprep.mubr.f32.mxu0 0.0
        %751 = vmatmul.mubr.f32.gmra.mrb[0].mxu0 %v650
        %v752 = vpop.f32.mrb[0].mxu0
        %v753 = vadd.f32 0.0, %v752
        %v754 = vpop.f32.mrb[0].mxu0
        %755 = vmatprep.mubr.f32.mxu0 0.0
        %756 = vmatmul.mubr.f32.gmra.mrb[0].mxu0 %v653
        %v757 = vpop.f32.mrb[0].mxu0
        %v758 = vadd.f32 0.0, %v757
        %v759 = vpop.f32.mrb[0].mxu0
        %760 = vmatprep.mubr.f32.mxu0 0.0
        %761 = vmatmul.mubr.f32.gmra.mrb[0].mxu0 %v656
        %v762 = vpop.f32.mrb[0].mxu0
        %v763 = vadd.f32 0.0, %v762
        %v764 = vpop.f32.mrb[0].mxu0
        %765 = vdwg.mxu0
        %v766 = vadd.f32 %v615, %v728
        %v767 = vadd.f32 %v616, %v733
        %v768 = vadd.f32 %v617, %v738
        %v769 = vadd.f32 %v618, %v743
        %v770 = vadd.f32 %v619, %v748
        %v771 = vadd.f32 %v620, %v753
        %v772 = vadd.f32 %v621, %v758
        %v773 = vadd.f32 %v622, %v763
        %s774 = sadd.s32 %s184, 4
        %s775 = scalar_lea.vmem %s165, %s774
        %v776 = vld [vmem:[%s775] sm:$0xff]
        %v777 = vld [vmem:[%s775 + $0x8] sm:$0xff]
        %v778 = vld [vmem:[%s775 + $0x10] sm:$0xff]
        %v779 = vld [vmem:[%s775 + $0x18] sm:$0xff]
        %v780 = vld [vmem:[%s775 + $0x20] sm:$0xff]
        %v781 = vld [vmem:[%s775 + $0x28] sm:$0xff]
        %v782 = vld [vmem:[%s775 + $0x30] sm:$0xff]
        %v783 = vld [vmem:[%s775 + $0x38] sm:$0xff]
        %v784 = vld [vmem:[%s1 + $0xc] sm:$0x7]
        %v786 = vsel %vm206, %v776, 0
        %v789 = vsel %vm206, %v777, 0
        %v792 = vsel %vm206, %v778, 0
        %v795 = vsel %vm206, %v779, 0
        %v798 = vsel %vm206, %v780, 0
        %v801 = vsel %vm206, %v781, 0
        %v804 = vsel %vm206, %v782, 0
        %v807 = vsel %vm206, %v783, 0
        %v810 = vsel %vm231, %v784, 0
        %812 = vmatprep.subr.mxu0 0.0
        %813 = vmatpush1.msra.mxu0 %v810
        %814 = vmatprep.subr.mxu0 0.0
        %815 = vmatpush1.msra.mxu0 0.0
        %816 = vmatprep.subr.mxu0 0.0
        %817 = vmatpush1.msra.mxu0 0.0
        %818 = vmatprep.subr.mxu0 0.0
        %819 = vmatpush1.msra.mxu0 0.0
        %820 = vmatprep.subr.mxu0 0.0
        %821 = vmatpush1.msra.mxu0 0.0
        %822 = vmatprep.subr.mxu0 0.0
        %823 = vmatpush1.msra.mxu0 0.0
        %824 = vmatprep.subr.mxu0 0.0
        %825 = vmatpush1.msra.mxu0 0.0
        %826 = vmatprep.subr.mxu0 0.0
        %827 = vmatpush1.msra.mxu0 0.0
        %828 = vmatprep.subr.mxu0 0.0
        %829 = vmatpush1.msra.mxu0 0.0
        %830 = vmatprep.subr.mxu0 0.0
        %831 = vmatpush1.msra.mxu0 0.0
        %832 = vmatprep.subr.mxu0 0.0
        %833 = vmatpush1.msra.mxu0 0.0
        %834 = vmatprep.subr.mxu0 0.0
        %835 = vmatpush1.msra.mxu0 0.0
        %836 = vmatprep.subr.mxu0 0.0
        %837 = vmatpush1.msra.mxu0 0.0
        %838 = vmatprep.subr.mxu0 0.0
        %839 = vmatpush1.msra.mxu0 0.0
        %840 = vmatprep.subr.mxu0 0.0
        %841 = vmatpush1.msra.mxu0 0.0
        %842 = vmatprep.subr.mxu0 0.0
        %843 = vmatpush1.msra.mxu0 0.0
        %844 = vmatprep.subr.mxu0 0.0
        %845 = vmatpush1.msra.mxu0 0.0
        %846 = vmatprep.subr.mxu0 0.0
        %847 = vmatpush1.msra.mxu0 0.0
        %848 = vmatprep.subr.mxu0 0.0
        %849 = vmatpush1.msra.mxu0 0.0
        %850 = vmatprep.subr.mxu0 0.0
        %851 = vmatpush1.msra.mxu0 0.0
        %852 = vmatprep.subr.mxu0 0.0
        %853 = vmatpush1.msra.mxu0 0.0
        %854 = vmatprep.subr.mxu0 0.0
        %855 = vmatpush1.msra.mxu0 0.0
        %856 = vmatprep.subr.mxu0 0.0
        %857 = vmatpush1.msra.mxu0 0.0
        %858 = vmatprep.subr.mxu0 0.0
        %859 = vmatpush1.msra.mxu0 0.0
        %860 = vmatprep.subr.mxu0 0.0
        %861 = vmatpush1.msra.mxu0 0.0
        %862 = vmatprep.subr.mxu0 0.0
        %863 = vmatpush1.msra.mxu0 0.0
        %864 = vmatprep.subr.mxu0 0.0
        %865 = vmatpush1.msra.mxu0 0.0
        %866 = vmatprep.subr.mxu0 0.0
        %867 = vmatpush1.msra.mxu0 0.0
        %868 = vmatprep.subr.mxu0 0.0
        %869 = vmatpush1.msra.mxu0 0.0
        %870 = vmatprep.subr.mxu0 0.0
        %871 = vmatpush1.msra.mxu0 0.0
        %872 = vmatprep.subr.mxu0 0.0
        %873 = vmatpush1.msra.mxu0 0.0
        %874 = vmatprep.subr.mxu0 0.0
        %875 = vmatpush1.msra.mxu0 0.0
        %876 = vmatprep.mubr.f32.mxu0 0.0
        %877 = vmatmul.mubr.f32.gmra.mrb[0].mxu0 %v786
        %v878 = vpop.f32.mrb[0].mxu0
        %v879 = vadd.f32 0.0, %v878
        %v880 = vpop.f32.mrb[0].mxu0
        %881 = vmatprep.mubr.f32.mxu0 0.0
        %882 = vmatmul.mubr.f32.gmra.mrb[0].mxu0 %v789
        %v883 = vpop.f32.mrb[0].mxu0
        %v884 = vadd.f32 0.0, %v883
        %v885 = vpop.f32.mrb[0].mxu0
        %886 = vmatprep.mubr.f32.mxu0 0.0
        %887 = vmatmul.mubr.f32.gmra.mrb[0].mxu0 %v792
        %v888 = vpop.f32.mrb[0].mxu0
        %v889 = vadd.f32 0.0, %v888
        %v890 = vpop.f32.mrb[0].mxu0
        %891 = vmatprep.mubr.f32.mxu0 0.0
        %892 = vmatmul.mubr.f32.gmra.mrb[0].mxu0 %v795
        %v893 = vpop.f32.mrb[0].mxu0
        %v894 = vadd.f32 0.0, %v893
        %v895 = vpop.f32.mrb[0].mxu0
        %896 = vmatprep.mubr.f32.mxu0 0.0
        %897 = vmatmul.mubr.f32.gmra.mrb[0].mxu0 %v798
        %v898 = vpop.f32.mrb[0].mxu0
        %v899 = vadd.f32 0.0, %v898
        %v900 = vpop.f32.mrb[0].mxu0
        %901 = vmatprep.mubr.f32.mxu0 0.0
        %902 = vmatmul.mubr.f32.gmra.mrb[0].mxu0 %v801
        %v903 = vpop.f32.mrb[0].mxu0
        %v904 = vadd.f32 0.0, %v903
        %v905 = vpop.f32.mrb[0].mxu0
        %906 = vmatprep.mubr.f32.mxu0 0.0
        %907 = vmatmul.mubr.f32.gmra.mrb[0].mxu0 %v804
        %v908 = vpop.f32.mrb[0].mxu0
        %v909 = vadd.f32 0.0, %v908
        %v910 = vpop.f32.mrb[0].mxu0
        %911 = vmatprep.mubr.f32.mxu0 0.0
        %912 = vmatmul.mubr.f32.gmra.mrb[0].mxu0 %v807
        %v913 = vpop.f32.mrb[0].mxu0
        %v914 = vadd.f32 0.0, %v913
        %v915 = vpop.f32.mrb[0].mxu0
        %916 = vdwg.mxu0
        %v917 = vadd.f32 %v766, %v879
        %v918 = vadd.f32 %v767, %v884
        %v919 = vadd.f32 %v768, %v889
        %v920 = vadd.f32 %v769, %v894
        %v921 = vadd.f32 %v770, %v899
        %v922 = vadd.f32 %v771, %v904
        %v923 = vadd.f32 %v772, %v909
        %v924 = vadd.f32 %v773, %v914
        %s925 = sadd.s32 %s184, 32
        %s926 = scalar_lea.vmem %s165, %s925
        %v927 = vld [vmem:[%s926] sm:$0xff]
        %v928 = vld [vmem:[%s926 + $0x8] sm:$0xff]
        %v929 = vld [vmem:[%s926 + $0x10] sm:$0xff]
        %v930 = vld [vmem:[%s926 + $0x18] sm:$0xff]
        %v931 = vld [vmem:[%s926 + $0x20] sm:$0xff]
        %v932 = vld [vmem:[%s926 + $0x28] sm:$0xff]
        %v933 = vld [vmem:[%s926 + $0x30] sm:$0xff]
        %v934 = vld [vmem:[%s926 + $0x38] sm:$0xff]
        %v935 = vld [vmem:[%s1 + $0xf] sm:$0x7]
        %v937 = vsel %vm206, %v927, 0
        %v940 = vsel %vm206, %v928, 0
        %v943 = vsel %vm206, %v929, 0
        %v946 = vsel %vm206, %v930, 0
        %v949 = vsel %vm206, %v931, 0
        %v952 = vsel %vm206, %v932, 0
        %v955 = vsel %vm206, %v933, 0
        %v958 = vsel %vm206, %v934, 0
        %v961 = vsel %vm231, %v935, 0
        %963 = vmatprep.subr.mxu0 0.0
        %964 = vmatpush1.msra.mxu0 %v961
        %965 = vmatprep.subr.mxu0 0.0
        %966 = vmatpush1.msra.mxu0 0.0
        %967 = vmatprep.subr.mxu0 0.0
        %968 = vmatpush1.msra.mxu0 0.0
        %969 = vmatprep.subr.mxu0 0.0
        %970 = vmatpush1.msra.mxu0 0.0
        %971 = vmatprep.subr.mxu0 0.0
        %972 = vmatpush1.msra.mxu0 0.0
        %973 = vmatprep.subr.mxu0 0.0
        %974 = vmatpush1.msra.mxu0 0.0
        %975 = vmatprep.subr.mxu0 0.0
        %976 = vmatpush1.msra.mxu0 0.0
        %977 = vmatprep.subr.mxu0 0.0
        %978 = vmatpush1.msra.mxu0 0.0
        %979 = vmatprep.subr.mxu0 0.0
        %980 = vmatpush1.msra.mxu0 0.0
        %981 = vmatprep.subr.mxu0 0.0
        %982 = vmatpush1.msra.mxu0 0.0
        %983 = vmatprep.subr.mxu0 0.0
        %984 = vmatpush1.msra.mxu0 0.0
        %985 = vmatprep.subr.mxu0 0.0
        %986 = vmatpush1.msra.mxu0 0.0
        %987 = vmatprep.subr.mxu0 0.0
        %988 = vmatpush1.msra.mxu0 0.0
        %989 = vmatprep.subr.mxu0 0.0
        %990 = vmatpush1.msra.mxu0 0.0
        %991 = vmatprep.subr.mxu0 0.0
        %992 = vmatpush1.msra.mxu0 0.0
        %993 = vmatprep.subr.mxu0 0.0
        %994 = vmatpush1.msra.mxu0 0.0
        %995 = vmatprep.subr.mxu0 0.0
        %996 = vmatpush1.msra.mxu0 0.0
        %997 = vmatprep.subr.mxu0 0.0
        %998 = vmatpush1.msra.mxu0 0.0
        %999 = vmatprep.subr.mxu0 0.0
        %1000 = vmatpush1.msra.mxu0 0.0
        %1001 = vmatprep.subr.mxu0 0.0
        %1002 = vmatpush1.msra.mxu0 0.0
        %1003 = vmatprep.subr.mxu0 0.0
        %1004 = vmatpush1.msra.mxu0 0.0
        %1005 = vmatprep.subr.mxu0 0.0
        %1006 = vmatpush1.msra.mxu0 0.0
        %1007 = vmatprep.subr.mxu0 0.0
        %1008 = vmatpush1.msra.mxu0 0.0
        %1009 = vmatprep.subr.mxu0 0.0
        %1010 = vmatpush1.msra.mxu0 0.0
        %1011 = vmatprep.subr.mxu0 0.0
        %1012 = vmatpush1.msra.mxu0 0.0
        %1013 = vmatprep.subr.mxu0 0.0
        %1014 = vmatpush1.msra.mxu0 0.0
        %1015 = vmatprep.subr.mxu0 0.0
        %1016 = vmatpush1.msra.mxu0 0.0
        %1017 = vmatprep.subr.mxu0 0.0
        %1018 = vmatpush1.msra.mxu0 0.0
        %1019 = vmatprep.subr.mxu0 0.0
        %1020 = vmatpush1.msra.mxu0 0.0
        %1021 = vmatprep.subr.mxu0 0.0
        %1022 = vmatpush1.msra.mxu0 0.0
        %1023 = vmatprep.subr.mxu0 0.0
        %1024 = vmatpush1.msra.mxu0 0.0
        %1025 = vmatprep.subr.mxu0 0.0
        %1026 = vmatpush1.msra.mxu0 0.0
        %1027 = vmatprep.mubr.f32.mxu0 0.0
        %1028 = vmatmul.mubr.f32.gmra.mrb[0].mxu0 %v937
        %v1029 = vpop.f32.mrb[0].mxu0
        %v1030 = vadd.f32 0.0, %v1029
        %v1031 = vpop.f32.mrb[0].mxu0
        %1032 = vmatprep.mubr.f32.mxu0 0.0
        %1033 = vmatmul.mubr.f32.gmra.mrb[0].mxu0 %v940
        %v1034 = vpop.f32.mrb[0].mxu0
        %v1035 = vadd.f32 0.0, %v1034
        %v1036 = vpop.f32.mrb[0].mxu0
        %1037 = vmatprep.mubr.f32.mxu0 0.0
        %1038 = vmatmul.mubr.f32.gmra.mrb[0].mxu0 %v943
        %v1039 = vpop.f32.mrb[0].mxu0
        %v1040 = vadd.f32 0.0, %v1039
        %v1041 = vpop.f32.mrb[0].mxu0
        %1042 = vmatprep.mubr.f32.mxu0 0.0
        %1043 = vmatmul.mubr.f32.gmra.mrb[0].mxu0 %v946
        %v1044 = vpop.f32.mrb[0].mxu0
        %v1045 = vadd.f32 0.0, %v1044
        %v1046 = vpop.f32.mrb[0].mxu0
        %1047 = vmatprep.mubr.f32.mxu0 0.0
        %1048 = vmatmul.mubr.f32.gmra.mrb[0].mxu0 %v949
        %v1049 = vpop.f32.mrb[0].mxu0
        %v1050 = vadd.f32 0.0, %v1049
        %v1051 = vpop.f32.mrb[0].mxu0
        %1052 = vmatprep.mubr.f32.mxu0 0.0
        %1053 = vmatmul.mubr.f32.gmra.mrb[0].mxu0 %v952
        %v1054 = vpop.f32.mrb[0].mxu0
        %v1055 = vadd.f32 0.0, %v1054
        %v1056 = vpop.f32.mrb[0].mxu0
        %1057 = vmatprep.mubr.f32.mxu0 0.0
        %1058 = vmatmul.mubr.f32.gmra.mrb[0].mxu0 %v955
        %v1059 = vpop.f32.mrb[0].mxu0
        %v1060 = vadd.f32 0.0, %v1059
        %v1061 = vpop.f32.mrb[0].mxu0
        %1062 = vmatprep.mubr.f32.mxu0 0.0
        %1063 = vmatmul.mubr.f32.gmra.mrb[0].mxu0 %v958
        %v1064 = vpop.f32.mrb[0].mxu0
        %v1065 = vadd.f32 0.0, %v1064
        %v1066 = vpop.f32.mrb[0].mxu0
        %1067 = vdwg.mxu0
        %v1068 = vadd.f32 %v917, %v1030
        %v1069 = vadd.f32 %v918, %v1035
        %v1070 = vadd.f32 %v919, %v1040
        %v1071 = vadd.f32 %v920, %v1045
        %v1072 = vadd.f32 %v921, %v1050
        %v1073 = vadd.f32 %v922, %v1055
        %v1074 = vadd.f32 %v923, %v1060
        %v1075 = vadd.f32 %v924, %v1065
        %s1076 = sadd.s32 %s184, 33
        %s1077 = scalar_lea.vmem %s165, %s1076
        %v1078 = vld [vmem:[%s1077] sm:$0xff]
        %v1079 = vld [vmem:[%s1077 + $0x8] sm:$0xff]
        %v1080 = vld [vmem:[%s1077 + $0x10] sm:$0xff]
        %v1081 = vld [vmem:[%s1077 + $0x18] sm:$0xff]
        %v1082 = vld [vmem:[%s1077 + $0x20] sm:$0xff]
        %v1083 = vld [vmem:[%s1077 + $0x28] sm:$0xff]
        %v1084 = vld [vmem:[%s1077 + $0x30] sm:$0xff]
        %v1085 = vld [vmem:[%s1077 + $0x38] sm:$0xff]
        %v1086 = vld [vmem:[%s1 + $0x12] sm:$0x7]
        %v1088 = vsel %vm206, %v1078, 0
        %v1091 = vsel %vm206, %v1079, 0
        %v1094 = vsel %vm206, %v1080, 0
        %v1097 = vsel %vm206, %v1081, 0
        %v1100 = vsel %vm206, %v1082, 0
        %v1103 = vsel %vm206, %v1083, 0
        %v1106 = vsel %vm206, %v1084, 0
        %v1109 = vsel %vm206, %v1085, 0
        %v1112 = vsel %vm231, %v1086, 0
        %1114 = vmatprep.subr.mxu0 0.0
        %1115 = vmatpush1.msra.mxu0 %v1112
        %1116 = vmatprep.subr.mxu0 0.0
        %1117 = vmatpush1.msra.mxu0 0.0
        %1118 = vmatprep.subr.mxu0 0.0
        %1119 = vmatpush1.msra.mxu0 0.0
        %1120 = vmatprep.subr.mxu0 0.0
        %1121 = vmatpush1.msra.mxu0 0.0
        %1122 = vmatprep.subr.mxu0 0.0
        %1123 = vmatpush1.msra.mxu0 0.0
        %1124 = vmatprep.subr.mxu0 0.0
        %1125 = vmatpush1.msra.mxu0 0.0
        %1126 = vmatprep.subr.mxu0 0.0
        %1127 = vmatpush1.msra.mxu0 0.0
        %1128 = vmatprep.subr.mxu0 0.0
        %1129 = vmatpush1.msra.mxu0 0.0
        %1130 = vmatprep.subr.mxu0 0.0
        %1131 = vmatpush1.msra.mxu0 0.0
        %1132 = vmatprep.subr.mxu0 0.0
        %1133 = vmatpush1.msra.mxu0 0.0
        %1134 = vmatprep.subr.mxu0 0.0
        %1135 = vmatpush1.msra.mxu0 0.0
        %1136 = vmatprep.subr.mxu0 0.0
        %1137 = vmatpush1.msra.mxu0 0.0
        %1138 = vmatprep.subr.mxu0 0.0
        %1139 = vmatpush1.msra.mxu0 0.0
        %1140 = vmatprep.subr.mxu0 0.0
        %1141 = vmatpush1.msra.mxu0 0.0
        %1142 = vmatprep.subr.mxu0 0.0
        %1143 = vmatpush1.msra.mxu0 0.0
        %1144 = vmatprep.subr.mxu0 0.0
        %1145 = vmatpush1.msra.mxu0 0.0
        %1146 = vmatprep.subr.mxu0 0.0
        %1147 = vmatpush1.msra.mxu0 0.0
        %1148 = vmatprep.subr.mxu0 0.0
        %1149 = vmatpush1.msra.mxu0 0.0
        %1150 = vmatprep.subr.mxu0 0.0
        %1151 = vmatpush1.msra.mxu0 0.0
        %1152 = vmatprep.subr.mxu0 0.0
        %1153 = vmatpush1.msra.mxu0 0.0
        %1154 = vmatprep.subr.mxu0 0.0
        %1155 = vmatpush1.msra.mxu0 0.0
        %1156 = vmatprep.subr.mxu0 0.0
        %1157 = vmatpush1.msra.mxu0 0.0
        %1158 = vmatprep.subr.mxu0 0.0
        %1159 = vmatpush1.msra.mxu0 0.0
        %1160 = vmatprep.subr.mxu0 0.0
        %1161 = vmatpush1.msra.mxu0 0.0
        %1162 = vmatprep.subr.mxu0 0.0
        %1163 = vmatpush1.msra.mxu0 0.0
        %1164 = vmatprep.subr.mxu0 0.0
        %1165 = vmatpush1.msra.mxu0 0.0
        %1166 = vmatprep.subr.mxu0 0.0
        %1167 = vmatpush1.msra.mxu0 0.0
        %1168 = vmatprep.subr.mxu0 0.0
        %1169 = vmatpush1.msra.mxu0 0.0
        %1170 = vmatprep.subr.mxu0 0.0
        %1171 = vmatpush1.msra.mxu0 0.0
        %1172 = vmatprep.subr.mxu0 0.0
        %1173 = vmatpush1.msra.mxu0 0.0
        %1174 = vmatprep.subr.mxu0 0.0
        %1175 = vmatpush1.msra.mxu0 0.0
        %1176 = vmatprep.subr.mxu0 0.0
        %1177 = vmatpush1.msra.mxu0 0.0
        %1178 = vmatprep.mubr.f32.mxu0 0.0
        %1179 = vmatmul.mubr.f32.gmra.mrb[0].mxu0 %v1088
        %v1180 = vpop.f32.mrb[0].mxu0
        %v1181 = vadd.f32 0.0, %v1180
        %v1182 = vpop.f32.mrb[0].mxu0
        %1183 = vmatprep.mubr.f32.mxu0 0.0
        %1184 = vmatmul.mubr.f32.gmra.mrb[0].mxu0 %v1091
        %v1185 = vpop.f32.mrb[0].mxu0
        %v1186 = vadd.f32 0.0, %v1185
        %v1187 = vpop.f32.mrb[0].mxu0
        %1188 = vmatprep.mubr.f32.mxu0 0.0
        %1189 = vmatmul.mubr.f32.gmra.mrb[0].mxu0 %v1094
        %v1190 = vpop.f32.mrb[0].mxu0
        %v1191 = vadd.f32 0.0, %v1190
        %v1192 = vpop.f32.mrb[0].mxu0
        %1193 = vmatprep.mubr.f32.mxu0 0.0
        %1194 = vmatmul.mubr.f32.gmra.mrb[0].mxu0 %v1097
        %v1195 = vpop.f32.mrb[0].mxu0
        %v1196 = vadd.f32 0.0, %v1195
        %v1197 = vpop.f32.mrb[0].mxu0
        %1198 = vmatprep.mubr.f32.mxu0 0.0
        %1199 = vmatmul.mubr.f32.gmra.mrb[0].mxu0 %v1100
        %v1200 = vpop.f32.mrb[0].mxu0
        %v1201 = vadd.f32 0.0, %v1200
        %v1202 = vpop.f32.mrb[0].mxu0
        %1203 = vmatprep.mubr.f32.mxu0 0.0
        %1204 = vmatmul.mubr.f32.gmra.mrb[0].mxu0 %v1103
        %v1205 = vpop.f32.mrb[0].mxu0
        %v1206 = vadd.f32 0.0, %v1205
        %v1207 = vpop.f32.mrb[0].mxu0
        %1208 = vmatprep.mubr.f32.mxu0 0.0
        %1209 = vmatmul.mubr.f32.gmra.mrb[0].mxu0 %v1106
        %v1210 = vpop.f32.mrb[0].mxu0
        %v1211 = vadd.f32 0.0, %v1210
        %v1212 = vpop.f32.mrb[0].mxu0
        %1213 = vmatprep.mubr.f32.mxu0 0.0
        %1214 = vmatmul.mubr.f32.gmra.mrb[0].mxu0 %v1109
        %v1215 = vpop.f32.mrb[0].mxu0
        %v1216 = vadd.f32 0.0, %v1215
        %v1217 = vpop.f32.mrb[0].mxu0
        %1218 = vdwg.mxu0
        %v1219 = vadd.f32 %v1068, %v1181
        %v1220 = vadd.f32 %v1069, %v1186
        %v1221 = vadd.f32 %v1070, %v1191
        %v1222 = vadd.f32 %v1071, %v1196
        %v1223 = vadd.f32 %v1072, %v1201
        %v1224 = vadd.f32 %v1073, %v1206
        %v1225 = vadd.f32 %v1074, %v1211
        %v1226 = vadd.f32 %v1075, %v1216
        %s1227 = sadd.s32 %s184, 34
        %s1228 = scalar_lea.vmem %s165, %s1227
        %v1229 = vld [vmem:[%s1228] sm:$0xff]
        %v1230 = vld [vmem:[%s1228 + $0x8] sm:$0xff]
        %v1231 = vld [vmem:[%s1228 + $0x10] sm:$0xff]
        %v1232 = vld [vmem:[%s1228 + $0x18] sm:$0xff]
        %v1233 = vld [vmem:[%s1228 + $0x20] sm:$0xff]
        %v1234 = vld [vmem:[%s1228 + $0x28] sm:$0xff]
        %v1235 = vld [vmem:[%s1228 + $0x30] sm:$0xff]
        %v1236 = vld [vmem:[%s1228 + $0x38] sm:$0xff]
        %v1237 = vld [vmem:[%s1 + $0x15] sm:$0x7]
        %v1239 = vsel %vm206, %v1229, 0
        %v1242 = vsel %vm206, %v1230, 0
        %v1245 = vsel %vm206, %v1231, 0
        %v1248 = vsel %vm206, %v1232, 0
        %v1251 = vsel %vm206, %v1233, 0
        %v1254 = vsel %vm206, %v1234, 0
        %v1257 = vsel %vm206, %v1235, 0
        %v1260 = vsel %vm206, %v1236, 0
        %v1263 = vsel %vm231, %v1237, 0
        %1265 = vmatprep.subr.mxu0 0.0
        %1266 = vmatpush1.msra.mxu0 %v1263
        %1267 = vmatprep.subr.mxu0 0.0
        %1268 = vmatpush1.msra.mxu0 0.0
        %1269 = vmatprep.subr.mxu0 0.0
        %1270 = vmatpush1.msra.mxu0 0.0
        %1271 = vmatprep.subr.mxu0 0.0
        %1272 = vmatpush1.msra.mxu0 0.0
        %1273 = vmatprep.subr.mxu0 0.0
        %1274 = vmatpush1.msra.mxu0 0.0
        %1275 = vmatprep.subr.mxu0 0.0
        %1276 = vmatpush1.msra.mxu0 0.0
        %1277 = vmatprep.subr.mxu0 0.0
        %1278 = vmatpush1.msra.mxu0 0.0
        %1279 = vmatprep.subr.mxu0 0.0
        %1280 = vmatpush1.msra.mxu0 0.0
        %1281 = vmatprep.subr.mxu0 0.0
        %1282 = vmatpush1.msra.mxu0 0.0
        %1283 = vmatprep.subr.mxu0 0.0
        %1284 = vmatpush1.msra.mxu0 0.0
        %1285 = vmatprep.subr.mxu0 0.0
        %1286 = vmatpush1.msra.mxu0 0.0
        %1287 = vmatprep.subr.mxu0 0.0
        %1288 = vmatpush1.msra.mxu0 0.0
        %1289 = vmatprep.subr.mxu0 0.0
        %1290 = vmatpush1.msra.mxu0 0.0
        %1291 = vmatprep.subr.mxu0 0.0
        %1292 = vmatpush1.msra.mxu0 0.0
        %1293 = vmatprep.subr.mxu0 0.0
        %1294 = vmatpush1.msra.mxu0 0.0
        %1295 = vmatprep.subr.mxu0 0.0
        %1296 = vmatpush1.msra.mxu0 0.0
        %1297 = vmatprep.subr.mxu0 0.0
        %1298 = vmatpush1.msra.mxu0 0.0
        %1299 = vmatprep.subr.mxu0 0.0
        %1300 = vmatpush1.msra.mxu0 0.0
        %1301 = vmatprep.subr.mxu0 0.0
        %1302 = vmatpush1.msra.mxu0 0.0
        %1303 = vmatprep.subr.mxu0 0.0
        %1304 = vmatpush1.msra.mxu0 0.0
        %1305 = vmatprep.subr.mxu0 0.0
        %1306 = vmatpush1.msra.mxu0 0.0
        %1307 = vmatprep.subr.mxu0 0.0
        %1308 = vmatpush1.msra.mxu0 0.0
        %1309 = vmatprep.subr.mxu0 0.0
        %1310 = vmatpush1.msra.mxu0 0.0
        %1311 = vmatprep.subr.mxu0 0.0
        %1312 = vmatpush1.msra.mxu0 0.0
        %1313 = vmatprep.subr.mxu0 0.0
        %1314 = vmatpush1.msra.mxu0 0.0
        %1315 = vmatprep.subr.mxu0 0.0
        %1316 = vmatpush1.msra.mxu0 0.0
        %1317 = vmatprep.subr.mxu0 0.0
        %1318 = vmatpush1.msra.mxu0 0.0
        %1319 = vmatprep.subr.mxu0 0.0
        %1320 = vmatpush1.msra.mxu0 0.0
        %1321 = vmatprep.subr.mxu0 0.0
        %1322 = vmatpush1.msra.mxu0 0.0
        %1323 = vmatprep.subr.mxu0 0.0
        %1324 = vmatpush1.msra.mxu0 0.0
        %1325 = vmatprep.subr.mxu0 0.0
        %1326 = vmatpush1.msra.mxu0 0.0
        %1327 = vmatprep.subr.mxu0 0.0
        %1328 = vmatpush1.msra.mxu0 0.0
        %1329 = vmatprep.mubr.f32.mxu0 0.0
        %1330 = vmatmul.mubr.f32.gmra.mrb[0].mxu0 %v1239
        %v1331 = vpop.f32.mrb[0].mxu0
        %v1332 = vadd.f32 0.0, %v1331
        %v1333 = vpop.f32.mrb[0].mxu0
        %1334 = vmatprep.mubr.f32.mxu0 0.0
        %1335 = vmatmul.mubr.f32.gmra.mrb[0].mxu0 %v1242
        %v1336 = vpop.f32.mrb[0].mxu0
        %v1337 = vadd.f32 0.0, %v1336
        %v1338 = vpop.f32.mrb[0].mxu0
        %1339 = vmatprep.mubr.f32.mxu0 0.0
        %1340 = vmatmul.mubr.f32.gmra.mrb[0].mxu0 %v1245
        %v1341 = vpop.f32.mrb[0].mxu0
        %v1342 = vadd.f32 0.0, %v1341
        %v1343 = vpop.f32.mrb[0].mxu0
        %1344 = vmatprep.mubr.f32.mxu0 0.0
        %1345 = vmatmul.mubr.f32.gmra.mrb[0].mxu0 %v1248
        %v1346 = vpop.f32.mrb[0].mxu0
        %v1347 = vadd.f32 0.0, %v1346
        %v1348 = vpop.f32.mrb[0].mxu0
        %1349 = vmatprep.mubr.f32.mxu0 0.0
        %1350 = vmatmul.mubr.f32.gmra.mrb[0].mxu0 %v1251
        %v1351 = vpop.f32.mrb[0].mxu0
        %v1352 = vadd.f32 0.0, %v1351
        %v1353 = vpop.f32.mrb[0].mxu0
        %1354 = vmatprep.mubr.f32.mxu0 0.0
        %1355 = vmatmul.mubr.f32.gmra.mrb[0].mxu0 %v1254
        %v1356 = vpop.f32.mrb[0].mxu0
        %v1357 = vadd.f32 0.0, %v1356
        %v1358 = vpop.f32.mrb[0].mxu0
        %1359 = vmatprep.mubr.f32.mxu0 0.0
        %1360 = vmatmul.mubr.f32.gmra.mrb[0].mxu0 %v1257
        %v1361 = vpop.f32.mrb[0].mxu0
        %v1362 = vadd.f32 0.0, %v1361
        %v1363 = vpop.f32.mrb[0].mxu0
        %1364 = vmatprep.mubr.f32.mxu0 0.0
        %1365 = vmatmul.mubr.f32.gmra.mrb[0].mxu0 %v1260
        %v1366 = vpop.f32.mrb[0].mxu0
        %v1367 = vadd.f32 0.0, %v1366
        %v1368 = vpop.f32.mrb[0].mxu0
        %1369 = vdwg.mxu0
        %v1370 = vadd.f32 %v1219, %v1332
        %v1371 = vadd.f32 %v1220, %v1337
        %v1372 = vadd.f32 %v1221, %v1342
        %v1373 = vadd.f32 %v1222, %v1347
        %v1374 = vadd.f32 %v1223, %v1352
        %v1375 = vadd.f32 %v1224, %v1357
        %v1376 = vadd.f32 %v1225, %v1362
        %v1377 = vadd.f32 %v1226, %v1367
        %s1378 = sadd.s32 %s184, 35
        %s1379 = scalar_lea.vmem %s165, %s1378
        %v1380 = vld [vmem:[%s1379] sm:$0xff]
        %v1381 = vld [vmem:[%s1379 + $0x8] sm:$0xff]
        %v1382 = vld [vmem:[%s1379 + $0x10] sm:$0xff]
        %v1383 = vld [vmem:[%s1379 + $0x18] sm:$0xff]
        %v1384 = vld [vmem:[%s1379 + $0x20] sm:$0xff]
        %v1385 = vld [vmem:[%s1379 + $0x28] sm:$0xff]
        %v1386 = vld [vmem:[%s1379 + $0x30] sm:$0xff]
        %v1387 = vld [vmem:[%s1379 + $0x38] sm:$0xff]
        %v1388 = vld [vmem:[%s1 + $0x18] sm:$0x7]
        %v1390 = vsel %vm206, %v1380, 0
        %v1393 = vsel %vm206, %v1381, 0
        %v1396 = vsel %vm206, %v1382, 0
        %v1399 = vsel %vm206, %v1383, 0
        %v1402 = vsel %vm206, %v1384, 0
        %v1405 = vsel %vm206, %v1385, 0
        %v1408 = vsel %vm206, %v1386, 0
        %v1411 = vsel %vm206, %v1387, 0
        %v1414 = vsel %vm231, %v1388, 0
        %1416 = vmatprep.subr.mxu0 0.0
        %1417 = vmatpush1.msra.mxu0 %v1414
        %1418 = vmatprep.subr.mxu0 0.0
        %1419 = vmatpush1.msra.mxu0 0.0
        %1420 = vmatprep.subr.mxu0 0.0
        %1421 = vmatpush1.msra.mxu0 0.0
        %1422 = vmatprep.subr.mxu0 0.0
        %1423 = vmatpush1.msra.mxu0 0.0
        %1424 = vmatprep.subr.mxu0 0.0
        %1425 = vmatpush1.msra.mxu0 0.0
        %1426 = vmatprep.subr.mxu0 0.0
        %1427 = vmatpush1.msra.mxu0 0.0
        %1428 = vmatprep.subr.mxu0 0.0
        %1429 = vmatpush1.msra.mxu0 0.0
        %1430 = vmatprep.subr.mxu0 0.0
        %1431 = vmatpush1.msra.mxu0 0.0
        %1432 = vmatprep.subr.mxu0 0.0
        %1433 = vmatpush1.msra.mxu0 0.0
        %1434 = vmatprep.subr.mxu0 0.0
        %1435 = vmatpush1.msra.mxu0 0.0
        %1436 = vmatprep.subr.mxu0 0.0
        %1437 = vmatpush1.msra.mxu0 0.0
        %1438 = vmatprep.subr.mxu0 0.0
        %1439 = vmatpush1.msra.mxu0 0.0
        %1440 = vmatprep.subr.mxu0 0.0
        %1441 = vmatpush1.msra.mxu0 0.0
        %1442 = vmatprep.subr.mxu0 0.0
        %1443 = vmatpush1.msra.mxu0 0.0
        %1444 = vmatprep.subr.mxu0 0.0
        %1445 = vmatpush1.msra.mxu0 0.0
        %1446 = vmatprep.subr.mxu0 0.0
        %1447 = vmatpush1.msra.mxu0 0.0
        %1448 = vmatprep.subr.mxu0 0.0
        %1449 = vmatpush1.msra.mxu0 0.0
        %1450 = vmatprep.subr.mxu0 0.0
        %1451 = vmatpush1.msra.mxu0 0.0
        %1452 = vmatprep.subr.mxu0 0.0
        %1453 = vmatpush1.msra.mxu0 0.0
        %1454 = vmatprep.subr.mxu0 0.0
        %1455 = vmatpush1.msra.mxu0 0.0
        %1456 = vmatprep.subr.mxu0 0.0
        %1457 = vmatpush1.msra.mxu0 0.0
        %1458 = vmatprep.subr.mxu0 0.0
        %1459 = vmatpush1.msra.mxu0 0.0
        %1460 = vmatprep.subr.mxu0 0.0
        %1461 = vmatpush1.msra.mxu0 0.0
        %1462 = vmatprep.subr.mxu0 0.0
        %1463 = vmatpush1.msra.mxu0 0.0
        %1464 = vmatprep.subr.mxu0 0.0
        %1465 = vmatpush1.msra.mxu0 0.0
        %1466 = vmatprep.subr.mxu0 0.0
        %1467 = vmatpush1.msra.mxu0 0.0
        %1468 = vmatprep.subr.mxu0 0.0
        %1469 = vmatpush1.msra.mxu0 0.0
        %1470 = vmatprep.subr.mxu0 0.0
        %1471 = vmatpush1.msra.mxu0 0.0
        %1472 = vmatprep.subr.mxu0 0.0
        %1473 = vmatpush1.msra.mxu0 0.0
        %1474 = vmatprep.subr.mxu0 0.0
        %1475 = vmatpush1.msra.mxu0 0.0
        %1476 = vmatprep.subr.mxu0 0.0
        %1477 = vmatpush1.msra.mxu0 0.0
        %1478 = vmatprep.subr.mxu0 0.0
        %1479 = vmatpush1.msra.mxu0 0.0
        %1480 = vmatprep.mubr.f32.mxu0 0.0
        %1481 = vmatmul.mubr.f32.gmra.mrb[0].mxu0 %v1390
        %v1482 = vpop.f32.mrb[0].mxu0
        %v1483 = vadd.f32 0.0, %v1482
        %v1484 = vpop.f32.mrb[0].mxu0
        %1485 = vmatprep.mubr.f32.mxu0 0.0
        %1486 = vmatmul.mubr.f32.gmra.mrb[0].mxu0 %v1393
        %v1487 = vpop.f32.mrb[0].mxu0
        %v1488 = vadd.f32 0.0, %v1487
        %v1489 = vpop.f32.mrb[0].mxu0
        %1490 = vmatprep.mubr.f32.mxu0 0.0
        %1491 = vmatmul.mubr.f32.gmra.mrb[0].mxu0 %v1396
        %v1492 = vpop.f32.mrb[0].mxu0
        %v1493 = vadd.f32 0.0, %v1492
        %v1494 = vpop.f32.mrb[0].mxu0
        %1495 = vmatprep.mubr.f32.mxu0 0.0
        %1496 = vmatmul.mubr.f32.gmra.mrb[0].mxu0 %v1399
        %v1497 = vpop.f32.mrb[0].mxu0
        %v1498 = vadd.f32 0.0, %v1497
        %v1499 = vpop.f32.mrb[0].mxu0
        %1500 = vmatprep.mubr.f32.mxu0 0.0
        %1501 = vmatmul.mubr.f32.gmra.mrb[0].mxu0 %v1402
        %v1502 = vpop.f32.mrb[0].mxu0
        %v1503 = vadd.f32 0.0, %v1502
        %v1504 = vpop.f32.mrb[0].mxu0
        %1505 = vmatprep.mubr.f32.mxu0 0.0
        %1506 = vmatmul.mubr.f32.gmra.mrb[0].mxu0 %v1405
        %v1507 = vpop.f32.mrb[0].mxu0
        %v1508 = vadd.f32 0.0, %v1507
        %v1509 = vpop.f32.mrb[0].mxu0
        %1510 = vmatprep.mubr.f32.mxu0 0.0
        %1511 = vmatmul.mubr.f32.gmra.mrb[0].mxu0 %v1408
        %v1512 = vpop.f32.mrb[0].mxu0
        %v1513 = vadd.f32 0.0, %v1512
        %v1514 = vpop.f32.mrb[0].mxu0
        %1515 = vmatprep.mubr.f32.mxu0 0.0
        %1516 = vmatmul.mubr.f32.gmra.mrb[0].mxu0 %v1411
        %v1517 = vpop.f32.mrb[0].mxu0
        %v1518 = vadd.f32 0.0, %v1517
        %v1519 = vpop.f32.mrb[0].mxu0
        %1520 = vdwg.mxu0
        %v1521 = vadd.f32 %v1370, %v1483
        %v1522 = vadd.f32 %v1371, %v1488
        %v1523 = vadd.f32 %v1372, %v1493
        %v1524 = vadd.f32 %v1373, %v1498
        %v1525 = vadd.f32 %v1374, %v1503
        %v1526 = vadd.f32 %v1375, %v1508
        %v1527 = vadd.f32 %v1376, %v1513
        %v1528 = vadd.f32 %v1377, %v1518
        %s1529 = sadd.s32 %s184, 36
        %s1530 = scalar_lea.vmem %s165, %s1529
        %v1531 = vld [vmem:[%s1530] sm:$0xff]
        %v1532 = vld [vmem:[%s1530 + $0x8] sm:$0xff]
        %v1533 = vld [vmem:[%s1530 + $0x10] sm:$0xff]
        %v1534 = vld [vmem:[%s1530 + $0x18] sm:$0xff]
        %v1535 = vld [vmem:[%s1530 + $0x20] sm:$0xff]
        %v1536 = vld [vmem:[%s1530 + $0x28] sm:$0xff]
        %v1537 = vld [vmem:[%s1530 + $0x30] sm:$0xff]
        %v1538 = vld [vmem:[%s1530 + $0x38] sm:$0xff]
        %v1539 = vld [vmem:[%s1 + $0x1b] sm:$0x7]
        %v1541 = vsel %vm206, %v1531, 0
        %v1544 = vsel %vm206, %v1532, 0
        %v1547 = vsel %vm206, %v1533, 0
        %v1550 = vsel %vm206, %v1534, 0
        %v1553 = vsel %vm206, %v1535, 0
        %v1556 = vsel %vm206, %v1536, 0
        %v1559 = vsel %vm206, %v1537, 0
        %v1562 = vsel %vm206, %v1538, 0
        %v1565 = vsel %vm231, %v1539, 0
        %1567 = vmatprep.subr.mxu0 0.0
        %1568 = vmatpush1.msra.mxu0 %v1565
        %1569 = vmatprep.subr.mxu0 0.0
        %1570 = vmatpush1.msra.mxu0 0.0
        %1571 = vmatprep.subr.mxu0 0.0
        %1572 = vmatpush1.msra.mxu0 0.0
        %1573 = vmatprep.subr.mxu0 0.0
        %1574 = vmatpush1.msra.mxu0 0.0
        %1575 = vmatprep.subr.mxu0 0.0
        %1576 = vmatpush1.msra.mxu0 0.0
        %1577 = vmatprep.subr.mxu0 0.0
        %1578 = vmatpush1.msra.mxu0 0.0
        %1579 = vmatprep.subr.mxu0 0.0
        %1580 = vmatpush1.msra.mxu0 0.0
        %1581 = vmatprep.subr.mxu0 0.0
        %1582 = vmatpush1.msra.mxu0 0.0
        %1583 = vmatprep.subr.mxu0 0.0
        %1584 = vmatpush1.msra.mxu0 0.0
        %1585 = vmatprep.subr.mxu0 0.0
        %1586 = vmatpush1.msra.mxu0 0.0
        %1587 = vmatprep.subr.mxu0 0.0
        %1588 = vmatpush1.msra.mxu0 0.0
        %1589 = vmatprep.subr.mxu0 0.0
        %1590 = vmatpush1.msra.mxu0 0.0
        %1591 = vmatprep.subr.mxu0 0.0
        %1592 = vmatpush1.msra.mxu0 0.0
        %1593 = vmatprep.subr.mxu0 0.0
        %1594 = vmatpush1.msra.mxu0 0.0
        %1595 = vmatprep.subr.mxu0 0.0
        %1596 = vmatpush1.msra.mxu0 0.0
        %1597 = vmatprep.subr.mxu0 0.0
        %1598 = vmatpush1.msra.mxu0 0.0
        %1599 = vmatprep.subr.mxu0 0.0
        %1600 = vmatpush1.msra.mxu0 0.0
        %1601 = vmatprep.subr.mxu0 0.0
        %1602 = vmatpush1.msra.mxu0 0.0
        %1603 = vmatprep.subr.mxu0 0.0
        %1604 = vmatpush1.msra.mxu0 0.0
        %1605 = vmatprep.subr.mxu0 0.0
        %1606 = vmatpush1.msra.mxu0 0.0
        %1607 = vmatprep.subr.mxu0 0.0
        %1608 = vmatpush1.msra.mxu0 0.0
        %1609 = vmatprep.subr.mxu0 0.0
        %1610 = vmatpush1.msra.mxu0 0.0
        %1611 = vmatprep.subr.mxu0 0.0
        %1612 = vmatpush1.msra.mxu0 0.0
        %1613 = vmatprep.subr.mxu0 0.0
        %1614 = vmatpush1.msra.mxu0 0.0
        %1615 = vmatprep.subr.mxu0 0.0
        %1616 = vmatpush1.msra.mxu0 0.0
        %1617 = vmatprep.subr.mxu0 0.0
        %1618 = vmatpush1.msra.mxu0 0.0
        %1619 = vmatprep.subr.mxu0 0.0
        %1620 = vmatpush1.msra.mxu0 0.0
        %1621 = vmatprep.subr.mxu0 0.0
        %1622 = vmatpush1.msra.mxu0 0.0
        %1623 = vmatprep.subr.mxu0 0.0
        %1624 = vmatpush1.msra.mxu0 0.0
        %1625 = vmatprep.subr.mxu0 0.0
        %1626 = vmatpush1.msra.mxu0 0.0
        %1627 = vmatprep.subr.mxu0 0.0
        %1628 = vmatpush1.msra.mxu0 0.0
        %1629 = vmatprep.subr.mxu0 0.0
        %1630 = vmatpush1.msra.mxu0 0.0
        %1631 = vmatprep.mubr.f32.mxu0 0.0
        %1632 = vmatmul.mubr.f32.gmra.mrb[0].mxu0 %v1541
        %v1633 = vpop.f32.mrb[0].mxu0
        %v1634 = vadd.f32 0.0, %v1633
        %v1635 = vpop.f32.mrb[0].mxu0
        %1636 = vmatprep.mubr.f32.mxu0 0.0
        %1637 = vmatmul.mubr.f32.gmra.mrb[0].mxu0 %v1544
        %v1638 = vpop.f32.mrb[0].mxu0
        %v1639 = vadd.f32 0.0, %v1638
        %v1640 = vpop.f32.mrb[0].mxu0
        %1641 = vmatprep.mubr.f32.mxu0 0.0
        %1642 = vmatmul.mubr.f32.gmra.mrb[0].mxu0 %v1547
        %v1643 = vpop.f32.mrb[0].mxu0
        %v1644 = vadd.f32 0.0, %v1643
        %v1645 = vpop.f32.mrb[0].mxu0
        %1646 = vmatprep.mubr.f32.mxu0 0.0
        %1647 = vmatmul.mubr.f32.gmra.mrb[0].mxu0 %v1550
        %v1648 = vpop.f32.mrb[0].mxu0
        %v1649 = vadd.f32 0.0, %v1648
        %v1650 = vpop.f32.mrb[0].mxu0
        %1651 = vmatprep.mubr.f32.mxu0 0.0
        %1652 = vmatmul.mubr.f32.gmra.mrb[0].mxu0 %v1553
        %v1653 = vpop.f32.mrb[0].mxu0
        %v1654 = vadd.f32 0.0, %v1653
        %v1655 = vpop.f32.mrb[0].mxu0
        %1656 = vmatprep.mubr.f32.mxu0 0.0
        %1657 = vmatmul.mubr.f32.gmra.mrb[0].mxu0 %v1556
        %v1658 = vpop.f32.mrb[0].mxu0
        %v1659 = vadd.f32 0.0, %v1658
        %v1660 = vpop.f32.mrb[0].mxu0
        %1661 = vmatprep.mubr.f32.mxu0 0.0
        %1662 = vmatmul.mubr.f32.gmra.mrb[0].mxu0 %v1559
        %v1663 = vpop.f32.mrb[0].mxu0
        %v1664 = vadd.f32 0.0, %v1663
        %v1665 = vpop.f32.mrb[0].mxu0
        %1666 = vmatprep.mubr.f32.mxu0 0.0
        %1667 = vmatmul.mubr.f32.gmra.mrb[0].mxu0 %v1562
        %v1668 = vpop.f32.mrb[0].mxu0
        %v1669 = vadd.f32 0.0, %v1668
        %v1670 = vpop.f32.mrb[0].mxu0
        %1671 = vdwg.mxu0
        %v1672 = vadd.f32 %v1521, %v1634
        %v1673 = vadd.f32 %v1522, %v1639
        %v1674 = vadd.f32 %v1523, %v1644
        %v1675 = vadd.f32 %v1524, %v1649
        %v1676 = vadd.f32 %v1525, %v1654
        %v1677 = vadd.f32 %v1526, %v1659
        %v1678 = vadd.f32 %v1527, %v1664
        %v1679 = vadd.f32 %v1528, %v1669
        %s1680 = sadd.s32 %s184, 64
        %s1681 = scalar_lea.vmem %s165, %s1680
        %v1682 = vld [vmem:[%s1681] sm:$0xff]
        %v1683 = vld [vmem:[%s1681 + $0x8] sm:$0xff]
        %v1684 = vld [vmem:[%s1681 + $0x10] sm:$0xff]
        %v1685 = vld [vmem:[%s1681 + $0x18] sm:$0xff]
        %v1686 = vld [vmem:[%s1681 + $0x20] sm:$0xff]
        %v1687 = vld [vmem:[%s1681 + $0x28] sm:$0xff]
        %v1688 = vld [vmem:[%s1681 + $0x30] sm:$0xff]
        %v1689 = vld [vmem:[%s1681 + $0x38] sm:$0xff]
        %v1690 = vld [vmem:[%s1 + $0x1e] sm:$0x7]
        %v1692 = vsel %vm206, %v1682, 0
        %v1695 = vsel %vm206, %v1683, 0
        %v1698 = vsel %vm206, %v1684, 0
        %v1701 = vsel %vm206, %v1685, 0
        %v1704 = vsel %vm206, %v1686, 0
        %v1707 = vsel %vm206, %v1687, 0
        %v1710 = vsel %vm206, %v1688, 0
        %v1713 = vsel %vm206, %v1689, 0
        %v1716 = vsel %vm231, %v1690, 0
        %1718 = vmatprep.subr.mxu0 0.0
        %1719 = vmatpush1.msra.mxu0 %v1716
        %1720 = vmatprep.subr.mxu0 0.0
        %1721 = vmatpush1.msra.mxu0 0.0
        %1722 = vmatprep.subr.mxu0 0.0
        %1723 = vmatpush1.msra.mxu0 0.0
        %1724 = vmatprep.subr.mxu0 0.0
        %1725 = vmatpush1.msra.mxu0 0.0
        %1726 = vmatprep.subr.mxu0 0.0
        %1727 = vmatpush1.msra.mxu0 0.0
        %1728 = vmatprep.subr.mxu0 0.0
        %1729 = vmatpush1.msra.mxu0 0.0
        %1730 = vmatprep.subr.mxu0 0.0
        %1731 = vmatpush1.msra.mxu0 0.0
        %1732 = vmatprep.subr.mxu0 0.0
        %1733 = vmatpush1.msra.mxu0 0.0
        %1734 = vmatprep.subr.mxu0 0.0
        %1735 = vmatpush1.msra.mxu0 0.0
        %1736 = vmatprep.subr.mxu0 0.0
        %1737 = vmatpush1.msra.mxu0 0.0
        %1738 = vmatprep.subr.mxu0 0.0
        %1739 = vmatpush1.msra.mxu0 0.0
        %1740 = vmatprep.subr.mxu0 0.0
        %1741 = vmatpush1.msra.mxu0 0.0
        %1742 = vmatprep.subr.mxu0 0.0
        %1743 = vmatpush1.msra.mxu0 0.0
        %1744 = vmatprep.subr.mxu0 0.0
        %1745 = vmatpush1.msra.mxu0 0.0
        %1746 = vmatprep.subr.mxu0 0.0
        %1747 = vmatpush1.msra.mxu0 0.0
        %1748 = vmatprep.subr.mxu0 0.0
        %1749 = vmatpush1.msra.mxu0 0.0
        %1750 = vmatprep.subr.mxu0 0.0
        %1751 = vmatpush1.msra.mxu0 0.0
        %1752 = vmatprep.subr.mxu0 0.0
        %1753 = vmatpush1.msra.mxu0 0.0
        %1754 = vmatprep.subr.mxu0 0.0
        %1755 = vmatpush1.msra.mxu0 0.0
        %1756 = vmatprep.subr.mxu0 0.0
        %1757 = vmatpush1.msra.mxu0 0.0
        %1758 = vmatprep.subr.mxu0 0.0
        %1759 = vmatpush1.msra.mxu0 0.0
        %1760 = vmatprep.subr.mxu0 0.0
        %1761 = vmatpush1.msra.mxu0 0.0
        %1762 = vmatprep.subr.mxu0 0.0
        %1763 = vmatpush1.msra.mxu0 0.0
        %1764 = vmatprep.subr.mxu0 0.0
        %1765 = vmatpush1.msra.mxu0 0.0
        %1766 = vmatprep.subr.mxu0 0.0
        %1767 = vmatpush1.msra.mxu0 0.0
        %1768 = vmatprep.subr.mxu0 0.0
        %1769 = vmatpush1.msra.mxu0 0.0
        %1770 = vmatprep.subr.mxu0 0.0
        %1771 = vmatpush1.msra.mxu0 0.0
        %1772 = vmatprep.subr.mxu0 0.0
        %1773 = vmatpush1.msra.mxu0 0.0
        %1774 = vmatprep.subr.mxu0 0.0
        %1775 = vmatpush1.msra.mxu0 0.0
        %1776 = vmatprep.subr.mxu0 0.0
        %1777 = vmatpush1.msra.mxu0 0.0
        %1778 = vmatprep.subr.mxu0 0.0
        %1779 = vmatpush1.msra.mxu0 0.0
        %1780 = vmatprep.subr.mxu0 0.0
        %1781 = vmatpush1.msra.mxu0 0.0
        %1782 = vmatprep.mubr.f32.mxu0 0.0
        %1783 = vmatmul.mubr.f32.gmra.mrb[0].mxu0 %v1692
        %v1784 = vpop.f32.mrb[0].mxu0
        %v1785 = vadd.f32 0.0, %v1784
        %v1786 = vpop.f32.mrb[0].mxu0
        %1787 = vmatprep.mubr.f32.mxu0 0.0
        %1788 = vmatmul.mubr.f32.gmra.mrb[0].mxu0 %v1695
        %v1789 = vpop.f32.mrb[0].mxu0
        %v1790 = vadd.f32 0.0, %v1789
        %v1791 = vpop.f32.mrb[0].mxu0
        %1792 = vmatprep.mubr.f32.mxu0 0.0
        %1793 = vmatmul.mubr.f32.gmra.mrb[0].mxu0 %v1698
        %v1794 = vpop.f32.mrb[0].mxu0
        %v1795 = vadd.f32 0.0, %v1794
        %v1796 = vpop.f32.mrb[0].mxu0
        %1797 = vmatprep.mubr.f32.mxu0 0.0
        %1798 = vmatmul.mubr.f32.gmra.mrb[0].mxu0 %v1701
        %v1799 = vpop.f32.mrb[0].mxu0
        %v1800 = vadd.f32 0.0, %v1799
        %v1801 = vpop.f32.mrb[0].mxu0
        %1802 = vmatprep.mubr.f32.mxu0 0.0
        %1803 = vmatmul.mubr.f32.gmra.mrb[0].mxu0 %v1704
        %v1804 = vpop.f32.mrb[0].mxu0
        %v1805 = vadd.f32 0.0, %v1804
        %v1806 = vpop.f32.mrb[0].mxu0
        %1807 = vmatprep.mubr.f32.mxu0 0.0
        %1808 = vmatmul.mubr.f32.gmra.mrb[0].mxu0 %v1707
        %v1809 = vpop.f32.mrb[0].mxu0
        %v1810 = vadd.f32 0.0, %v1809
        %v1811 = vpop.f32.mrb[0].mxu0
        %1812 = vmatprep.mubr.f32.mxu0 0.0
        %1813 = vmatmul.mubr.f32.gmra.mrb[0].mxu0 %v1710
        %v1814 = vpop.f32.mrb[0].mxu0
        %v1815 = vadd.f32 0.0, %v1814
        %v1816 = vpop.f32.mrb[0].mxu0
        %1817 = vmatprep.mubr.f32.mxu0 0.0
        %1818 = vmatmul.mubr.f32.gmra.mrb[0].mxu0 %v1713
        %v1819 = vpop.f32.mrb[0].mxu0
        %v1820 = vadd.f32 0.0, %v1819
        %v1821 = vpop.f32.mrb[0].mxu0
        %1822 = vdwg.mxu0
        %v1823 = vadd.f32 %v1672, %v1785
        %v1824 = vadd.f32 %v1673, %v1790
        %v1825 = vadd.f32 %v1674, %v1795
        %v1826 = vadd.f32 %v1675, %v1800
        %v1827 = vadd.f32 %v1676, %v1805
        %v1828 = vadd.f32 %v1677, %v1810
        %v1829 = vadd.f32 %v1678, %v1815
        %v1830 = vadd.f32 %v1679, %v1820
        %s1831 = sadd.s32 %s184, 65
        %s1832 = scalar_lea.vmem %s165, %s1831
        %v1833 = vld [vmem:[%s1832] sm:$0xff]
        %v1834 = vld [vmem:[%s1832 + $0x8] sm:$0xff]
        %v1835 = vld [vmem:[%s1832 + $0x10] sm:$0xff]
        %v1836 = vld [vmem:[%s1832 + $0x18] sm:$0xff]
        %v1837 = vld [vmem:[%s1832 + $0x20] sm:$0xff]
        %v1838 = vld [vmem:[%s1832 + $0x28] sm:$0xff]
        %v1839 = vld [vmem:[%s1832 + $0x30] sm:$0xff]
        %v1840 = vld [vmem:[%s1832 + $0x38] sm:$0xff]
        %v1841 = vld [vmem:[%s1 + $0x21] sm:$0x7]
        %v1843 = vsel %vm206, %v1833, 0
        %v1846 = vsel %vm206, %v1834, 0
        %v1849 = vsel %vm206, %v1835, 0
        %v1852 = vsel %vm206, %v1836, 0
        %v1855 = vsel %vm206, %v1837, 0
        %v1858 = vsel %vm206, %v1838, 0
        %v1861 = vsel %vm206, %v1839, 0
        %v1864 = vsel %vm206, %v1840, 0
        %v1867 = vsel %vm231, %v1841, 0
        %1869 = vmatprep.subr.mxu0 0.0
        %1870 = vmatpush1.msra.mxu0 %v1867
        %1871 = vmatprep.subr.mxu0 0.0
        %1872 = vmatpush1.msra.mxu0 0.0
        %1873 = vmatprep.subr.mxu0 0.0
        %1874 = vmatpush1.msra.mxu0 0.0
        %1875 = vmatprep.subr.mxu0 0.0
        %1876 = vmatpush1.msra.mxu0 0.0
        %1877 = vmatprep.subr.mxu0 0.0
        %1878 = vmatpush1.msra.mxu0 0.0
        %1879 = vmatprep.subr.mxu0 0.0
        %1880 = vmatpush1.msra.mxu0 0.0
        %1881 = vmatprep.subr.mxu0 0.0
        %1882 = vmatpush1.msra.mxu0 0.0
        %1883 = vmatprep.subr.mxu0 0.0
        %1884 = vmatpush1.msra.mxu0 0.0
        %1885 = vmatprep.subr.mxu0 0.0
        %1886 = vmatpush1.msra.mxu0 0.0
        %1887 = vmatprep.subr.mxu0 0.0
        %1888 = vmatpush1.msra.mxu0 0.0
        %1889 = vmatprep.subr.mxu0 0.0
        %1890 = vmatpush1.msra.mxu0 0.0
        %1891 = vmatprep.subr.mxu0 0.0
        %1892 = vmatpush1.msra.mxu0 0.0
        %1893 = vmatprep.subr.mxu0 0.0
        %1894 = vmatpush1.msra.mxu0 0.0
        %1895 = vmatprep.subr.mxu0 0.0
        %1896 = vmatpush1.msra.mxu0 0.0
        %1897 = vmatprep.subr.mxu0 0.0
        %1898 = vmatpush1.msra.mxu0 0.0
        %1899 = vmatprep.subr.mxu0 0.0
        %1900 = vmatpush1.msra.mxu0 0.0
        %1901 = vmatprep.subr.mxu0 0.0
        %1902 = vmatpush1.msra.mxu0 0.0
        %1903 = vmatprep.subr.mxu0 0.0
        %1904 = vmatpush1.msra.mxu0 0.0
        %1905 = vmatprep.subr.mxu0 0.0
        %1906 = vmatpush1.msra.mxu0 0.0
        %1907 = vmatprep.subr.mxu0 0.0
        %1908 = vmatpush1.msra.mxu0 0.0
        %1909 = vmatprep.subr.mxu0 0.0
        %1910 = vmatpush1.msra.mxu0 0.0
        %1911 = vmatprep.subr.mxu0 0.0
        %1912 = vmatpush1.msra.mxu0 0.0
        %1913 = vmatprep.subr.mxu0 0.0
        %1914 = vmatpush1.msra.mxu0 0.0
        %1915 = vmatprep.subr.mxu0 0.0
        %1916 = vmatpush1.msra.mxu0 0.0
        %1917 = vmatprep.subr.mxu0 0.0
        %1918 = vmatpush1.msra.mxu0 0.0
        %1919 = vmatprep.subr.mxu0 0.0
        %1920 = vmatpush1.msra.mxu0 0.0
        %1921 = vmatprep.subr.mxu0 0.0
        %1922 = vmatpush1.msra.mxu0 0.0
        %1923 = vmatprep.subr.mxu0 0.0
        %1924 = vmatpush1.msra.mxu0 0.0
        %1925 = vmatprep.subr.mxu0 0.0
        %1926 = vmatpush1.msra.mxu0 0.0
        %1927 = vmatprep.subr.mxu0 0.0
        %1928 = vmatpush1.msra.mxu0 0.0
        %1929 = vmatprep.subr.mxu0 0.0
        %1930 = vmatpush1.msra.mxu0 0.0
        %1931 = vmatprep.subr.mxu0 0.0
        %1932 = vmatpush1.msra.mxu0 0.0
        %1933 = vmatprep.mubr.f32.mxu0 0.0
        %1934 = vmatmul.mubr.f32.gmra.mrb[0].mxu0 %v1843
        %v1935 = vpop.f32.mrb[0].mxu0
        %v1936 = vadd.f32 0.0, %v1935
        %v1937 = vpop.f32.mrb[0].mxu0
        %1938 = vmatprep.mubr.f32.mxu0 0.0
        %1939 = vmatmul.mubr.f32.gmra.mrb[0].mxu0 %v1846
        %v1940 = vpop.f32.mrb[0].mxu0
        %v1941 = vadd.f32 0.0, %v1940
        %v1942 = vpop.f32.mrb[0].mxu0
        %1943 = vmatprep.mubr.f32.mxu0 0.0
        %1944 = vmatmul.mubr.f32.gmra.mrb[0].mxu0 %v1849
        %v1945 = vpop.f32.mrb[0].mxu0
        %v1946 = vadd.f32 0.0, %v1945
        %v1947 = vpop.f32.mrb[0].mxu0
        %1948 = vmatprep.mubr.f32.mxu0 0.0
        %1949 = vmatmul.mubr.f32.gmra.mrb[0].mxu0 %v1852
        %v1950 = vpop.f32.mrb[0].mxu0
        %v1951 = vadd.f32 0.0, %v1950
        %v1952 = vpop.f32.mrb[0].mxu0
        %1953 = vmatprep.mubr.f32.mxu0 0.0
        %1954 = vmatmul.mubr.f32.gmra.mrb[0].mxu0 %v1855
        %v1955 = vpop.f32.mrb[0].mxu0
        %v1956 = vadd.f32 0.0, %v1955
        %v1957 = vpop.f32.mrb[0].mxu0
        %1958 = vmatprep.mubr.f32.mxu0 0.0
        %1959 = vmatmul.mubr.f32.gmra.mrb[0].mxu0 %v1858
        %v1960 = vpop.f32.mrb[0].mxu0
        %v1961 = vadd.f32 0.0, %v1960
        %v1962 = vpop.f32.mrb[0].mxu0
        %1963 = vmatprep.mubr.f32.mxu0 0.0
        %1964 = vmatmul.mubr.f32.gmra.mrb[0].mxu0 %v1861
        %v1965 = vpop.f32.mrb[0].mxu0
        %v1966 = vadd.f32 0.0, %v1965
        %v1967 = vpop.f32.mrb[0].mxu0
        %1968 = vmatprep.mubr.f32.mxu0 0.0
        %1969 = vmatmul.mubr.f32.gmra.mrb[0].mxu0 %v1864
        %v1970 = vpop.f32.mrb[0].mxu0
        %v1971 = vadd.f32 0.0, %v1970
        %v1972 = vpop.f32.mrb[0].mxu0
        %1973 = vdwg.mxu0
        %v1974 = vadd.f32 %v1823, %v1936
        %v1975 = vadd.f32 %v1824, %v1941
        %v1976 = vadd.f32 %v1825, %v1946
        %v1977 = vadd.f32 %v1826, %v1951
        %v1978 = vadd.f32 %v1827, %v1956
        %v1979 = vadd.f32 %v1828, %v1961
        %v1980 = vadd.f32 %v1829, %v1966
        %v1981 = vadd.f32 %v1830, %v1971
        %s1982 = sadd.s32 %s184, 66
        %s1983 = scalar_lea.vmem %s165, %s1982
        %v1984 = vld [vmem:[%s1983] sm:$0xff]
        %v1985 = vld [vmem:[%s1983 + $0x8] sm:$0xff]
        %v1986 = vld [vmem:[%s1983 + $0x10] sm:$0xff]
        %v1987 = vld [vmem:[%s1983 + $0x18] sm:$0xff]
        %v1988 = vld [vmem:[%s1983 + $0x20] sm:$0xff]
        %v1989 = vld [vmem:[%s1983 + $0x28] sm:$0xff]
        %v1990 = vld [vmem:[%s1983 + $0x30] sm:$0xff]
        %v1991 = vld [vmem:[%s1983 + $0x38] sm:$0xff]
        %v1992 = vld [vmem:[%s1 + $0x24] sm:$0x7]
        %v1994 = vsel %vm206, %v1984, 0
        %v1997 = vsel %vm206, %v1985, 0
        %v2000 = vsel %vm206, %v1986, 0
        %v2003 = vsel %vm206, %v1987, 0
        %v2006 = vsel %vm206, %v1988, 0
        %v2009 = vsel %vm206, %v1989, 0
        %v2012 = vsel %vm206, %v1990, 0
        %v2015 = vsel %vm206, %v1991, 0
        %v2018 = vsel %vm231, %v1992, 0
        %2020 = vmatprep.subr.mxu0 0.0
        %2021 = vmatpush1.msra.mxu0 %v2018
        %2022 = vmatprep.subr.mxu0 0.0
        %2023 = vmatpush1.msra.mxu0 0.0
        %2024 = vmatprep.subr.mxu0 0.0
        %2025 = vmatpush1.msra.mxu0 0.0
        %2026 = vmatprep.subr.mxu0 0.0
        %2027 = vmatpush1.msra.mxu0 0.0
        %2028 = vmatprep.subr.mxu0 0.0
        %2029 = vmatpush1.msra.mxu0 0.0
        %2030 = vmatprep.subr.mxu0 0.0
        %2031 = vmatpush1.msra.mxu0 0.0
        %2032 = vmatprep.subr.mxu0 0.0
        %2033 = vmatpush1.msra.mxu0 0.0
        %2034 = vmatprep.subr.mxu0 0.0
        %2035 = vmatpush1.msra.mxu0 0.0
        %2036 = vmatprep.subr.mxu0 0.0
        %2037 = vmatpush1.msra.mxu0 0.0
        %2038 = vmatprep.subr.mxu0 0.0
        %2039 = vmatpush1.msra.mxu0 0.0
        %2040 = vmatprep.subr.mxu0 0.0
        %2041 = vmatpush1.msra.mxu0 0.0
        %2042 = vmatprep.subr.mxu0 0.0
        %2043 = vmatpush1.msra.mxu0 0.0
        %2044 = vmatprep.subr.mxu0 0.0
        %2045 = vmatpush1.msra.mxu0 0.0
        %2046 = vmatprep.subr.mxu0 0.0
        %2047 = vmatpush1.msra.mxu0 0.0
        %2048 = vmatprep.subr.mxu0 0.0
        %2049 = vmatpush1.msra.mxu0 0.0
        %2050 = vmatprep.subr.mxu0 0.0
        %2051 = vmatpush1.msra.mxu0 0.0
        %2052 = vmatprep.subr.mxu0 0.0
        %2053 = vmatpush1.msra.mxu0 0.0
        %2054 = vmatprep.subr.mxu0 0.0
        %2055 = vmatpush1.msra.mxu0 0.0
        %2056 = vmatprep.subr.mxu0 0.0
        %2057 = vmatpush1.msra.mxu0 0.0
        %2058 = vmatprep.subr.mxu0 0.0
        %2059 = vmatpush1.msra.mxu0 0.0
        %2060 = vmatprep.subr.mxu0 0.0
        %2061 = vmatpush1.msra.mxu0 0.0
        %2062 = vmatprep.subr.mxu0 0.0
        %2063 = vmatpush1.msra.mxu0 0.0
        %2064 = vmatprep.subr.mxu0 0.0
        %2065 = vmatpush1.msra.mxu0 0.0
        %2066 = vmatprep.subr.mxu0 0.0
        %2067 = vmatpush1.msra.mxu0 0.0
        %2068 = vmatprep.subr.mxu0 0.0
        %2069 = vmatpush1.msra.mxu0 0.0
        %2070 = vmatprep.subr.mxu0 0.0
        %2071 = vmatpush1.msra.mxu0 0.0
        %2072 = vmatprep.subr.mxu0 0.0
        %2073 = vmatpush1.msra.mxu0 0.0
        %2074 = vmatprep.subr.mxu0 0.0
        %2075 = vmatpush1.msra.mxu0 0.0
        %2076 = vmatprep.subr.mxu0 0.0
        %2077 = vmatpush1.msra.mxu0 0.0
        %2078 = vmatprep.subr.mxu0 0.0
        %2079 = vmatpush1.msra.mxu0 0.0
        %2080 = vmatprep.subr.mxu0 0.0
        %2081 = vmatpush1.msra.mxu0 0.0
        %2082 = vmatprep.subr.mxu0 0.0
        %2083 = vmatpush1.msra.mxu0 0.0
        %2084 = vmatprep.mubr.f32.mxu0 0.0
        %2085 = vmatmul.mubr.f32.gmra.mrb[0].mxu0 %v1994
        %v2086 = vpop.f32.mrb[0].mxu0
        %v2087 = vadd.f32 0.0, %v2086
        %v2088 = vpop.f32.mrb[0].mxu0
        %2089 = vmatprep.mubr.f32.mxu0 0.0
        %2090 = vmatmul.mubr.f32.gmra.mrb[0].mxu0 %v1997
        %v2091 = vpop.f32.mrb[0].mxu0
        %v2092 = vadd.f32 0.0, %v2091
        %v2093 = vpop.f32.mrb[0].mxu0
        %2094 = vmatprep.mubr.f32.mxu0 0.0
        %2095 = vmatmul.mubr.f32.gmra.mrb[0].mxu0 %v2000
        %v2096 = vpop.f32.mrb[0].mxu0
        %v2097 = vadd.f32 0.0, %v2096
        %v2098 = vpop.f32.mrb[0].mxu0
        %2099 = vmatprep.mubr.f32.mxu0 0.0
        %2100 = vmatmul.mubr.f32.gmra.mrb[0].mxu0 %v2003
        %v2101 = vpop.f32.mrb[0].mxu0
        %v2102 = vadd.f32 0.0, %v2101
        %v2103 = vpop.f32.mrb[0].mxu0
        %2104 = vmatprep.mubr.f32.mxu0 0.0
        %2105 = vmatmul.mubr.f32.gmra.mrb[0].mxu0 %v2006
        %v2106 = vpop.f32.mrb[0].mxu0
        %v2107 = vadd.f32 0.0, %v2106
        %v2108 = vpop.f32.mrb[0].mxu0
        %2109 = vmatprep.mubr.f32.mxu0 0.0
        %2110 = vmatmul.mubr.f32.gmra.mrb[0].mxu0 %v2009
        %v2111 = vpop.f32.mrb[0].mxu0
        %v2112 = vadd.f32 0.0, %v2111
        %v2113 = vpop.f32.mrb[0].mxu0
        %2114 = vmatprep.mubr.f32.mxu0 0.0
        %2115 = vmatmul.mubr.f32.gmra.mrb[0].mxu0 %v2012
        %v2116 = vpop.f32.mrb[0].mxu0
        %v2117 = vadd.f32 0.0, %v2116
        %v2118 = vpop.f32.mrb[0].mxu0
        %2119 = vmatprep.mubr.f32.mxu0 0.0
        %2120 = vmatmul.mubr.f32.gmra.mrb[0].mxu0 %v2015
        %v2121 = vpop.f32.mrb[0].mxu0
        %v2122 = vadd.f32 0.0, %v2121
        %v2123 = vpop.f32.mrb[0].mxu0
        %2124 = vdwg.mxu0
        %v2125 = vadd.f32 %v1974, %v2087
        %v2126 = vadd.f32 %v1975, %v2092
        %v2127 = vadd.f32 %v1976, %v2097
        %v2128 = vadd.f32 %v1977, %v2102
        %v2129 = vadd.f32 %v1978, %v2107
        %v2130 = vadd.f32 %v1979, %v2112
        %v2131 = vadd.f32 %v1980, %v2117
        %v2132 = vadd.f32 %v1981, %v2122
        %s2133 = sadd.s32 %s184, 67
        %s2134 = scalar_lea.vmem %s165, %s2133
        %v2135 = vld [vmem:[%s2134] sm:$0xff]
        %v2136 = vld [vmem:[%s2134 + $0x8] sm:$0xff]
        %v2137 = vld [vmem:[%s2134 + $0x10] sm:$0xff]
        %v2138 = vld [vmem:[%s2134 + $0x18] sm:$0xff]
        %v2139 = vld [vmem:[%s2134 + $0x20] sm:$0xff]
        %v2140 = vld [vmem:[%s2134 + $0x28] sm:$0xff]
        %v2141 = vld [vmem:[%s2134 + $0x30] sm:$0xff]
        %v2142 = vld [vmem:[%s2134 + $0x38] sm:$0xff]
        %v2143 = vld [vmem:[%s1 + $0x27] sm:$0x7]
        %v2145 = vsel %vm206, %v2135, 0
        %v2148 = vsel %vm206, %v2136, 0
        %v2151 = vsel %vm206, %v2137, 0
        %v2154 = vsel %vm206, %v2138, 0
        %v2157 = vsel %vm206, %v2139, 0
        %v2160 = vsel %vm206, %v2140, 0
        %v2163 = vsel %vm206, %v2141, 0
        %v2166 = vsel %vm206, %v2142, 0
        %v2169 = vsel %vm231, %v2143, 0
        %2171 = vmatprep.subr.mxu0 0.0
        %2172 = vmatpush1.msra.mxu0 %v2169
        %2173 = vmatprep.subr.mxu0 0.0
        %2174 = vmatpush1.msra.mxu0 0.0
        %2175 = vmatprep.subr.mxu0 0.0
        %2176 = vmatpush1.msra.mxu0 0.0
        %2177 = vmatprep.subr.mxu0 0.0
        %2178 = vmatpush1.msra.mxu0 0.0
        %2179 = vmatprep.subr.mxu0 0.0
        %2180 = vmatpush1.msra.mxu0 0.0
        %2181 = vmatprep.subr.mxu0 0.0
        %2182 = vmatpush1.msra.mxu0 0.0
        %2183 = vmatprep.subr.mxu0 0.0
        %2184 = vmatpush1.msra.mxu0 0.0
        %2185 = vmatprep.subr.mxu0 0.0
        %2186 = vmatpush1.msra.mxu0 0.0
        %2187 = vmatprep.subr.mxu0 0.0
        %2188 = vmatpush1.msra.mxu0 0.0
        %2189 = vmatprep.subr.mxu0 0.0
        %2190 = vmatpush1.msra.mxu0 0.0
        %2191 = vmatprep.subr.mxu0 0.0
        %2192 = vmatpush1.msra.mxu0 0.0
        %2193 = vmatprep.subr.mxu0 0.0
        %2194 = vmatpush1.msra.mxu0 0.0
        %2195 = vmatprep.subr.mxu0 0.0
        %2196 = vmatpush1.msra.mxu0 0.0
        %2197 = vmatprep.subr.mxu0 0.0
        %2198 = vmatpush1.msra.mxu0 0.0
        %2199 = vmatprep.subr.mxu0 0.0
        %2200 = vmatpush1.msra.mxu0 0.0
        %2201 = vmatprep.subr.mxu0 0.0
        %2202 = vmatpush1.msra.mxu0 0.0
        %2203 = vmatprep.subr.mxu0 0.0
        %2204 = vmatpush1.msra.mxu0 0.0
        %2205 = vmatprep.subr.mxu0 0.0
        %2206 = vmatpush1.msra.mxu0 0.0
        %2207 = vmatprep.subr.mxu0 0.0
        %2208 = vmatpush1.msra.mxu0 0.0
        %2209 = vmatprep.subr.mxu0 0.0
        %2210 = vmatpush1.msra.mxu0 0.0
        %2211 = vmatprep.subr.mxu0 0.0
        %2212 = vmatpush1.msra.mxu0 0.0
        %2213 = vmatprep.subr.mxu0 0.0
        %2214 = vmatpush1.msra.mxu0 0.0
        %2215 = vmatprep.subr.mxu0 0.0
        %2216 = vmatpush1.msra.mxu0 0.0
        %2217 = vmatprep.subr.mxu0 0.0
        %2218 = vmatpush1.msra.mxu0 0.0
        %2219 = vmatprep.subr.mxu0 0.0
        %2220 = vmatpush1.msra.mxu0 0.0
        %2221 = vmatprep.subr.mxu0 0.0
        %2222 = vmatpush1.msra.mxu0 0.0
        %2223 = vmatprep.subr.mxu0 0.0
        %2224 = vmatpush1.msra.mxu0 0.0
        %2225 = vmatprep.subr.mxu0 0.0
        %2226 = vmatpush1.msra.mxu0 0.0
        %2227 = vmatprep.subr.mxu0 0.0
        %2228 = vmatpush1.msra.mxu0 0.0
        %2229 = vmatprep.subr.mxu0 0.0
        %2230 = vmatpush1.msra.mxu0 0.0
        %2231 = vmatprep.subr.mxu0 0.0
        %2232 = vmatpush1.msra.mxu0 0.0
        %2233 = vmatprep.subr.mxu0 0.0
        %2234 = vmatpush1.msra.mxu0 0.0
        %2235 = vmatprep.mubr.f32.mxu0 0.0
        %2236 = vmatmul.mubr.f32.gmra.mrb[0].mxu0 %v2145
        %v2237 = vpop.f32.mrb[0].mxu0
        %v2238 = vadd.f32 0.0, %v2237
        %v2239 = vpop.f32.mrb[0].mxu0
        %2240 = vmatprep.mubr.f32.mxu0 0.0
        %2241 = vmatmul.mubr.f32.gmra.mrb[0].mxu0 %v2148
        %v2242 = vpop.f32.mrb[0].mxu0
        %v2243 = vadd.f32 0.0, %v2242
        %v2244 = vpop.f32.mrb[0].mxu0
        %2245 = vmatprep.mubr.f32.mxu0 0.0
        %2246 = vmatmul.mubr.f32.gmra.mrb[0].mxu0 %v2151
        %v2247 = vpop.f32.mrb[0].mxu0
        %v2248 = vadd.f32 0.0, %v2247
        %v2249 = vpop.f32.mrb[0].mxu0
        %2250 = vmatprep.mubr.f32.mxu0 0.0
        %2251 = vmatmul.mubr.f32.gmra.mrb[0].mxu0 %v2154
        %v2252 = vpop.f32.mrb[0].mxu0
        %v2253 = vadd.f32 0.0, %v2252
        %v2254 = vpop.f32.mrb[0].mxu0
        %2255 = vmatprep.mubr.f32.mxu0 0.0
        %2256 = vmatmul.mubr.f32.gmra.mrb[0].mxu0 %v2157
        %v2257 = vpop.f32.mrb[0].mxu0
        %v2258 = vadd.f32 0.0, %v2257
        %v2259 = vpop.f32.mrb[0].mxu0
        %2260 = vmatprep.mubr.f32.mxu0 0.0
        %2261 = vmatmul.mubr.f32.gmra.mrb[0].mxu0 %v2160
        %v2262 = vpop.f32.mrb[0].mxu0
        %v2263 = vadd.f32 0.0, %v2262
        %v2264 = vpop.f32.mrb[0].mxu0
        %2265 = vmatprep.mubr.f32.mxu0 0.0
        %2266 = vmatmul.mubr.f32.gmra.mrb[0].mxu0 %v2163
        %v2267 = vpop.f32.mrb[0].mxu0
        %v2268 = vadd.f32 0.0, %v2267
        %v2269 = vpop.f32.mrb[0].mxu0
        %2270 = vmatprep.mubr.f32.mxu0 0.0
        %2271 = vmatmul.mubr.f32.gmra.mrb[0].mxu0 %v2166
        %v2272 = vpop.f32.mrb[0].mxu0
        %v2273 = vadd.f32 0.0, %v2272
        %v2274 = vpop.f32.mrb[0].mxu0
        %2275 = vdwg.mxu0
        %v2276 = vadd.f32 %v2125, %v2238
        %v2277 = vadd.f32 %v2126, %v2243
        %v2278 = vadd.f32 %v2127, %v2248
        %v2279 = vadd.f32 %v2128, %v2253
        %v2280 = vadd.f32 %v2129, %v2258
        %v2281 = vadd.f32 %v2130, %v2263
        %v2282 = vadd.f32 %v2131, %v2268
        %v2283 = vadd.f32 %v2132, %v2273
        %s2284 = sadd.s32 %s184, 68
        %s2285 = scalar_lea.vmem %s165, %s2284
        %v2286 = vld [vmem:[%s2285] sm:$0xff]
        %v2287 = vld [vmem:[%s2285 + $0x8] sm:$0xff]
        %v2288 = vld [vmem:[%s2285 + $0x10] sm:$0xff]
        %v2289 = vld [vmem:[%s2285 + $0x18] sm:$0xff]
        %v2290 = vld [vmem:[%s2285 + $0x20] sm:$0xff]
        %v2291 = vld [vmem:[%s2285 + $0x28] sm:$0xff]
        %v2292 = vld [vmem:[%s2285 + $0x30] sm:$0xff]
        %v2293 = vld [vmem:[%s2285 + $0x38] sm:$0xff]
        %v2294 = vld [vmem:[%s1 + $0x2a] sm:$0x7]
        %v2296 = vsel %vm206, %v2286, 0
        %v2299 = vsel %vm206, %v2287, 0
        %v2302 = vsel %vm206, %v2288, 0
        %v2305 = vsel %vm206, %v2289, 0
        %v2308 = vsel %vm206, %v2290, 0
        %v2311 = vsel %vm206, %v2291, 0
        %v2314 = vsel %vm206, %v2292, 0
        %v2317 = vsel %vm206, %v2293, 0
        %v2320 = vsel %vm231, %v2294, 0
        %2322 = vmatprep.subr.mxu0 0.0
        %2323 = vmatpush1.msra.mxu0 %v2320
        %2324 = vmatprep.subr.mxu0 0.0
        %2325 = vmatpush1.msra.mxu0 0.0
        %2326 = vmatprep.subr.mxu0 0.0
        %2327 = vmatpush1.msra.mxu0 0.0
        %2328 = vmatprep.subr.mxu0 0.0
        %2329 = vmatpush1.msra.mxu0 0.0
        %2330 = vmatprep.subr.mxu0 0.0
        %2331 = vmatpush1.msra.mxu0 0.0
        %2332 = vmatprep.subr.mxu0 0.0
        %2333 = vmatpush1.msra.mxu0 0.0
        %2334 = vmatprep.subr.mxu0 0.0
        %2335 = vmatpush1.msra.mxu0 0.0
        %2336 = vmatprep.subr.mxu0 0.0
        %2337 = vmatpush1.msra.mxu0 0.0
        %2338 = vmatprep.subr.mxu0 0.0
        %2339 = vmatpush1.msra.mxu0 0.0
        %2340 = vmatprep.subr.mxu0 0.0
        %2341 = vmatpush1.msra.mxu0 0.0
        %2342 = vmatprep.subr.mxu0 0.0
        %2343 = vmatpush1.msra.mxu0 0.0
        %2344 = vmatprep.subr.mxu0 0.0
        %2345 = vmatpush1.msra.mxu0 0.0
        %2346 = vmatprep.subr.mxu0 0.0
        %2347 = vmatpush1.msra.mxu0 0.0
        %2348 = vmatprep.subr.mxu0 0.0
        %2349 = vmatpush1.msra.mxu0 0.0
        %2350 = vmatprep.subr.mxu0 0.0
        %2351 = vmatpush1.msra.mxu0 0.0
        %2352 = vmatprep.subr.mxu0 0.0
        %2353 = vmatpush1.msra.mxu0 0.0
        %2354 = vmatprep.subr.mxu0 0.0
        %2355 = vmatpush1.msra.mxu0 0.0
        %2356 = vmatprep.subr.mxu0 0.0
        %2357 = vmatpush1.msra.mxu0 0.0
        %2358 = vmatprep.subr.mxu0 0.0
        %2359 = vmatpush1.msra.mxu0 0.0
        %2360 = vmatprep.subr.mxu0 0.0
        %2361 = vmatpush1.msra.mxu0 0.0
        %2362 = vmatprep.subr.mxu0 0.0
        %2363 = vmatpush1.msra.mxu0 0.0
        %2364 = vmatprep.subr.mxu0 0.0
        %2365 = vmatpush1.msra.mxu0 0.0
        %2366 = vmatprep.subr.mxu0 0.0
        %2367 = vmatpush1.msra.mxu0 0.0
        %2368 = vmatprep.subr.mxu0 0.0
        %2369 = vmatpush1.msra.mxu0 0.0
        %2370 = vmatprep.subr.mxu0 0.0
        %2371 = vmatpush1.msra.mxu0 0.0
        %2372 = vmatprep.subr.mxu0 0.0
        %2373 = vmatpush1.msra.mxu0 0.0
        %2374 = vmatprep.subr.mxu0 0.0
        %2375 = vmatpush1.msra.mxu0 0.0
        %2376 = vmatprep.subr.mxu0 0.0
        %2377 = vmatpush1.msra.mxu0 0.0
        %2378 = vmatprep.subr.mxu0 0.0
        %2379 = vmatpush1.msra.mxu0 0.0
        %2380 = vmatprep.subr.mxu0 0.0
        %2381 = vmatpush1.msra.mxu0 0.0
        %2382 = vmatprep.subr.mxu0 0.0
        %2383 = vmatpush1.msra.mxu0 0.0
        %2384 = vmatprep.subr.mxu0 0.0
        %2385 = vmatpush1.msra.mxu0 0.0
        %2386 = vmatprep.mubr.f32.mxu0 0.0
        %2387 = vmatmul.mubr.f32.gmra.mrb[0].mxu0 %v2296
        %v2388 = vpop.f32.mrb[0].mxu0
        %v2389 = vadd.f32 0.0, %v2388
        %v2390 = vpop.f32.mrb[0].mxu0
        %2391 = vmatprep.mubr.f32.mxu0 0.0
        %2392 = vmatmul.mubr.f32.gmra.mrb[0].mxu0 %v2299
        %v2393 = vpop.f32.mrb[0].mxu0
        %v2394 = vadd.f32 0.0, %v2393
        %v2395 = vpop.f32.mrb[0].mxu0
        %2396 = vmatprep.mubr.f32.mxu0 0.0
        %2397 = vmatmul.mubr.f32.gmra.mrb[0].mxu0 %v2302
        %v2398 = vpop.f32.mrb[0].mxu0
        %v2399 = vadd.f32 0.0, %v2398
        %v2400 = vpop.f32.mrb[0].mxu0
        %2401 = vmatprep.mubr.f32.mxu0 0.0
        %2402 = vmatmul.mubr.f32.gmra.mrb[0].mxu0 %v2305
        %v2403 = vpop.f32.mrb[0].mxu0
        %v2404 = vadd.f32 0.0, %v2403
        %v2405 = vpop.f32.mrb[0].mxu0
        %2406 = vmatprep.mubr.f32.mxu0 0.0
        %2407 = vmatmul.mubr.f32.gmra.mrb[0].mxu0 %v2308
        %v2408 = vpop.f32.mrb[0].mxu0
        %v2409 = vadd.f32 0.0, %v2408
        %v2410 = vpop.f32.mrb[0].mxu0
        %2411 = vmatprep.mubr.f32.mxu0 0.0
        %2412 = vmatmul.mubr.f32.gmra.mrb[0].mxu0 %v2311
        %v2413 = vpop.f32.mrb[0].mxu0
        %v2414 = vadd.f32 0.0, %v2413
        %v2415 = vpop.f32.mrb[0].mxu0
        %2416 = vmatprep.mubr.f32.mxu0 0.0
        %2417 = vmatmul.mubr.f32.gmra.mrb[0].mxu0 %v2314
        %v2418 = vpop.f32.mrb[0].mxu0
        %v2419 = vadd.f32 0.0, %v2418
        %v2420 = vpop.f32.mrb[0].mxu0
        %2421 = vmatprep.mubr.f32.mxu0 0.0
        %2422 = vmatmul.mubr.f32.gmra.mrb[0].mxu0 %v2317
        %v2423 = vpop.f32.mrb[0].mxu0
        %v2424 = vadd.f32 0.0, %v2423
        %v2425 = vpop.f32.mrb[0].mxu0
        %2426 = vdwg.mxu0
        %v2427 = vadd.f32 %v2276, %v2389
        %v2428 = vadd.f32 %v2277, %v2394
        %v2429 = vadd.f32 %v2278, %v2399
        %v2430 = vadd.f32 %v2279, %v2404
        %v2431 = vadd.f32 %v2280, %v2409
        %v2432 = vadd.f32 %v2281, %v2414
        %v2433 = vadd.f32 %v2282, %v2419
        %v2434 = vadd.f32 %v2283, %v2424
        %s2435 = sadd.s32 %s184, 96
        %s2436 = scalar_lea.vmem %s165, %s2435
        %v2437 = vld [vmem:[%s2436] sm:$0xff]
        %v2438 = vld [vmem:[%s2436 + $0x8] sm:$0xff]
        %v2439 = vld [vmem:[%s2436 + $0x10] sm:$0xff]
        %v2440 = vld [vmem:[%s2436 + $0x18] sm:$0xff]
        %v2441 = vld [vmem:[%s2436 + $0x20] sm:$0xff]
        %v2442 = vld [vmem:[%s2436 + $0x28] sm:$0xff]
        %v2443 = vld [vmem:[%s2436 + $0x30] sm:$0xff]
        %v2444 = vld [vmem:[%s2436 + $0x38] sm:$0xff]
        %v2445 = vld [vmem:[%s1 + $0x2d] sm:$0x7]
        %v2447 = vsel %vm206, %v2437, 0
        %v2450 = vsel %vm206, %v2438, 0
        %v2453 = vsel %vm206, %v2439, 0
        %v2456 = vsel %vm206, %v2440, 0
        %v2459 = vsel %vm206, %v2441, 0
        %v2462 = vsel %vm206, %v2442, 0
        %v2465 = vsel %vm206, %v2443, 0
        %v2468 = vsel %vm206, %v2444, 0
        %v2471 = vsel %vm231, %v2445, 0
        %2473 = vmatprep.subr.mxu0 0.0
        %2474 = vmatpush1.msra.mxu0 %v2471
        %2475 = vmatprep.subr.mxu0 0.0
        %2476 = vmatpush1.msra.mxu0 0.0
        %2477 = vmatprep.subr.mxu0 0.0
        %2478 = vmatpush1.msra.mxu0 0.0
        %2479 = vmatprep.subr.mxu0 0.0
        %2480 = vmatpush1.msra.mxu0 0.0
        %2481 = vmatprep.subr.mxu0 0.0
        %2482 = vmatpush1.msra.mxu0 0.0
        %2483 = vmatprep.subr.mxu0 0.0
        %2484 = vmatpush1.msra.mxu0 0.0
        %2485 = vmatprep.subr.mxu0 0.0
        %2486 = vmatpush1.msra.mxu0 0.0
        %2487 = vmatprep.subr.mxu0 0.0
        %2488 = vmatpush1.msra.mxu0 0.0
        %2489 = vmatprep.subr.mxu0 0.0
        %2490 = vmatpush1.msra.mxu0 0.0
        %2491 = vmatprep.subr.mxu0 0.0
        %2492 = vmatpush1.msra.mxu0 0.0
        %2493 = vmatprep.subr.mxu0 0.0
        %2494 = vmatpush1.msra.mxu0 0.0
        %2495 = vmatprep.subr.mxu0 0.0
        %2496 = vmatpush1.msra.mxu0 0.0
        %2497 = vmatprep.subr.mxu0 0.0
        %2498 = vmatpush1.msra.mxu0 0.0
        %2499 = vmatprep.subr.mxu0 0.0
        %2500 = vmatpush1.msra.mxu0 0.0
        %2501 = vmatprep.subr.mxu0 0.0
        %2502 = vmatpush1.msra.mxu0 0.0
        %2503 = vmatprep.subr.mxu0 0.0
        %2504 = vmatpush1.msra.mxu0 0.0
        %2505 = vmatprep.subr.mxu0 0.0
        %2506 = vmatpush1.msra.mxu0 0.0
        %2507 = vmatprep.subr.mxu0 0.0
        %2508 = vmatpush1.msra.mxu0 0.0
        %2509 = vmatprep.subr.mxu0 0.0
        %2510 = vmatpush1.msra.mxu0 0.0
        %2511 = vmatprep.subr.mxu0 0.0
        %2512 = vmatpush1.msra.mxu0 0.0
        %2513 = vmatprep.subr.mxu0 0.0
        %2514 = vmatpush1.msra.mxu0 0.0
        %2515 = vmatprep.subr.mxu0 0.0
        %2516 = vmatpush1.msra.mxu0 0.0
        %2517 = vmatprep.subr.mxu0 0.0
        %2518 = vmatpush1.msra.mxu0 0.0
        %2519 = vmatprep.subr.mxu0 0.0
        %2520 = vmatpush1.msra.mxu0 0.0
        %2521 = vmatprep.subr.mxu0 0.0
        %2522 = vmatpush1.msra.mxu0 0.0
        %2523 = vmatprep.subr.mxu0 0.0
        %2524 = vmatpush1.msra.mxu0 0.0
        %2525 = vmatprep.subr.mxu0 0.0
        %2526 = vmatpush1.msra.mxu0 0.0
        %2527 = vmatprep.subr.mxu0 0.0
        %2528 = vmatpush1.msra.mxu0 0.0
        %2529 = vmatprep.subr.mxu0 0.0
        %2530 = vmatpush1.msra.mxu0 0.0
        %2531 = vmatprep.subr.mxu0 0.0
        %2532 = vmatpush1.msra.mxu0 0.0
        %2533 = vmatprep.subr.mxu0 0.0
        %2534 = vmatpush1.msra.mxu0 0.0
        %2535 = vmatprep.subr.mxu0 0.0
        %2536 = vmatpush1.msra.mxu0 0.0
        %2537 = vmatprep.mubr.f32.mxu0 0.0
        %2538 = vmatmul.mubr.f32.gmra.mrb[0].mxu0 %v2447
        %v2539 = vpop.f32.mrb[0].mxu0
        %v2540 = vadd.f32 0.0, %v2539
        %v2541 = vpop.f32.mrb[0].mxu0
        %2542 = vmatprep.mubr.f32.mxu0 0.0
        %2543 = vmatmul.mubr.f32.gmra.mrb[0].mxu0 %v2450
        %v2544 = vpop.f32.mrb[0].mxu0
        %v2545 = vadd.f32 0.0, %v2544
        %v2546 = vpop.f32.mrb[0].mxu0
        %2547 = vmatprep.mubr.f32.mxu0 0.0
        %2548 = vmatmul.mubr.f32.gmra.mrb[0].mxu0 %v2453
        %v2549 = vpop.f32.mrb[0].mxu0
        %v2550 = vadd.f32 0.0, %v2549
        %v2551 = vpop.f32.mrb[0].mxu0
        %2552 = vmatprep.mubr.f32.mxu0 0.0
        %2553 = vmatmul.mubr.f32.gmra.mrb[0].mxu0 %v2456
        %v2554 = vpop.f32.mrb[0].mxu0
        %v2555 = vadd.f32 0.0, %v2554
        %v2556 = vpop.f32.mrb[0].mxu0
        %2557 = vmatprep.mubr.f32.mxu0 0.0
        %2558 = vmatmul.mubr.f32.gmra.mrb[0].mxu0 %v2459
        %v2559 = vpop.f32.mrb[0].mxu0
        %v2560 = vadd.f32 0.0, %v2559
        %v2561 = vpop.f32.mrb[0].mxu0
        %2562 = vmatprep.mubr.f32.mxu0 0.0
        %2563 = vmatmul.mubr.f32.gmra.mrb[0].mxu0 %v2462
        %v2564 = vpop.f32.mrb[0].mxu0
        %v2565 = vadd.f32 0.0, %v2564
        %v2566 = vpop.f32.mrb[0].mxu0
        %2567 = vmatprep.mubr.f32.mxu0 0.0
        %2568 = vmatmul.mubr.f32.gmra.mrb[0].mxu0 %v2465
        %v2569 = vpop.f32.mrb[0].mxu0
        %v2570 = vadd.f32 0.0, %v2569
        %v2571 = vpop.f32.mrb[0].mxu0
        %2572 = vmatprep.mubr.f32.mxu0 0.0
        %2573 = vmatmul.mubr.f32.gmra.mrb[0].mxu0 %v2468
        %v2574 = vpop.f32.mrb[0].mxu0
        %v2575 = vadd.f32 0.0, %v2574
        %v2576 = vpop.f32.mrb[0].mxu0
        %2577 = vdwg.mxu0
        %v2578 = vadd.f32 %v2427, %v2540
        %v2579 = vadd.f32 %v2428, %v2545
        %v2580 = vadd.f32 %v2429, %v2550
        %v2581 = vadd.f32 %v2430, %v2555
        %v2582 = vadd.f32 %v2431, %v2560
        %v2583 = vadd.f32 %v2432, %v2565
        %v2584 = vadd.f32 %v2433, %v2570
        %v2585 = vadd.f32 %v2434, %v2575
        %s2586 = sadd.s32 %s184, 97
        %s2587 = scalar_lea.vmem %s165, %s2586
        %v2588 = vld [vmem:[%s2587] sm:$0xff]
        %v2589 = vld [vmem:[%s2587 + $0x8] sm:$0xff]
        %v2590 = vld [vmem:[%s2587 + $0x10] sm:$0xff]
        %v2591 = vld [vmem:[%s2587 + $0x18] sm:$0xff]
        %v2592 = vld [vmem:[%s2587 + $0x20] sm:$0xff]
        %v2593 = vld [vmem:[%s2587 + $0x28] sm:$0xff]
        %v2594 = vld [vmem:[%s2587 + $0x30] sm:$0xff]
        %v2595 = vld [vmem:[%s2587 + $0x38] sm:$0xff]
        %v2596 = vld [vmem:[%s1 + $0x30] sm:$0x7]
        %v2598 = vsel %vm206, %v2588, 0
        %v2601 = vsel %vm206, %v2589, 0
        %v2604 = vsel %vm206, %v2590, 0
        %v2607 = vsel %vm206, %v2591, 0
        %v2610 = vsel %vm206, %v2592, 0
        %v2613 = vsel %vm206, %v2593, 0
        %v2616 = vsel %vm206, %v2594, 0
        %v2619 = vsel %vm206, %v2595, 0
        %v2622 = vsel %vm231, %v2596, 0
        %2624 = vmatprep.subr.mxu0 0.0
        %2625 = vmatpush1.msra.mxu0 %v2622
        %2626 = vmatprep.subr.mxu0 0.0
        %2627 = vmatpush1.msra.mxu0 0.0
        %2628 = vmatprep.subr.mxu0 0.0
        %2629 = vmatpush1.msra.mxu0 0.0
        %2630 = vmatprep.subr.mxu0 0.0
        %2631 = vmatpush1.msra.mxu0 0.0
        %2632 = vmatprep.subr.mxu0 0.0
        %2633 = vmatpush1.msra.mxu0 0.0
        %2634 = vmatprep.subr.mxu0 0.0
        %2635 = vmatpush1.msra.mxu0 0.0
        %2636 = vmatprep.subr.mxu0 0.0
        %2637 = vmatpush1.msra.mxu0 0.0
        %2638 = vmatprep.subr.mxu0 0.0
        %2639 = vmatpush1.msra.mxu0 0.0
        %2640 = vmatprep.subr.mxu0 0.0
        %2641 = vmatpush1.msra.mxu0 0.0
        %2642 = vmatprep.subr.mxu0 0.0
        %2643 = vmatpush1.msra.mxu0 0.0
        %2644 = vmatprep.subr.mxu0 0.0
        %2645 = vmatpush1.msra.mxu0 0.0
        %2646 = vmatprep.subr.mxu0 0.0
        %2647 = vmatpush1.msra.mxu0 0.0
        %2648 = vmatprep.subr.mxu0 0.0
        %2649 = vmatpush1.msra.mxu0 0.0
        %2650 = vmatprep.subr.mxu0 0.0
        %2651 = vmatpush1.msra.mxu0 0.0
        %2652 = vmatprep.subr.mxu0 0.0
        %2653 = vmatpush1.msra.mxu0 0.0
        %2654 = vmatprep.subr.mxu0 0.0
        %2655 = vmatpush1.msra.mxu0 0.0
        %2656 = vmatprep.subr.mxu0 0.0
        %2657 = vmatpush1.msra.mxu0 0.0
        %2658 = vmatprep.subr.mxu0 0.0
        %2659 = vmatpush1.msra.mxu0 0.0
        %2660 = vmatprep.subr.mxu0 0.0
        %2661 = vmatpush1.msra.mxu0 0.0
        %2662 = vmatprep.subr.mxu0 0.0
        %2663 = vmatpush1.msra.mxu0 0.0
        %2664 = vmatprep.subr.mxu0 0.0
        %2665 = vmatpush1.msra.mxu0 0.0
        %2666 = vmatprep.subr.mxu0 0.0
        %2667 = vmatpush1.msra.mxu0 0.0
        %2668 = vmatprep.subr.mxu0 0.0
        %2669 = vmatpush1.msra.mxu0 0.0
        %2670 = vmatprep.subr.mxu0 0.0
        %2671 = vmatpush1.msra.mxu0 0.0
        %2672 = vmatprep.subr.mxu0 0.0
        %2673 = vmatpush1.msra.mxu0 0.0
        %2674 = vmatprep.subr.mxu0 0.0
        %2675 = vmatpush1.msra.mxu0 0.0
        %2676 = vmatprep.subr.mxu0 0.0
        %2677 = vmatpush1.msra.mxu0 0.0
        %2678 = vmatprep.subr.mxu0 0.0
        %2679 = vmatpush1.msra.mxu0 0.0
        %2680 = vmatprep.subr.mxu0 0.0
        %2681 = vmatpush1.msra.mxu0 0.0
        %2682 = vmatprep.subr.mxu0 0.0
        %2683 = vmatpush1.msra.mxu0 0.0
        %2684 = vmatprep.subr.mxu0 0.0
        %2685 = vmatpush1.msra.mxu0 0.0
        %2686 = vmatprep.subr.mxu0 0.0
        %2687 = vmatpush1.msra.mxu0 0.0
        %2688 = vmatprep.mubr.f32.mxu0 0.0
        %2689 = vmatmul.mubr.f32.gmra.mrb[0].mxu0 %v2598
        %v2690 = vpop.f32.mrb[0].mxu0
        %v2691 = vadd.f32 0.0, %v2690
        %v2692 = vpop.f32.mrb[0].mxu0
        %2693 = vmatprep.mubr.f32.mxu0 0.0
        %2694 = vmatmul.mubr.f32.gmra.mrb[0].mxu0 %v2601
        %v2695 = vpop.f32.mrb[0].mxu0
        %v2696 = vadd.f32 0.0, %v2695
        %v2697 = vpop.f32.mrb[0].mxu0
        %2698 = vmatprep.mubr.f32.mxu0 0.0
        %2699 = vmatmul.mubr.f32.gmra.mrb[0].mxu0 %v2604
        %v2700 = vpop.f32.mrb[0].mxu0
        %v2701 = vadd.f32 0.0, %v2700
        %v2702 = vpop.f32.mrb[0].mxu0
        %2703 = vmatprep.mubr.f32.mxu0 0.0
        %2704 = vmatmul.mubr.f32.gmra.mrb[0].mxu0 %v2607
        %v2705 = vpop.f32.mrb[0].mxu0
        %v2706 = vadd.f32 0.0, %v2705
        %v2707 = vpop.f32.mrb[0].mxu0
        %2708 = vmatprep.mubr.f32.mxu0 0.0
        %2709 = vmatmul.mubr.f32.gmra.mrb[0].mxu0 %v2610
        %v2710 = vpop.f32.mrb[0].mxu0
        %v2711 = vadd.f32 0.0, %v2710
        %v2712 = vpop.f32.mrb[0].mxu0
        %2713 = vmatprep.mubr.f32.mxu0 0.0
        %2714 = vmatmul.mubr.f32.gmra.mrb[0].mxu0 %v2613
        %v2715 = vpop.f32.mrb[0].mxu0
        %v2716 = vadd.f32 0.0, %v2715
        %v2717 = vpop.f32.mrb[0].mxu0
        %2718 = vmatprep.mubr.f32.mxu0 0.0
        %2719 = vmatmul.mubr.f32.gmra.mrb[0].mxu0 %v2616
        %v2720 = vpop.f32.mrb[0].mxu0
        %v2721 = vadd.f32 0.0, %v2720
        %v2722 = vpop.f32.mrb[0].mxu0
        %2723 = vmatprep.mubr.f32.mxu0 0.0
        %2724 = vmatmul.mubr.f32.gmra.mrb[0].mxu0 %v2619
        %v2725 = vpop.f32.mrb[0].mxu0
        %v2726 = vadd.f32 0.0, %v2725
        %v2727 = vpop.f32.mrb[0].mxu0
        %2728 = vdwg.mxu0
        %v2729 = vadd.f32 %v2578, %v2691
        %v2730 = vadd.f32 %v2579, %v2696
        %v2731 = vadd.f32 %v2580, %v2701
        %v2732 = vadd.f32 %v2581, %v2706
        %v2733 = vadd.f32 %v2582, %v2711
        %v2734 = vadd.f32 %v2583, %v2716
        %v2735 = vadd.f32 %v2584, %v2721
        %v2736 = vadd.f32 %v2585, %v2726
        %s2737 = sadd.s32 %s184, 98
        %s2738 = scalar_lea.vmem %s165, %s2737
        %v2739 = vld [vmem:[%s2738] sm:$0xff]
        %v2740 = vld [vmem:[%s2738 + $0x8] sm:$0xff]
        %v2741 = vld [vmem:[%s2738 + $0x10] sm:$0xff]
        %v2742 = vld [vmem:[%s2738 + $0x18] sm:$0xff]
        %v2743 = vld [vmem:[%s2738 + $0x20] sm:$0xff]
        %v2744 = vld [vmem:[%s2738 + $0x28] sm:$0xff]
        %v2745 = vld [vmem:[%s2738 + $0x30] sm:$0xff]
        %v2746 = vld [vmem:[%s2738 + $0x38] sm:$0xff]
        %v2747 = vld [vmem:[%s1 + $0x33] sm:$0x7]
        %v2749 = vsel %vm206, %v2739, 0
        %v2752 = vsel %vm206, %v2740, 0
        %v2755 = vsel %vm206, %v2741, 0
        %v2758 = vsel %vm206, %v2742, 0
        %v2761 = vsel %vm206, %v2743, 0
        %v2764 = vsel %vm206, %v2744, 0
        %v2767 = vsel %vm206, %v2745, 0
        %v2770 = vsel %vm206, %v2746, 0
        %v2773 = vsel %vm231, %v2747, 0
        %2775 = vmatprep.subr.mxu0 0.0
        %2776 = vmatpush1.msra.mxu0 %v2773
        %2777 = vmatprep.subr.mxu0 0.0
        %2778 = vmatpush1.msra.mxu0 0.0
        %2779 = vmatprep.subr.mxu0 0.0
        %2780 = vmatpush1.msra.mxu0 0.0
        %2781 = vmatprep.subr.mxu0 0.0
        %2782 = vmatpush1.msra.mxu0 0.0
        %2783 = vmatprep.subr.mxu0 0.0
        %2784 = vmatpush1.msra.mxu0 0.0
        %2785 = vmatprep.subr.mxu0 0.0
        %2786 = vmatpush1.msra.mxu0 0.0
        %2787 = vmatprep.subr.mxu0 0.0
        %2788 = vmatpush1.msra.mxu0 0.0
        %2789 = vmatprep.subr.mxu0 0.0
        %2790 = vmatpush1.msra.mxu0 0.0
        %2791 = vmatprep.subr.mxu0 0.0
        %2792 = vmatpush1.msra.mxu0 0.0
        %2793 = vmatprep.subr.mxu0 0.0
        %2794 = vmatpush1.msra.mxu0 0.0
        %2795 = vmatprep.subr.mxu0 0.0
        %2796 = vmatpush1.msra.mxu0 0.0
        %2797 = vmatprep.subr.mxu0 0.0
        %2798 = vmatpush1.msra.mxu0 0.0
        %2799 = vmatprep.subr.mxu0 0.0
        %2800 = vmatpush1.msra.mxu0 0.0
        %2801 = vmatprep.subr.mxu0 0.0
        %2802 = vmatpush1.msra.mxu0 0.0
        %2803 = vmatprep.subr.mxu0 0.0
        %2804 = vmatpush1.msra.mxu0 0.0
        %2805 = vmatprep.subr.mxu0 0.0
        %2806 = vmatpush1.msra.mxu0 0.0
        %2807 = vmatprep.subr.mxu0 0.0
        %2808 = vmatpush1.msra.mxu0 0.0
        %2809 = vmatprep.subr.mxu0 0.0
        %2810 = vmatpush1.msra.mxu0 0.0
        %2811 = vmatprep.subr.mxu0 0.0
        %2812 = vmatpush1.msra.mxu0 0.0
        %2813 = vmatprep.subr.mxu0 0.0
        %2814 = vmatpush1.msra.mxu0 0.0
        %2815 = vmatprep.subr.mxu0 0.0
        %2816 = vmatpush1.msra.mxu0 0.0
        %2817 = vmatprep.subr.mxu0 0.0
        %2818 = vmatpush1.msra.mxu0 0.0
        %2819 = vmatprep.subr.mxu0 0.0
        %2820 = vmatpush1.msra.mxu0 0.0
        %2821 = vmatprep.subr.mxu0 0.0
        %2822 = vmatpush1.msra.mxu0 0.0
        %2823 = vmatprep.subr.mxu0 0.0
        %2824 = vmatpush1.msra.mxu0 0.0
        %2825 = vmatprep.subr.mxu0 0.0
        %2826 = vmatpush1.msra.mxu0 0.0
        %2827 = vmatprep.subr.mxu0 0.0
        %2828 = vmatpush1.msra.mxu0 0.0
        %2829 = vmatprep.subr.mxu0 0.0
        %2830 = vmatpush1.msra.mxu0 0.0
        %2831 = vmatprep.subr.mxu0 0.0
        %2832 = vmatpush1.msra.mxu0 0.0
        %2833 = vmatprep.subr.mxu0 0.0
        %2834 = vmatpush1.msra.mxu0 0.0
        %2835 = vmatprep.subr.mxu0 0.0
        %2836 = vmatpush1.msra.mxu0 0.0
        %2837 = vmatprep.subr.mxu0 0.0
        %2838 = vmatpush1.msra.mxu0 0.0
        %2839 = vmatprep.mubr.f32.mxu0 0.0
        %2840 = vmatmul.mubr.f32.gmra.mrb[0].mxu0 %v2749
        %v2841 = vpop.f32.mrb[0].mxu0
        %v2842 = vadd.f32 0.0, %v2841
        %v2843 = vpop.f32.mrb[0].mxu0
        %2844 = vmatprep.mubr.f32.mxu0 0.0
        %2845 = vmatmul.mubr.f32.gmra.mrb[0].mxu0 %v2752
        %v2846 = vpop.f32.mrb[0].mxu0
        %v2847 = vadd.f32 0.0, %v2846
        %v2848 = vpop.f32.mrb[0].mxu0
        %2849 = vmatprep.mubr.f32.mxu0 0.0
        %2850 = vmatmul.mubr.f32.gmra.mrb[0].mxu0 %v2755
        %v2851 = vpop.f32.mrb[0].mxu0
        %v2852 = vadd.f32 0.0, %v2851
        %v2853 = vpop.f32.mrb[0].mxu0
        %2854 = vmatprep.mubr.f32.mxu0 0.0
        %2855 = vmatmul.mubr.f32.gmra.mrb[0].mxu0 %v2758
        %v2856 = vpop.f32.mrb[0].mxu0
        %v2857 = vadd.f32 0.0, %v2856
        %v2858 = vpop.f32.mrb[0].mxu0
        %2859 = vmatprep.mubr.f32.mxu0 0.0
        %2860 = vmatmul.mubr.f32.gmra.mrb[0].mxu0 %v2761
        %v2861 = vpop.f32.mrb[0].mxu0
        %v2862 = vadd.f32 0.0, %v2861
        %v2863 = vpop.f32.mrb[0].mxu0
        %2864 = vmatprep.mubr.f32.mxu0 0.0
        %2865 = vmatmul.mubr.f32.gmra.mrb[0].mxu0 %v2764
        %v2866 = vpop.f32.mrb[0].mxu0
        %v2867 = vadd.f32 0.0, %v2866
        %v2868 = vpop.f32.mrb[0].mxu0
        %2869 = vmatprep.mubr.f32.mxu0 0.0
        %2870 = vmatmul.mubr.f32.gmra.mrb[0].mxu0 %v2767
        %v2871 = vpop.f32.mrb[0].mxu0
        %v2872 = vadd.f32 0.0, %v2871
        %v2873 = vpop.f32.mrb[0].mxu0
        %2874 = vmatprep.mubr.f32.mxu0 0.0
        %2875 = vmatmul.mubr.f32.gmra.mrb[0].mxu0 %v2770
        %v2876 = vpop.f32.mrb[0].mxu0
        %v2877 = vadd.f32 0.0, %v2876
        %v2878 = vpop.f32.mrb[0].mxu0
        %2879 = vdwg.mxu0
        %v2880 = vadd.f32 %v2729, %v2842
        %v2881 = vadd.f32 %v2730, %v2847
        %v2882 = vadd.f32 %v2731, %v2852
        %v2883 = vadd.f32 %v2732, %v2857
        %v2884 = vadd.f32 %v2733, %v2862
        %v2885 = vadd.f32 %v2734, %v2867
        %v2886 = vadd.f32 %v2735, %v2872
        %v2887 = vadd.f32 %v2736, %v2877
        %s2888 = sadd.s32 %s184, 99
        %s2889 = scalar_lea.vmem %s165, %s2888
        %v2890 = vld [vmem:[%s2889] sm:$0xff]
        %v2891 = vld [vmem:[%s2889 + $0x8] sm:$0xff]
        %v2892 = vld [vmem:[%s2889 + $0x10] sm:$0xff]
        %v2893 = vld [vmem:[%s2889 + $0x18] sm:$0xff]
        %v2894 = vld [vmem:[%s2889 + $0x20] sm:$0xff]
        %v2895 = vld [vmem:[%s2889 + $0x28] sm:$0xff]
        %v2896 = vld [vmem:[%s2889 + $0x30] sm:$0xff]
        %v2897 = vld [vmem:[%s2889 + $0x38] sm:$0xff]
        %v2898 = vld [vmem:[%s1 + $0x36] sm:$0x7]
        %v2900 = vsel %vm206, %v2890, 0
        %v2903 = vsel %vm206, %v2891, 0
        %v2906 = vsel %vm206, %v2892, 0
        %v2909 = vsel %vm206, %v2893, 0
        %v2912 = vsel %vm206, %v2894, 0
        %v2915 = vsel %vm206, %v2895, 0
        %v2918 = vsel %vm206, %v2896, 0
        %v2921 = vsel %vm206, %v2897, 0
        %v2924 = vsel %vm231, %v2898, 0
        %2926 = vmatprep.subr.mxu0 0.0
        %2927 = vmatpush1.msra.mxu0 %v2924
        %2928 = vmatprep.subr.mxu0 0.0
        %2929 = vmatpush1.msra.mxu0 0.0
        %2930 = vmatprep.subr.mxu0 0.0
        %2931 = vmatpush1.msra.mxu0 0.0
        %2932 = vmatprep.subr.mxu0 0.0
        %2933 = vmatpush1.msra.mxu0 0.0
        %2934 = vmatprep.subr.mxu0 0.0
        %2935 = vmatpush1.msra.mxu0 0.0
        %2936 = vmatprep.subr.mxu0 0.0
        %2937 = vmatpush1.msra.mxu0 0.0
        %2938 = vmatprep.subr.mxu0 0.0
        %2939 = vmatpush1.msra.mxu0 0.0
        %2940 = vmatprep.subr.mxu0 0.0
        %2941 = vmatpush1.msra.mxu0 0.0
        %2942 = vmatprep.subr.mxu0 0.0
        %2943 = vmatpush1.msra.mxu0 0.0
        %2944 = vmatprep.subr.mxu0 0.0
        %2945 = vmatpush1.msra.mxu0 0.0
        %2946 = vmatprep.subr.mxu0 0.0
        %2947 = vmatpush1.msra.mxu0 0.0
        %2948 = vmatprep.subr.mxu0 0.0
        %2949 = vmatpush1.msra.mxu0 0.0
        %2950 = vmatprep.subr.mxu0 0.0
        %2951 = vmatpush1.msra.mxu0 0.0
        %2952 = vmatprep.subr.mxu0 0.0
        %2953 = vmatpush1.msra.mxu0 0.0
        %2954 = vmatprep.subr.mxu0 0.0
        %2955 = vmatpush1.msra.mxu0 0.0
        %2956 = vmatprep.subr.mxu0 0.0
        %2957 = vmatpush1.msra.mxu0 0.0
        %2958 = vmatprep.subr.mxu0 0.0
        %2959 = vmatpush1.msra.mxu0 0.0
        %2960 = vmatprep.subr.mxu0 0.0
        %2961 = vmatpush1.msra.mxu0 0.0
        %2962 = vmatprep.subr.mxu0 0.0
        %2963 = vmatpush1.msra.mxu0 0.0
        %2964 = vmatprep.subr.mxu0 0.0
        %2965 = vmatpush1.msra.mxu0 0.0
        %2966 = vmatprep.subr.mxu0 0.0
        %2967 = vmatpush1.msra.mxu0 0.0
        %2968 = vmatprep.subr.mxu0 0.0
        %2969 = vmatpush1.msra.mxu0 0.0
        %2970 = vmatprep.subr.mxu0 0.0
        %2971 = vmatpush1.msra.mxu0 0.0
        %2972 = vmatprep.subr.mxu0 0.0
        %2973 = vmatpush1.msra.mxu0 0.0
        %2974 = vmatprep.subr.mxu0 0.0
        %2975 = vmatpush1.msra.mxu0 0.0
        %2976 = vmatprep.subr.mxu0 0.0
        %2977 = vmatpush1.msra.mxu0 0.0
        %2978 = vmatprep.subr.mxu0 0.0
        %2979 = vmatpush1.msra.mxu0 0.0
        %2980 = vmatprep.subr.mxu0 0.0
        %2981 = vmatpush1.msra.mxu0 0.0
        %2982 = vmatprep.subr.mxu0 0.0
        %2983 = vmatpush1.msra.mxu0 0.0
        %2984 = vmatprep.subr.mxu0 0.0
        %2985 = vmatpush1.msra.mxu0 0.0
        %2986 = vmatprep.subr.mxu0 0.0
        %2987 = vmatpush1.msra.mxu0 0.0
        %2988 = vmatprep.subr.mxu0 0.0
        %2989 = vmatpush1.msra.mxu0 0.0
        %2990 = vmatprep.mubr.f32.mxu0 0.0
        %2991 = vmatmul.mubr.f32.gmra.mrb[0].mxu0 %v2900
        %v2992 = vpop.f32.mrb[0].mxu0
        %v2993 = vadd.f32 0.0, %v2992
        %v2994 = vpop.f32.mrb[0].mxu0
        %2995 = vmatprep.mubr.f32.mxu0 0.0
        %2996 = vmatmul.mubr.f32.gmra.mrb[0].mxu0 %v2903
        %v2997 = vpop.f32.mrb[0].mxu0
        %v2998 = vadd.f32 0.0, %v2997
        %v2999 = vpop.f32.mrb[0].mxu0
        %3000 = vmatprep.mubr.f32.mxu0 0.0
        %3001 = vmatmul.mubr.f32.gmra.mrb[0].mxu0 %v2906
        %v3002 = vpop.f32.mrb[0].mxu0
        %v3003 = vadd.f32 0.0, %v3002
        %v3004 = vpop.f32.mrb[0].mxu0
        %3005 = vmatprep.mubr.f32.mxu0 0.0
        %3006 = vmatmul.mubr.f32.gmra.mrb[0].mxu0 %v2909
        %v3007 = vpop.f32.mrb[0].mxu0
        %v3008 = vadd.f32 0.0, %v3007
        %v3009 = vpop.f32.mrb[0].mxu0
        %3010 = vmatprep.mubr.f32.mxu0 0.0
        %3011 = vmatmul.mubr.f32.gmra.mrb[0].mxu0 %v2912
        %v3012 = vpop.f32.mrb[0].mxu0
        %v3013 = vadd.f32 0.0, %v3012
        %v3014 = vpop.f32.mrb[0].mxu0
        %3015 = vmatprep.mubr.f32.mxu0 0.0
        %3016 = vmatmul.mubr.f32.gmra.mrb[0].mxu0 %v2915
        %v3017 = vpop.f32.mrb[0].mxu0
        %v3018 = vadd.f32 0.0, %v3017
        %v3019 = vpop.f32.mrb[0].mxu0
        %3020 = vmatprep.mubr.f32.mxu0 0.0
        %3021 = vmatmul.mubr.f32.gmra.mrb[0].mxu0 %v2918
        %v3022 = vpop.f32.mrb[0].mxu0
        %v3023 = vadd.f32 0.0, %v3022
        %v3024 = vpop.f32.mrb[0].mxu0
        %3025 = vmatprep.mubr.f32.mxu0 0.0
        %3026 = vmatmul.mubr.f32.gmra.mrb[0].mxu0 %v2921
        %v3027 = vpop.f32.mrb[0].mxu0
        %v3028 = vadd.f32 0.0, %v3027
        %v3029 = vpop.f32.mrb[0].mxu0
        %3030 = vdwg.mxu0
        %v3031 = vadd.f32 %v2880, %v2993
        %v3032 = vadd.f32 %v2881, %v2998
        %v3033 = vadd.f32 %v2882, %v3003
        %v3034 = vadd.f32 %v2883, %v3008
        %v3035 = vadd.f32 %v2884, %v3013
        %v3036 = vadd.f32 %v2885, %v3018
        %v3037 = vadd.f32 %v2886, %v3023
        %v3038 = vadd.f32 %v2887, %v3028
        %s3039 = sadd.s32 %s184, 100
        %s3040 = scalar_lea.vmem %s165, %s3039
        %v3041 = vld [vmem:[%s3040] sm:$0xff]
        %v3042 = vld [vmem:[%s3040 + $0x8] sm:$0xff]
        %v3043 = vld [vmem:[%s3040 + $0x10] sm:$0xff]
        %v3044 = vld [vmem:[%s3040 + $0x18] sm:$0xff]
        %v3045 = vld [vmem:[%s3040 + $0x20] sm:$0xff]
        %v3046 = vld [vmem:[%s3040 + $0x28] sm:$0xff]
        %v3047 = vld [vmem:[%s3040 + $0x30] sm:$0xff]
        %v3048 = vld [vmem:[%s3040 + $0x38] sm:$0xff]
        %v3049 = vld [vmem:[%s1 + $0x39] sm:$0x7]
        %v3051 = vsel %vm206, %v3041, 0
        %v3054 = vsel %vm206, %v3042, 0
        %v3057 = vsel %vm206, %v3043, 0
        %v3060 = vsel %vm206, %v3044, 0
        %v3063 = vsel %vm206, %v3045, 0
        %v3066 = vsel %vm206, %v3046, 0
        %v3069 = vsel %vm206, %v3047, 0
        %v3072 = vsel %vm206, %v3048, 0
        %v3075 = vsel %vm231, %v3049, 0
        %3077 = vmatprep.subr.mxu0 0.0
        %3078 = vmatpush1.msra.mxu0 %v3075
        %3079 = vmatprep.subr.mxu0 0.0
        %3080 = vmatpush1.msra.mxu0 0.0
        %3081 = vmatprep.subr.mxu0 0.0
        %3082 = vmatpush1.msra.mxu0 0.0
        %3083 = vmatprep.subr.mxu0 0.0
        %3084 = vmatpush1.msra.mxu0 0.0
        %3085 = vmatprep.subr.mxu0 0.0
        %3086 = vmatpush1.msra.mxu0 0.0
        %3087 = vmatprep.subr.mxu0 0.0
        %3088 = vmatpush1.msra.mxu0 0.0
        %3089 = vmatprep.subr.mxu0 0.0
        %3090 = vmatpush1.msra.mxu0 0.0
        %3091 = vmatprep.subr.mxu0 0.0
        %3092 = vmatpush1.msra.mxu0 0.0
        %3093 = vmatprep.subr.mxu0 0.0
        %3094 = vmatpush1.msra.mxu0 0.0
        %3095 = vmatprep.subr.mxu0 0.0
        %3096 = vmatpush1.msra.mxu0 0.0
        %3097 = vmatprep.subr.mxu0 0.0
        %3098 = vmatpush1.msra.mxu0 0.0
        %3099 = vmatprep.subr.mxu0 0.0
        %3100 = vmatpush1.msra.mxu0 0.0
        %3101 = vmatprep.subr.mxu0 0.0
        %3102 = vmatpush1.msra.mxu0 0.0
        %3103 = vmatprep.subr.mxu0 0.0
        %3104 = vmatpush1.msra.mxu0 0.0
        %3105 = vmatprep.subr.mxu0 0.0
        %3106 = vmatpush1.msra.mxu0 0.0
        %3107 = vmatprep.subr.mxu0 0.0
        %3108 = vmatpush1.msra.mxu0 0.0
        %3109 = vmatprep.subr.mxu0 0.0
        %3110 = vmatpush1.msra.mxu0 0.0
        %3111 = vmatprep.subr.mxu0 0.0
        %3112 = vmatpush1.msra.mxu0 0.0
        %3113 = vmatprep.subr.mxu0 0.0
        %3114 = vmatpush1.msra.mxu0 0.0
        %3115 = vmatprep.subr.mxu0 0.0
        %3116 = vmatpush1.msra.mxu0 0.0
        %3117 = vmatprep.subr.mxu0 0.0
        %3118 = vmatpush1.msra.mxu0 0.0
        %3119 = vmatprep.subr.mxu0 0.0
        %3120 = vmatpush1.msra.mxu0 0.0
        %3121 = vmatprep.subr.mxu0 0.0
        %3122 = vmatpush1.msra.mxu0 0.0
        %3123 = vmatprep.subr.mxu0 0.0
        %3124 = vmatpush1.msra.mxu0 0.0
        %3125 = vmatprep.subr.mxu0 0.0
        %3126 = vmatpush1.msra.mxu0 0.0
        %3127 = vmatprep.subr.mxu0 0.0
        %3128 = vmatpush1.msra.mxu0 0.0
        %3129 = vmatprep.subr.mxu0 0.0
        %3130 = vmatpush1.msra.mxu0 0.0
        %3131 = vmatprep.subr.mxu0 0.0
        %3132 = vmatpush1.msra.mxu0 0.0
        %3133 = vmatprep.subr.mxu0 0.0
        %3134 = vmatpush1.msra.mxu0 0.0
        %3135 = vmatprep.subr.mxu0 0.0
        %3136 = vmatpush1.msra.mxu0 0.0
        %3137 = vmatprep.subr.mxu0 0.0
        %3138 = vmatpush1.msra.mxu0 0.0
        %3139 = vmatprep.subr.mxu0 0.0
        %3140 = vmatpush1.msra.mxu0 0.0
        %3141 = vmatprep.mubr.f32.mxu0 0.0
        %3142 = vmatmul.mubr.f32.gmra.mrb[0].mxu0 %v3051
        %v3143 = vpop.f32.mrb[0].mxu0
        %v3144 = vadd.f32 0.0, %v3143
        %v3145 = vpop.f32.mrb[0].mxu0
        %3146 = vmatprep.mubr.f32.mxu0 0.0
        %3147 = vmatmul.mubr.f32.gmra.mrb[0].mxu0 %v3054
        %v3148 = vpop.f32.mrb[0].mxu0
        %v3149 = vadd.f32 0.0, %v3148
        %v3150 = vpop.f32.mrb[0].mxu0
        %3151 = vmatprep.mubr.f32.mxu0 0.0
        %3152 = vmatmul.mubr.f32.gmra.mrb[0].mxu0 %v3057
        %v3153 = vpop.f32.mrb[0].mxu0
        %v3154 = vadd.f32 0.0, %v3153
        %v3155 = vpop.f32.mrb[0].mxu0
        %3156 = vmatprep.mubr.f32.mxu0 0.0
        %3157 = vmatmul.mubr.f32.gmra.mrb[0].mxu0 %v3060
        %v3158 = vpop.f32.mrb[0].mxu0
        %v3159 = vadd.f32 0.0, %v3158
        %v3160 = vpop.f32.mrb[0].mxu0
        %3161 = vmatprep.mubr.f32.mxu0 0.0
        %3162 = vmatmul.mubr.f32.gmra.mrb[0].mxu0 %v3063
        %v3163 = vpop.f32.mrb[0].mxu0
        %v3164 = vadd.f32 0.0, %v3163
        %v3165 = vpop.f32.mrb[0].mxu0
        %3166 = vmatprep.mubr.f32.mxu0 0.0
        %3167 = vmatmul.mubr.f32.gmra.mrb[0].mxu0 %v3066
        %v3168 = vpop.f32.mrb[0].mxu0
        %v3169 = vadd.f32 0.0, %v3168
        %v3170 = vpop.f32.mrb[0].mxu0
        %3171 = vmatprep.mubr.f32.mxu0 0.0
        %3172 = vmatmul.mubr.f32.gmra.mrb[0].mxu0 %v3069
        %v3173 = vpop.f32.mrb[0].mxu0
        %v3174 = vadd.f32 0.0, %v3173
        %v3175 = vpop.f32.mrb[0].mxu0
        %3176 = vmatprep.mubr.f32.mxu0 0.0
        %3177 = vmatmul.mubr.f32.gmra.mrb[0].mxu0 %v3072
        %v3178 = vpop.f32.mrb[0].mxu0
        %v3179 = vadd.f32 0.0, %v3178
        %v3180 = vpop.f32.mrb[0].mxu0
        %3181 = vdwg.mxu0
        %v3182 = vadd.f32 %v3031, %v3144
        %v3183 = vadd.f32 %v3032, %v3149
        %v3184 = vadd.f32 %v3033, %v3154
        %v3185 = vadd.f32 %v3034, %v3159
        %v3186 = vadd.f32 %v3035, %v3164
        %v3187 = vadd.f32 %v3036, %v3169
        %v3188 = vadd.f32 %v3037, %v3174
        %v3189 = vadd.f32 %v3038, %v3179
        %s3190 = sadd.s32 %s184, 128
        %s3191 = scalar_lea.vmem %s165, %s3190
        %v3192 = vld [vmem:[%s3191] sm:$0xff]
        %v3193 = vld [vmem:[%s3191 + $0x8] sm:$0xff]
        %v3194 = vld [vmem:[%s3191 + $0x10] sm:$0xff]
        %v3195 = vld [vmem:[%s3191 + $0x18] sm:$0xff]
        %v3196 = vld [vmem:[%s3191 + $0x20] sm:$0xff]
        %v3197 = vld [vmem:[%s3191 + $0x28] sm:$0xff]
        %v3198 = vld [vmem:[%s3191 + $0x30] sm:$0xff]
        %v3199 = vld [vmem:[%s3191 + $0x38] sm:$0xff]
        %v3200 = vld [vmem:[%s1 + $0x3c] sm:$0x7]
        %v3202 = vsel %vm206, %v3192, 0
        %v3205 = vsel %vm206, %v3193, 0
        %v3208 = vsel %vm206, %v3194, 0
        %v3211 = vsel %vm206, %v3195, 0
        %v3214 = vsel %vm206, %v3196, 0
        %v3217 = vsel %vm206, %v3197, 0
        %v3220 = vsel %vm206, %v3198, 0
        %v3223 = vsel %vm206, %v3199, 0
        %v3226 = vsel %vm231, %v3200, 0
        %3228 = vmatprep.subr.mxu0 0.0
        %3229 = vmatpush1.msra.mxu0 %v3226
        %3230 = vmatprep.subr.mxu0 0.0
        %3231 = vmatpush1.msra.mxu0 0.0
        %3232 = vmatprep.subr.mxu0 0.0
        %3233 = vmatpush1.msra.mxu0 0.0
        %3234 = vmatprep.subr.mxu0 0.0
        %3235 = vmatpush1.msra.mxu0 0.0
        %3236 = vmatprep.subr.mxu0 0.0
        %3237 = vmatpush1.msra.mxu0 0.0
        %3238 = vmatprep.subr.mxu0 0.0
        %3239 = vmatpush1.msra.mxu0 0.0
        %3240 = vmatprep.subr.mxu0 0.0
        %3241 = vmatpush1.msra.mxu0 0.0
        %3242 = vmatprep.subr.mxu0 0.0
        %3243 = vmatpush1.msra.mxu0 0.0
        %3244 = vmatprep.subr.mxu0 0.0
        %3245 = vmatpush1.msra.mxu0 0.0
        %3246 = vmatprep.subr.mxu0 0.0
        %3247 = vmatpush1.msra.mxu0 0.0
        %3248 = vmatprep.subr.mxu0 0.0
        %3249 = vmatpush1.msra.mxu0 0.0
        %3250 = vmatprep.subr.mxu0 0.0
        %3251 = vmatpush1.msra.mxu0 0.0
        %3252 = vmatprep.subr.mxu0 0.0
        %3253 = vmatpush1.msra.mxu0 0.0
        %3254 = vmatprep.subr.mxu0 0.0
        %3255 = vmatpush1.msra.mxu0 0.0
        %3256 = vmatprep.subr.mxu0 0.0
        %3257 = vmatpush1.msra.mxu0 0.0
        %3258 = vmatprep.subr.mxu0 0.0
        %3259 = vmatpush1.msra.mxu0 0.0
        %3260 = vmatprep.subr.mxu0 0.0
        %3261 = vmatpush1.msra.mxu0 0.0
        %3262 = vmatprep.subr.mxu0 0.0
        %3263 = vmatpush1.msra.mxu0 0.0
        %3264 = vmatprep.subr.mxu0 0.0
        %3265 = vmatpush1.msra.mxu0 0.0
        %3266 = vmatprep.subr.mxu0 0.0
        %3267 = vmatpush1.msra.mxu0 0.0
        %3268 = vmatprep.subr.mxu0 0.0
        %3269 = vmatpush1.msra.mxu0 0.0
        %3270 = vmatprep.subr.mxu0 0.0
        %3271 = vmatpush1.msra.mxu0 0.0
        %3272 = vmatprep.subr.mxu0 0.0
        %3273 = vmatpush1.msra.mxu0 0.0
        %3274 = vmatprep.subr.mxu0 0.0
        %3275 = vmatpush1.msra.mxu0 0.0
        %3276 = vmatprep.subr.mxu0 0.0
        %3277 = vmatpush1.msra.mxu0 0.0
        %3278 = vmatprep.subr.mxu0 0.0
        %3279 = vmatpush1.msra.mxu0 0.0
        %3280 = vmatprep.subr.mxu0 0.0
        %3281 = vmatpush1.msra.mxu0 0.0
        %3282 = vmatprep.subr.mxu0 0.0
        %3283 = vmatpush1.msra.mxu0 0.0
        %3284 = vmatprep.subr.mxu0 0.0
        %3285 = vmatpush1.msra.mxu0 0.0
        %3286 = vmatprep.subr.mxu0 0.0
        %3287 = vmatpush1.msra.mxu0 0.0
        %3288 = vmatprep.subr.mxu0 0.0
        %3289 = vmatpush1.msra.mxu0 0.0
        %3290 = vmatprep.subr.mxu0 0.0
        %3291 = vmatpush1.msra.mxu0 0.0
        %3292 = vmatprep.mubr.f32.mxu0 0.0
        %3293 = vmatmul.mubr.f32.gmra.mrb[0].mxu0 %v3202
        %v3294 = vpop.f32.mrb[0].mxu0
        %v3295 = vadd.f32 0.0, %v3294
        %v3296 = vpop.f32.mrb[0].mxu0
        %3297 = vmatprep.mubr.f32.mxu0 0.0
        %3298 = vmatmul.mubr.f32.gmra.mrb[0].mxu0 %v3205
        %v3299 = vpop.f32.mrb[0].mxu0
        %v3300 = vadd.f32 0.0, %v3299
        %v3301 = vpop.f32.mrb[0].mxu0
        %3302 = vmatprep.mubr.f32.mxu0 0.0
        %3303 = vmatmul.mubr.f32.gmra.mrb[0].mxu0 %v3208
        %v3304 = vpop.f32.mrb[0].mxu0
        %v3305 = vadd.f32 0.0, %v3304
        %v3306 = vpop.f32.mrb[0].mxu0
        %3307 = vmatprep.mubr.f32.mxu0 0.0
        %3308 = vmatmul.mubr.f32.gmra.mrb[0].mxu0 %v3211
        %v3309 = vpop.f32.mrb[0].mxu0
        %v3310 = vadd.f32 0.0, %v3309
        %v3311 = vpop.f32.mrb[0].mxu0
        %3312 = vmatprep.mubr.f32.mxu0 0.0
        %3313 = vmatmul.mubr.f32.gmra.mrb[0].mxu0 %v3214
        %v3314 = vpop.f32.mrb[0].mxu0
        %v3315 = vadd.f32 0.0, %v3314
        %v3316 = vpop.f32.mrb[0].mxu0
        %3317 = vmatprep.mubr.f32.mxu0 0.0
        %3318 = vmatmul.mubr.f32.gmra.mrb[0].mxu0 %v3217
        %v3319 = vpop.f32.mrb[0].mxu0
        %v3320 = vadd.f32 0.0, %v3319
        %v3321 = vpop.f32.mrb[0].mxu0
        %3322 = vmatprep.mubr.f32.mxu0 0.0
        %3323 = vmatmul.mubr.f32.gmra.mrb[0].mxu0 %v3220
        %v3324 = vpop.f32.mrb[0].mxu0
        %v3325 = vadd.f32 0.0, %v3324
        %v3326 = vpop.f32.mrb[0].mxu0
        %3327 = vmatprep.mubr.f32.mxu0 0.0
        %3328 = vmatmul.mubr.f32.gmra.mrb[0].mxu0 %v3223
        %v3329 = vpop.f32.mrb[0].mxu0
        %v3330 = vadd.f32 0.0, %v3329
        %v3331 = vpop.f32.mrb[0].mxu0
        %3332 = vdwg.mxu0
        %v3333 = vadd.f32 %v3182, %v3295
        %v3334 = vadd.f32 %v3183, %v3300
        %v3335 = vadd.f32 %v3184, %v3305
        %v3336 = vadd.f32 %v3185, %v3310
        %v3337 = vadd.f32 %v3186, %v3315
        %v3338 = vadd.f32 %v3187, %v3320
        %v3339 = vadd.f32 %v3188, %v3325
        %v3340 = vadd.f32 %v3189, %v3330
        %s3341 = sadd.s32 %s184, 129
        %s3342 = scalar_lea.vmem %s165, %s3341
        %v3343 = vld [vmem:[%s3342] sm:$0xff]
        %v3344 = vld [vmem:[%s3342 + $0x8] sm:$0xff]
        %v3345 = vld [vmem:[%s3342 + $0x10] sm:$0xff]
        %v3346 = vld [vmem:[%s3342 + $0x18] sm:$0xff]
        %v3347 = vld [vmem:[%s3342 + $0x20] sm:$0xff]
        %v3348 = vld [vmem:[%s3342 + $0x28] sm:$0xff]
        %v3349 = vld [vmem:[%s3342 + $0x30] sm:$0xff]
        %v3350 = vld [vmem:[%s3342 + $0x38] sm:$0xff]
        %v3351 = vld [vmem:[%s1 + $0x3f] sm:$0x7]
        %v3353 = vsel %vm206, %v3343, 0
        %v3356 = vsel %vm206, %v3344, 0
        %v3359 = vsel %vm206, %v3345, 0
        %v3362 = vsel %vm206, %v3346, 0
        %v3365 = vsel %vm206, %v3347, 0
        %v3368 = vsel %vm206, %v3348, 0
        %v3371 = vsel %vm206, %v3349, 0
        %v3374 = vsel %vm206, %v3350, 0
        %v3377 = vsel %vm231, %v3351, 0
        %3379 = vmatprep.subr.mxu0 0.0
        %3380 = vmatpush1.msra.mxu0 %v3377
        %3381 = vmatprep.subr.mxu0 0.0
        %3382 = vmatpush1.msra.mxu0 0.0
        %3383 = vmatprep.subr.mxu0 0.0
        %3384 = vmatpush1.msra.mxu0 0.0
        %3385 = vmatprep.subr.mxu0 0.0
        %3386 = vmatpush1.msra.mxu0 0.0
        %3387 = vmatprep.subr.mxu0 0.0
        %3388 = vmatpush1.msra.mxu0 0.0
        %3389 = vmatprep.subr.mxu0 0.0
        %3390 = vmatpush1.msra.mxu0 0.0
        %3391 = vmatprep.subr.mxu0 0.0
        %3392 = vmatpush1.msra.mxu0 0.0
        %3393 = vmatprep.subr.mxu0 0.0
        %3394 = vmatpush1.msra.mxu0 0.0
        %3395 = vmatprep.subr.mxu0 0.0
        %3396 = vmatpush1.msra.mxu0 0.0
        %3397 = vmatprep.subr.mxu0 0.0
        %3398 = vmatpush1.msra.mxu0 0.0
        %3399 = vmatprep.subr.mxu0 0.0
        %3400 = vmatpush1.msra.mxu0 0.0
        %3401 = vmatprep.subr.mxu0 0.0
        %3402 = vmatpush1.msra.mxu0 0.0
        %3403 = vmatprep.subr.mxu0 0.0
        %3404 = vmatpush1.msra.mxu0 0.0
        %3405 = vmatprep.subr.mxu0 0.0
        %3406 = vmatpush1.msra.mxu0 0.0
        %3407 = vmatprep.subr.mxu0 0.0
        %3408 = vmatpush1.msra.mxu0 0.0
        %3409 = vmatprep.subr.mxu0 0.0
        %3410 = vmatpush1.msra.mxu0 0.0
        %3411 = vmatprep.subr.mxu0 0.0
        %3412 = vmatpush1.msra.mxu0 0.0
        %3413 = vmatprep.subr.mxu0 0.0
        %3414 = vmatpush1.msra.mxu0 0.0
        %3415 = vmatprep.subr.mxu0 0.0
        %3416 = vmatpush1.msra.mxu0 0.0
        %3417 = vmatprep.subr.mxu0 0.0
        %3418 = vmatpush1.msra.mxu0 0.0
        %3419 = vmatprep.subr.mxu0 0.0
        %3420 = vmatpush1.msra.mxu0 0.0
        %3421 = vmatprep.subr.mxu0 0.0
        %3422 = vmatpush1.msra.mxu0 0.0
        %3423 = vmatprep.subr.mxu0 0.0
        %3424 = vmatpush1.msra.mxu0 0.0
        %3425 = vmatprep.subr.mxu0 0.0
        %3426 = vmatpush1.msra.mxu0 0.0
        %3427 = vmatprep.subr.mxu0 0.0
        %3428 = vmatpush1.msra.mxu0 0.0
        %3429 = vmatprep.subr.mxu0 0.0
        %3430 = vmatpush1.msra.mxu0 0.0
        %3431 = vmatprep.subr.mxu0 0.0
        %3432 = vmatpush1.msra.mxu0 0.0
        %3433 = vmatprep.subr.mxu0 0.0
        %3434 = vmatpush1.msra.mxu0 0.0
        %3435 = vmatprep.subr.mxu0 0.0
        %3436 = vmatpush1.msra.mxu0 0.0
        %3437 = vmatprep.subr.mxu0 0.0
        %3438 = vmatpush1.msra.mxu0 0.0
        %3439 = vmatprep.subr.mxu0 0.0
        %3440 = vmatpush1.msra.mxu0 0.0
        %3441 = vmatprep.subr.mxu0 0.0
        %3442 = vmatpush1.msra.mxu0 0.0
        %3443 = vmatprep.mubr.f32.mxu0 0.0
        %3444 = vmatmul.mubr.f32.gmra.mrb[0].mxu0 %v3353
        %v3445 = vpop.f32.mrb[0].mxu0
        %v3446 = vadd.f32 0.0, %v3445
        %v3447 = vpop.f32.mrb[0].mxu0
        %3448 = vmatprep.mubr.f32.mxu0 0.0
        %3449 = vmatmul.mubr.f32.gmra.mrb[0].mxu0 %v3356
        %v3450 = vpop.f32.mrb[0].mxu0
        %v3451 = vadd.f32 0.0, %v3450
        %v3452 = vpop.f32.mrb[0].mxu0
        %3453 = vmatprep.mubr.f32.mxu0 0.0
        %3454 = vmatmul.mubr.f32.gmra.mrb[0].mxu0 %v3359
        %v3455 = vpop.f32.mrb[0].mxu0
        %v3456 = vadd.f32 0.0, %v3455
        %v3457 = vpop.f32.mrb[0].mxu0
        %3458 = vmatprep.mubr.f32.mxu0 0.0
        %3459 = vmatmul.mubr.f32.gmra.mrb[0].mxu0 %v3362
        %v3460 = vpop.f32.mrb[0].mxu0
        %v3461 = vadd.f32 0.0, %v3460
        %v3462 = vpop.f32.mrb[0].mxu0
        %3463 = vmatprep.mubr.f32.mxu0 0.0
        %3464 = vmatmul.mubr.f32.gmra.mrb[0].mxu0 %v3365
        %v3465 = vpop.f32.mrb[0].mxu0
        %v3466 = vadd.f32 0.0, %v3465
        %v3467 = vpop.f32.mrb[0].mxu0
        %3468 = vmatprep.mubr.f32.mxu0 0.0
        %3469 = vmatmul.mubr.f32.gmra.mrb[0].mxu0 %v3368
        %v3470 = vpop.f32.mrb[0].mxu0
        %v3471 = vadd.f32 0.0, %v3470
        %v3472 = vpop.f32.mrb[0].mxu0
        %3473 = vmatprep.mubr.f32.mxu0 0.0
        %3474 = vmatmul.mubr.f32.gmra.mrb[0].mxu0 %v3371
        %v3475 = vpop.f32.mrb[0].mxu0
        %v3476 = vadd.f32 0.0, %v3475
        %v3477 = vpop.f32.mrb[0].mxu0
        %3478 = vmatprep.mubr.f32.mxu0 0.0
        %3479 = vmatmul.mubr.f32.gmra.mrb[0].mxu0 %v3374
        %v3480 = vpop.f32.mrb[0].mxu0
        %v3481 = vadd.f32 0.0, %v3480
        %v3482 = vpop.f32.mrb[0].mxu0
        %3483 = vdwg.mxu0
        %v3484 = vadd.f32 %v3333, %v3446
        %v3485 = vadd.f32 %v3334, %v3451
        %v3486 = vadd.f32 %v3335, %v3456
        %v3487 = vadd.f32 %v3336, %v3461
        %v3488 = vadd.f32 %v3337, %v3466
        %v3489 = vadd.f32 %v3338, %v3471
        %v3490 = vadd.f32 %v3339, %v3476
        %v3491 = vadd.f32 %v3340, %v3481
        %s3492 = sadd.s32 %s184, 130
        %s3493 = scalar_lea.vmem %s165, %s3492
        %v3494 = vld [vmem:[%s3493] sm:$0xff]
        %v3495 = vld [vmem:[%s3493 + $0x8] sm:$0xff]
        %v3496 = vld [vmem:[%s3493 + $0x10] sm:$0xff]
        %v3497 = vld [vmem:[%s3493 + $0x18] sm:$0xff]
        %v3498 = vld [vmem:[%s3493 + $0x20] sm:$0xff]
        %v3499 = vld [vmem:[%s3493 + $0x28] sm:$0xff]
        %v3500 = vld [vmem:[%s3493 + $0x30] sm:$0xff]
        %v3501 = vld [vmem:[%s3493 + $0x38] sm:$0xff]
        %v3502 = vld [vmem:[%s1 + $0x42] sm:$0x7]
        %v3504 = vsel %vm206, %v3494, 0
        %v3507 = vsel %vm206, %v3495, 0
        %v3510 = vsel %vm206, %v3496, 0
        %v3513 = vsel %vm206, %v3497, 0
        %v3516 = vsel %vm206, %v3498, 0
        %v3519 = vsel %vm206, %v3499, 0
        %v3522 = vsel %vm206, %v3500, 0
        %v3525 = vsel %vm206, %v3501, 0
        %v3528 = vsel %vm231, %v3502, 0
        %3530 = vmatprep.subr.mxu0 0.0
        %3531 = vmatpush1.msra.mxu0 %v3528
        %3532 = vmatprep.subr.mxu0 0.0
        %3533 = vmatpush1.msra.mxu0 0.0
        %3534 = vmatprep.subr.mxu0 0.0
        %3535 = vmatpush1.msra.mxu0 0.0
        %3536 = vmatprep.subr.mxu0 0.0
        %3537 = vmatpush1.msra.mxu0 0.0
        %3538 = vmatprep.subr.mxu0 0.0
        %3539 = vmatpush1.msra.mxu0 0.0
        %3540 = vmatprep.subr.mxu0 0.0
        %3541 = vmatpush1.msra.mxu0 0.0
        %3542 = vmatprep.subr.mxu0 0.0
        %3543 = vmatpush1.msra.mxu0 0.0
        %3544 = vmatprep.subr.mxu0 0.0
        %3545 = vmatpush1.msra.mxu0 0.0
        %3546 = vmatprep.subr.mxu0 0.0
        %3547 = vmatpush1.msra.mxu0 0.0
        %3548 = vmatprep.subr.mxu0 0.0
        %3549 = vmatpush1.msra.mxu0 0.0
        %3550 = vmatprep.subr.mxu0 0.0
        %3551 = vmatpush1.msra.mxu0 0.0
        %3552 = vmatprep.subr.mxu0 0.0
        %3553 = vmatpush1.msra.mxu0 0.0
        %3554 = vmatprep.subr.mxu0 0.0
        %3555 = vmatpush1.msra.mxu0 0.0
        %3556 = vmatprep.subr.mxu0 0.0
        %3557 = vmatpush1.msra.mxu0 0.0
        %3558 = vmatprep.subr.mxu0 0.0
        %3559 = vmatpush1.msra.mxu0 0.0
        %3560 = vmatprep.subr.mxu0 0.0
        %3561 = vmatpush1.msra.mxu0 0.0
        %3562 = vmatprep.subr.mxu0 0.0
        %3563 = vmatpush1.msra.mxu0 0.0
        %3564 = vmatprep.subr.mxu0 0.0
        %3565 = vmatpush1.msra.mxu0 0.0
        %3566 = vmatprep.subr.mxu0 0.0
        %3567 = vmatpush1.msra.mxu0 0.0
        %3568 = vmatprep.subr.mxu0 0.0
        %3569 = vmatpush1.msra.mxu0 0.0
        %3570 = vmatprep.subr.mxu0 0.0
        %3571 = vmatpush1.msra.mxu0 0.0
        %3572 = vmatprep.subr.mxu0 0.0
        %3573 = vmatpush1.msra.mxu0 0.0
        %3574 = vmatprep.subr.mxu0 0.0
        %3575 = vmatpush1.msra.mxu0 0.0
        %3576 = vmatprep.subr.mxu0 0.0
        %3577 = vmatpush1.msra.mxu0 0.0
        %3578 = vmatprep.subr.mxu0 0.0
        %3579 = vmatpush1.msra.mxu0 0.0
        %3580 = vmatprep.subr.mxu0 0.0
        %3581 = vmatpush1.msra.mxu0 0.0
        %3582 = vmatprep.subr.mxu0 0.0
        %3583 = vmatpush1.msra.mxu0 0.0
        %3584 = vmatprep.subr.mxu0 0.0
        %3585 = vmatpush1.msra.mxu0 0.0
        %3586 = vmatprep.subr.mxu0 0.0
        %3587 = vmatpush1.msra.mxu0 0.0
        %3588 = vmatprep.subr.mxu0 0.0
        %3589 = vmatpush1.msra.mxu0 0.0
        %3590 = vmatprep.subr.mxu0 0.0
        %3591 = vmatpush1.msra.mxu0 0.0
        %3592 = vmatprep.subr.mxu0 0.0
        %3593 = vmatpush1.msra.mxu0 0.0
        %3594 = vmatprep.mubr.f32.mxu0 0.0
        %3595 = vmatmul.mubr.f32.gmra.mrb[0].mxu0 %v3504
        %v3596 = vpop.f32.mrb[0].mxu0
        %v3597 = vadd.f32 0.0, %v3596
        %v3598 = vpop.f32.mrb[0].mxu0
        %3599 = vmatprep.mubr.f32.mxu0 0.0
        %3600 = vmatmul.mubr.f32.gmra.mrb[0].mxu0 %v3507
        %v3601 = vpop.f32.mrb[0].mxu0
        %v3602 = vadd.f32 0.0, %v3601
        %v3603 = vpop.f32.mrb[0].mxu0
        %3604 = vmatprep.mubr.f32.mxu0 0.0
        %3605 = vmatmul.mubr.f32.gmra.mrb[0].mxu0 %v3510
        %v3606 = vpop.f32.mrb[0].mxu0
        %v3607 = vadd.f32 0.0, %v3606
        %v3608 = vpop.f32.mrb[0].mxu0
        %3609 = vmatprep.mubr.f32.mxu0 0.0
        %3610 = vmatmul.mubr.f32.gmra.mrb[0].mxu0 %v3513
        %v3611 = vpop.f32.mrb[0].mxu0
        %v3612 = vadd.f32 0.0, %v3611
        %v3613 = vpop.f32.mrb[0].mxu0
        %3614 = vmatprep.mubr.f32.mxu0 0.0
        %3615 = vmatmul.mubr.f32.gmra.mrb[0].mxu0 %v3516
        %v3616 = vpop.f32.mrb[0].mxu0
        %v3617 = vadd.f32 0.0, %v3616
        %v3618 = vpop.f32.mrb[0].mxu0
        %3619 = vmatprep.mubr.f32.mxu0 0.0
        %3620 = vmatmul.mubr.f32.gmra.mrb[0].mxu0 %v3519
        %v3621 = vpop.f32.mrb[0].mxu0
        %v3622 = vadd.f32 0.0, %v3621
        %v3623 = vpop.f32.mrb[0].mxu0
        %3624 = vmatprep.mubr.f32.mxu0 0.0
        %3625 = vmatmul.mubr.f32.gmra.mrb[0].mxu0 %v3522
        %v3626 = vpop.f32.mrb[0].mxu0
        %v3627 = vadd.f32 0.0, %v3626
        %v3628 = vpop.f32.mrb[0].mxu0
        %3629 = vmatprep.mubr.f32.mxu0 0.0
        %3630 = vmatmul.mubr.f32.gmra.mrb[0].mxu0 %v3525
        %v3631 = vpop.f32.mrb[0].mxu0
        %v3632 = vadd.f32 0.0, %v3631
        %v3633 = vpop.f32.mrb[0].mxu0
        %3634 = vdwg.mxu0
        %v3635 = vadd.f32 %v3484, %v3597
        %v3636 = vadd.f32 %v3485, %v3602
        %v3637 = vadd.f32 %v3486, %v3607
        %v3638 = vadd.f32 %v3487, %v3612
        %v3639 = vadd.f32 %v3488, %v3617
        %v3640 = vadd.f32 %v3489, %v3622
        %v3641 = vadd.f32 %v3490, %v3627
        %v3642 = vadd.f32 %v3491, %v3632
        %s3643 = sadd.s32 %s184, 131
        %s3644 = scalar_lea.vmem %s165, %s3643
        %v3645 = vld [vmem:[%s3644] sm:$0xff]
        %v3646 = vld [vmem:[%s3644 + $0x8] sm:$0xff]
        %v3647 = vld [vmem:[%s3644 + $0x10] sm:$0xff]
        %v3648 = vld [vmem:[%s3644 + $0x18] sm:$0xff]
        %v3649 = vld [vmem:[%s3644 + $0x20] sm:$0xff]
        %v3650 = vld [vmem:[%s3644 + $0x28] sm:$0xff]
        %v3651 = vld [vmem:[%s3644 + $0x30] sm:$0xff]
        %v3652 = vld [vmem:[%s3644 + $0x38] sm:$0xff]
        %v3653 = vld [vmem:[%s1 + $0x45] sm:$0x7]
        %v3655 = vsel %vm206, %v3645, 0
        %v3658 = vsel %vm206, %v3646, 0
        %v3661 = vsel %vm206, %v3647, 0
        %v3664 = vsel %vm206, %v3648, 0
        %v3667 = vsel %vm206, %v3649, 0
        %v3670 = vsel %vm206, %v3650, 0
        %v3673 = vsel %vm206, %v3651, 0
        %v3676 = vsel %vm206, %v3652, 0
        %v3679 = vsel %vm231, %v3653, 0
        %3681 = vmatprep.subr.mxu0 0.0
        %3682 = vmatpush1.msra.mxu0 %v3679
        %3683 = vmatprep.subr.mxu0 0.0
        %3684 = vmatpush1.msra.mxu0 0.0
        %3685 = vmatprep.subr.mxu0 0.0
        %3686 = vmatpush1.msra.mxu0 0.0
        %3687 = vmatprep.subr.mxu0 0.0
        %3688 = vmatpush1.msra.mxu0 0.0
        %3689 = vmatprep.subr.mxu0 0.0
        %3690 = vmatpush1.msra.mxu0 0.0
        %3691 = vmatprep.subr.mxu0 0.0
        %3692 = vmatpush1.msra.mxu0 0.0
        %3693 = vmatprep.subr.mxu0 0.0
        %3694 = vmatpush1.msra.mxu0 0.0
        %3695 = vmatprep.subr.mxu0 0.0
        %3696 = vmatpush1.msra.mxu0 0.0
        %3697 = vmatprep.subr.mxu0 0.0
        %3698 = vmatpush1.msra.mxu0 0.0
        %3699 = vmatprep.subr.mxu0 0.0
        %3700 = vmatpush1.msra.mxu0 0.0
        %3701 = vmatprep.subr.mxu0 0.0
        %3702 = vmatpush1.msra.mxu0 0.0
        %3703 = vmatprep.subr.mxu0 0.0
        %3704 = vmatpush1.msra.mxu0 0.0
        %3705 = vmatprep.subr.mxu0 0.0
        %3706 = vmatpush1.msra.mxu0 0.0
        %3707 = vmatprep.subr.mxu0 0.0
        %3708 = vmatpush1.msra.mxu0 0.0
        %3709 = vmatprep.subr.mxu0 0.0
        %3710 = vmatpush1.msra.mxu0 0.0
        %3711 = vmatprep.subr.mxu0 0.0
        %3712 = vmatpush1.msra.mxu0 0.0
        %3713 = vmatprep.subr.mxu0 0.0
        %3714 = vmatpush1.msra.mxu0 0.0
        %3715 = vmatprep.subr.mxu0 0.0
        %3716 = vmatpush1.msra.mxu0 0.0
        %3717 = vmatprep.subr.mxu0 0.0
        %3718 = vmatpush1.msra.mxu0 0.0
        %3719 = vmatprep.subr.mxu0 0.0
        %3720 = vmatpush1.msra.mxu0 0.0
        %3721 = vmatprep.subr.mxu0 0.0
        %3722 = vmatpush1.msra.mxu0 0.0
        %3723 = vmatprep.subr.mxu0 0.0
        %3724 = vmatpush1.msra.mxu0 0.0
        %3725 = vmatprep.subr.mxu0 0.0
        %3726 = vmatpush1.msra.mxu0 0.0
        %3727 = vmatprep.subr.mxu0 0.0
        %3728 = vmatpush1.msra.mxu0 0.0
        %3729 = vmatprep.subr.mxu0 0.0
        %3730 = vmatpush1.msra.mxu0 0.0
        %3731 = vmatprep.subr.mxu0 0.0
        %3732 = vmatpush1.msra.mxu0 0.0
        %3733 = vmatprep.subr.mxu0 0.0
        %3734 = vmatpush1.msra.mxu0 0.0
        %3735 = vmatprep.subr.mxu0 0.0
        %3736 = vmatpush1.msra.mxu0 0.0
        %3737 = vmatprep.subr.mxu0 0.0
        %3738 = vmatpush1.msra.mxu0 0.0
        %3739 = vmatprep.subr.mxu0 0.0
        %3740 = vmatpush1.msra.mxu0 0.0
        %3741 = vmatprep.subr.mxu0 0.0
        %3742 = vmatpush1.msra.mxu0 0.0
        %3743 = vmatprep.subr.mxu0 0.0
        %3744 = vmatpush1.msra.mxu0 0.0
        %3745 = vmatprep.mubr.f32.mxu0 0.0
        %3746 = vmatmul.mubr.f32.gmra.mrb[0].mxu0 %v3655
        %v3747 = vpop.f32.mrb[0].mxu0
        %v3748 = vadd.f32 0.0, %v3747
        %v3749 = vpop.f32.mrb[0].mxu0
        %3750 = vmatprep.mubr.f32.mxu0 0.0
        %3751 = vmatmul.mubr.f32.gmra.mrb[0].mxu0 %v3658
        %v3752 = vpop.f32.mrb[0].mxu0
        %v3753 = vadd.f32 0.0, %v3752
        %v3754 = vpop.f32.mrb[0].mxu0
        %3755 = vmatprep.mubr.f32.mxu0 0.0
        %3756 = vmatmul.mubr.f32.gmra.mrb[0].mxu0 %v3661
        %v3757 = vpop.f32.mrb[0].mxu0
        %v3758 = vadd.f32 0.0, %v3757
        %v3759 = vpop.f32.mrb[0].mxu0
        %3760 = vmatprep.mubr.f32.mxu0 0.0
        %3761 = vmatmul.mubr.f32.gmra.mrb[0].mxu0 %v3664
        %v3762 = vpop.f32.mrb[0].mxu0
        %v3763 = vadd.f32 0.0, %v3762
        %v3764 = vpop.f32.mrb[0].mxu0
        %3765 = vmatprep.mubr.f32.mxu0 0.0
        %3766 = vmatmul.mubr.f32.gmra.mrb[0].mxu0 %v3667
        %v3767 = vpop.f32.mrb[0].mxu0
        %v3768 = vadd.f32 0.0, %v3767
        %v3769 = vpop.f32.mrb[0].mxu0
        %3770 = vmatprep.mubr.f32.mxu0 0.0
        %3771 = vmatmul.mubr.f32.gmra.mrb[0].mxu0 %v3670
        %v3772 = vpop.f32.mrb[0].mxu0
        %v3773 = vadd.f32 0.0, %v3772
        %v3774 = vpop.f32.mrb[0].mxu0
        %3775 = vmatprep.mubr.f32.mxu0 0.0
        %3776 = vmatmul.mubr.f32.gmra.mrb[0].mxu0 %v3673
        %v3777 = vpop.f32.mrb[0].mxu0
        %v3778 = vadd.f32 0.0, %v3777
        %v3779 = vpop.f32.mrb[0].mxu0
        %3780 = vmatprep.mubr.f32.mxu0 0.0
        %3781 = vmatmul.mubr.f32.gmra.mrb[0].mxu0 %v3676
        %v3782 = vpop.f32.mrb[0].mxu0
        %v3783 = vadd.f32 0.0, %v3782
        %v3784 = vpop.f32.mrb[0].mxu0
        %3785 = vdwg.mxu0
        %v3786 = vadd.f32 %v3635, %v3748
        %v3787 = vadd.f32 %v3636, %v3753
        %v3788 = vadd.f32 %v3637, %v3758
        %v3789 = vadd.f32 %v3638, %v3763
        %v3790 = vadd.f32 %v3639, %v3768
        %v3791 = vadd.f32 %v3640, %v3773
        %v3792 = vadd.f32 %v3641, %v3778
        %v3793 = vadd.f32 %v3642, %v3783
        %s3794 = sadd.s32 %s184, 132
        %s3795 = scalar_lea.vmem %s165, %s3794
        %v3796 = vld [vmem:[%s3795] sm:$0xff]
        %v3797 = vld [vmem:[%s3795 + $0x8] sm:$0xff]
        %v3798 = vld [vmem:[%s3795 + $0x10] sm:$0xff]
        %v3799 = vld [vmem:[%s3795 + $0x18] sm:$0xff]
        %v3800 = vld [vmem:[%s3795 + $0x20] sm:$0xff]
        %v3801 = vld [vmem:[%s3795 + $0x28] sm:$0xff]
        %v3802 = vld [vmem:[%s3795 + $0x30] sm:$0xff]
        %v3803 = vld [vmem:[%s3795 + $0x38] sm:$0xff]
        %v3804 = vld [vmem:[%s1 + $0x48] sm:$0x7]
        %v3806 = vsel %vm206, %v3796, 0
        %v3809 = vsel %vm206, %v3797, 0
        %v3812 = vsel %vm206, %v3798, 0
        %v3815 = vsel %vm206, %v3799, 0
        %v3818 = vsel %vm206, %v3800, 0
        %v3821 = vsel %vm206, %v3801, 0
        %v3824 = vsel %vm206, %v3802, 0
        %v3827 = vsel %vm206, %v3803, 0
        %v3830 = vsel %vm231, %v3804, 0
        %3832 = vmatprep.subr.mxu0 0.0
        %3833 = vmatpush1.msra.mxu0 %v3830
        %3834 = vmatprep.subr.mxu0 0.0
        %3835 = vmatpush1.msra.mxu0 0.0
        %3836 = vmatprep.subr.mxu0 0.0
        %3837 = vmatpush1.msra.mxu0 0.0
        %3838 = vmatprep.subr.mxu0 0.0
        %3839 = vmatpush1.msra.mxu0 0.0
        %3840 = vmatprep.subr.mxu0 0.0
        %3841 = vmatpush1.msra.mxu0 0.0
        %3842 = vmatprep.subr.mxu0 0.0
        %3843 = vmatpush1.msra.mxu0 0.0
        %3844 = vmatprep.subr.mxu0 0.0
        %3845 = vmatpush1.msra.mxu0 0.0
        %3846 = vmatprep.subr.mxu0 0.0
        %3847 = vmatpush1.msra.mxu0 0.0
        %3848 = vmatprep.subr.mxu0 0.0
        %3849 = vmatpush1.msra.mxu0 0.0
        %3850 = vmatprep.subr.mxu0 0.0
        %3851 = vmatpush1.msra.mxu0 0.0
        %3852 = vmatprep.subr.mxu0 0.0
        %3853 = vmatpush1.msra.mxu0 0.0
        %3854 = vmatprep.subr.mxu0 0.0
        %3855 = vmatpush1.msra.mxu0 0.0
        %3856 = vmatprep.subr.mxu0 0.0
        %3857 = vmatpush1.msra.mxu0 0.0
        %3858 = vmatprep.subr.mxu0 0.0
        %3859 = vmatpush1.msra.mxu0 0.0
        %3860 = vmatprep.subr.mxu0 0.0
        %3861 = vmatpush1.msra.mxu0 0.0
        %3862 = vmatprep.subr.mxu0 0.0
        %3863 = vmatpush1.msra.mxu0 0.0
        %3864 = vmatprep.subr.mxu0 0.0
        %3865 = vmatpush1.msra.mxu0 0.0
        %3866 = vmatprep.subr.mxu0 0.0
        %3867 = vmatpush1.msra.mxu0 0.0
        %3868 = vmatprep.subr.mxu0 0.0
        %3869 = vmatpush1.msra.mxu0 0.0
        %3870 = vmatprep.subr.mxu0 0.0
        %3871 = vmatpush1.msra.mxu0 0.0
        %3872 = vmatprep.subr.mxu0 0.0
        %3873 = vmatpush1.msra.mxu0 0.0
        %3874 = vmatprep.subr.mxu0 0.0
        %3875 = vmatpush1.msra.mxu0 0.0
        %3876 = vmatprep.subr.mxu0 0.0
        %3877 = vmatpush1.msra.mxu0 0.0
        %3878 = vmatprep.subr.mxu0 0.0
        %3879 = vmatpush1.msra.mxu0 0.0
        %3880 = vmatprep.subr.mxu0 0.0
        %3881 = vmatpush1.msra.mxu0 0.0
        %3882 = vmatprep.subr.mxu0 0.0
        %3883 = vmatpush1.msra.mxu0 0.0
        %3884 = vmatprep.subr.mxu0 0.0
        %3885 = vmatpush1.msra.mxu0 0.0
        %3886 = vmatprep.subr.mxu0 0.0
        %3887 = vmatpush1.msra.mxu0 0.0
        %3888 = vmatprep.subr.mxu0 0.0
        %3889 = vmatpush1.msra.mxu0 0.0
        %3890 = vmatprep.subr.mxu0 0.0
        %3891 = vmatpush1.msra.mxu0 0.0
        %3892 = vmatprep.subr.mxu0 0.0
        %3893 = vmatpush1.msra.mxu0 0.0
        %3894 = vmatprep.subr.mxu0 0.0
        %3895 = vmatpush1.msra.mxu0 0.0
        %3896 = vmatprep.mubr.f32.mxu0 0.0
        %3897 = vmatmul.mubr.f32.gmra.mrb[0].mxu0 %v3806
        %v3898 = vpop.f32.mrb[0].mxu0
        %v3899 = vadd.f32 0.0, %v3898
        %v3900 = vpop.f32.mrb[0].mxu0
        %3901 = vmatprep.mubr.f32.mxu0 0.0
        %3902 = vmatmul.mubr.f32.gmra.mrb[0].mxu0 %v3809
        %v3903 = vpop.f32.mrb[0].mxu0
        %v3904 = vadd.f32 0.0, %v3903
        %v3905 = vpop.f32.mrb[0].mxu0
        %3906 = vmatprep.mubr.f32.mxu0 0.0
        %3907 = vmatmul.mubr.f32.gmra.mrb[0].mxu0 %v3812
        %v3908 = vpop.f32.mrb[0].mxu0
        %v3909 = vadd.f32 0.0, %v3908
        %v3910 = vpop.f32.mrb[0].mxu0
        %3911 = vmatprep.mubr.f32.mxu0 0.0
        %3912 = vmatmul.mubr.f32.gmra.mrb[0].mxu0 %v3815
        %v3913 = vpop.f32.mrb[0].mxu0
        %v3914 = vadd.f32 0.0, %v3913
        %v3915 = vpop.f32.mrb[0].mxu0
        %3916 = vmatprep.mubr.f32.mxu0 0.0
        %3917 = vmatmul.mubr.f32.gmra.mrb[0].mxu0 %v3818
        %v3918 = vpop.f32.mrb[0].mxu0
        %v3919 = vadd.f32 0.0, %v3918
        %v3920 = vpop.f32.mrb[0].mxu0
        %3921 = vmatprep.mubr.f32.mxu0 0.0
        %3922 = vmatmul.mubr.f32.gmra.mrb[0].mxu0 %v3821
        %v3923 = vpop.f32.mrb[0].mxu0
        %v3924 = vadd.f32 0.0, %v3923
        %v3925 = vpop.f32.mrb[0].mxu0
        %3926 = vmatprep.mubr.f32.mxu0 0.0
        %3927 = vmatmul.mubr.f32.gmra.mrb[0].mxu0 %v3824
        %v3928 = vpop.f32.mrb[0].mxu0
        %v3929 = vadd.f32 0.0, %v3928
        %v3930 = vpop.f32.mrb[0].mxu0
        %3931 = vmatprep.mubr.f32.mxu0 0.0
        %3932 = vmatmul.mubr.f32.gmra.mrb[0].mxu0 %v3827
        %v3933 = vpop.f32.mrb[0].mxu0
        %v3934 = vadd.f32 0.0, %v3933
        %v3935 = vpop.f32.mrb[0].mxu0
        %3936 = vdwg.mxu0
        %v3937 = vadd.f32 %v3786, %v3899
        %v3938 = vadd.f32 %v3787, %v3904
        %v3939 = vadd.f32 %v3788, %v3909
        %v3940 = vadd.f32 %v3789, %v3914
        %v3941 = vadd.f32 %v3790, %v3919
        %v3942 = vadd.f32 %v3791, %v3924
        %v3943 = vadd.f32 %v3792, %v3929
        %v3944 = vadd.f32 %v3793, %v3934
        %3945 = vst [vmem:[#allocation2] sm:$0xff] %v3937
        %3946 = vst [vmem:[#allocation2 + $0x8] sm:$0xff] %v3938
        %3947 = vst [vmem:[#allocation2 + $0x10] sm:$0xff] %v3939
        %3948 = vst [vmem:[#allocation2 + $0x18] sm:$0xff] %v3940
        %3949 = vst [vmem:[#allocation2 + $0x20] sm:$0xff] %v3941
        %3950 = vst [vmem:[#allocation2 + $0x28] sm:$0xff] %v3942
        %3951 = vst [vmem:[#allocation2 + $0x30] sm:$0xff] %v3943
        %3952 = vst [vmem:[#allocation2 + $0x38] sm:$0xff] %v3944
        %v3953 = vld [vmem:[#allocation2] ss:$2 sm:$0xff]
        %s3954 = scalar_lea.vmem [#allocation2], 16
        %v3955 = vld [vmem:[%s3954] ss:$2 sm:$0x3f]
        %s3956 = scalar_lea.vmem [#allocation2], 1
        %v3957 = vld [vmem:[%s3956] ss:$2 sm:$0xff]
        %s3958 = scalar_lea.vmem [#allocation2], 17
        %v3959 = vld [vmem:[%s3958] ss:$2 sm:$0x3f]
        %s3960 = scalar_lea.vmem [#allocation2], 32
        %v3961 = vld [vmem:[%s3960] ss:$2 sm:$0xff]
        %s3962 = scalar_lea.vmem [#allocation2], 48
        %v3963 = vld [vmem:[%s3962] ss:$2 sm:$0x3f]
        %s3964 = scalar_lea.vmem [#allocation2], 33
        %v3965 = vld [vmem:[%s3964] ss:$2 sm:$0xff]
        %s3966 = scalar_lea.vmem [#allocation2], 49
        %v3967 = vld [vmem:[%s3966] ss:$2 sm:$0x3f]
        %v3968 = vmax.f32 %v3953, %v3957
        %v3969 = vmax.f32 %v3955, %v3959
        %v3970 = vmax.f32 %v3961, %v3965
        %v3971 = vmax.f32 %v3963, %v3967
        %v3972 = vmax.f32 %v3968, %v3970
        %v3973 = vmax.f32 %v3969, %v3971
        %v3974 = vadd.f32 %v3972, %v176
        %v3975 = vadd.f32 %v3973, %v176
        %v3976 = vmax.f32 %v3974, 0.0
        %v3977 = vmax.f32 %v3975, 0.0
        %s3978 = smul.u32 %s179, 14
        %s3979 = scalar_lea.vmem %s170, %s3978
        %3980 = vst [vmem:[%s3979] sm:$0xff] %v3976
        %3981 = vst [vmem:[%s3979 + $0x8] sm:$0x3f] %v3977
      $region37: #{lenet_forward.3} parent=31 // loop_footer
        %s183 = sadd.s32 1, %s179
      $region38: #{lenet_forward.3} parent=31 // loop_footer_branch
        %178 = sbr.rel target = $region34
      $region39: #{lenet_forward.3} parent=31 // loop_exit
        _
      %3982 = vst [vmem:[%s170 + $0xc4] sm:$0xf] 0.0
      %p3983 = scmp.lt.s32.totalorder %s14, 1
      %s3984 = scalar_select %p3983, %s14, 1
      %s3985 = smul.addr %s3984, 25
      %s3986 = smul.addr %s3985, 8
      %s3987 = scalar_lea.vmem %s3, %s3986
      // Predicated region
      $region40: #{lenet_forward.3} parent=31 // pred_check
        %p3988 = pneg %p100
      $region41: #{lenet_forward.3} parent=31 // pred_check_branch
        %3990 = sbr.rel (%p3988) target = $region43
      $region42: #{lenet_forward.3} parent=31 // pred_region
        _
      $region43: #{lenet_forward.3} parent=31 // pred_fallthru
        _
    $region32: #{lenet_forward.3} parent=5 // pred_fallthru
      _
    %p3991 = scmp.le.s32.totalorder 2, %s9
    // Predicated region
    $region44: #{lenet_forward.3} parent=5 // pred_check
      %p3992 = pneg %p3991
    $region45: #{lenet_forward.3} parent=5 // pred_check_branch
      %3994 = sbr.rel (%p3992) target = $region47
    $region46: #{lenet_forward.3} parent=5 // pred_region
      %s3995 = ssub.s32 %s9, 2
      // Predicated region
      $region48: #{lenet_forward.3} parent=46 // pred_check
        %p3996 = pneg %p106
      $region49: #{lenet_forward.3} parent=46 // pred_check_branch
        %3998 = sbr.rel (%p3996) target = $region51
      $region50: #{lenet_forward.3} parent=46 // pred_region
        %p3999 = scmp.lt.s32.totalorder %s15, 1
        %s4000 = scalar_select %p3999, %s15, 1
        %s4001 = smul.addr %s4000, 25
        %s4002 = smul.addr %s4001, 8
        %s4003 = scalar_lea.vmem %s3, %s4002
      $region51: #{lenet_forward.3} parent=46 // pred_fallthru
        _
    $region47: #{lenet_forward.3} parent=5 // pred_fallthru
      _
  $region6: #{lenet_forward.3} parent=0 // loop_footer
    %s13 = sadd.s32 1, %s9
  $region7: #{lenet_forward.3} parent=0 // loop_footer_branch
    %8 = sbr.rel target = $region3
  $region8: #{lenet_forward.3} parent=0 // loop_exit
    _

</llo_original>
